<compile_context>
chip_gen: v6e
topology: v6e:2x2x1
jax: 0.10.0
libtpu: 0.0.40
codegen_flags: <defaults>
</compile_context>

<pallas_src>
import functools

import jax
import jax.numpy as jnp
from jax.experimental import pallas as pl
from jax.experimental.pallas import tpu as pltpu

EPS = 1e-5            # nn.InstanceNorm2d default eps
PADL = 8              # left zero-padding of the W axis -> interior starts sublane-aligned
MATMUL_DTYPE = jnp.bfloat16   # MXU input dtype; accumulation stays f32

# Weight stacks smaller than this stay fully VMEM-resident (loaded once for the whole
# grid); larger stacks fall back to per-block streaming.
WEIGHT_RESIDENT_MAX_BYTES = 24 * 1024 * 1024


# -------------------------- Pallas kernel -----------------------------------

def _instance_norm(y, inv_hw):
    # Single-pass stats over the spatial axes of an (H, W, C) tile, all in f32.
    s = jnp.sum(y, axis=(0, 1), keepdims=True)
    ss = jnp.sum(y * y, axis=(0, 1), keepdims=True)
    mean = s * inv_hw
    var = jnp.maximum(ss * inv_hw - mean * mean, 0.0)
    return (y - mean) * jax.lax.rsqrt(var + EPS)


def _resblocks_kernel(x_ref, w1_ref, b1_ref, w2_ref, b2_ref, o_ref, xpad_s,
                      *, H, W, C, Wp, resident_weights):
    # x_ref : (H, W, C)            input sample (consumed at block 0)
    # w*_ref: (nb|1, 3, 3C, C)     packed conv weights (bf16), kh-major, kw folded into K
    # b*_ref: (nb|1, 1, C)         conv bias (f32)
    # o_ref : (H, W, C)            output sample (written on the last block)
    # xpad_s: (H+2, Wp, C) f32     zero-padded activation, resident across blocks
    blk = pl.program_id(1)
    widx = blk if resident_weights else 0
    HWp = H * Wp
    inv_hw = jnp.float32(1.0 / (H * W))

    @pl.when(blk == 0)
    def _init():
        xpad_s[...] = jnp.zeros_like(xpad_s)
        xpad_s[1:H + 1, PADL:PADL + W, :] = x_ref[...].astype(jnp.float32)

    def conv3x3(w_ref):
        # 3 matmuls (one per kh) with K = 3*C.  The kw shifts are XLU sublane rolls
        # on the flattened row slab (no unaligned slices -> no relayout copies);
        # roll wraparound only touches padding columns, which are sliced away below.
        acc = None
        for dh in range(3):
            slab = xpad_s[dh:dh + H, :, :].reshape(HWp, C)      # free: Wp % 8 == 0
            lhs = jnp.concatenate(
                [pltpu.roll(slab, 1, 0),           # column w-1
                 slab,                             # column w
                 pltpu.roll(slab, HWp - 1, 0)],    # column w+1
                axis=1).astype(MATMUL_DTYPE)       # (HWp, 3C) bf16
            part = jnp.dot(lhs, w_ref[widx, dh],
                           preferred_element_type=jnp.float32)   # (HWp, C) f32
            acc = part if acc is None else acc + part
        return acc.reshape(H, Wp, C)

    # Residual = activation at block entry (aligned interior read).
    residual = xpad_s[1:H + 1, PADL:PADL + W, :]

    # conv1 -> InstanceNorm -> ReLU
    y1 = conv3x3(w1_ref)[:, PADL:PADL + W, :] + b1_ref[widx]
    y1 = jnp.maximum(_instance_norm(y1, inv_hw), 0.0)
    xpad_s[1:H + 1, PADL:PADL + W, :] = y1

    # conv2 -> InstanceNorm -> + residual
    y2 = conv3x3(w2_ref)[:, PADL:PADL + W, :] + b2_ref[widx]
    y2 = _instance_norm(y2, inv_hw) + residual
    xpad_s[1:H + 1, PADL:PADL + W, :] = y2

    @pl.when(blk == pl.num_programs(1) - 1)
    def _finalize():
        o_ref[...] = y2.astype(o_ref.dtype)


# -------------------------- wrapper ------------------------------------------

def _vmem_limit_bytes():
    # Per-generation budget: ~7/8 of physical VMEM (~112 MiB v5e/v6e, ~56 MiB v7x),
    # leaving headroom for compiler scratch and double-buffered blocks.
    try:
        cap = int(pltpu.get_tpu_info().vmem_capacity_bytes)
    except Exception:
        cap = 64 * 1024 * 1024
    if cap <= 0:
        cap = 64 * 1024 * 1024
    return cap - cap // 8


def res_blocks_pallas(x_nchw, params):
    """ResBlocks forward.  x_nchw: (N, C, H, W) f32; params: list of (w1, b1, w2, b2)."""
    x = jnp.transpose(x_nchw, (0, 2, 3, 1)).astype(jnp.float32)   # NCHW -> NHWC
    N, H, W, C = x.shape
    nb = len(params)

    # Padded width: interior at [PADL, PADL+W), one extra zero column on the right for
    # the w+1 tap, rounded up so each row is a whole number of sublane tiles.
    Wp = PADL + ((W + 1 + 7) // 8) * 8

    def wpack(w_oihw):
        # (C_out, C_in, 3, 3) -> (3 [kh], 3*C_in [kw-major K], C_out), bf16 in HBM
        # (no in-kernel weight casts, half the weight DMA bytes).
        w = jnp.transpose(w_oihw, (2, 3, 1, 0))        # (kh, kw, C_in, C_out)
        return w.reshape(3, 3 * C, C).astype(MATMUL_DTYPE)

    w1_all = jnp.stack([wpack(p[0]) for p in params])                       # (nb, 3, 3C, C)
    b1_all = jnp.stack([p[1].reshape(1, C) for p in params]).astype(jnp.float32)
    w2_all = jnp.stack([wpack(p[2]) for p in params])
    b2_all = jnp.stack([p[3].reshape(1, C) for p in params]).astype(jnp.float32)

    weight_bytes = (w1_all.size + w2_all.size) * w1_all.dtype.itemsize
    resident = weight_bytes <= WEIGHT_RESIDENT_MAX_BYTES

    if resident:
        # Whole weight stack DMA'd once (constant index_map), indexed by blk in-kernel.
        w_spec = pl.BlockSpec((nb, 3, 3 * C, C), lambda n, b: (0, 0, 0, 0))
        b_spec = pl.BlockSpec((nb, 1, C), lambda n, b: (0, 0, 0))
    else:
        # Stack too large for VMEM residency (huge nb*C, e.g. on v7x): stream per block.
        w_spec = pl.BlockSpec((1, 3, 3 * C, C), lambda n, b: (b, 0, 0, 0))
        b_spec = pl.BlockSpec((1, 1, C), lambda n, b: (b, 0, 0))

    # Advisory cost estimate (matmuls run over the padded width Wp).
    flops = N * nb * 2 * (2 * (H * Wp) * (3 * C) * C)
    transcendentals = N * nb * 2 * C
    stream_factor = 1 if resident else N
    bytes_accessed = (2 * x.size * 4
                      + stream_factor * weight_bytes
                      + stream_factor * (b1_all.size + b2_all.size) * 4)

    out = pl.pallas_call(
        functools.partial(_resblocks_kernel, H=H, W=W, C=C, Wp=Wp,
                          resident_weights=resident),
        out_shape=jax.ShapeDtypeStruct((N, H, W, C), x.dtype),
        grid=(N, nb),
        in_specs=[
            pl.BlockSpec((pl.Squeezed(), H, W, C), lambda n, b: (n, 0, 0, 0)),
            w_spec, b_spec, w_spec, b_spec,
        ],
        out_specs=pl.BlockSpec((pl.Squeezed(), H, W, C), lambda n, b: (n, 0, 0, 0)),
        scratch_shapes=[pltpu.VMEM((H + 2, Wp, C), jnp.float32)],
        compiler_params=pltpu.CompilerParams(
            dimension_semantics=("parallel", "arbitrary"),
            vmem_limit_bytes=_vmem_limit_bytes(),
        ),
        cost_estimate=pl.CostEstimate(
            flops=flops, transcendentals=transcendentals,
            bytes_accessed=bytes_accessed),
    )(x, w1_all, b1_all, w2_all, b2_all)

    return jnp.transpose(out, (0, 3, 1, 2))                       # NHWC -> NCHW


# -------------------------- pure-JAX reference -------------------------------

def _ref_forward(x_nchw, params):
    # Conv operands are cast to the same MXU dtype as the kernel (f32 accumulation),
    # so kernel-vs-reference differences reduce to summation order and the kernel's
    # single-pass InstanceNorm statistics (both tiny in f32).
    def inorm(x):
        mean = x.mean(axis=(2, 3), keepdims=True)
        var = ((x - mean) ** 2).mean(axis=(2, 3), keepdims=True)
        return (x - mean) * jax.lax.rsqrt(var + EPS)

    out = x_nchw.astype(jnp.float32)
    for (w1, b1, w2, b2) in params:
        res = out
        h = jax.lax.conv_general_dilated(
            out.astype(MATMUL_DTYPE), w1.astype(MATMUL_DTYPE), (1, 1), ((1, 1), (1, 1)),
            dimension_numbers=('NCHW', 'OIHW', 'NCHW'),
            preferred_element_type=jnp.float32) + b1[None, :, None, None]
        h = jnp.maximum(inorm(h), 0.0)
        h = jax.lax.conv_general_dilated(
            h.astype(MATMUL_DTYPE), w2.astype(MATMUL_DTYPE), (1, 1), ((1, 1), (1, 1)),
            dimension_numbers=('NCHW', 'OIHW', 'NCHW'),
            preferred_element_type=jnp.float32) + b2[None, :, None, None]
        out = inorm(h) + res
    return out


# -------------------------- main ---------------------------------------------

if __name__ == "__main__":
    num_blocks = 2
    N, C, H, W = 2, 4, 16, 16            # keep N >= 2 for v7x's 2 TensorCores

    key = jax.random.PRNGKey(0)
    key, kx = jax.random.split(key)
    x = jax.random.normal(kx, (N, C, H, W), dtype=jnp.float32)

    # Deterministic parameter init (Conv2d weights (C_out, C_in, 3, 3) + bias).
    params = []
    for _ in range(num_blocks):
        key, k1, k2, k3, k4 = jax.random.split(key, 5)
        w1 = 0.1 * jax.random.normal(k1, (C, C, 3, 3), dtype=jnp.float32)
        b1 = 0.1 * jax.random.normal(k2, (C,), dtype=jnp.float32)
        w2 = 0.1 * jax.random.normal(k3, (C, C, 3, 3), dtype=jnp.float32)
        b2 = 0.1 * jax.random.normal(k4, (C,), dtype=jnp.float32)
        params.append((w1, b1, w2, b2))

    out = jax.jit(lambda xx: res_blocks_pallas(xx, params))(x)
    out = jax.block_until_ready(out)

    ref = jax.block_until_ready(_ref_forward(x, params))
    assert out.shape == (N, C, H, W)
    err = float(jnp.max(jnp.abs(out - ref)))
    # bf16 MXU inputs (f32 accumulation) -> loosened tolerance vs the f32 path.
    assert jnp.allclose(out, ref, rtol=1e-2, atol=1e-2), err

    print("KERNEL_OK")
</pallas_src>

<mosaic_0001>
module attributes {stable_mosaic.version = 11 : i64} {
  func.func @_resblocks_kernel(%arg0: i32, %arg1: i32, %arg2: memref<1x16x16x4xf32, #tpu.memory_space<vmem>>, %arg3: memref<2x3x12x4xbf16, #tpu.memory_space<vmem>>, %arg4: memref<2x1x4xf32, #tpu.memory_space<vmem>>, %arg5: memref<2x3x12x4xbf16, #tpu.memory_space<vmem>>, %arg6: memref<2x1x4xf32, #tpu.memory_space<vmem>>, %arg7: memref<1x16x16x4xf32, #tpu.memory_space<vmem>>, %arg8: memref<18x32x4xf32, #tpu.memory_space<vmem>>) attributes {dimension_semantics = [#tpu.dimension_semantics<parallel>, #tpu.dimension_semantics<arbitrary>], iteration_bounds = array<i64: 2, 2>, scalar_prefetch = 0 : i64, scratch_operands = 1 : i64, tpu.core_type = #tpu.core_type<tc>, window_params = [{transform_indices = @transform_0, window_bounds = array<i64: 1, 16, 16, 4>}, {pipeline_mode = #tpu.pipeline_mode<synchronous>, transform_indices = @transform_1, window_bounds = array<i64: 2, 3, 12, 4>}, {pipeline_mode = #tpu.pipeline_mode<synchronous>, transform_indices = @transform_2, window_bounds = array<i64: 2, 1, 4>}, {pipeline_mode = #tpu.pipeline_mode<synchronous>, transform_indices = @transform_3, window_bounds = array<i64: 2, 3, 12, 4>}, {pipeline_mode = #tpu.pipeline_mode<synchronous>, transform_indices = @transform_4, window_bounds = array<i64: 2, 1, 4>}, {transform_indices = @transform_5, window_bounds = array<i64: 1, 16, 16, 4>}]} {
    %c0_i32 = arith.constant 0 : i32
    %0 = arith.cmpi eq, %arg1, %c0_i32 : i32
    %1 = arith.extui %0 : i1 to i32
    %c0_i32_0 = arith.constant 0 : i32
    %2 = arith.cmpi ne, %1, %c0_i32_0 : i32
    scf.if %2 {
      %cst_76 = arith.constant 0.000000e+00 : f32
      %132 = vector.broadcast %cst_76 : f32 to vector<18x32x4xf32>
      %c0_77 = arith.constant 0 : index
      %c0_78 = arith.constant 0 : index
      %c0_79 = arith.constant 0 : index
      %133 = vector.load %arg8[%c0_77, %c0_78, %c0_79] : memref<18x32x4xf32, #tpu.memory_space<vmem>>, vector<18x32x4xf32>
      tpu.vector_store %arg8[%c0_77, %c0_78, %c0_79], %132 {strides = array<i32>} : memref<18x32x4xf32, #tpu.memory_space<vmem>>, vector<18x32x4xf32>,
      %c0_80 = arith.constant 0 : index
      %c0_81 = arith.constant 0 : index
      %c0_82 = arith.constant 0 : index
      %c0_83 = arith.constant 0 : index
      %134 = vector.load %arg2[%c0_80, %c0_81, %c0_82, %c0_83] : memref<1x16x16x4xf32, #tpu.memory_space<vmem>>, vector<1x16x16x4xf32>
      %135 = vector.shape_cast %134 : vector<1x16x16x4xf32> to vector<16x16x4xf32>
      %c1_84 = arith.constant 1 : index
      %c8_85 = arith.constant 8 : index
      %c0_86 = arith.constant 0 : index
      %136 = vector.load %arg8[%c1_84, %c8_85, %c0_86] : memref<18x32x4xf32, #tpu.memory_space<vmem>>, vector<16x16x4xf32>
      tpu.vector_store %arg8[%c1_84, %c8_85, %c0_86], %135 {strides = array<i32>} : memref<18x32x4xf32, #tpu.memory_space<vmem>>, vector<16x16x4xf32>,
    } else {
    }
    %c1 = arith.constant 1 : index
    %c8 = arith.constant 8 : index
    %c0 = arith.constant 0 : index
    %3 = vector.load %arg8[%c1, %c8, %c0] : memref<18x32x4xf32, #tpu.memory_space<vmem>>, vector<16x16x4xf32>
    %c0_1 = arith.constant 0 : index
    %c0_2 = arith.constant 0 : index
    %c0_3 = arith.constant 0 : index
    %4 = vector.load %arg8[%c0_1, %c0_2, %c0_3] : memref<18x32x4xf32, #tpu.memory_space<vmem>>, vector<16x32x4xf32>
    %5 = vector.shape_cast %4 : vector<16x32x4xf32> to vector<512x4xf32>
    %c1_i32 = arith.constant 1 : i32
    %6 = tpu.dynamic_rotate %5 by %c1_i32 dim 0 : vector<512x4xf32>, i32 -> vector<512x4xf32>
    %c511_i32 = arith.constant 511 : i32
    %7 = tpu.dynamic_rotate %5 by %c511_i32 dim 0 : vector<512x4xf32>, i32 -> vector<512x4xf32>
    %8 = tpu.concatenate %6, %5, %7 in 1 : vector<512x4xf32>, vector<512x4xf32>, vector<512x4xf32> -> vector<512x12xf32>
    %9 = arith.truncf %8 : vector<512x12xf32> to vector<512x12xbf16>
    %10 = arith.index_cast %arg1 : i32 to index
    %c0_4 = arith.constant 0 : index
    %c0_5 = arith.constant 0 : index
    %c0_6 = arith.constant 0 : index
    %11 = vector.load %arg3[%10, %c0_4, %c0_5, %c0_6] : memref<2x3x12x4xbf16, #tpu.memory_space<vmem>>, vector<1x1x12x4xbf16>
    %12 = vector.shape_cast %11 : vector<1x1x12x4xbf16> to vector<12x4xbf16>
    %cst = arith.constant dense<0.000000e+00> : vector<512x4xf32>
    %13 = tpu.matmul %9, %12, %cst {dimension_numbers = #tpu.dot_dimension_numbers<[1], [0], [0], [1], [0, 0, 1, 1], [], []>} : vector<512x12xbf16>, vector<12x4xbf16>, vector<512x4xf32> -> vector<512x4xf32>
    %c1_7 = arith.constant 1 : index
    %c0_8 = arith.constant 0 : index
    %c0_9 = arith.constant 0 : index
    %14 = vector.load %arg8[%c1_7, %c0_8, %c0_9] : memref<18x32x4xf32, #tpu.memory_space<vmem>>, vector<16x32x4xf32>
    %15 = vector.shape_cast %14 : vector<16x32x4xf32> to vector<512x4xf32>
    %c1_i32_10 = arith.constant 1 : i32
    %16 = tpu.dynamic_rotate %15 by %c1_i32_10 dim 0 : vector<512x4xf32>, i32 -> vector<512x4xf32>
    %c511_i32_11 = arith.constant 511 : i32
    %17 = tpu.dynamic_rotate %15 by %c511_i32_11 dim 0 : vector<512x4xf32>, i32 -> vector<512x4xf32>
    %18 = tpu.concatenate %16, %15, %17 in 1 : vector<512x4xf32>, vector<512x4xf32>, vector<512x4xf32> -> vector<512x12xf32>
    %19 = arith.truncf %18 : vector<512x12xf32> to vector<512x12xbf16>
    %20 = arith.index_cast %arg1 : i32 to index
    %c1_12 = arith.constant 1 : index
    %c0_13 = arith.constant 0 : index
    %c0_14 = arith.constant 0 : index
    %21 = vector.load %arg3[%20, %c1_12, %c0_13, %c0_14] : memref<2x3x12x4xbf16, #tpu.memory_space<vmem>>, vector<1x1x12x4xbf16>
    %22 = vector.shape_cast %21 : vector<1x1x12x4xbf16> to vector<12x4xbf16>
    %cst_15 = arith.constant dense<0.000000e+00> : vector<512x4xf32>
    %23 = tpu.matmul %19, %22, %cst_15 {dimension_numbers = #tpu.dot_dimension_numbers<[1], [0], [0], [1], [0, 0, 1, 1], [], []>} : vector<512x12xbf16>, vector<12x4xbf16>, vector<512x4xf32> -> vector<512x4xf32>
    %24 = arith.addf %13, %23 : vector<512x4xf32>
    %c2 = arith.constant 2 : index
    %c0_16 = arith.constant 0 : index
    %c0_17 = arith.constant 0 : index
    %25 = vector.load %arg8[%c2, %c0_16, %c0_17] : memref<18x32x4xf32, #tpu.memory_space<vmem>>, vector<16x32x4xf32>
    %26 = vector.shape_cast %25 : vector<16x32x4xf32> to vector<512x4xf32>
    %c1_i32_18 = arith.constant 1 : i32
    %27 = tpu.dynamic_rotate %26 by %c1_i32_18 dim 0 : vector<512x4xf32>, i32 -> vector<512x4xf32>
    %c511_i32_19 = arith.constant 511 : i32
    %28 = tpu.dynamic_rotate %26 by %c511_i32_19 dim 0 : vector<512x4xf32>, i32 -> vector<512x4xf32>
    %29 = tpu.concatenate %27, %26, %28 in 1 : vector<512x4xf32>, vector<512x4xf32>, vector<512x4xf32> -> vector<512x12xf32>
    %30 = arith.truncf %29 : vector<512x12xf32> to vector<512x12xbf16>
    %31 = arith.index_cast %arg1 : i32 to index
    %c2_20 = arith.constant 2 : index
    %c0_21 = arith.constant 0 : index
    %c0_22 = arith.constant 0 : index
    %32 = vector.load %arg3[%31, %c2_20, %c0_21, %c0_22] : memref<2x3x12x4xbf16, #tpu.memory_space<vmem>>, vector<1x1x12x4xbf16>
    %33 = vector.shape_cast %32 : vector<1x1x12x4xbf16> to vector<12x4xbf16>
    %cst_23 = arith.constant dense<0.000000e+00> : vector<512x4xf32>
    %34 = tpu.matmul %30, %33, %cst_23 {dimension_numbers = #tpu.dot_dimension_numbers<[1], [0], [0], [1], [0, 0, 1, 1], [], []>} : vector<512x12xbf16>, vector<12x4xbf16>, vector<512x4xf32> -> vector<512x4xf32>
    %35 = arith.addf %24, %34 : vector<512x4xf32>
    %36 = vector.shape_cast %35 : vector<512x4xf32> to vector<16x32x4xf32>
    %37 = vector.extract_strided_slice %36 {offsets = [0, 8, 0], sizes = [16, 16, 4], strides = [1, 1, 1]} : vector<16x32x4xf32> to vector<16x16x4xf32>
    %38 = arith.index_cast %arg1 : i32 to index
    %c0_24 = arith.constant 0 : index
    %c0_25 = arith.constant 0 : index
    %39 = vector.load %arg4[%38, %c0_24, %c0_25] : memref<2x1x4xf32, #tpu.memory_space<vmem>>, vector<1x1x4xf32>
    %40 = vector.shape_cast %39 : vector<1x1x4xf32> to vector<1x4xf32>
    %41 = vector.shape_cast %40 : vector<1x4xf32> to vector<1x1x4xf32>
    %42 = vector.broadcast %41 : vector<1x1x4xf32> to vector<16x16x4xf32>
    %43 = arith.addf %37, %42 : vector<16x16x4xf32>
    %cst_26 = arith.constant dense<0.000000e+00> : vector<4xf32>
    %44 = vector.multi_reduction <add>, %43, %cst_26 [0, 1] : vector<16x16x4xf32> to vector<4xf32>
    %45 = vector.shape_cast %44 : vector<4xf32> to vector<1x1x4xf32>
    %46 = arith.mulf %43, %43 : vector<16x16x4xf32>
    %cst_27 = arith.constant dense<0.000000e+00> : vector<4xf32>
    %47 = vector.multi_reduction <add>, %46, %cst_27 [0, 1] : vector<16x16x4xf32> to vector<4xf32>
    %48 = vector.shape_cast %47 : vector<4xf32> to vector<1x1x4xf32>
    %cst_28 = arith.constant 3.906250e-03 : f32
    %49 = vector.broadcast %cst_28 : f32 to vector<1x1x4xf32>
    %50 = arith.mulf %45, %49 : vector<1x1x4xf32>
    %cst_29 = arith.constant 3.906250e-03 : f32
    %51 = vector.broadcast %cst_29 : f32 to vector<1x1x4xf32>
    %52 = arith.mulf %48, %51 : vector<1x1x4xf32>
    %53 = arith.mulf %50, %50 : vector<1x1x4xf32>
    %54 = arith.subf %52, %53 : vector<1x1x4xf32>
    %cst_30 = arith.constant 0.000000e+00 : f32
    %55 = vector.broadcast %cst_30 : f32 to vector<1x1x4xf32>
    %56 = arith.maximumf %54, %55 : vector<1x1x4xf32>
    %57 = vector.broadcast %50 : vector<1x1x4xf32> to vector<16x16x4xf32>
    %58 = arith.subf %43, %57 : vector<16x16x4xf32>
    %cst_31 = arith.constant 9.99999974E-6 : f32
    %59 = vector.broadcast %cst_31 : f32 to vector<1x1x4xf32>
    %60 = arith.addf %56, %59 : vector<1x1x4xf32>
    %61 = math.rsqrt %60 : vector<1x1x4xf32>
    %62 = vector.broadcast %61 : vector<1x1x4xf32> to vector<16x16x4xf32>
    %63 = arith.mulf %58, %62 : vector<16x16x4xf32>
    %cst_32 = arith.constant 0.000000e+00 : f32
    %64 = vector.broadcast %cst_32 : f32 to vector<16x16x4xf32>
    %65 = arith.maximumf %63, %64 : vector<16x16x4xf32>
    %c1_33 = arith.constant 1 : index
    %c8_34 = arith.constant 8 : index
    %c0_35 = arith.constant 0 : index
    %66 = vector.load %arg8[%c1_33, %c8_34, %c0_35] : memref<18x32x4xf32, #tpu.memory_space<vmem>>, vector<16x16x4xf32>
    tpu.vector_store %arg8[%c1_33, %c8_34, %c0_35], %65 {strides = array<i32>} : memref<18x32x4xf32, #tpu.memory_space<vmem>>, vector<16x16x4xf32>,
    %c0_36 = arith.constant 0 : index
    %c0_37 = arith.constant 0 : index
    %c0_38 = arith.constant 0 : index
    %67 = vector.load %arg8[%c0_36, %c0_37, %c0_38] : memref<18x32x4xf32, #tpu.memory_space<vmem>>, vector<16x32x4xf32>
    %68 = vector.shape_cast %67 : vector<16x32x4xf32> to vector<512x4xf32>
    %c1_i32_39 = arith.constant 1 : i32
    %69 = tpu.dynamic_rotate %68 by %c1_i32_39 dim 0 : vector<512x4xf32>, i32 -> vector<512x4xf32>
    %c511_i32_40 = arith.constant 511 : i32
    %70 = tpu.dynamic_rotate %68 by %c511_i32_40 dim 0 : vector<512x4xf32>, i32 -> vector<512x4xf32>
    %71 = tpu.concatenate %69, %68, %70 in 1 : vector<512x4xf32>, vector<512x4xf32>, vector<512x4xf32> -> vector<512x12xf32>
    %72 = arith.truncf %71 : vector<512x12xf32> to vector<512x12xbf16>
    %73 = arith.index_cast %arg1 : i32 to index
    %c0_41 = arith.constant 0 : index
    %c0_42 = arith.constant 0 : index
    %c0_43 = arith.constant 0 : index
    %74 = vector.load %arg5[%73, %c0_41, %c0_42, %c0_43] : memref<2x3x12x4xbf16, #tpu.memory_space<vmem>>, vector<1x1x12x4xbf16>
    %75 = vector.shape_cast %74 : vector<1x1x12x4xbf16> to vector<12x4xbf16>
    %cst_44 = arith.constant dense<0.000000e+00> : vector<512x4xf32>
    %76 = tpu.matmul %72, %75, %cst_44 {dimension_numbers = #tpu.dot_dimension_numbers<[1], [0], [0], [1], [0, 0, 1, 1], [], []>} : vector<512x12xbf16>, vector<12x4xbf16>, vector<512x4xf32> -> vector<512x4xf32>
    %c1_45 = arith.constant 1 : index
    %c0_46 = arith.constant 0 : index
    %c0_47 = arith.constant 0 : index
    %77 = vector.load %arg8[%c1_45, %c0_46, %c0_47] : memref<18x32x4xf32, #tpu.memory_space<vmem>>, vector<16x32x4xf32>
    %78 = vector.shape_cast %77 : vector<16x32x4xf32> to vector<512x4xf32>
    %c1_i32_48 = arith.constant 1 : i32
    %79 = tpu.dynamic_rotate %78 by %c1_i32_48 dim 0 : vector<512x4xf32>, i32 -> vector<512x4xf32>
    %c511_i32_49 = arith.constant 511 : i32
    %80 = tpu.dynamic_rotate %78 by %c511_i32_49 dim 0 : vector<512x4xf32>, i32 -> vector<512x4xf32>
    %81 = tpu.concatenate %79, %78, %80 in 1 : vector<512x4xf32>, vector<512x4xf32>, vector<512x4xf32> -> vector<512x12xf32>
    %82 = arith.truncf %81 : vector<512x12xf32> to vector<512x12xbf16>
    %83 = arith.index_cast %arg1 : i32 to index
    %c1_50 = arith.constant 1 : index
    %c0_51 = arith.constant 0 : index
    %c0_52 = arith.constant 0 : index
    %84 = vector.load %arg5[%83, %c1_50, %c0_51, %c0_52] : memref<2x3x12x4xbf16, #tpu.memory_space<vmem>>, vector<1x1x12x4xbf16>
    %85 = vector.shape_cast %84 : vector<1x1x12x4xbf16> to vector<12x4xbf16>
    %cst_53 = arith.constant dense<0.000000e+00> : vector<512x4xf32>
    %86 = tpu.matmul %82, %85, %cst_53 {dimension_numbers = #tpu.dot_dimension_numbers<[1], [0], [0], [1], [0, 0, 1, 1], [], []>} : vector<512x12xbf16>, vector<12x4xbf16>, vector<512x4xf32> -> vector<512x4xf32>
    %87 = arith.addf %76, %86 : vector<512x4xf32>
    %c2_54 = arith.constant 2 : index
    %c0_55 = arith.constant 0 : index
    %c0_56 = arith.constant 0 : index
    %88 = vector.load %arg8[%c2_54, %c0_55, %c0_56] : memref<18x32x4xf32, #tpu.memory_space<vmem>>, vector<16x32x4xf32>
    %89 = vector.shape_cast %88 : vector<16x32x4xf32> to vector<512x4xf32>
    %c1_i32_57 = arith.constant 1 : i32
    %90 = tpu.dynamic_rotate %89 by %c1_i32_57 dim 0 : vector<512x4xf32>, i32 -> vector<512x4xf32>
    %c511_i32_58 = arith.constant 511 : i32
    %91 = tpu.dynamic_rotate %89 by %c511_i32_58 dim 0 : vector<512x4xf32>, i32 -> vector<512x4xf32>
    %92 = tpu.concatenate %90, %89, %91 in 1 : vector<512x4xf32>, vector<512x4xf32>, vector<512x4xf32> -> vector<512x12xf32>
    %93 = arith.truncf %92 : vector<512x12xf32> to vector<512x12xbf16>
    %94 = arith.index_cast %arg1 : i32 to index
    %c2_59 = arith.constant 2 : index
    %c0_60 = arith.constant 0 : index
    %c0_61 = arith.constant 0 : index
    %95 = vector.load %arg5[%94, %c2_59, %c0_60, %c0_61] : memref<2x3x12x4xbf16, #tpu.memory_space<vmem>>, vector<1x1x12x4xbf16>
    %96 = vector.shape_cast %95 : vector<1x1x12x4xbf16> to vector<12x4xbf16>
    %cst_62 = arith.constant dense<0.000000e+00> : vector<512x4xf32>
    %97 = tpu.matmul %93, %96, %cst_62 {dimension_numbers = #tpu.dot_dimension_numbers<[1], [0], [0], [1], [0, 0, 1, 1], [], []>} : vector<512x12xbf16>, vector<12x4xbf16>, vector<512x4xf32> -> vector<512x4xf32>
    %98 = arith.addf %87, %97 : vector<512x4xf32>
    %99 = vector.shape_cast %98 : vector<512x4xf32> to vector<16x32x4xf32>
    %100 = vector.extract_strided_slice %99 {offsets = [0, 8, 0], sizes = [16, 16, 4], strides = [1, 1, 1]} : vector<16x32x4xf32> to vector<16x16x4xf32>
    %101 = arith.index_cast %arg1 : i32 to index
    %c0_63 = arith.constant 0 : index
    %c0_64 = arith.constant 0 : index
    %102 = vector.load %arg6[%101, %c0_63, %c0_64] : memref<2x1x4xf32, #tpu.memory_space<vmem>>, vector<1x1x4xf32>
    %103 = vector.shape_cast %102 : vector<1x1x4xf32> to vector<1x4xf32>
    %104 = vector.shape_cast %103 : vector<1x4xf32> to vector<1x1x4xf32>
    %105 = vector.broadcast %104 : vector<1x1x4xf32> to vector<16x16x4xf32>
    %106 = arith.addf %100, %105 : vector<16x16x4xf32>
    %cst_65 = arith.constant dense<0.000000e+00> : vector<4xf32>
    %107 = vector.multi_reduction <add>, %106, %cst_65 [0, 1] : vector<16x16x4xf32> to vector<4xf32>
    %108 = vector.shape_cast %107 : vector<4xf32> to vector<1x1x4xf32>
    %109 = arith.mulf %106, %106 : vector<16x16x4xf32>
    %cst_66 = arith.constant dense<0.000000e+00> : vector<4xf32>
    %110 = vector.multi_reduction <add>, %109, %cst_66 [0, 1] : vector<16x16x4xf32> to vector<4xf32>
    %111 = vector.shape_cast %110 : vector<4xf32> to vector<1x1x4xf32>
    %cst_67 = arith.constant 3.906250e-03 : f32
    %112 = vector.broadcast %cst_67 : f32 to vector<1x1x4xf32>
    %113 = arith.mulf %108, %112 : vector<1x1x4xf32>
    %cst_68 = arith.constant 3.906250e-03 : f32
    %114 = vector.broadcast %cst_68 : f32 to vector<1x1x4xf32>
    %115 = arith.mulf %111, %114 : vector<1x1x4xf32>
    %116 = arith.mulf %113, %113 : vector<1x1x4xf32>
    %117 = arith.subf %115, %116 : vector<1x1x4xf32>
    %cst_69 = arith.constant 0.000000e+00 : f32
    %118 = vector.broadcast %cst_69 : f32 to vector<1x1x4xf32>
    %119 = arith.maximumf %117, %118 : vector<1x1x4xf32>
    %120 = vector.broadcast %113 : vector<1x1x4xf32> to vector<16x16x4xf32>
    %121 = arith.subf %106, %120 : vector<16x16x4xf32>
    %cst_70 = arith.constant 9.99999974E-6 : f32
    %122 = vector.broadcast %cst_70 : f32 to vector<1x1x4xf32>
    %123 = arith.addf %119, %122 : vector<1x1x4xf32>
    %124 = math.rsqrt %123 : vector<1x1x4xf32>
    %125 = vector.broadcast %124 : vector<1x1x4xf32> to vector<16x16x4xf32>
    %126 = arith.mulf %121, %125 : vector<16x16x4xf32>
    %127 = arith.addf %126, %3 : vector<16x16x4xf32>
    %c1_71 = arith.constant 1 : index
    %c8_72 = arith.constant 8 : index
    %c0_73 = arith.constant 0 : index
    %128 = vector.load %arg8[%c1_71, %c8_72, %c0_73] : memref<18x32x4xf32, #tpu.memory_space<vmem>>, vector<16x16x4xf32>
    tpu.vector_store %arg8[%c1_71, %c8_72, %c0_73], %127 {strides = array<i32>} : memref<18x32x4xf32, #tpu.memory_space<vmem>>, vector<16x16x4xf32>,
    %c1_i32_74 = arith.constant 1 : i32
    %129 = arith.cmpi eq, %arg1, %c1_i32_74 : i32
    %130 = arith.extui %129 : i1 to i32
    %c0_i32_75 = arith.constant 0 : i32
    %131 = arith.cmpi ne, %130, %c0_i32_75 : i32
    scf.if %131 {
      %c0_76 = arith.constant 0 : index
      %c0_77 = arith.constant 0 : index
      %c0_78 = arith.constant 0 : index
      %c0_79 = arith.constant 0 : index
      %132 = vector.load %arg7[%c0_76, %c0_77, %c0_78, %c0_79] : memref<1x16x16x4xf32, #tpu.memory_space<vmem>>, vector<1x16x16x4xf32>
      %133 = vector.shape_cast %132 : vector<1x16x16x4xf32> to vector<16x16x4xf32>
      %134 = vector.shape_cast %127 : vector<16x16x4xf32> to vector<1x16x16x4xf32>
      tpu.vector_store %arg7[%c0_76, %c0_77, %c0_78, %c0_79], %134 {strides = array<i32>} : memref<1x16x16x4xf32, #tpu.memory_space<vmem>>, vector<1x16x16x4xf32>,
    } else {
    }
    return
  }
  func.func @transform_0(%arg0: i32, %arg1: i32) -> (i32, i32, i32, i32) {
    %c0_i32 = arith.constant 0 : i32
    %c0_i32_0 = arith.constant 0 : i32
    %c0_i32_1 = arith.constant 0 : i32
    %c0_i32_2 = arith.constant 0 : i32
    return %arg0, %c0_i32, %c0_i32_0, %c0_i32_1 : i32, i32, i32, i32
  }
  func.func @transform_1(%arg0: i32, %arg1: i32) -> (i32, i32, i32, i32) {
    %c0_i32 = arith.constant 0 : i32
    %c0_i32_0 = arith.constant 0 : i32
    %c0_i32_1 = arith.constant 0 : i32
    %c0_i32_2 = arith.constant 0 : i32
    %c0_i32_3 = arith.constant 0 : i32
    return %c0_i32, %c0_i32_0, %c0_i32_1, %c0_i32_2 : i32, i32, i32, i32
  }
  func.func @transform_2(%arg0: i32, %arg1: i32) -> (i32, i32, i32) {
    %c0_i32 = arith.constant 0 : i32
    %c0_i32_0 = arith.constant 0 : i32
    %c0_i32_1 = arith.constant 0 : i32
    %c0_i32_2 = arith.constant 0 : i32
    return %c0_i32, %c0_i32_0, %c0_i32_1 : i32, i32, i32
  }
  func.func @transform_3(%arg0: i32, %arg1: i32) -> (i32, i32, i32, i32) {
    %c0_i32 = arith.constant 0 : i32
    %c0_i32_0 = arith.constant 0 : i32
    %c0_i32_1 = arith.constant 0 : i32
    %c0_i32_2 = arith.constant 0 : i32
    %c0_i32_3 = arith.constant 0 : i32
    return %c0_i32, %c0_i32_0, %c0_i32_1, %c0_i32_2 : i32, i32, i32, i32
  }
  func.func @transform_4(%arg0: i32, %arg1: i32) -> (i32, i32, i32) {
    %c0_i32 = arith.constant 0 : i32
    %c0_i32_0 = arith.constant 0 : i32
    %c0_i32_1 = arith.constant 0 : i32
    %c0_i32_2 = arith.constant 0 : i32
    return %c0_i32, %c0_i32_0, %c0_i32_1 : i32, i32, i32
  }
  func.func @transform_5(%arg0: i32, %arg1: i32) -> (i32, i32, i32, i32) {
    %c0_i32 = arith.constant 0 : i32
    %c0_i32_0 = arith.constant 0 : i32
    %c0_i32_1 = arith.constant 0 : i32
    %c0_i32_2 = arith.constant 0 : i32
    return %arg0, %c0_i32, %c0_i32_0, %c0_i32_1 : i32, i32, i32, i32
  }
}

</mosaic_0001>

<llo_original>
// kernel: _lambda_.1
$region0: #{_lambda_.1}
  #allocation0 [shape = 'u32[]', space=smem, size = 0x4, offset = 0x4, fixed_abs, tag = 'smem constant byte address 0x4 - core index']
  #allocation1 [shape = 'u32[144,128]{1,0:T(1,128)}', space=vmem, size = 0x12000, scoped, tag = 'internal scratch']
  #allocation2 [shape = 'f32[18,32,4]{2,1,0:T(8,128)}', space=vmem, size = 0x48000, scoped, tag = 'scratch operand']
  %s0 = inlined_call_operand.vmem [shape: f32[2,16,16,4], index: 0, kind: input, shape index: {}]
  %s1 = inlined_call_operand.vmem [shape: bf16[2,3,12,4], index: 1, kind: input, shape index: {}]
  %s2 = inlined_call_operand.vmem [shape: f32[2,1,4], index: 2, kind: input, shape index: {}]
  %s3 = inlined_call_operand.vmem [shape: bf16[2,3,12,4], index: 3, kind: input, shape index: {}]
  %s4 = inlined_call_operand.vmem [shape: f32[2,1,4], index: 4, kind: input, shape index: {}]
  %s5 = inlined_call_operand.vmem [shape: f32[2,16,16,4], index: 5, kind: output, shape index: {}]
  %s6 = sld [smem:[#allocation0]]
  $region61: #{_lambda_.1} parent=0
    _
  %s8 = ssub.s32 1, %s6
  %s9 = scalar_select 0, %s8, %s6
  loop: start=0, step=1, limit=6
  $region2: #{_lambda_.1} parent=0 // loop_pre_header
    _
  $region3: #{_lambda_.1} parent=0 // loop_header
    %s11 = sphi 0, %s15
    %p12 = scmp.ge.s32.totalorder %s11, 6
    %s18 = sphi 0, %s30
    %s19 = sphi 0, %s26
    %s20 = sphi 0, %s18
    %s21 = sphi 0, %s19
    %s22 = sphi 0, %s20
    %s23 = sphi 0, %s21
    %s33 = sphi 0, %s35
    %s36 = sphi 0, %s33
    %s37 = sphi 0, %s36
    %s53 = sphi 0, %s37
    %s57 = sphi 0, %s57
    %s59 = sphi 0, %s57
    %s60 = sphi 0, %s59
    %s74 = sphi 0, %s60
    %s78 = sphi 0, %s78
    %s80 = sphi 0, %s78
    %s81 = sphi 0, %s80
    %s95 = sphi 0, %s81
    %s99 = sphi 0, %s99
    %s101 = sphi 0, %s99
    %s102 = sphi 0, %s101
    %s116 = sphi 0, %s102
    %s120 = sphi 0, %s120
    %s122 = sphi 0, %s120
    %s123 = sphi 0, %s122
    %s137 = sphi 0, %s123
    %s143 = sphi 0, %s145
    %s146 = sphi 0, %s143
    %s147 = sphi 0, %s146
    %s163 = sphi 0, %s147
  $region4: #{_lambda_.1} parent=0 // loop_header_branch
    %14 = sbr.rel (%p12) target = $region8
  $region5: #{_lambda_.1} parent=0 // loop_body
    %s16 = ssub.s32 %s11, 1
    %s17 = ssub.s32 %s11, 2
    %s24 = sadd.s32 1, %s19
    %p25 = scmp.ge.s32.totalorder %s24, 2
    %s26 = scalar_select %p25, 0, %s24
    %s27 = sadd.s32 1, %s18
    %s28 = scalar_select %p25, %s27, %s18
    %p29 = scmp.ge.s32.totalorder %s28, 2
    %s30 = scalar_select %p29, 0, %s28
    %s31 = ssub.s32 %s18, %s30
    %p32 = scmp.eq.s32.totalorder %s31, 0
    %s34 = sadd.s32 %s33, 1
    %s35 = scalar_select %p32, %s33, %s34
    %p38 = pneg %p32
    %p39 = scmp.eq.s32.totalorder %s11, 3
    %p40 = por %p38, %p39
    %p41 = scmp.ne.s32.totalorder %s33, %s36
    %p42 = scmp.eq.s32.totalorder %s11, 0
    %p43 = por %p41, %p42
    %p44 = scmp.ne.s32.totalorder %s33, %s36
    %p45 = scmp.eq.s32.totalorder %s16, 3
    %p46 = por %p44, %p45
    %p47 = scmp.ne.s32.totalorder %s36, %s37
    %p48 = scmp.eq.s32.totalorder %s16, 0
    %p49 = por %p47, %p48
    %p50 = scmp.ne.s32.totalorder %s36, %s37
    %p51 = scmp.eq.s32.totalorder %s17, 3
    %p52 = por %p50, %p51
    %p54 = scmp.ne.s32.totalorder %s37, %s53
    %p55 = scmp.eq.s32.totalorder %s17, 0
    %p56 = por %p54, %p55
    %s58 = sadd.s32 %s57, 1
    %p61 = scmp.eq.s32.totalorder %s11, 3
    %p62 = scmp.ne.s32.totalorder %s57, %s59
    %p63 = scmp.eq.s32.totalorder %s11, 0
    %p64 = por %p62, %p63
    %p65 = scmp.ne.s32.totalorder %s57, %s59
    %p66 = scmp.eq.s32.totalorder %s16, 3
    %p67 = por %p65, %p66
    %p68 = scmp.ne.s32.totalorder %s59, %s60
    %p69 = scmp.eq.s32.totalorder %s16, 0
    %p70 = por %p68, %p69
    %p71 = scmp.ne.s32.totalorder %s59, %s60
    %p72 = scmp.eq.s32.totalorder %s17, 3
    %p73 = por %p71, %p72
    %p75 = scmp.ne.s32.totalorder %s60, %s74
    %p76 = scmp.eq.s32.totalorder %s17, 0
    %p77 = por %p75, %p76
    %s79 = sadd.s32 %s78, 1
    %p82 = scmp.eq.s32.totalorder %s11, 3
    %p83 = scmp.ne.s32.totalorder %s78, %s80
    %p84 = scmp.eq.s32.totalorder %s11, 0
    %p85 = por %p83, %p84
    %p86 = scmp.ne.s32.totalorder %s78, %s80
    %p87 = scmp.eq.s32.totalorder %s16, 3
    %p88 = por %p86, %p87
    %p89 = scmp.ne.s32.totalorder %s80, %s81
    %p90 = scmp.eq.s32.totalorder %s16, 0
    %p91 = por %p89, %p90
    %p92 = scmp.ne.s32.totalorder %s80, %s81
    %p93 = scmp.eq.s32.totalorder %s17, 3
    %p94 = por %p92, %p93
    %p96 = scmp.ne.s32.totalorder %s81, %s95
    %p97 = scmp.eq.s32.totalorder %s17, 0
    %p98 = por %p96, %p97
    %s100 = sadd.s32 %s99, 1
    %p103 = scmp.eq.s32.totalorder %s11, 3
    %p104 = scmp.ne.s32.totalorder %s99, %s101
    %p105 = scmp.eq.s32.totalorder %s11, 0
    %p106 = por %p104, %p105
    %p107 = scmp.ne.s32.totalorder %s99, %s101
    %p108 = scmp.eq.s32.totalorder %s16, 3
    %p109 = por %p107, %p108
    %p110 = scmp.ne.s32.totalorder %s101, %s102
    %p111 = scmp.eq.s32.totalorder %s16, 0
    %p112 = por %p110, %p111
    %p113 = scmp.ne.s32.totalorder %s101, %s102
    %p114 = scmp.eq.s32.totalorder %s17, 3
    %p115 = por %p113, %p114
    %p117 = scmp.ne.s32.totalorder %s102, %s116
    %p118 = scmp.eq.s32.totalorder %s17, 0
    %p119 = por %p117, %p118
    %s121 = sadd.s32 %s120, 1
    %p124 = scmp.eq.s32.totalorder %s11, 3
    %p125 = scmp.ne.s32.totalorder %s120, %s122
    %p126 = scmp.eq.s32.totalorder %s11, 0
    %p127 = por %p125, %p126
    %p128 = scmp.ne.s32.totalorder %s120, %s122
    %p129 = scmp.eq.s32.totalorder %s16, 3
    %p130 = por %p128, %p129
    %p131 = scmp.ne.s32.totalorder %s122, %s123
    %p132 = scmp.eq.s32.totalorder %s16, 0
    %p133 = por %p131, %p132
    %p134 = scmp.ne.s32.totalorder %s122, %s123
    %p135 = scmp.eq.s32.totalorder %s17, 3
    %p136 = por %p134, %p135
    %p138 = scmp.ne.s32.totalorder %s123, %s137
    %p139 = scmp.eq.s32.totalorder %s17, 0
    %p140 = por %p138, %p139
    %s141 = ssub.s32 %s18, %s30
    %p142 = scmp.eq.s32.totalorder %s141, 0
    %s144 = sadd.s32 %s143, 1
    %s145 = scalar_select %p142, %s143, %s144
    %p148 = pneg %p142
    %p149 = scmp.eq.s32.totalorder %s11, 3
    %p150 = por %p148, %p149
    %p151 = scmp.ne.s32.totalorder %s143, %s146
    %p152 = scmp.eq.s32.totalorder %s11, 0
    %p153 = por %p151, %p152
    %p154 = scmp.ne.s32.totalorder %s143, %s146
    %p155 = scmp.eq.s32.totalorder %s16, 3
    %p156 = por %p154, %p155
    %p157 = scmp.ne.s32.totalorder %s146, %s147
    %p158 = scmp.eq.s32.totalorder %s16, 0
    %p159 = por %p157, %p158
    %p160 = scmp.ne.s32.totalorder %s146, %s147
    %p161 = scmp.eq.s32.totalorder %s17, 3
    %p162 = por %p160, %p161
    %p164 = scmp.ne.s32.totalorder %s147, %s163
    %p165 = scmp.eq.s32.totalorder %s17, 0
    %p166 = por %p164, %p165
    %p167 = scmp.le.s32.totalorder 1, %s11
    %p168 = scmp.lt.s32.totalorder %s11, 5
    %p169 = pnand %p167, %p168
    %p170 = pneg %p169
    // Predicated region
    $region9: #{_lambda_.1} parent=5 // pred_check
      _
    $region10: #{_lambda_.1} parent=5 // pred_check_branch
      %172 = sbr.rel (%p169) target = $region12
    $region11: #{_lambda_.1} parent=5 // pred_region
      %s173 = ssub.s32 %s11, 1
      // Predicated region
      $region13: #{_lambda_.1} parent=11 // pred_check
        %p174 = pneg %p70
      $region14: #{_lambda_.1} parent=11 // pred_check_branch
        %176 = sbr.rel (%p174) target = $region16
      $region15: #{_lambda_.1} parent=11 // pred_region
        _
      $region16: #{_lambda_.1} parent=11 // pred_fallthru
        _
      // Predicated region
      $region17: #{_lambda_.1} parent=11 // pred_check
        %p177 = pneg %p91
      $region18: #{_lambda_.1} parent=11 // pred_check_branch
        %179 = sbr.rel (%p177) target = $region20
      $region19: #{_lambda_.1} parent=11 // pred_region
        _
      $region20: #{_lambda_.1} parent=11 // pred_fallthru
        _
      // Predicated region
      $region21: #{_lambda_.1} parent=11 // pred_check
        %p180 = pneg %p112
      $region22: #{_lambda_.1} parent=11 // pred_check_branch
        %182 = sbr.rel (%p180) target = $region24
      $region23: #{_lambda_.1} parent=11 // pred_region
        _
      $region24: #{_lambda_.1} parent=11 // pred_fallthru
        _
      // Predicated region
      $region25: #{_lambda_.1} parent=11 // pred_check
        %p183 = pneg %p133
      $region26: #{_lambda_.1} parent=11 // pred_check_branch
        %185 = sbr.rel (%p183) target = $region28
      $region27: #{_lambda_.1} parent=11 // pred_region
        _
      $region28: #{_lambda_.1} parent=11 // pred_fallthru
        _
    $region12: #{_lambda_.1} parent=5 // pred_fallthru
      _
    %p186 = scmp.lt.s32.totalorder %s11, 4
    // Predicated region
    $region29: #{_lambda_.1} parent=5 // pred_check
      %p187 = pneg %p186
    $region30: #{_lambda_.1} parent=5 // pred_check_branch
      %189 = sbr.rel (%p187) target = $region32
    $region31: #{_lambda_.1} parent=5 // pred_region
      // Predicated region
      $region33: #{_lambda_.1} parent=31 // pred_check
        %p190 = pneg %p43
      $region34: #{_lambda_.1} parent=31 // pred_check_branch
        %192 = sbr.rel (%p190) target = $region36
      $region35: #{_lambda_.1} parent=31 // pred_region
        %p193 = scmp.lt.s32.totalorder %s18, 1
        %s194 = scalar_select %p193, %s18, 1
        %s195 = smul.addr %s194, 32
        %s196 = smul.addr %s195, 8
        %s197 = scalar_lea.vmem %s0, %s196
      $region36: #{_lambda_.1} parent=31 // pred_fallthru
        _
    $region32: #{_lambda_.1} parent=5 // pred_fallthru
      _
    %p198 = scmp.le.s32.totalorder 1, %s11
    %p199 = scmp.lt.s32.totalorder %s11, 5
    %p200 = pnand %p198, %p199
    %p201 = pneg %p200
    // Predicated region
    $region37: #{_lambda_.1} parent=5 // pred_check
      _
    $region38: #{_lambda_.1} parent=5 // pred_check_branch
      %203 = sbr.rel (%p200) target = $region40
    $region39: #{_lambda_.1} parent=5 // pred_region
      %s204 = ssub.s32 %s11, 1
      %p205 = scmp.lt.s32.totalorder %s20, 1
      %s206 = scalar_select %p205, %s20, 1
      %s207 = smul.addr %s206, 32
      %s208 = smul.addr %s207, 8
      %s209 = scalar_lea.vmem %s0, %s208
      %p210 = pneg %p49
      %p211 = pneg %p46
      %p212 = pneg %p70
      %p213 = pneg %p67
      %p214 = pneg %p91
      %p215 = pneg %p88
      %p216 = pneg %p112
      %p217 = pneg %p109
      %p218 = pneg %p133
      %p219 = pneg %p130
      %p220 = pneg %p159
      %p221 = pneg %p156
      %p222 = scmp.lt.s32.totalorder %s20, 1
      %s223 = scalar_select %p222, %s20, 1
      %s224 = smul.addr %s223, 32
      %s225 = smul.addr %s224, 8
      %s226 = scalar_lea.vmem %s5, %s225
      %p227 = scmp.lt.s32.totalorder %s20, 1
      %s228 = scalar_select %p227, %s20, 1
      %s229 = smul.addr %s228, 32
      %s230 = smul.addr %s229, 8
      %s231 = scalar_lea.vmem %s0, %s230
      %p232 = scmp.lt.s32.totalorder %s20, 1
      %s233 = scalar_select %p232, %s20, 1
      %s234 = smul.addr %s233, 32
      %s235 = smul.addr %s234, 8
      %s236 = scalar_lea.vmem %s5, %s235
      %p238 = scmp.eq.s32.totalorder %s21, 0
      // Predicated region
      $region41: #{_lambda_.1} parent=39 // pred_check
        %p239 = pneg %p238
      $region42: #{_lambda_.1} parent=39 // pred_check_branch
        %241 = sbr.rel (%p239) target = $region44
      $region43: #{_lambda_.1} parent=39 // pred_region
        %vm242 = vcmask 31744
        %243 = vst.msk [vmem:[#allocation2] sm:$0xff] %vm242, 0.0
        %244 = vst.msk [vmem:[#allocation2 + $0x8] sm:$0xff] %vm242, 0.0
        %245 = vst.msk [vmem:[#allocation2 + $0x10] sm:$0xff] %vm242, 0.0
        %246 = vst.msk [vmem:[#allocation2 + $0x18] sm:$0xff] %vm242, 0.0
        %247 = vst.msk [vmem:[#allocation2 + $0x20] sm:$0xff] %vm242, 0.0
        %248 = vst.msk [vmem:[#allocation2 + $0x28] sm:$0xff] %vm242, 0.0
        %249 = vst.msk [vmem:[#allocation2 + $0x30] sm:$0xff] %vm242, 0.0
        %250 = vst.msk [vmem:[#allocation2 + $0x38] sm:$0xff] %vm242, 0.0
        %251 = vst.msk [vmem:[#allocation2 + $0x40] sm:$0xff] %vm242, 0.0
        %252 = vst.msk [vmem:[#allocation2 + $0x48] sm:$0xff] %vm242, 0.0
        %253 = vst.msk [vmem:[#allocation2 + $0x50] sm:$0xff] %vm242, 0.0
        %254 = vst.msk [vmem:[#allocation2 + $0x58] sm:$0xff] %vm242, 0.0
        %255 = vst.msk [vmem:[#allocation2 + $0x60] sm:$0xff] %vm242, 0.0
        %256 = vst.msk [vmem:[#allocation2 + $0x68] sm:$0xff] %vm242, 0.0
        %257 = vst.msk [vmem:[#allocation2 + $0x70] sm:$0xff] %vm242, 0.0
        %258 = vst.msk [vmem:[#allocation2 + $0x78] sm:$0xff] %vm242, 0.0
        %259 = vst.msk [vmem:[#allocation2 + $0x80] sm:$0xff] %vm242, 0.0
        %260 = vst.msk [vmem:[#allocation2 + $0x88] sm:$0xff] %vm242, 0.0
        %261 = vst.msk [vmem:[#allocation2 + $0x90] sm:$0xff] %vm242, 0.0
        %262 = vst.msk [vmem:[#allocation2 + $0x98] sm:$0xff] %vm242, 0.0
        %263 = vst.msk [vmem:[#allocation2 + $0xa0] sm:$0xff] %vm242, 0.0
        %264 = vst.msk [vmem:[#allocation2 + $0xa8] sm:$0xff] %vm242, 0.0
        %265 = vst.msk [vmem:[#allocation2 + $0xb0] sm:$0xff] %vm242, 0.0
        %266 = vst.msk [vmem:[#allocation2 + $0xb8] sm:$0xff] %vm242, 0.0
        %267 = vst.msk [vmem:[#allocation2 + $0xc0] sm:$0xff] %vm242, 0.0
        %268 = vst.msk [vmem:[#allocation2 + $0xc8] sm:$0xff] %vm242, 0.0
        %269 = vst.msk [vmem:[#allocation2 + $0xd0] sm:$0xff] %vm242, 0.0
        %270 = vst.msk [vmem:[#allocation2 + $0xd8] sm:$0xff] %vm242, 0.0
        %271 = vst.msk [vmem:[#allocation2 + $0xe0] sm:$0xff] %vm242, 0.0
        %272 = vst.msk [vmem:[#allocation2 + $0xe8] sm:$0xff] %vm242, 0.0
        %273 = vst.msk [vmem:[#allocation2 + $0xf0] sm:$0xff] %vm242, 0.0
        %274 = vst.msk [vmem:[#allocation2 + $0xf8] sm:$0xff] %vm242, 0.0
        %275 = vst.msk [vmem:[#allocation2 + $0x100] sm:$0xff] %vm242, 0.0
        %276 = vst.msk [vmem:[#allocation2 + $0x108] sm:$0xff] %vm242, 0.0
        %277 = vst.msk [vmem:[#allocation2 + $0x110] sm:$0xff] %vm242, 0.0
        %278 = vst.msk [vmem:[#allocation2 + $0x118] sm:$0xff] %vm242, 0.0
        %279 = vst.msk [vmem:[#allocation2 + $0x120] sm:$0xff] %vm242, 0.0
        %280 = vst.msk [vmem:[#allocation2 + $0x128] sm:$0xff] %vm242, 0.0
        %281 = vst.msk [vmem:[#allocation2 + $0x130] sm:$0xff] %vm242, 0.0
        %282 = vst.msk [vmem:[#allocation2 + $0x138] sm:$0xff] %vm242, 0.0
        %283 = vst.msk [vmem:[#allocation2 + $0x140] sm:$0xff] %vm242, 0.0
        %284 = vst.msk [vmem:[#allocation2 + $0x148] sm:$0xff] %vm242, 0.0
        %285 = vst.msk [vmem:[#allocation2 + $0x150] sm:$0xff] %vm242, 0.0
        %286 = vst.msk [vmem:[#allocation2 + $0x158] sm:$0xff] %vm242, 0.0
        %287 = vst.msk [vmem:[#allocation2 + $0x160] sm:$0xff] %vm242, 0.0
        %288 = vst.msk [vmem:[#allocation2 + $0x168] sm:$0xff] %vm242, 0.0
        %289 = vst.msk [vmem:[#allocation2 + $0x170] sm:$0xff] %vm242, 0.0
        %290 = vst.msk [vmem:[#allocation2 + $0x178] sm:$0xff] %vm242, 0.0
        %291 = vst.msk [vmem:[#allocation2 + $0x180] sm:$0xff] %vm242, 0.0
        %292 = vst.msk [vmem:[#allocation2 + $0x188] sm:$0xff] %vm242, 0.0
        %293 = vst.msk [vmem:[#allocation2 + $0x190] sm:$0xff] %vm242, 0.0
        %294 = vst.msk [vmem:[#allocation2 + $0x198] sm:$0xff] %vm242, 0.0
        %295 = vst.msk [vmem:[#allocation2 + $0x1a0] sm:$0xff] %vm242, 0.0
        %296 = vst.msk [vmem:[#allocation2 + $0x1a8] sm:$0xff] %vm242, 0.0
        %297 = vst.msk [vmem:[#allocation2 + $0x1b0] sm:$0xff] %vm242, 0.0
        %298 = vst.msk [vmem:[#allocation2 + $0x1b8] sm:$0xff] %vm242, 0.0
        %299 = vst.msk [vmem:[#allocation2 + $0x1c0] sm:$0xff] %vm242, 0.0
        %300 = vst.msk [vmem:[#allocation2 + $0x1c8] sm:$0xff] %vm242, 0.0
        %301 = vst.msk [vmem:[#allocation2 + $0x1d0] sm:$0xff] %vm242, 0.0
        %302 = vst.msk [vmem:[#allocation2 + $0x1d8] sm:$0xff] %vm242, 0.0
        %303 = vst.msk [vmem:[#allocation2 + $0x1e0] sm:$0xff] %vm242, 0.0
        %304 = vst.msk [vmem:[#allocation2 + $0x1e8] sm:$0xff] %vm242, 0.0
        %305 = vst.msk [vmem:[#allocation2 + $0x1f0] sm:$0xff] %vm242, 0.0
        %306 = vst.msk [vmem:[#allocation2 + $0x1f8] sm:$0xff] %vm242, 0.0
        %307 = vst.msk [vmem:[#allocation2 + $0x200] sm:$0xff] %vm242, 0.0
        %308 = vst.msk [vmem:[#allocation2 + $0x208] sm:$0xff] %vm242, 0.0
        %309 = vst.msk [vmem:[#allocation2 + $0x210] sm:$0xff] %vm242, 0.0
        %310 = vst.msk [vmem:[#allocation2 + $0x218] sm:$0xff] %vm242, 0.0
        %311 = vst.msk [vmem:[#allocation2 + $0x220] sm:$0xff] %vm242, 0.0
        %312 = vst.msk [vmem:[#allocation2 + $0x228] sm:$0xff] %vm242, 0.0
        %313 = vst.msk [vmem:[#allocation2 + $0x230] sm:$0xff] %vm242, 0.0
        %314 = vst.msk [vmem:[#allocation2 + $0x238] sm:$0xff] %vm242, 0.0
        %v315 = vld [vmem:[%s231] sm:$0xff]
        %v316 = vld [vmem:[%s231 + $0x8] sm:$0xff]
        %v317 = vld [vmem:[%s231 + $0x10] sm:$0xff]
        %v318 = vld [vmem:[%s231 + $0x18] sm:$0xff]
        %v319 = vld [vmem:[%s231 + $0x20] sm:$0xff]
        %v320 = vld [vmem:[%s231 + $0x28] sm:$0xff]
        %v321 = vld [vmem:[%s231 + $0x30] sm:$0xff]
        %v322 = vld [vmem:[%s231 + $0x38] sm:$0xff]
        %v323 = vld [vmem:[%s231 + $0x40] sm:$0xff]
        %v324 = vld [vmem:[%s231 + $0x48] sm:$0xff]
        %v325 = vld [vmem:[%s231 + $0x50] sm:$0xff]
        %v326 = vld [vmem:[%s231 + $0x58] sm:$0xff]
        %v327 = vld [vmem:[%s231 + $0x60] sm:$0xff]
        %v328 = vld [vmem:[%s231 + $0x68] sm:$0xff]
        %v329 = vld [vmem:[%s231 + $0x70] sm:$0xff]
        %v330 = vld [vmem:[%s231 + $0x78] sm:$0xff]
        %v331 = vld [vmem:[%s231 + $0x80] sm:$0xff]
        %v332 = vld [vmem:[%s231 + $0x88] sm:$0xff]
        %v333 = vld [vmem:[%s231 + $0x90] sm:$0xff]
        %v334 = vld [vmem:[%s231 + $0x98] sm:$0xff]
        %v335 = vld [vmem:[%s231 + $0xa0] sm:$0xff]
        %v336 = vld [vmem:[%s231 + $0xa8] sm:$0xff]
        %v337 = vld [vmem:[%s231 + $0xb0] sm:$0xff]
        %v338 = vld [vmem:[%s231 + $0xb8] sm:$0xff]
        %v339 = vld [vmem:[%s231 + $0xc0] sm:$0xff]
        %v340 = vld [vmem:[%s231 + $0xc8] sm:$0xff]
        %v341 = vld [vmem:[%s231 + $0xd0] sm:$0xff]
        %v342 = vld [vmem:[%s231 + $0xd8] sm:$0xff]
        %v343 = vld [vmem:[%s231 + $0xe0] sm:$0xff]
        %v344 = vld [vmem:[%s231 + $0xe8] sm:$0xff]
        %v345 = vld [vmem:[%s231 + $0xf0] sm:$0xff]
        %v346 = vld [vmem:[%s231 + $0xf8] sm:$0xff]
        %s347 = scalar_lea.vmem [#allocation2], 32
        %348 = vst.msk [vmem:[%s347 + $0x8] sm:$0xff] %vm242, %v315
        %349 = vst.msk [vmem:[%s347 + $0x10] sm:$0xff] %vm242, %v316
        %350 = vst.msk [vmem:[%s347 + $0x28] sm:$0xff] %vm242, %v317
        %351 = vst.msk [vmem:[%s347 + $0x30] sm:$0xff] %vm242, %v318
        %352 = vst.msk [vmem:[%s347 + $0x48] sm:$0xff] %vm242, %v319
        %353 = vst.msk [vmem:[%s347 + $0x50] sm:$0xff] %vm242, %v320
        %354 = vst.msk [vmem:[%s347 + $0x68] sm:$0xff] %vm242, %v321
        %355 = vst.msk [vmem:[%s347 + $0x70] sm:$0xff] %vm242, %v322
        %356 = vst.msk [vmem:[%s347 + $0x88] sm:$0xff] %vm242, %v323
        %357 = vst.msk [vmem:[%s347 + $0x90] sm:$0xff] %vm242, %v324
        %358 = vst.msk [vmem:[%s347 + $0xa8] sm:$0xff] %vm242, %v325
        %359 = vst.msk [vmem:[%s347 + $0xb0] sm:$0xff] %vm242, %v326
        %360 = vst.msk [vmem:[%s347 + $0xc8] sm:$0xff] %vm242, %v327
        %361 = vst.msk [vmem:[%s347 + $0xd0] sm:$0xff] %vm242, %v328
        %362 = vst.msk [vmem:[%s347 + $0xe8] sm:$0xff] %vm242, %v329
        %363 = vst.msk [vmem:[%s347 + $0xf0] sm:$0xff] %vm242, %v330
        %364 = vst.msk [vmem:[%s347 + $0x108] sm:$0xff] %vm242, %v331
        %365 = vst.msk [vmem:[%s347 + $0x110] sm:$0xff] %vm242, %v332
        %366 = vst.msk [vmem:[%s347 + $0x128] sm:$0xff] %vm242, %v333
        %367 = vst.msk [vmem:[%s347 + $0x130] sm:$0xff] %vm242, %v334
        %368 = vst.msk [vmem:[%s347 + $0x148] sm:$0xff] %vm242, %v335
        %369 = vst.msk [vmem:[%s347 + $0x150] sm:$0xff] %vm242, %v336
        %370 = vst.msk [vmem:[%s347 + $0x168] sm:$0xff] %vm242, %v337
        %371 = vst.msk [vmem:[%s347 + $0x170] sm:$0xff] %vm242, %v338
        %372 = vst.msk [vmem:[%s347 + $0x188] sm:$0xff] %vm242, %v339
        %373 = vst.msk [vmem:[%s347 + $0x190] sm:$0xff] %vm242, %v340
        %374 = vst.msk [vmem:[%s347 + $0x1a8] sm:$0xff] %vm242, %v341
        %375 = vst.msk [vmem:[%s347 + $0x1b0] sm:$0xff] %vm242, %v342
        %376 = vst.msk [vmem:[%s347 + $0x1c8] sm:$0xff] %vm242, %v343
        %377 = vst.msk [vmem:[%s347 + $0x1d0] sm:$0xff] %vm242, %v344
        %378 = vst.msk [vmem:[%s347 + $0x1e8] sm:$0xff] %vm242, %v345
        %379 = vst.msk [vmem:[%s347 + $0x1f0] sm:$0xff] %vm242, %v346
      $region44: #{_lambda_.1} parent=39 // pred_fallthru
        _
      %s380 = scalar_lea.vmem [#allocation2], 32
      %v381 = vld [vmem:[%s380 + $0x8] sm:$0xff]
      %v382 = vld [vmem:[%s380 + $0x10] sm:$0xff]
      %v383 = vld [vmem:[%s380 + $0x28] sm:$0xff]
      %v384 = vld [vmem:[%s380 + $0x30] sm:$0xff]
      %v385 = vld [vmem:[%s380 + $0x48] sm:$0xff]
      %v386 = vld [vmem:[%s380 + $0x50] sm:$0xff]
      %v387 = vld [vmem:[%s380 + $0x68] sm:$0xff]
      %v388 = vld [vmem:[%s380 + $0x70] sm:$0xff]
      %v389 = vld [vmem:[%s380 + $0x88] sm:$0xff]
      %v390 = vld [vmem:[%s380 + $0x90] sm:$0xff]
      %v391 = vld [vmem:[%s380 + $0xa8] sm:$0xff]
      %v392 = vld [vmem:[%s380 + $0xb0] sm:$0xff]
      %v393 = vld [vmem:[%s380 + $0xc8] sm:$0xff]
      %v394 = vld [vmem:[%s380 + $0xd0] sm:$0xff]
      %v395 = vld [vmem:[%s380 + $0xe8] sm:$0xff]
      %v396 = vld [vmem:[%s380 + $0xf0] sm:$0xff]
      %v397 = vld [vmem:[%s380 + $0x108] sm:$0xff]
      %v398 = vld [vmem:[%s380 + $0x110] sm:$0xff]
      %v399 = vld [vmem:[%s380 + $0x128] sm:$0xff]
      %v400 = vld [vmem:[%s380 + $0x130] sm:$0xff]
      %v401 = vld [vmem:[%s380 + $0x148] sm:$0xff]
      %v402 = vld [vmem:[%s380 + $0x150] sm:$0xff]
      %v403 = vld [vmem:[%s380 + $0x168] sm:$0xff]
      %v404 = vld [vmem:[%s380 + $0x170] sm:$0xff]
      %v405 = vld [vmem:[%s380 + $0x188] sm:$0xff]
      %v406 = vld [vmem:[%s380 + $0x190] sm:$0xff]
      %v407 = vld [vmem:[%s380 + $0x1a8] sm:$0xff]
      %v408 = vld [vmem:[%s380 + $0x1b0] sm:$0xff]
      %v409 = vld [vmem:[%s380 + $0x1c8] sm:$0xff]
      %v410 = vld [vmem:[%s380 + $0x1d0] sm:$0xff]
      %v411 = vld [vmem:[%s380 + $0x1e8] sm:$0xff]
      %v412 = vld [vmem:[%s380 + $0x1f0] sm:$0xff]
      %v413 = vld [vmem:[#allocation2] sm:$0xff]
      %v414 = vld [vmem:[#allocation2 + $0x8] sm:$0xff]
      %v415 = vld [vmem:[#allocation2 + $0x10] sm:$0xff]
      %v416 = vld [vmem:[#allocation2 + $0x18] sm:$0xff]
      %v417 = vld [vmem:[#allocation2 + $0x20] sm:$0xff]
      %v418 = vld [vmem:[#allocation2 + $0x28] sm:$0xff]
      %v419 = vld [vmem:[#allocation2 + $0x30] sm:$0xff]
      %v420 = vld [vmem:[#allocation2 + $0x38] sm:$0xff]
      %v421 = vld [vmem:[#allocation2 + $0x40] sm:$0xff]
      %v422 = vld [vmem:[#allocation2 + $0x48] sm:$0xff]
      %v423 = vld [vmem:[#allocation2 + $0x50] sm:$0xff]
      %v424 = vld [vmem:[#allocation2 + $0x58] sm:$0xff]
      %v425 = vld [vmem:[#allocation2 + $0x60] sm:$0xff]
      %v426 = vld [vmem:[#allocation2 + $0x68] sm:$0xff]
      %v427 = vld [vmem:[#allocation2 + $0x70] sm:$0xff]
      %v428 = vld [vmem:[#allocation2 + $0x78] sm:$0xff]
      %v429 = vld [vmem:[#allocation2 + $0x80] sm:$0xff]
      %v430 = vld [vmem:[#allocation2 + $0x88] sm:$0xff]
      %v431 = vld [vmem:[#allocation2 + $0x90] sm:$0xff]
      %v432 = vld [vmem:[#allocation2 + $0x98] sm:$0xff]
      %v433 = vld [vmem:[#allocation2 + $0xa0] sm:$0xff]
      %v434 = vld [vmem:[#allocation2 + $0xa8] sm:$0xff]
      %v435 = vld [vmem:[#allocation2 + $0xb0] sm:$0xff]
      %v436 = vld [vmem:[#allocation2 + $0xb8] sm:$0xff]
      %v437 = vld [vmem:[#allocation2 + $0xc0] sm:$0xff]
      %v438 = vld [vmem:[#allocation2 + $0xc8] sm:$0xff]
      %v439 = vld [vmem:[#allocation2 + $0xd0] sm:$0xff]
      %v440 = vld [vmem:[#allocation2 + $0xd8] sm:$0xff]
      %v441 = vld [vmem:[#allocation2 + $0xe0] sm:$0xff]
      %v442 = vld [vmem:[#allocation2 + $0xe8] sm:$0xff]
      %v443 = vld [vmem:[#allocation2 + $0xf0] sm:$0xff]
      %v444 = vld [vmem:[#allocation2 + $0xf8] sm:$0xff]
      %v445 = vld [vmem:[#allocation2 + $0x100] sm:$0xff]
      %v446 = vld [vmem:[#allocation2 + $0x108] sm:$0xff]
      %v447 = vld [vmem:[#allocation2 + $0x110] sm:$0xff]
      %v448 = vld [vmem:[#allocation2 + $0x118] sm:$0xff]
      %v449 = vld [vmem:[#allocation2 + $0x120] sm:$0xff]
      %v450 = vld [vmem:[#allocation2 + $0x128] sm:$0xff]
      %v451 = vld [vmem:[#allocation2 + $0x130] sm:$0xff]
      %v452 = vld [vmem:[#allocation2 + $0x138] sm:$0xff]
      %v453 = vld [vmem:[#allocation2 + $0x140] sm:$0xff]
      %v454 = vld [vmem:[#allocation2 + $0x148] sm:$0xff]
      %v455 = vld [vmem:[#allocation2 + $0x150] sm:$0xff]
      %v456 = vld [vmem:[#allocation2 + $0x158] sm:$0xff]
      %v457 = vld [vmem:[#allocation2 + $0x160] sm:$0xff]
      %v458 = vld [vmem:[#allocation2 + $0x168] sm:$0xff]
      %v459 = vld [vmem:[#allocation2 + $0x170] sm:$0xff]
      %v460 = vld [vmem:[#allocation2 + $0x178] sm:$0xff]
      %v461 = vld [vmem:[#allocation2 + $0x180] sm:$0xff]
      %v462 = vld [vmem:[#allocation2 + $0x188] sm:$0xff]
      %v463 = vld [vmem:[#allocation2 + $0x190] sm:$0xff]
      %v464 = vld [vmem:[#allocation2 + $0x198] sm:$0xff]
      %v465 = vld [vmem:[#allocation2 + $0x1a0] sm:$0xff]
      %v466 = vld [vmem:[#allocation2 + $0x1a8] sm:$0xff]
      %v467 = vld [vmem:[#allocation2 + $0x1b0] sm:$0xff]
      %v468 = vld [vmem:[#allocation2 + $0x1b8] sm:$0xff]
      %v469 = vld [vmem:[#allocation2 + $0x1c0] sm:$0xff]
      %v470 = vld [vmem:[#allocation2 + $0x1c8] sm:$0xff]
      %v471 = vld [vmem:[#allocation2 + $0x1d0] sm:$0xff]
      %v472 = vld [vmem:[#allocation2 + $0x1d8] sm:$0xff]
      %v473 = vld [vmem:[#allocation2 + $0x1e0] sm:$0xff]
      %v474 = vld [vmem:[#allocation2 + $0x1e8] sm:$0xff]
      %v475 = vld [vmem:[#allocation2 + $0x1f0] sm:$0xff]
      %v476 = vld [vmem:[#allocation2 + $0x1f8] sm:$0xff]
      %v477 = vrot.slane %v413, 7
      %v478 = vrot.slane %v414, 7
      %v479 = vrot.slane %v415, 7
      %v480 = vrot.slane %v416, 7
      %v481 = vrot.slane %v417, 7
      %v482 = vrot.slane %v418, 7
      %v483 = vrot.slane %v419, 7
      %v484 = vrot.slane %v420, 7
      %v485 = vrot.slane %v421, 7
      %v486 = vrot.slane %v422, 7
      %v487 = vrot.slane %v423, 7
      %v488 = vrot.slane %v424, 7
      %v489 = vrot.slane %v425, 7
      %v490 = vrot.slane %v426, 7
      %v491 = vrot.slane %v427, 7
      %v492 = vrot.slane %v428, 7
      %v493 = vrot.slane %v429, 7
      %v494 = vrot.slane %v430, 7
      %v495 = vrot.slane %v431, 7
      %v496 = vrot.slane %v432, 7
      %v497 = vrot.slane %v433, 7
      %v498 = vrot.slane %v434, 7
      %v499 = vrot.slane %v435, 7
      %v500 = vrot.slane %v436, 7
      %v501 = vrot.slane %v437, 7
      %v502 = vrot.slane %v438, 7
      %v503 = vrot.slane %v439, 7
      %v504 = vrot.slane %v440, 7
      %v505 = vrot.slane %v441, 7
      %v506 = vrot.slane %v442, 7
      %v507 = vrot.slane %v443, 7
      %v508 = vrot.slane %v444, 7
      %v509 = vrot.slane %v445, 7
      %v510 = vrot.slane %v446, 7
      %v511 = vrot.slane %v447, 7
      %v512 = vrot.slane %v448, 7
      %v513 = vrot.slane %v449, 7
      %v514 = vrot.slane %v450, 7
      %v515 = vrot.slane %v451, 7
      %v516 = vrot.slane %v452, 7
      %v517 = vrot.slane %v453, 7
      %v518 = vrot.slane %v454, 7
      %v519 = vrot.slane %v455, 7
      %v520 = vrot.slane %v456, 7
      %v521 = vrot.slane %v457, 7
      %v522 = vrot.slane %v458, 7
      %v523 = vrot.slane %v459, 7
      %v524 = vrot.slane %v460, 7
      %v525 = vrot.slane %v461, 7
      %v526 = vrot.slane %v462, 7
      %v527 = vrot.slane %v463, 7
      %v528 = vrot.slane %v464, 7
      %v529 = vrot.slane %v465, 7
      %v530 = vrot.slane %v466, 7
      %v531 = vrot.slane %v467, 7
      %v532 = vrot.slane %v468, 7
      %v533 = vrot.slane %v469, 7
      %v534 = vrot.slane %v470, 7
      %v535 = vrot.slane %v471, 7
      %v536 = vrot.slane %v472, 7
      %v537 = vrot.slane %v473, 7
      %v538 = vrot.slane %v474, 7
      %v539 = vrot.slane %v475, 7
      %v540 = vrot.slane %v476, 7
      %v541 = vlaneseq
      %v542 = vshrl.u32 %v541, 7
      %vm543 = vcmp.lt.s32.totalorder %v542, 1
      %v544 = vsel %vm543, %v539, %v540
      %v545 = vsel %vm543, %v538, %v539
      %v546 = vsel %vm543, %v537, %v538
      %v547 = vsel %vm543, %v536, %v537
      %v548 = vsel %vm543, %v535, %v536
      %v549 = vsel %vm543, %v534, %v535
      %v550 = vsel %vm543, %v533, %v534
      %v551 = vsel %vm543, %v532, %v533
      %v552 = vsel %vm543, %v531, %v532
      %v553 = vsel %vm543, %v530, %v531
      %v554 = vsel %vm543, %v529, %v530
      %v555 = vsel %vm543, %v528, %v529
      %v556 = vsel %vm543, %v527, %v528
      %v557 = vsel %vm543, %v526, %v527
      %v558 = vsel %vm543, %v525, %v526
      %v559 = vsel %vm543, %v524, %v525
      %v560 = vsel %vm543, %v523, %v524
      %v561 = vsel %vm543, %v522, %v523
      %v562 = vsel %vm543, %v521, %v522
      %v563 = vsel %vm543, %v520, %v521
      %v564 = vsel %vm543, %v519, %v520
      %v565 = vsel %vm543, %v518, %v519
      %v566 = vsel %vm543, %v517, %v518
      %v567 = vsel %vm543, %v516, %v517
      %v568 = vsel %vm543, %v515, %v516
      %v569 = vsel %vm543, %v514, %v515
      %v570 = vsel %vm543, %v513, %v514
      %v571 = vsel %vm543, %v512, %v513
      %v572 = vsel %vm543, %v511, %v512
      %v573 = vsel %vm543, %v510, %v511
      %v574 = vsel %vm543, %v509, %v510
      %v575 = vsel %vm543, %v508, %v509
      %v576 = vsel %vm543, %v507, %v508
      %v577 = vsel %vm543, %v506, %v507
      %v578 = vsel %vm543, %v505, %v506
      %v579 = vsel %vm543, %v504, %v505
      %v580 = vsel %vm543, %v503, %v504
      %v581 = vsel %vm543, %v502, %v503
      %v582 = vsel %vm543, %v501, %v502
      %v583 = vsel %vm543, %v500, %v501
      %v584 = vsel %vm543, %v499, %v500
      %v585 = vsel %vm543, %v498, %v499
      %v586 = vsel %vm543, %v497, %v498
      %v587 = vsel %vm543, %v496, %v497
      %v588 = vsel %vm543, %v495, %v496
      %v589 = vsel %vm543, %v494, %v495
      %v590 = vsel %vm543, %v493, %v494
      %v591 = vsel %vm543, %v492, %v493
      %v592 = vsel %vm543, %v491, %v492
      %v593 = vsel %vm543, %v490, %v491
      %v594 = vsel %vm543, %v489, %v490
      %v595 = vsel %vm543, %v488, %v489
      %v596 = vsel %vm543, %v487, %v488
      %v597 = vsel %vm543, %v486, %v487
      %v598 = vsel %vm543, %v485, %v486
      %v599 = vsel %vm543, %v484, %v485
      %v600 = vsel %vm543, %v483, %v484
      %v601 = vsel %vm543, %v482, %v483
      %v602 = vsel %vm543, %v481, %v482
      %v603 = vsel %vm543, %v480, %v481
      %v604 = vsel %vm543, %v479, %v480
      %v605 = vsel %vm543, %v478, %v479
      %v606 = vsel %vm543, %v477, %v478
      %v607 = vsel %vm543, %v540, %v477
      %v608 = vrot.slane %v413, 1
      %v609 = vrot.slane %v414, 1
      %v610 = vrot.slane %v415, 1
      %v611 = vrot.slane %v416, 1
      %v612 = vrot.slane %v417, 1
      %v613 = vrot.slane %v418, 1
      %v614 = vrot.slane %v419, 1
      %v615 = vrot.slane %v420, 1
      %v616 = vrot.slane %v421, 1
      %v617 = vrot.slane %v422, 1
      %v618 = vrot.slane %v423, 1
      %v619 = vrot.slane %v424, 1
      %v620 = vrot.slane %v425, 1
      %v621 = vrot.slane %v426, 1
      %v622 = vrot.slane %v427, 1
      %v623 = vrot.slane %v428, 1
      %v624 = vrot.slane %v429, 1
      %v625 = vrot.slane %v430, 1
      %v626 = vrot.slane %v431, 1
      %v627 = vrot.slane %v432, 1
      %v628 = vrot.slane %v433, 1
      %v629 = vrot.slane %v434, 1
      %v630 = vrot.slane %v435, 1
      %v631 = vrot.slane %v436, 1
      %v632 = vrot.slane %v437, 1
      %v633 = vrot.slane %v438, 1
      %v634 = vrot.slane %v439, 1
      %v635 = vrot.slane %v440, 1
      %v636 = vrot.slane %v441, 1
      %v637 = vrot.slane %v442, 1
      %v638 = vrot.slane %v443, 1
      %v639 = vrot.slane %v444, 1
      %v640 = vrot.slane %v445, 1
      %v641 = vrot.slane %v446, 1
      %v642 = vrot.slane %v447, 1
      %v643 = vrot.slane %v448, 1
      %v644 = vrot.slane %v449, 1
      %v645 = vrot.slane %v450, 1
      %v646 = vrot.slane %v451, 1
      %v647 = vrot.slane %v452, 1
      %v648 = vrot.slane %v453, 1
      %v649 = vrot.slane %v454, 1
      %v650 = vrot.slane %v455, 1
      %v651 = vrot.slane %v456, 1
      %v652 = vrot.slane %v457, 1
      %v653 = vrot.slane %v458, 1
      %v654 = vrot.slane %v459, 1
      %v655 = vrot.slane %v460, 1
      %v656 = vrot.slane %v461, 1
      %v657 = vrot.slane %v462, 1
      %v658 = vrot.slane %v463, 1
      %v659 = vrot.slane %v464, 1
      %v660 = vrot.slane %v465, 1
      %v661 = vrot.slane %v466, 1
      %v662 = vrot.slane %v467, 1
      %v663 = vrot.slane %v468, 1
      %v664 = vrot.slane %v469, 1
      %v665 = vrot.slane %v470, 1
      %v666 = vrot.slane %v471, 1
      %v667 = vrot.slane %v472, 1
      %v668 = vrot.slane %v473, 1
      %v669 = vrot.slane %v474, 1
      %v670 = vrot.slane %v475, 1
      %v671 = vrot.slane %v476, 1
      %vm672 = vcmp.lt.s32.totalorder %v542, 7
      %v673 = vsel %vm672, %v670, %v671
      %v674 = vsel %vm672, %v669, %v670
      %v675 = vsel %vm672, %v668, %v669
      %v676 = vsel %vm672, %v667, %v668
      %v677 = vsel %vm672, %v666, %v667
      %v678 = vsel %vm672, %v665, %v666
      %v679 = vsel %vm672, %v664, %v665
      %v680 = vsel %vm672, %v663, %v664
      %v681 = vsel %vm672, %v662, %v663
      %v682 = vsel %vm672, %v661, %v662
      %v683 = vsel %vm672, %v660, %v661
      %v684 = vsel %vm672, %v659, %v660
      %v685 = vsel %vm672, %v658, %v659
      %v686 = vsel %vm672, %v657, %v658
      %v687 = vsel %vm672, %v656, %v657
      %v688 = vsel %vm672, %v655, %v656
      %v689 = vsel %vm672, %v654, %v655
      %v690 = vsel %vm672, %v653, %v654
      %v691 = vsel %vm672, %v652, %v653
      %v692 = vsel %vm672, %v651, %v652
      %v693 = vsel %vm672, %v650, %v651
      %v694 = vsel %vm672, %v649, %v650
      %v695 = vsel %vm672, %v648, %v649
      %v696 = vsel %vm672, %v647, %v648
      %v697 = vsel %vm672, %v646, %v647
      %v698 = vsel %vm672, %v645, %v646
      %v699 = vsel %vm672, %v644, %v645
      %v700 = vsel %vm672, %v643, %v644
      %v701 = vsel %vm672, %v642, %v643
      %v702 = vsel %vm672, %v641, %v642
      %v703 = vsel %vm672, %v640, %v641
      %v704 = vsel %vm672, %v639, %v640
      %v705 = vsel %vm672, %v638, %v639
      %v706 = vsel %vm672, %v637, %v638
      %v707 = vsel %vm672, %v636, %v637
      %v708 = vsel %vm672, %v635, %v636
      %v709 = vsel %vm672, %v634, %v635
      %v710 = vsel %vm672, %v633, %v634
      %v711 = vsel %vm672, %v632, %v633
      %v712 = vsel %vm672, %v631, %v632
      %v713 = vsel %vm672, %v630, %v631
      %v714 = vsel %vm672, %v629, %v630
      %v715 = vsel %vm672, %v628, %v629
      %v716 = vsel %vm672, %v627, %v628
      %v717 = vsel %vm672, %v626, %v627
      %v718 = vsel %vm672, %v625, %v626
      %v719 = vsel %vm672, %v624, %v625
      %v720 = vsel %vm672, %v623, %v624
      %v721 = vsel %vm672, %v622, %v623
      %v722 = vsel %vm672, %v621, %v622
      %v723 = vsel %vm672, %v620, %v621
      %v724 = vsel %vm672, %v619, %v620
      %v725 = vsel %vm672, %v618, %v619
      %v726 = vsel %vm672, %v617, %v618
      %v727 = vsel %vm672, %v616, %v617
      %v728 = vsel %vm672, %v615, %v616
      %v729 = vsel %vm672, %v614, %v615
      %v730 = vsel %vm672, %v613, %v614
      %v731 = vsel %vm672, %v612, %v613
      %v732 = vsel %vm672, %v611, %v612
      %v733 = vsel %vm672, %v610, %v611
      %v734 = vsel %vm672, %v609, %v610
      %v735 = vsel %vm672, %v608, %v609
      %v736 = vsel %vm672, %v671, %v608
      %801 = vrot.lane.b32.xlu0 %v413, 4
      %v802 = vpop.permute.xlu0 %801
      %803 = vrot.lane.b32.xlu0 %v414, 4
      %v804 = vpop.permute.xlu0 %803
      %805 = vrot.lane.b32.xlu0 %v415, 4
      %v806 = vpop.permute.xlu0 %805
      %807 = vrot.lane.b32.xlu0 %v416, 4
      %v808 = vpop.permute.xlu0 %807
      %809 = vrot.lane.b32.xlu0 %v417, 4
      %v810 = vpop.permute.xlu0 %809
      %811 = vrot.lane.b32.xlu0 %v418, 4
      %v812 = vpop.permute.xlu0 %811
      %813 = vrot.lane.b32.xlu0 %v419, 4
      %v814 = vpop.permute.xlu0 %813
      %815 = vrot.lane.b32.xlu0 %v420, 4
      %v816 = vpop.permute.xlu0 %815
      %817 = vrot.lane.b32.xlu0 %v421, 4
      %v818 = vpop.permute.xlu0 %817
      %819 = vrot.lane.b32.xlu0 %v422, 4
      %v820 = vpop.permute.xlu0 %819
      %821 = vrot.lane.b32.xlu0 %v423, 4
      %v822 = vpop.permute.xlu0 %821
      %823 = vrot.lane.b32.xlu0 %v424, 4
      %v824 = vpop.permute.xlu0 %823
      %825 = vrot.lane.b32.xlu0 %v425, 4
      %v826 = vpop.permute.xlu0 %825
      %827 = vrot.lane.b32.xlu0 %v426, 4
      %v828 = vpop.permute.xlu0 %827
      %829 = vrot.lane.b32.xlu0 %v427, 4
      %v830 = vpop.permute.xlu0 %829
      %831 = vrot.lane.b32.xlu0 %v428, 4
      %v832 = vpop.permute.xlu0 %831
      %833 = vrot.lane.b32.xlu0 %v429, 4
      %v834 = vpop.permute.xlu0 %833
      %835 = vrot.lane.b32.xlu0 %v430, 4
      %v836 = vpop.permute.xlu0 %835
      %837 = vrot.lane.b32.xlu0 %v431, 4
      %v838 = vpop.permute.xlu0 %837
      %839 = vrot.lane.b32.xlu0 %v432, 4
      %v840 = vpop.permute.xlu0 %839
      %841 = vrot.lane.b32.xlu0 %v433, 4
      %v842 = vpop.permute.xlu0 %841
      %843 = vrot.lane.b32.xlu0 %v434, 4
      %v844 = vpop.permute.xlu0 %843
      %845 = vrot.lane.b32.xlu0 %v435, 4
      %v846 = vpop.permute.xlu0 %845
      %847 = vrot.lane.b32.xlu0 %v436, 4
      %v848 = vpop.permute.xlu0 %847
      %849 = vrot.lane.b32.xlu0 %v437, 4
      %v850 = vpop.permute.xlu0 %849
      %851 = vrot.lane.b32.xlu0 %v438, 4
      %v852 = vpop.permute.xlu0 %851
      %853 = vrot.lane.b32.xlu0 %v439, 4
      %v854 = vpop.permute.xlu0 %853
      %855 = vrot.lane.b32.xlu0 %v440, 4
      %v856 = vpop.permute.xlu0 %855
      %857 = vrot.lane.b32.xlu0 %v441, 4
      %v858 = vpop.permute.xlu0 %857
      %859 = vrot.lane.b32.xlu0 %v442, 4
      %v860 = vpop.permute.xlu0 %859
      %861 = vrot.lane.b32.xlu0 %v443, 4
      %v862 = vpop.permute.xlu0 %861
      %863 = vrot.lane.b32.xlu0 %v444, 4
      %v864 = vpop.permute.xlu0 %863
      %865 = vrot.lane.b32.xlu0 %v445, 4
      %v866 = vpop.permute.xlu0 %865
      %867 = vrot.lane.b32.xlu0 %v446, 4
      %v868 = vpop.permute.xlu0 %867
      %869 = vrot.lane.b32.xlu0 %v447, 4
      %v870 = vpop.permute.xlu0 %869
      %871 = vrot.lane.b32.xlu0 %v448, 4
      %v872 = vpop.permute.xlu0 %871
      %873 = vrot.lane.b32.xlu0 %v449, 4
      %v874 = vpop.permute.xlu0 %873
      %875 = vrot.lane.b32.xlu0 %v450, 4
      %v876 = vpop.permute.xlu0 %875
      %877 = vrot.lane.b32.xlu0 %v451, 4
      %v878 = vpop.permute.xlu0 %877
      %879 = vrot.lane.b32.xlu0 %v452, 4
      %v880 = vpop.permute.xlu0 %879
      %881 = vrot.lane.b32.xlu0 %v453, 4
      %v882 = vpop.permute.xlu0 %881
      %883 = vrot.lane.b32.xlu0 %v454, 4
      %v884 = vpop.permute.xlu0 %883
      %885 = vrot.lane.b32.xlu0 %v455, 4
      %v886 = vpop.permute.xlu0 %885
      %887 = vrot.lane.b32.xlu0 %v456, 4
      %v888 = vpop.permute.xlu0 %887
      %889 = vrot.lane.b32.xlu0 %v457, 4
      %v890 = vpop.permute.xlu0 %889
      %891 = vrot.lane.b32.xlu0 %v458, 4
      %v892 = vpop.permute.xlu0 %891
      %893 = vrot.lane.b32.xlu0 %v459, 4
      %v894 = vpop.permute.xlu0 %893
      %895 = vrot.lane.b32.xlu0 %v460, 4
      %v896 = vpop.permute.xlu0 %895
      %897 = vrot.lane.b32.xlu0 %v461, 4
      %v898 = vpop.permute.xlu0 %897
      %899 = vrot.lane.b32.xlu0 %v462, 4
      %v900 = vpop.permute.xlu0 %899
      %901 = vrot.lane.b32.xlu0 %v463, 4
      %v902 = vpop.permute.xlu0 %901
      %903 = vrot.lane.b32.xlu0 %v464, 4
      %v904 = vpop.permute.xlu0 %903
      %905 = vrot.lane.b32.xlu0 %v465, 4
      %v906 = vpop.permute.xlu0 %905
      %907 = vrot.lane.b32.xlu0 %v466, 4
      %v908 = vpop.permute.xlu0 %907
      %909 = vrot.lane.b32.xlu0 %v467, 4
      %v910 = vpop.permute.xlu0 %909
      %911 = vrot.lane.b32.xlu0 %v468, 4
      %v912 = vpop.permute.xlu0 %911
      %913 = vrot.lane.b32.xlu0 %v469, 4
      %v914 = vpop.permute.xlu0 %913
      %915 = vrot.lane.b32.xlu0 %v470, 4
      %v916 = vpop.permute.xlu0 %915
      %917 = vrot.lane.b32.xlu0 %v471, 4
      %v918 = vpop.permute.xlu0 %917
      %919 = vrot.lane.b32.xlu0 %v472, 4
      %v920 = vpop.permute.xlu0 %919
      %921 = vrot.lane.b32.xlu0 %v473, 4
      %v922 = vpop.permute.xlu0 %921
      %923 = vrot.lane.b32.xlu0 %v474, 4
      %v924 = vpop.permute.xlu0 %923
      %925 = vrot.lane.b32.xlu0 %v475, 4
      %v926 = vpop.permute.xlu0 %925
      %927 = vrot.lane.b32.xlu0 %v476, 4
      %v928 = vpop.permute.xlu0 %927
      %1057 = vrot.lane.b32.xlu0 %v735, 8
      %v1058 = vpop.permute.xlu0 %1057
      %1059 = vrot.lane.b32.xlu0 %v734, 8
      %v1060 = vpop.permute.xlu0 %1059
      %1061 = vrot.lane.b32.xlu0 %v733, 8
      %v1062 = vpop.permute.xlu0 %1061
      %1063 = vrot.lane.b32.xlu0 %v732, 8
      %v1064 = vpop.permute.xlu0 %1063
      %1065 = vrot.lane.b32.xlu0 %v731, 8
      %v1066 = vpop.permute.xlu0 %1065
      %1067 = vrot.lane.b32.xlu0 %v730, 8
      %v1068 = vpop.permute.xlu0 %1067
      %1069 = vrot.lane.b32.xlu0 %v729, 8
      %v1070 = vpop.permute.xlu0 %1069
      %1071 = vrot.lane.b32.xlu0 %v728, 8
      %v1072 = vpop.permute.xlu0 %1071
      %1073 = vrot.lane.b32.xlu0 %v727, 8
      %v1074 = vpop.permute.xlu0 %1073
      %1075 = vrot.lane.b32.xlu0 %v726, 8
      %v1076 = vpop.permute.xlu0 %1075
      %1077 = vrot.lane.b32.xlu0 %v725, 8
      %v1078 = vpop.permute.xlu0 %1077
      %1079 = vrot.lane.b32.xlu0 %v724, 8
      %v1080 = vpop.permute.xlu0 %1079
      %1081 = vrot.lane.b32.xlu0 %v723, 8
      %v1082 = vpop.permute.xlu0 %1081
      %1083 = vrot.lane.b32.xlu0 %v722, 8
      %v1084 = vpop.permute.xlu0 %1083
      %1085 = vrot.lane.b32.xlu0 %v721, 8
      %v1086 = vpop.permute.xlu0 %1085
      %1087 = vrot.lane.b32.xlu0 %v720, 8
      %v1088 = vpop.permute.xlu0 %1087
      %1089 = vrot.lane.b32.xlu0 %v719, 8
      %v1090 = vpop.permute.xlu0 %1089
      %1091 = vrot.lane.b32.xlu0 %v718, 8
      %v1092 = vpop.permute.xlu0 %1091
      %1093 = vrot.lane.b32.xlu0 %v717, 8
      %v1094 = vpop.permute.xlu0 %1093
      %1095 = vrot.lane.b32.xlu0 %v716, 8
      %v1096 = vpop.permute.xlu0 %1095
      %1097 = vrot.lane.b32.xlu0 %v715, 8
      %v1098 = vpop.permute.xlu0 %1097
      %1099 = vrot.lane.b32.xlu0 %v714, 8
      %v1100 = vpop.permute.xlu0 %1099
      %1101 = vrot.lane.b32.xlu0 %v713, 8
      %v1102 = vpop.permute.xlu0 %1101
      %1103 = vrot.lane.b32.xlu0 %v712, 8
      %v1104 = vpop.permute.xlu0 %1103
      %1105 = vrot.lane.b32.xlu0 %v711, 8
      %v1106 = vpop.permute.xlu0 %1105
      %1107 = vrot.lane.b32.xlu0 %v710, 8
      %v1108 = vpop.permute.xlu0 %1107
      %1109 = vrot.lane.b32.xlu0 %v709, 8
      %v1110 = vpop.permute.xlu0 %1109
      %1111 = vrot.lane.b32.xlu0 %v708, 8
      %v1112 = vpop.permute.xlu0 %1111
      %1113 = vrot.lane.b32.xlu0 %v707, 8
      %v1114 = vpop.permute.xlu0 %1113
      %1115 = vrot.lane.b32.xlu0 %v706, 8
      %v1116 = vpop.permute.xlu0 %1115
      %1117 = vrot.lane.b32.xlu0 %v705, 8
      %v1118 = vpop.permute.xlu0 %1117
      %1119 = vrot.lane.b32.xlu0 %v704, 8
      %v1120 = vpop.permute.xlu0 %1119
      %1121 = vrot.lane.b32.xlu0 %v703, 8
      %v1122 = vpop.permute.xlu0 %1121
      %1123 = vrot.lane.b32.xlu0 %v702, 8
      %v1124 = vpop.permute.xlu0 %1123
      %1125 = vrot.lane.b32.xlu0 %v701, 8
      %v1126 = vpop.permute.xlu0 %1125
      %1127 = vrot.lane.b32.xlu0 %v700, 8
      %v1128 = vpop.permute.xlu0 %1127
      %1129 = vrot.lane.b32.xlu0 %v699, 8
      %v1130 = vpop.permute.xlu0 %1129
      %1131 = vrot.lane.b32.xlu0 %v698, 8
      %v1132 = vpop.permute.xlu0 %1131
      %1133 = vrot.lane.b32.xlu0 %v697, 8
      %v1134 = vpop.permute.xlu0 %1133
      %1135 = vrot.lane.b32.xlu0 %v696, 8
      %v1136 = vpop.permute.xlu0 %1135
      %1137 = vrot.lane.b32.xlu0 %v695, 8
      %v1138 = vpop.permute.xlu0 %1137
      %1139 = vrot.lane.b32.xlu0 %v694, 8
      %v1140 = vpop.permute.xlu0 %1139
      %1141 = vrot.lane.b32.xlu0 %v693, 8
      %v1142 = vpop.permute.xlu0 %1141
      %1143 = vrot.lane.b32.xlu0 %v692, 8
      %v1144 = vpop.permute.xlu0 %1143
      %1145 = vrot.lane.b32.xlu0 %v691, 8
      %v1146 = vpop.permute.xlu0 %1145
      %1147 = vrot.lane.b32.xlu0 %v690, 8
      %v1148 = vpop.permute.xlu0 %1147
      %1149 = vrot.lane.b32.xlu0 %v689, 8
      %v1150 = vpop.permute.xlu0 %1149
      %1151 = vrot.lane.b32.xlu0 %v688, 8
      %v1152 = vpop.permute.xlu0 %1151
      %1153 = vrot.lane.b32.xlu0 %v687, 8
      %v1154 = vpop.permute.xlu0 %1153
      %1155 = vrot.lane.b32.xlu0 %v686, 8
      %v1156 = vpop.permute.xlu0 %1155
      %1157 = vrot.lane.b32.xlu0 %v685, 8
      %v1158 = vpop.permute.xlu0 %1157
      %1159 = vrot.lane.b32.xlu0 %v684, 8
      %v1160 = vpop.permute.xlu0 %1159
      %1161 = vrot.lane.b32.xlu0 %v683, 8
      %v1162 = vpop.permute.xlu0 %1161
      %1163 = vrot.lane.b32.xlu0 %v682, 8
      %v1164 = vpop.permute.xlu0 %1163
      %1165 = vrot.lane.b32.xlu0 %v681, 8
      %v1166 = vpop.permute.xlu0 %1165
      %1167 = vrot.lane.b32.xlu0 %v680, 8
      %v1168 = vpop.permute.xlu0 %1167
      %1169 = vrot.lane.b32.xlu0 %v679, 8
      %v1170 = vpop.permute.xlu0 %1169
      %1171 = vrot.lane.b32.xlu0 %v678, 8
      %v1172 = vpop.permute.xlu0 %1171
      %1173 = vrot.lane.b32.xlu0 %v677, 8
      %v1174 = vpop.permute.xlu0 %1173
      %1175 = vrot.lane.b32.xlu0 %v676, 8
      %v1176 = vpop.permute.xlu0 %1175
      %1177 = vrot.lane.b32.xlu0 %v675, 8
      %v1178 = vpop.permute.xlu0 %1177
      %1179 = vrot.lane.b32.xlu0 %v674, 8
      %v1180 = vpop.permute.xlu0 %1179
      %1181 = vrot.lane.b32.xlu0 %v673, 8
      %v1182 = vpop.permute.xlu0 %1181
      %1183 = vrot.lane.b32.xlu0 %v736, 8
      %v1184 = vpop.permute.xlu0 %1183
      %vm1249 = vcmask 31744
      %v1250 = vsel %vm1249, %v607, %v802
      %v1251 = vsel %vm1249, %v606, %v804
      %v1252 = vsel %vm1249, %v605, %v806
      %v1253 = vsel %vm1249, %v604, %v808
      %v1254 = vsel %vm1249, %v603, %v810
      %v1255 = vsel %vm1249, %v602, %v812
      %v1256 = vsel %vm1249, %v601, %v814
      %v1257 = vsel %vm1249, %v600, %v816
      %v1258 = vsel %vm1249, %v599, %v818
      %v1259 = vsel %vm1249, %v598, %v820
      %v1260 = vsel %vm1249, %v597, %v822
      %v1261 = vsel %vm1249, %v596, %v824
      %v1262 = vsel %vm1249, %v595, %v826
      %v1263 = vsel %vm1249, %v594, %v828
      %v1264 = vsel %vm1249, %v593, %v830
      %v1265 = vsel %vm1249, %v592, %v832
      %v1266 = vsel %vm1249, %v591, %v834
      %v1267 = vsel %vm1249, %v590, %v836
      %v1268 = vsel %vm1249, %v589, %v838
      %v1269 = vsel %vm1249, %v588, %v840
      %v1270 = vsel %vm1249, %v587, %v842
      %v1271 = vsel %vm1249, %v586, %v844
      %v1272 = vsel %vm1249, %v585, %v846
      %v1273 = vsel %vm1249, %v584, %v848
      %v1274 = vsel %vm1249, %v583, %v850
      %v1275 = vsel %vm1249, %v582, %v852
      %v1276 = vsel %vm1249, %v581, %v854
      %v1277 = vsel %vm1249, %v580, %v856
      %v1278 = vsel %vm1249, %v579, %v858
      %v1279 = vsel %vm1249, %v578, %v860
      %v1280 = vsel %vm1249, %v577, %v862
      %v1281 = vsel %vm1249, %v576, %v864
      %v1282 = vsel %vm1249, %v575, %v866
      %v1283 = vsel %vm1249, %v574, %v868
      %v1284 = vsel %vm1249, %v573, %v870
      %v1285 = vsel %vm1249, %v572, %v872
      %v1286 = vsel %vm1249, %v571, %v874
      %v1287 = vsel %vm1249, %v570, %v876
      %v1288 = vsel %vm1249, %v569, %v878
      %v1289 = vsel %vm1249, %v568, %v880
      %v1290 = vsel %vm1249, %v567, %v882
      %v1291 = vsel %vm1249, %v566, %v884
      %v1292 = vsel %vm1249, %v565, %v886
      %v1293 = vsel %vm1249, %v564, %v888
      %v1294 = vsel %vm1249, %v563, %v890
      %v1295 = vsel %vm1249, %v562, %v892
      %v1296 = vsel %vm1249, %v561, %v894
      %v1297 = vsel %vm1249, %v560, %v896
      %v1298 = vsel %vm1249, %v559, %v898
      %v1299 = vsel %vm1249, %v558, %v900
      %v1300 = vsel %vm1249, %v557, %v902
      %v1301 = vsel %vm1249, %v556, %v904
      %v1302 = vsel %vm1249, %v555, %v906
      %v1303 = vsel %vm1249, %v554, %v908
      %v1304 = vsel %vm1249, %v553, %v910
      %v1305 = vsel %vm1249, %v552, %v912
      %v1306 = vsel %vm1249, %v551, %v914
      %v1307 = vsel %vm1249, %v550, %v916
      %v1308 = vsel %vm1249, %v549, %v918
      %v1309 = vsel %vm1249, %v548, %v920
      %v1310 = vsel %vm1249, %v547, %v922
      %v1311 = vsel %vm1249, %v546, %v924
      %v1312 = vsel %vm1249, %v545, %v926
      %v1313 = vsel %vm1249, %v544, %v928
      %vm1314 = vcmask 64512
      %v1315 = vsel %vm1314, %v1250, %v1058
      %v1316 = vsel %vm1314, %v1251, %v1060
      %v1317 = vsel %vm1314, %v1252, %v1062
      %v1318 = vsel %vm1314, %v1253, %v1064
      %v1319 = vsel %vm1314, %v1254, %v1066
      %v1320 = vsel %vm1314, %v1255, %v1068
      %v1321 = vsel %vm1314, %v1256, %v1070
      %v1322 = vsel %vm1314, %v1257, %v1072
      %v1323 = vsel %vm1314, %v1258, %v1074
      %v1324 = vsel %vm1314, %v1259, %v1076
      %v1325 = vsel %vm1314, %v1260, %v1078
      %v1326 = vsel %vm1314, %v1261, %v1080
      %v1327 = vsel %vm1314, %v1262, %v1082
      %v1328 = vsel %vm1314, %v1263, %v1084
      %v1329 = vsel %vm1314, %v1264, %v1086
      %v1330 = vsel %vm1314, %v1265, %v1088
      %v1331 = vsel %vm1314, %v1266, %v1090
      %v1332 = vsel %vm1314, %v1267, %v1092
      %v1333 = vsel %vm1314, %v1268, %v1094
      %v1334 = vsel %vm1314, %v1269, %v1096
      %v1335 = vsel %vm1314, %v1270, %v1098
      %v1336 = vsel %vm1314, %v1271, %v1100
      %v1337 = vsel %vm1314, %v1272, %v1102
      %v1338 = vsel %vm1314, %v1273, %v1104
      %v1339 = vsel %vm1314, %v1274, %v1106
      %v1340 = vsel %vm1314, %v1275, %v1108
      %v1341 = vsel %vm1314, %v1276, %v1110
      %v1342 = vsel %vm1314, %v1277, %v1112
      %v1343 = vsel %vm1314, %v1278, %v1114
      %v1344 = vsel %vm1314, %v1279, %v1116
      %v1345 = vsel %vm1314, %v1280, %v1118
      %v1346 = vsel %vm1314, %v1281, %v1120
      %v1347 = vsel %vm1314, %v1282, %v1122
      %v1348 = vsel %vm1314, %v1283, %v1124
      %v1349 = vsel %vm1314, %v1284, %v1126
      %v1350 = vsel %vm1314, %v1285, %v1128
      %v1351 = vsel %vm1314, %v1286, %v1130
      %v1352 = vsel %vm1314, %v1287, %v1132
      %v1353 = vsel %vm1314, %v1288, %v1134
      %v1354 = vsel %vm1314, %v1289, %v1136
      %v1355 = vsel %vm1314, %v1290, %v1138
      %v1356 = vsel %vm1314, %v1291, %v1140
      %v1357 = vsel %vm1314, %v1292, %v1142
      %v1358 = vsel %vm1314, %v1293, %v1144
      %v1359 = vsel %vm1314, %v1294, %v1146
      %v1360 = vsel %vm1314, %v1295, %v1148
      %v1361 = vsel %vm1314, %v1296, %v1150
      %v1362 = vsel %vm1314, %v1297, %v1152
      %v1363 = vsel %vm1314, %v1298, %v1154
      %v1364 = vsel %vm1314, %v1299, %v1156
      %v1365 = vsel %vm1314, %v1300, %v1158
      %v1366 = vsel %vm1314, %v1301, %v1160
      %v1367 = vsel %vm1314, %v1302, %v1162
      %v1368 = vsel %vm1314, %v1303, %v1164
      %v1369 = vsel %vm1314, %v1304, %v1166
      %v1370 = vsel %vm1314, %v1305, %v1168
      %v1371 = vsel %vm1314, %v1306, %v1170
      %v1372 = vsel %vm1314, %v1307, %v1172
      %v1373 = vsel %vm1314, %v1308, %v1174
      %v1374 = vsel %vm1314, %v1309, %v1176
      %v1375 = vsel %vm1314, %v1310, %v1178
      %v1376 = vsel %vm1314, %v1311, %v1180
      %v1377 = vsel %vm1314, %v1312, %v1182
      %v1378 = vsel %vm1314, %v1313, %v1184
      %v1379 = vpack.c.bf16 %v1316, %v1315
      %v1380 = vpack.c.bf16 %v1318, %v1317
      %v1381 = vpack.c.bf16 %v1320, %v1319
      %v1382 = vpack.c.bf16 %v1322, %v1321
      %v1383 = vpack.c.bf16 %v1324, %v1323
      %v1384 = vpack.c.bf16 %v1326, %v1325
      %v1385 = vpack.c.bf16 %v1328, %v1327
      %v1386 = vpack.c.bf16 %v1330, %v1329
      %v1387 = vpack.c.bf16 %v1332, %v1331
      %v1388 = vpack.c.bf16 %v1334, %v1333
      %v1389 = vpack.c.bf16 %v1336, %v1335
      %v1390 = vpack.c.bf16 %v1338, %v1337
      %v1391 = vpack.c.bf16 %v1340, %v1339
      %v1392 = vpack.c.bf16 %v1342, %v1341
      %v1393 = vpack.c.bf16 %v1344, %v1343
      %v1394 = vpack.c.bf16 %v1346, %v1345
      %v1395 = vpack.c.bf16 %v1348, %v1347
      %v1396 = vpack.c.bf16 %v1350, %v1349
      %v1397 = vpack.c.bf16 %v1352, %v1351
      %v1398 = vpack.c.bf16 %v1354, %v1353
      %v1399 = vpack.c.bf16 %v1356, %v1355
      %v1400 = vpack.c.bf16 %v1358, %v1357
      %v1401 = vpack.c.bf16 %v1360, %v1359
      %v1402 = vpack.c.bf16 %v1362, %v1361
      %v1403 = vpack.c.bf16 %v1364, %v1363
      %v1404 = vpack.c.bf16 %v1366, %v1365
      %v1405 = vpack.c.bf16 %v1368, %v1367
      %v1406 = vpack.c.bf16 %v1370, %v1369
      %v1407 = vpack.c.bf16 %v1372, %v1371
      %v1408 = vpack.c.bf16 %v1374, %v1373
      %v1409 = vpack.c.bf16 %v1376, %v1375
      %v1410 = vpack.c.bf16 %v1378, %v1377
      %s1411 = smul.u32 %s21, 6
      %s1412 = smul.addr %s1411, 4
      %s1413 = scalar_lea.vmem %s1, %s1412
      %v1414 = vld [vmem:[%s1413] sm:$0xf]
      %v1415 = vld [vmem:[%s1413 + $0x4] sm:$0x3]
      %v1416 = vld [vmem:[%s380] sm:$0xff]
      %v1417 = vld [vmem:[%s380 + $0x8] sm:$0xff]
      %v1418 = vld [vmem:[%s380 + $0x10] sm:$0xff]
      %v1419 = vld [vmem:[%s380 + $0x18] sm:$0xff]
      %v1420 = vld [vmem:[%s380 + $0x20] sm:$0xff]
      %v1421 = vld [vmem:[%s380 + $0x28] sm:$0xff]
      %v1422 = vld [vmem:[%s380 + $0x30] sm:$0xff]
      %v1423 = vld [vmem:[%s380 + $0x38] sm:$0xff]
      %v1424 = vld [vmem:[%s380 + $0x40] sm:$0xff]
      %v1425 = vld [vmem:[%s380 + $0x48] sm:$0xff]
      %v1426 = vld [vmem:[%s380 + $0x50] sm:$0xff]
      %v1427 = vld [vmem:[%s380 + $0x58] sm:$0xff]
      %v1428 = vld [vmem:[%s380 + $0x60] sm:$0xff]
      %v1429 = vld [vmem:[%s380 + $0x68] sm:$0xff]
      %v1430 = vld [vmem:[%s380 + $0x70] sm:$0xff]
      %v1431 = vld [vmem:[%s380 + $0x78] sm:$0xff]
      %v1432 = vld [vmem:[%s380 + $0x80] sm:$0xff]
      %v1433 = vld [vmem:[%s380 + $0x88] sm:$0xff]
      %v1434 = vld [vmem:[%s380 + $0x90] sm:$0xff]
      %v1435 = vld [vmem:[%s380 + $0x98] sm:$0xff]
      %v1436 = vld [vmem:[%s380 + $0xa0] sm:$0xff]
      %v1437 = vld [vmem:[%s380 + $0xa8] sm:$0xff]
      %v1438 = vld [vmem:[%s380 + $0xb0] sm:$0xff]
      %v1439 = vld [vmem:[%s380 + $0xb8] sm:$0xff]
      %v1440 = vld [vmem:[%s380 + $0xc0] sm:$0xff]
      %v1441 = vld [vmem:[%s380 + $0xc8] sm:$0xff]
      %v1442 = vld [vmem:[%s380 + $0xd0] sm:$0xff]
      %v1443 = vld [vmem:[%s380 + $0xd8] sm:$0xff]
      %v1444 = vld [vmem:[%s380 + $0xe0] sm:$0xff]
      %v1445 = vld [vmem:[%s380 + $0xe8] sm:$0xff]
      %v1446 = vld [vmem:[%s380 + $0xf0] sm:$0xff]
      %v1447 = vld [vmem:[%s380 + $0xf8] sm:$0xff]
      %v1448 = vld [vmem:[%s380 + $0x100] sm:$0xff]
      %v1449 = vld [vmem:[%s380 + $0x108] sm:$0xff]
      %v1450 = vld [vmem:[%s380 + $0x110] sm:$0xff]
      %v1451 = vld [vmem:[%s380 + $0x118] sm:$0xff]
      %v1452 = vld [vmem:[%s380 + $0x120] sm:$0xff]
      %v1453 = vld [vmem:[%s380 + $0x128] sm:$0xff]
      %v1454 = vld [vmem:[%s380 + $0x130] sm:$0xff]
      %v1455 = vld [vmem:[%s380 + $0x138] sm:$0xff]
      %v1456 = vld [vmem:[%s380 + $0x140] sm:$0xff]
      %v1457 = vld [vmem:[%s380 + $0x148] sm:$0xff]
      %v1458 = vld [vmem:[%s380 + $0x150] sm:$0xff]
      %v1459 = vld [vmem:[%s380 + $0x158] sm:$0xff]
      %v1460 = vld [vmem:[%s380 + $0x160] sm:$0xff]
      %v1461 = vld [vmem:[%s380 + $0x168] sm:$0xff]
      %v1462 = vld [vmem:[%s380 + $0x170] sm:$0xff]
      %v1463 = vld [vmem:[%s380 + $0x178] sm:$0xff]
      %v1464 = vld [vmem:[%s380 + $0x180] sm:$0xff]
      %v1465 = vld [vmem:[%s380 + $0x188] sm:$0xff]
      %v1466 = vld [vmem:[%s380 + $0x190] sm:$0xff]
      %v1467 = vld [vmem:[%s380 + $0x198] sm:$0xff]
      %v1468 = vld [vmem:[%s380 + $0x1a0] sm:$0xff]
      %v1469 = vld [vmem:[%s380 + $0x1a8] sm:$0xff]
      %v1470 = vld [vmem:[%s380 + $0x1b0] sm:$0xff]
      %v1471 = vld [vmem:[%s380 + $0x1b8] sm:$0xff]
      %v1472 = vld [vmem:[%s380 + $0x1c0] sm:$0xff]
      %v1473 = vld [vmem:[%s380 + $0x1c8] sm:$0xff]
      %v1474 = vld [vmem:[%s380 + $0x1d0] sm:$0xff]
      %v1475 = vld [vmem:[%s380 + $0x1d8] sm:$0xff]
      %v1476 = vld [vmem:[%s380 + $0x1e0] sm:$0xff]
      %v1477 = vld [vmem:[%s380 + $0x1e8] sm:$0xff]
      %v1478 = vld [vmem:[%s380 + $0x1f0] sm:$0xff]
      %v1479 = vld [vmem:[%s380 + $0x1f8] sm:$0xff]
      %v1480 = vrot.slane %v1416, 7
      %v1481 = vrot.slane %v1417, 7
      %v1482 = vrot.slane %v1418, 7
      %v1483 = vrot.slane %v1419, 7
      %v1484 = vrot.slane %v1420, 7
      %v1485 = vrot.slane %v1421, 7
      %v1486 = vrot.slane %v1422, 7
      %v1487 = vrot.slane %v1423, 7
      %v1488 = vrot.slane %v1424, 7
      %v1489 = vrot.slane %v1425, 7
      %v1490 = vrot.slane %v1426, 7
      %v1491 = vrot.slane %v1427, 7
      %v1492 = vrot.slane %v1428, 7
      %v1493 = vrot.slane %v1429, 7
      %v1494 = vrot.slane %v1430, 7
      %v1495 = vrot.slane %v1431, 7
      %v1496 = vrot.slane %v1432, 7
      %v1497 = vrot.slane %v1433, 7
      %v1498 = vrot.slane %v1434, 7
      %v1499 = vrot.slane %v1435, 7
      %v1500 = vrot.slane %v1436, 7
      %v1501 = vrot.slane %v1437, 7
      %v1502 = vrot.slane %v1438, 7
      %v1503 = vrot.slane %v1439, 7
      %v1504 = vrot.slane %v1440, 7
      %v1505 = vrot.slane %v1441, 7
      %v1506 = vrot.slane %v1442, 7
      %v1507 = vrot.slane %v1443, 7
      %v1508 = vrot.slane %v1444, 7
      %v1509 = vrot.slane %v1445, 7
      %v1510 = vrot.slane %v1446, 7
      %v1511 = vrot.slane %v1447, 7
      %v1512 = vrot.slane %v1448, 7
      %v1513 = vrot.slane %v1449, 7
      %v1514 = vrot.slane %v1450, 7
      %v1515 = vrot.slane %v1451, 7
      %v1516 = vrot.slane %v1452, 7
      %v1517 = vrot.slane %v1453, 7
      %v1518 = vrot.slane %v1454, 7
      %v1519 = vrot.slane %v1455, 7
      %v1520 = vrot.slane %v1456, 7
      %v1521 = vrot.slane %v1457, 7
      %v1522 = vrot.slane %v1458, 7
      %v1523 = vrot.slane %v1459, 7
      %v1524 = vrot.slane %v1460, 7
      %v1525 = vrot.slane %v1461, 7
      %v1526 = vrot.slane %v1462, 7
      %v1527 = vrot.slane %v1463, 7
      %v1528 = vrot.slane %v1464, 7
      %v1529 = vrot.slane %v1465, 7
      %v1530 = vrot.slane %v1466, 7
      %v1531 = vrot.slane %v1467, 7
      %v1532 = vrot.slane %v1468, 7
      %v1533 = vrot.slane %v1469, 7
      %v1534 = vrot.slane %v1470, 7
      %v1535 = vrot.slane %v1471, 7
      %v1536 = vrot.slane %v1472, 7
      %v1537 = vrot.slane %v1473, 7
      %v1538 = vrot.slane %v1474, 7
      %v1539 = vrot.slane %v1475, 7
      %v1540 = vrot.slane %v1476, 7
      %v1541 = vrot.slane %v1477, 7
      %v1542 = vrot.slane %v1478, 7
      %v1543 = vrot.slane %v1479, 7
      %v1544 = vsel %vm543, %v1542, %v1543
      %v1545 = vsel %vm543, %v1541, %v1542
      %v1546 = vsel %vm543, %v1540, %v1541
      %v1547 = vsel %vm543, %v1539, %v1540
      %v1548 = vsel %vm543, %v1538, %v1539
      %v1549 = vsel %vm543, %v1537, %v1538
      %v1550 = vsel %vm543, %v1536, %v1537
      %v1551 = vsel %vm543, %v1535, %v1536
      %v1552 = vsel %vm543, %v1534, %v1535
      %v1553 = vsel %vm543, %v1533, %v1534
      %v1554 = vsel %vm543, %v1532, %v1533
      %v1555 = vsel %vm543, %v1531, %v1532
      %v1556 = vsel %vm543, %v1530, %v1531
      %v1557 = vsel %vm543, %v1529, %v1530
      %v1558 = vsel %vm543, %v1528, %v1529
      %v1559 = vsel %vm543, %v1527, %v1528
      %v1560 = vsel %vm543, %v1526, %v1527
      %v1561 = vsel %vm543, %v1525, %v1526
      %v1562 = vsel %vm543, %v1524, %v1525
      %v1563 = vsel %vm543, %v1523, %v1524
      %v1564 = vsel %vm543, %v1522, %v1523
      %v1565 = vsel %vm543, %v1521, %v1522
      %v1566 = vsel %vm543, %v1520, %v1521
      %v1567 = vsel %vm543, %v1519, %v1520
      %v1568 = vsel %vm543, %v1518, %v1519
      %v1569 = vsel %vm543, %v1517, %v1518
      %v1570 = vsel %vm543, %v1516, %v1517
      %v1571 = vsel %vm543, %v1515, %v1516
      %v1572 = vsel %vm543, %v1514, %v1515
      %v1573 = vsel %vm543, %v1513, %v1514
      %v1574 = vsel %vm543, %v1512, %v1513
      %v1575 = vsel %vm543, %v1511, %v1512
      %v1576 = vsel %vm543, %v1510, %v1511
      %v1577 = vsel %vm543, %v1509, %v1510
      %v1578 = vsel %vm543, %v1508, %v1509
      %v1579 = vsel %vm543, %v1507, %v1508
      %v1580 = vsel %vm543, %v1506, %v1507
      %v1581 = vsel %vm543, %v1505, %v1506
      %v1582 = vsel %vm543, %v1504, %v1505
      %v1583 = vsel %vm543, %v1503, %v1504
      %v1584 = vsel %vm543, %v1502, %v1503
      %v1585 = vsel %vm543, %v1501, %v1502
      %v1586 = vsel %vm543, %v1500, %v1501
      %v1587 = vsel %vm543, %v1499, %v1500
      %v1588 = vsel %vm543, %v1498, %v1499
      %v1589 = vsel %vm543, %v1497, %v1498
      %v1590 = vsel %vm543, %v1496, %v1497
      %v1591 = vsel %vm543, %v1495, %v1496
      %v1592 = vsel %vm543, %v1494, %v1495
      %v1593 = vsel %vm543, %v1493, %v1494
      %v1594 = vsel %vm543, %v1492, %v1493
      %v1595 = vsel %vm543, %v1491, %v1492
      %v1596 = vsel %vm543, %v1490, %v1491
      %v1597 = vsel %vm543, %v1489, %v1490
      %v1598 = vsel %vm543, %v1488, %v1489
      %v1599 = vsel %vm543, %v1487, %v1488
      %v1600 = vsel %vm543, %v1486, %v1487
      %v1601 = vsel %vm543, %v1485, %v1486
      %v1602 = vsel %vm543, %v1484, %v1485
      %v1603 = vsel %vm543, %v1483, %v1484
      %v1604 = vsel %vm543, %v1482, %v1483
      %v1605 = vsel %vm543, %v1481, %v1482
      %v1606 = vsel %vm543, %v1480, %v1481
      %v1607 = vsel %vm543, %v1543, %v1480
      %v1608 = vrot.slane %v1416, 1
      %v1609 = vrot.slane %v1417, 1
      %v1610 = vrot.slane %v1418, 1
      %v1611 = vrot.slane %v1419, 1
      %v1612 = vrot.slane %v1420, 1
      %v1613 = vrot.slane %v1421, 1
      %v1614 = vrot.slane %v1422, 1
      %v1615 = vrot.slane %v1423, 1
      %v1616 = vrot.slane %v1424, 1
      %v1617 = vrot.slane %v1425, 1
      %v1618 = vrot.slane %v1426, 1
      %v1619 = vrot.slane %v1427, 1
      %v1620 = vrot.slane %v1428, 1
      %v1621 = vrot.slane %v1429, 1
      %v1622 = vrot.slane %v1430, 1
      %v1623 = vrot.slane %v1431, 1
      %v1624 = vrot.slane %v1432, 1
      %v1625 = vrot.slane %v1433, 1
      %v1626 = vrot.slane %v1434, 1
      %v1627 = vrot.slane %v1435, 1
      %v1628 = vrot.slane %v1436, 1
      %v1629 = vrot.slane %v1437, 1
      %v1630 = vrot.slane %v1438, 1
      %v1631 = vrot.slane %v1439, 1
      %v1632 = vrot.slane %v1440, 1
      %v1633 = vrot.slane %v1441, 1
      %v1634 = vrot.slane %v1442, 1
      %v1635 = vrot.slane %v1443, 1
      %v1636 = vrot.slane %v1444, 1
      %v1637 = vrot.slane %v1445, 1
      %v1638 = vrot.slane %v1446, 1
      %v1639 = vrot.slane %v1447, 1
      %v1640 = vrot.slane %v1448, 1
      %v1641 = vrot.slane %v1449, 1
      %v1642 = vrot.slane %v1450, 1
      %v1643 = vrot.slane %v1451, 1
      %v1644 = vrot.slane %v1452, 1
      %v1645 = vrot.slane %v1453, 1
      %v1646 = vrot.slane %v1454, 1
      %v1647 = vrot.slane %v1455, 1
      %v1648 = vrot.slane %v1456, 1
      %v1649 = vrot.slane %v1457, 1
      %v1650 = vrot.slane %v1458, 1
      %v1651 = vrot.slane %v1459, 1
      %v1652 = vrot.slane %v1460, 1
      %v1653 = vrot.slane %v1461, 1
      %v1654 = vrot.slane %v1462, 1
      %v1655 = vrot.slane %v1463, 1
      %v1656 = vrot.slane %v1464, 1
      %v1657 = vrot.slane %v1465, 1
      %v1658 = vrot.slane %v1466, 1
      %v1659 = vrot.slane %v1467, 1
      %v1660 = vrot.slane %v1468, 1
      %v1661 = vrot.slane %v1469, 1
      %v1662 = vrot.slane %v1470, 1
      %v1663 = vrot.slane %v1471, 1
      %v1664 = vrot.slane %v1472, 1
      %v1665 = vrot.slane %v1473, 1
      %v1666 = vrot.slane %v1474, 1
      %v1667 = vrot.slane %v1475, 1
      %v1668 = vrot.slane %v1476, 1
      %v1669 = vrot.slane %v1477, 1
      %v1670 = vrot.slane %v1478, 1
      %v1671 = vrot.slane %v1479, 1
      %v1672 = vsel %vm672, %v1670, %v1671
      %v1673 = vsel %vm672, %v1669, %v1670
      %v1674 = vsel %vm672, %v1668, %v1669
      %v1675 = vsel %vm672, %v1667, %v1668
      %v1676 = vsel %vm672, %v1666, %v1667
      %v1677 = vsel %vm672, %v1665, %v1666
      %v1678 = vsel %vm672, %v1664, %v1665
      %v1679 = vsel %vm672, %v1663, %v1664
      %v1680 = vsel %vm672, %v1662, %v1663
      %v1681 = vsel %vm672, %v1661, %v1662
      %v1682 = vsel %vm672, %v1660, %v1661
      %v1683 = vsel %vm672, %v1659, %v1660
      %v1684 = vsel %vm672, %v1658, %v1659
      %v1685 = vsel %vm672, %v1657, %v1658
      %v1686 = vsel %vm672, %v1656, %v1657
      %v1687 = vsel %vm672, %v1655, %v1656
      %v1688 = vsel %vm672, %v1654, %v1655
      %v1689 = vsel %vm672, %v1653, %v1654
      %v1690 = vsel %vm672, %v1652, %v1653
      %v1691 = vsel %vm672, %v1651, %v1652
      %v1692 = vsel %vm672, %v1650, %v1651
      %v1693 = vsel %vm672, %v1649, %v1650
      %v1694 = vsel %vm672, %v1648, %v1649
      %v1695 = vsel %vm672, %v1647, %v1648
      %v1696 = vsel %vm672, %v1646, %v1647
      %v1697 = vsel %vm672, %v1645, %v1646
      %v1698 = vsel %vm672, %v1644, %v1645
      %v1699 = vsel %vm672, %v1643, %v1644
      %v1700 = vsel %vm672, %v1642, %v1643
      %v1701 = vsel %vm672, %v1641, %v1642
      %v1702 = vsel %vm672, %v1640, %v1641
      %v1703 = vsel %vm672, %v1639, %v1640
      %v1704 = vsel %vm672, %v1638, %v1639
      %v1705 = vsel %vm672, %v1637, %v1638
      %v1706 = vsel %vm672, %v1636, %v1637
      %v1707 = vsel %vm672, %v1635, %v1636
      %v1708 = vsel %vm672, %v1634, %v1635
      %v1709 = vsel %vm672, %v1633, %v1634
      %v1710 = vsel %vm672, %v1632, %v1633
      %v1711 = vsel %vm672, %v1631, %v1632
      %v1712 = vsel %vm672, %v1630, %v1631
      %v1713 = vsel %vm672, %v1629, %v1630
      %v1714 = vsel %vm672, %v1628, %v1629
      %v1715 = vsel %vm672, %v1627, %v1628
      %v1716 = vsel %vm672, %v1626, %v1627
      %v1717 = vsel %vm672, %v1625, %v1626
      %v1718 = vsel %vm672, %v1624, %v1625
      %v1719 = vsel %vm672, %v1623, %v1624
      %v1720 = vsel %vm672, %v1622, %v1623
      %v1721 = vsel %vm672, %v1621, %v1622
      %v1722 = vsel %vm672, %v1620, %v1621
      %v1723 = vsel %vm672, %v1619, %v1620
      %v1724 = vsel %vm672, %v1618, %v1619
      %v1725 = vsel %vm672, %v1617, %v1618
      %v1726 = vsel %vm672, %v1616, %v1617
      %v1727 = vsel %vm672, %v1615, %v1616
      %v1728 = vsel %vm672, %v1614, %v1615
      %v1729 = vsel %vm672, %v1613, %v1614
      %v1730 = vsel %vm672, %v1612, %v1613
      %v1731 = vsel %vm672, %v1611, %v1612
      %v1732 = vsel %vm672, %v1610, %v1611
      %v1733 = vsel %vm672, %v1609, %v1610
      %v1734 = vsel %vm672, %v1608, %v1609
      %v1735 = vsel %vm672, %v1671, %v1608
      %1800 = vrot.lane.b32.xlu0 %v1416, 4
      %v1801 = vpop.permute.xlu0 %1800
      %1802 = vrot.lane.b32.xlu0 %v1417, 4
      %v1803 = vpop.permute.xlu0 %1802
      %1804 = vrot.lane.b32.xlu0 %v1418, 4
      %v1805 = vpop.permute.xlu0 %1804
      %1806 = vrot.lane.b32.xlu0 %v1419, 4
      %v1807 = vpop.permute.xlu0 %1806
      %1808 = vrot.lane.b32.xlu0 %v1420, 4
      %v1809 = vpop.permute.xlu0 %1808
      %1810 = vrot.lane.b32.xlu0 %v1421, 4
      %v1811 = vpop.permute.xlu0 %1810
      %1812 = vrot.lane.b32.xlu0 %v1422, 4
      %v1813 = vpop.permute.xlu0 %1812
      %1814 = vrot.lane.b32.xlu0 %v1423, 4
      %v1815 = vpop.permute.xlu0 %1814
      %1816 = vrot.lane.b32.xlu0 %v1424, 4
      %v1817 = vpop.permute.xlu0 %1816
      %1818 = vrot.lane.b32.xlu0 %v1425, 4
      %v1819 = vpop.permute.xlu0 %1818
      %1820 = vrot.lane.b32.xlu0 %v1426, 4
      %v1821 = vpop.permute.xlu0 %1820
      %1822 = vrot.lane.b32.xlu0 %v1427, 4
      %v1823 = vpop.permute.xlu0 %1822
      %1824 = vrot.lane.b32.xlu0 %v1428, 4
      %v1825 = vpop.permute.xlu0 %1824
      %1826 = vrot.lane.b32.xlu0 %v1429, 4
      %v1827 = vpop.permute.xlu0 %1826
      %1828 = vrot.lane.b32.xlu0 %v1430, 4
      %v1829 = vpop.permute.xlu0 %1828
      %1830 = vrot.lane.b32.xlu0 %v1431, 4
      %v1831 = vpop.permute.xlu0 %1830
      %1832 = vrot.lane.b32.xlu0 %v1432, 4
      %v1833 = vpop.permute.xlu0 %1832
      %1834 = vrot.lane.b32.xlu0 %v1433, 4
      %v1835 = vpop.permute.xlu0 %1834
      %1836 = vrot.lane.b32.xlu0 %v1434, 4
      %v1837 = vpop.permute.xlu0 %1836
      %1838 = vrot.lane.b32.xlu0 %v1435, 4
      %v1839 = vpop.permute.xlu0 %1838
      %1840 = vrot.lane.b32.xlu0 %v1436, 4
      %v1841 = vpop.permute.xlu0 %1840
      %1842 = vrot.lane.b32.xlu0 %v1437, 4
      %v1843 = vpop.permute.xlu0 %1842
      %1844 = vrot.lane.b32.xlu0 %v1438, 4
      %v1845 = vpop.permute.xlu0 %1844
      %1846 = vrot.lane.b32.xlu0 %v1439, 4
      %v1847 = vpop.permute.xlu0 %1846
      %1848 = vrot.lane.b32.xlu0 %v1440, 4
      %v1849 = vpop.permute.xlu0 %1848
      %1850 = vrot.lane.b32.xlu0 %v1441, 4
      %v1851 = vpop.permute.xlu0 %1850
      %1852 = vrot.lane.b32.xlu0 %v1442, 4
      %v1853 = vpop.permute.xlu0 %1852
      %1854 = vrot.lane.b32.xlu0 %v1443, 4
      %v1855 = vpop.permute.xlu0 %1854
      %1856 = vrot.lane.b32.xlu0 %v1444, 4
      %v1857 = vpop.permute.xlu0 %1856
      %1858 = vrot.lane.b32.xlu0 %v1445, 4
      %v1859 = vpop.permute.xlu0 %1858
      %1860 = vrot.lane.b32.xlu0 %v1446, 4
      %v1861 = vpop.permute.xlu0 %1860
      %1862 = vrot.lane.b32.xlu0 %v1447, 4
      %v1863 = vpop.permute.xlu0 %1862
      %1864 = vrot.lane.b32.xlu0 %v1448, 4
      %v1865 = vpop.permute.xlu0 %1864
      %1866 = vrot.lane.b32.xlu0 %v1449, 4
      %v1867 = vpop.permute.xlu0 %1866
      %1868 = vrot.lane.b32.xlu0 %v1450, 4
      %v1869 = vpop.permute.xlu0 %1868
      %1870 = vrot.lane.b32.xlu0 %v1451, 4
      %v1871 = vpop.permute.xlu0 %1870
      %1872 = vrot.lane.b32.xlu0 %v1452, 4
      %v1873 = vpop.permute.xlu0 %1872
      %1874 = vrot.lane.b32.xlu0 %v1453, 4
      %v1875 = vpop.permute.xlu0 %1874
      %1876 = vrot.lane.b32.xlu0 %v1454, 4
      %v1877 = vpop.permute.xlu0 %1876
      %1878 = vrot.lane.b32.xlu0 %v1455, 4
      %v1879 = vpop.permute.xlu0 %1878
      %1880 = vrot.lane.b32.xlu0 %v1456, 4
      %v1881 = vpop.permute.xlu0 %1880
      %1882 = vrot.lane.b32.xlu0 %v1457, 4
      %v1883 = vpop.permute.xlu0 %1882
      %1884 = vrot.lane.b32.xlu0 %v1458, 4
      %v1885 = vpop.permute.xlu0 %1884
      %1886 = vrot.lane.b32.xlu0 %v1459, 4
      %v1887 = vpop.permute.xlu0 %1886
      %1888 = vrot.lane.b32.xlu0 %v1460, 4
      %v1889 = vpop.permute.xlu0 %1888
      %1890 = vrot.lane.b32.xlu0 %v1461, 4
      %v1891 = vpop.permute.xlu0 %1890
      %1892 = vrot.lane.b32.xlu0 %v1462, 4
      %v1893 = vpop.permute.xlu0 %1892
      %1894 = vrot.lane.b32.xlu0 %v1463, 4
      %v1895 = vpop.permute.xlu0 %1894
      %1896 = vrot.lane.b32.xlu0 %v1464, 4
      %v1897 = vpop.permute.xlu0 %1896
      %1898 = vrot.lane.b32.xlu0 %v1465, 4
      %v1899 = vpop.permute.xlu0 %1898
      %1900 = vrot.lane.b32.xlu0 %v1466, 4
      %v1901 = vpop.permute.xlu0 %1900
      %1902 = vrot.lane.b32.xlu0 %v1467, 4
      %v1903 = vpop.permute.xlu0 %1902
      %1904 = vrot.lane.b32.xlu0 %v1468, 4
      %v1905 = vpop.permute.xlu0 %1904
      %1906 = vrot.lane.b32.xlu0 %v1469, 4
      %v1907 = vpop.permute.xlu0 %1906
      %1908 = vrot.lane.b32.xlu0 %v1470, 4
      %v1909 = vpop.permute.xlu0 %1908
      %1910 = vrot.lane.b32.xlu0 %v1471, 4
      %v1911 = vpop.permute.xlu0 %1910
      %1912 = vrot.lane.b32.xlu0 %v1472, 4
      %v1913 = vpop.permute.xlu0 %1912
      %1914 = vrot.lane.b32.xlu0 %v1473, 4
      %v1915 = vpop.permute.xlu0 %1914
      %1916 = vrot.lane.b32.xlu0 %v1474, 4
      %v1917 = vpop.permute.xlu0 %1916
      %1918 = vrot.lane.b32.xlu0 %v1475, 4
      %v1919 = vpop.permute.xlu0 %1918
      %1920 = vrot.lane.b32.xlu0 %v1476, 4
      %v1921 = vpop.permute.xlu0 %1920
      %1922 = vrot.lane.b32.xlu0 %v1477, 4
      %v1923 = vpop.permute.xlu0 %1922
      %1924 = vrot.lane.b32.xlu0 %v1478, 4
      %v1925 = vpop.permute.xlu0 %1924
      %1926 = vrot.lane.b32.xlu0 %v1479, 4
      %v1927 = vpop.permute.xlu0 %1926
      %2056 = vrot.lane.b32.xlu0 %v1734, 8
      %v2057 = vpop.permute.xlu0 %2056
      %2058 = vrot.lane.b32.xlu0 %v1733, 8
      %v2059 = vpop.permute.xlu0 %2058
      %2060 = vrot.lane.b32.xlu0 %v1732, 8
      %v2061 = vpop.permute.xlu0 %2060
      %2062 = vrot.lane.b32.xlu0 %v1731, 8
      %v2063 = vpop.permute.xlu0 %2062
      %2064 = vrot.lane.b32.xlu0 %v1730, 8
      %v2065 = vpop.permute.xlu0 %2064
      %2066 = vrot.lane.b32.xlu0 %v1729, 8
      %v2067 = vpop.permute.xlu0 %2066
      %2068 = vrot.lane.b32.xlu0 %v1728, 8
      %v2069 = vpop.permute.xlu0 %2068
      %2070 = vrot.lane.b32.xlu0 %v1727, 8
      %v2071 = vpop.permute.xlu0 %2070
      %2072 = vrot.lane.b32.xlu0 %v1726, 8
      %v2073 = vpop.permute.xlu0 %2072
      %2074 = vrot.lane.b32.xlu0 %v1725, 8
      %v2075 = vpop.permute.xlu0 %2074
      %2076 = vrot.lane.b32.xlu0 %v1724, 8
      %v2077 = vpop.permute.xlu0 %2076
      %2078 = vrot.lane.b32.xlu0 %v1723, 8
      %v2079 = vpop.permute.xlu0 %2078
      %2080 = vrot.lane.b32.xlu0 %v1722, 8
      %v2081 = vpop.permute.xlu0 %2080
      %2082 = vrot.lane.b32.xlu0 %v1721, 8
      %v2083 = vpop.permute.xlu0 %2082
      %2084 = vrot.lane.b32.xlu0 %v1720, 8
      %v2085 = vpop.permute.xlu0 %2084
      %2086 = vrot.lane.b32.xlu0 %v1719, 8
      %v2087 = vpop.permute.xlu0 %2086
      %2088 = vrot.lane.b32.xlu0 %v1718, 8
      %v2089 = vpop.permute.xlu0 %2088
      %2090 = vrot.lane.b32.xlu0 %v1717, 8
      %v2091 = vpop.permute.xlu0 %2090
      %2092 = vrot.lane.b32.xlu0 %v1716, 8
      %v2093 = vpop.permute.xlu0 %2092
      %2094 = vrot.lane.b32.xlu0 %v1715, 8
      %v2095 = vpop.permute.xlu0 %2094
      %2096 = vrot.lane.b32.xlu0 %v1714, 8
      %v2097 = vpop.permute.xlu0 %2096
      %2098 = vrot.lane.b32.xlu0 %v1713, 8
      %v2099 = vpop.permute.xlu0 %2098
      %2100 = vrot.lane.b32.xlu0 %v1712, 8
      %v2101 = vpop.permute.xlu0 %2100
      %2102 = vrot.lane.b32.xlu0 %v1711, 8
      %v2103 = vpop.permute.xlu0 %2102
      %2104 = vrot.lane.b32.xlu0 %v1710, 8
      %v2105 = vpop.permute.xlu0 %2104
      %2106 = vrot.lane.b32.xlu0 %v1709, 8
      %v2107 = vpop.permute.xlu0 %2106
      %2108 = vrot.lane.b32.xlu0 %v1708, 8
      %v2109 = vpop.permute.xlu0 %2108
      %2110 = vrot.lane.b32.xlu0 %v1707, 8
      %v2111 = vpop.permute.xlu0 %2110
      %2112 = vrot.lane.b32.xlu0 %v1706, 8
      %v2113 = vpop.permute.xlu0 %2112
      %2114 = vrot.lane.b32.xlu0 %v1705, 8
      %v2115 = vpop.permute.xlu0 %2114
      %2116 = vrot.lane.b32.xlu0 %v1704, 8
      %v2117 = vpop.permute.xlu0 %2116
      %2118 = vrot.lane.b32.xlu0 %v1703, 8
      %v2119 = vpop.permute.xlu0 %2118
      %2120 = vrot.lane.b32.xlu0 %v1702, 8
      %v2121 = vpop.permute.xlu0 %2120
      %2122 = vrot.lane.b32.xlu0 %v1701, 8
      %v2123 = vpop.permute.xlu0 %2122
      %2124 = vrot.lane.b32.xlu0 %v1700, 8
      %v2125 = vpop.permute.xlu0 %2124
      %2126 = vrot.lane.b32.xlu0 %v1699, 8
      %v2127 = vpop.permute.xlu0 %2126
      %2128 = vrot.lane.b32.xlu0 %v1698, 8
      %v2129 = vpop.permute.xlu0 %2128
      %2130 = vrot.lane.b32.xlu0 %v1697, 8
      %v2131 = vpop.permute.xlu0 %2130
      %2132 = vrot.lane.b32.xlu0 %v1696, 8
      %v2133 = vpop.permute.xlu0 %2132
      %2134 = vrot.lane.b32.xlu0 %v1695, 8
      %v2135 = vpop.permute.xlu0 %2134
      %2136 = vrot.lane.b32.xlu0 %v1694, 8
      %v2137 = vpop.permute.xlu0 %2136
      %2138 = vrot.lane.b32.xlu0 %v1693, 8
      %v2139 = vpop.permute.xlu0 %2138
      %2140 = vrot.lane.b32.xlu0 %v1692, 8
      %v2141 = vpop.permute.xlu0 %2140
      %2142 = vrot.lane.b32.xlu0 %v1691, 8
      %v2143 = vpop.permute.xlu0 %2142
      %2144 = vrot.lane.b32.xlu0 %v1690, 8
      %v2145 = vpop.permute.xlu0 %2144
      %2146 = vrot.lane.b32.xlu0 %v1689, 8
      %v2147 = vpop.permute.xlu0 %2146
      %2148 = vrot.lane.b32.xlu0 %v1688, 8
      %v2149 = vpop.permute.xlu0 %2148
      %2150 = vrot.lane.b32.xlu0 %v1687, 8
      %v2151 = vpop.permute.xlu0 %2150
      %2152 = vrot.lane.b32.xlu0 %v1686, 8
      %v2153 = vpop.permute.xlu0 %2152
      %2154 = vrot.lane.b32.xlu0 %v1685, 8
      %v2155 = vpop.permute.xlu0 %2154
      %2156 = vrot.lane.b32.xlu0 %v1684, 8
      %v2157 = vpop.permute.xlu0 %2156
      %2158 = vrot.lane.b32.xlu0 %v1683, 8
      %v2159 = vpop.permute.xlu0 %2158
      %2160 = vrot.lane.b32.xlu0 %v1682, 8
      %v2161 = vpop.permute.xlu0 %2160
      %2162 = vrot.lane.b32.xlu0 %v1681, 8
      %v2163 = vpop.permute.xlu0 %2162
      %2164 = vrot.lane.b32.xlu0 %v1680, 8
      %v2165 = vpop.permute.xlu0 %2164
      %2166 = vrot.lane.b32.xlu0 %v1679, 8
      %v2167 = vpop.permute.xlu0 %2166
      %2168 = vrot.lane.b32.xlu0 %v1678, 8
      %v2169 = vpop.permute.xlu0 %2168
      %2170 = vrot.lane.b32.xlu0 %v1677, 8
      %v2171 = vpop.permute.xlu0 %2170
      %2172 = vrot.lane.b32.xlu0 %v1676, 8
      %v2173 = vpop.permute.xlu0 %2172
      %2174 = vrot.lane.b32.xlu0 %v1675, 8
      %v2175 = vpop.permute.xlu0 %2174
      %2176 = vrot.lane.b32.xlu0 %v1674, 8
      %v2177 = vpop.permute.xlu0 %2176
      %2178 = vrot.lane.b32.xlu0 %v1673, 8
      %v2179 = vpop.permute.xlu0 %2178
      %2180 = vrot.lane.b32.xlu0 %v1672, 8
      %v2181 = vpop.permute.xlu0 %2180
      %2182 = vrot.lane.b32.xlu0 %v1735, 8
      %v2183 = vpop.permute.xlu0 %2182
      %v2248 = vsel %vm1249, %v1607, %v1801
      %v2249 = vsel %vm1249, %v1606, %v1803
      %v2250 = vsel %vm1249, %v1605, %v1805
      %v2251 = vsel %vm1249, %v1604, %v1807
      %v2252 = vsel %vm1249, %v1603, %v1809
      %v2253 = vsel %vm1249, %v1602, %v1811
      %v2254 = vsel %vm1249, %v1601, %v1813
      %v2255 = vsel %vm1249, %v1600, %v1815
      %v2256 = vsel %vm1249, %v1599, %v1817
      %v2257 = vsel %vm1249, %v1598, %v1819
      %v2258 = vsel %vm1249, %v1597, %v1821
      %v2259 = vsel %vm1249, %v1596, %v1823
      %v2260 = vsel %vm1249, %v1595, %v1825
      %v2261 = vsel %vm1249, %v1594, %v1827
      %v2262 = vsel %vm1249, %v1593, %v1829
      %v2263 = vsel %vm1249, %v1592, %v1831
      %v2264 = vsel %vm1249, %v1591, %v1833
      %v2265 = vsel %vm1249, %v1590, %v1835
      %v2266 = vsel %vm1249, %v1589, %v1837
      %v2267 = vsel %vm1249, %v1588, %v1839
      %v2268 = vsel %vm1249, %v1587, %v1841
      %v2269 = vsel %vm1249, %v1586, %v1843
      %v2270 = vsel %vm1249, %v1585, %v1845
      %v2271 = vsel %vm1249, %v1584, %v1847
      %v2272 = vsel %vm1249, %v1583, %v1849
      %v2273 = vsel %vm1249, %v1582, %v1851
      %v2274 = vsel %vm1249, %v1581, %v1853
      %v2275 = vsel %vm1249, %v1580, %v1855
      %v2276 = vsel %vm1249, %v1579, %v1857
      %v2277 = vsel %vm1249, %v1578, %v1859
      %v2278 = vsel %vm1249, %v1577, %v1861
      %v2279 = vsel %vm1249, %v1576, %v1863
      %v2280 = vsel %vm1249, %v1575, %v1865
      %v2281 = vsel %vm1249, %v1574, %v1867
      %v2282 = vsel %vm1249, %v1573, %v1869
      %v2283 = vsel %vm1249, %v1572, %v1871
      %v2284 = vsel %vm1249, %v1571, %v1873
      %v2285 = vsel %vm1249, %v1570, %v1875
      %v2286 = vsel %vm1249, %v1569, %v1877
      %v2287 = vsel %vm1249, %v1568, %v1879
      %v2288 = vsel %vm1249, %v1567, %v1881
      %v2289 = vsel %vm1249, %v1566, %v1883
      %v2290 = vsel %vm1249, %v1565, %v1885
      %v2291 = vsel %vm1249, %v1564, %v1887
      %v2292 = vsel %vm1249, %v1563, %v1889
      %v2293 = vsel %vm1249, %v1562, %v1891
      %v2294 = vsel %vm1249, %v1561, %v1893
      %v2295 = vsel %vm1249, %v1560, %v1895
      %v2296 = vsel %vm1249, %v1559, %v1897
      %v2297 = vsel %vm1249, %v1558, %v1899
      %v2298 = vsel %vm1249, %v1557, %v1901
      %v2299 = vsel %vm1249, %v1556, %v1903
      %v2300 = vsel %vm1249, %v1555, %v1905
      %v2301 = vsel %vm1249, %v1554, %v1907
      %v2302 = vsel %vm1249, %v1553, %v1909
      %v2303 = vsel %vm1249, %v1552, %v1911
      %v2304 = vsel %vm1249, %v1551, %v1913
      %v2305 = vsel %vm1249, %v1550, %v1915
      %v2306 = vsel %vm1249, %v1549, %v1917
      %v2307 = vsel %vm1249, %v1548, %v1919
      %v2308 = vsel %vm1249, %v1547, %v1921
      %v2309 = vsel %vm1249, %v1546, %v1923
      %v2310 = vsel %vm1249, %v1545, %v1925
      %v2311 = vsel %vm1249, %v1544, %v1927
      %v2312 = vsel %vm1314, %v2248, %v2057
      %v2313 = vsel %vm1314, %v2249, %v2059
      %v2314 = vsel %vm1314, %v2250, %v2061
      %v2315 = vsel %vm1314, %v2251, %v2063
      %v2316 = vsel %vm1314, %v2252, %v2065
      %v2317 = vsel %vm1314, %v2253, %v2067
      %v2318 = vsel %vm1314, %v2254, %v2069
      %v2319 = vsel %vm1314, %v2255, %v2071
      %v2320 = vsel %vm1314, %v2256, %v2073
      %v2321 = vsel %vm1314, %v2257, %v2075
      %v2322 = vsel %vm1314, %v2258, %v2077
      %v2323 = vsel %vm1314, %v2259, %v2079
      %v2324 = vsel %vm1314, %v2260, %v2081
      %v2325 = vsel %vm1314, %v2261, %v2083
      %v2326 = vsel %vm1314, %v2262, %v2085
      %v2327 = vsel %vm1314, %v2263, %v2087
      %v2328 = vsel %vm1314, %v2264, %v2089
      %v2329 = vsel %vm1314, %v2265, %v2091
      %v2330 = vsel %vm1314, %v2266, %v2093
      %v2331 = vsel %vm1314, %v2267, %v2095
      %v2332 = vsel %vm1314, %v2268, %v2097
      %v2333 = vsel %vm1314, %v2269, %v2099
      %v2334 = vsel %vm1314, %v2270, %v2101
      %v2335 = vsel %vm1314, %v2271, %v2103
      %v2336 = vsel %vm1314, %v2272, %v2105
      %v2337 = vsel %vm1314, %v2273, %v2107
      %v2338 = vsel %vm1314, %v2274, %v2109
      %v2339 = vsel %vm1314, %v2275, %v2111
      %v2340 = vsel %vm1314, %v2276, %v2113
      %v2341 = vsel %vm1314, %v2277, %v2115
      %v2342 = vsel %vm1314, %v2278, %v2117
      %v2343 = vsel %vm1314, %v2279, %v2119
      %v2344 = vsel %vm1314, %v2280, %v2121
      %v2345 = vsel %vm1314, %v2281, %v2123
      %v2346 = vsel %vm1314, %v2282, %v2125
      %v2347 = vsel %vm1314, %v2283, %v2127
      %v2348 = vsel %vm1314, %v2284, %v2129
      %v2349 = vsel %vm1314, %v2285, %v2131
      %v2350 = vsel %vm1314, %v2286, %v2133
      %v2351 = vsel %vm1314, %v2287, %v2135
      %v2352 = vsel %vm1314, %v2288, %v2137
      %v2353 = vsel %vm1314, %v2289, %v2139
      %v2354 = vsel %vm1314, %v2290, %v2141
      %v2355 = vsel %vm1314, %v2291, %v2143
      %v2356 = vsel %vm1314, %v2292, %v2145
      %v2357 = vsel %vm1314, %v2293, %v2147
      %v2358 = vsel %vm1314, %v2294, %v2149
      %v2359 = vsel %vm1314, %v2295, %v2151
      %v2360 = vsel %vm1314, %v2296, %v2153
      %v2361 = vsel %vm1314, %v2297, %v2155
      %v2362 = vsel %vm1314, %v2298, %v2157
      %v2363 = vsel %vm1314, %v2299, %v2159
      %v2364 = vsel %vm1314, %v2300, %v2161
      %v2365 = vsel %vm1314, %v2301, %v2163
      %v2366 = vsel %vm1314, %v2302, %v2165
      %v2367 = vsel %vm1314, %v2303, %v2167
      %v2368 = vsel %vm1314, %v2304, %v2169
      %v2369 = vsel %vm1314, %v2305, %v2171
      %v2370 = vsel %vm1314, %v2306, %v2173
      %v2371 = vsel %vm1314, %v2307, %v2175
      %v2372 = vsel %vm1314, %v2308, %v2177
      %v2373 = vsel %vm1314, %v2309, %v2179
      %v2374 = vsel %vm1314, %v2310, %v2181
      %v2375 = vsel %vm1314, %v2311, %v2183
      %v2376 = vpack.c.bf16 %v2313, %v2312
      %v2377 = vpack.c.bf16 %v2315, %v2314
      %v2378 = vpack.c.bf16 %v2317, %v2316
      %v2379 = vpack.c.bf16 %v2319, %v2318
      %v2380 = vpack.c.bf16 %v2321, %v2320
      %v2381 = vpack.c.bf16 %v2323, %v2322
      %v2382 = vpack.c.bf16 %v2325, %v2324
      %v2383 = vpack.c.bf16 %v2327, %v2326
      %v2384 = vpack.c.bf16 %v2329, %v2328
      %v2385 = vpack.c.bf16 %v2331, %v2330
      %v2386 = vpack.c.bf16 %v2333, %v2332
      %v2387 = vpack.c.bf16 %v2335, %v2334
      %v2388 = vpack.c.bf16 %v2337, %v2336
      %v2389 = vpack.c.bf16 %v2339, %v2338
      %v2390 = vpack.c.bf16 %v2341, %v2340
      %v2391 = vpack.c.bf16 %v2343, %v2342
      %v2392 = vpack.c.bf16 %v2345, %v2344
      %v2393 = vpack.c.bf16 %v2347, %v2346
      %v2394 = vpack.c.bf16 %v2349, %v2348
      %v2395 = vpack.c.bf16 %v2351, %v2350
      %v2396 = vpack.c.bf16 %v2353, %v2352
      %v2397 = vpack.c.bf16 %v2355, %v2354
      %v2398 = vpack.c.bf16 %v2357, %v2356
      %v2399 = vpack.c.bf16 %v2359, %v2358
      %v2400 = vpack.c.bf16 %v2361, %v2360
      %v2401 = vpack.c.bf16 %v2363, %v2362
      %v2402 = vpack.c.bf16 %v2365, %v2364
      %v2403 = vpack.c.bf16 %v2367, %v2366
      %v2404 = vpack.c.bf16 %v2369, %v2368
      %v2405 = vpack.c.bf16 %v2371, %v2370
      %v2406 = vpack.c.bf16 %v2373, %v2372
      %v2407 = vpack.c.bf16 %v2375, %v2374
      %s2408 = sadd.s32 2, %s1411
      %s2409 = smul.addr %s2408, 4
      %s2410 = scalar_lea.vmem %s1, %s2409
      %v2411 = vld [vmem:[%s2410] sm:$0xf]
      %v2412 = vld [vmem:[%s2410 + $0x4] sm:$0x3]
      %v2415 = vunpack.c.l.b16 %v2411
      %v2416 = vunpack.c.l.b16 %v2412
      %v2417 = vpack.c.b16 %v2416, %v2415
      %vm2418 = vcmask 97280
      %v2420 = vsel %vm2418, %v2376, 0
      %v2423 = vsel %vm2418, %v2377, 0
      %v2426 = vsel %vm2418, %v2378, 0
      %v2429 = vsel %vm2418, %v2379, 0
      %v2432 = vsel %vm2418, %v2380, 0
      %v2435 = vsel %vm2418, %v2381, 0
      %v2438 = vsel %vm2418, %v2382, 0
      %v2441 = vsel %vm2418, %v2383, 0
      %v2444 = vsel %vm2418, %v2384, 0
      %v2447 = vsel %vm2418, %v2385, 0
      %v2450 = vsel %vm2418, %v2386, 0
      %v2453 = vsel %vm2418, %v2387, 0
      %v2456 = vsel %vm2418, %v2388, 0
      %v2459 = vsel %vm2418, %v2389, 0
      %v2462 = vsel %vm2418, %v2390, 0
      %v2465 = vsel %vm2418, %v2391, 0
      %v2468 = vsel %vm2418, %v2392, 0
      %v2471 = vsel %vm2418, %v2393, 0
      %v2474 = vsel %vm2418, %v2394, 0
      %v2477 = vsel %vm2418, %v2395, 0
      %v2480 = vsel %vm2418, %v2396, 0
      %v2483 = vsel %vm2418, %v2397, 0
      %v2486 = vsel %vm2418, %v2398, 0
      %v2489 = vsel %vm2418, %v2399, 0
      %v2492 = vsel %vm2418, %v2400, 0
      %v2495 = vsel %vm2418, %v2401, 0
      %v2498 = vsel %vm2418, %v2402, 0
      %v2501 = vsel %vm2418, %v2403, 0
      %v2504 = vsel %vm2418, %v2404, 0
      %v2507 = vsel %vm2418, %v2405, 0
      %v2510 = vsel %vm2418, %v2406, 0
      %v2513 = vsel %vm2418, %v2407, 0
      %vm2515 = vcmask 1045504
      %v2517 = vsel %vm2515, %v2417, 0
      %2519 = vmatprep.subr.bf16.mxu0 0
      %2520 = vmatpush1.bf16.msra.mxu0 0
      %2521 = vmatprep.subr.bf16.mxu0 0
      %2522 = vmatpush1.bf16.msra.mxu0 0
      %2523 = vmatprep.subr.bf16.mxu0 0
      %2524 = vmatpush1.bf16.msra.mxu0 0
      %2525 = vmatprep.subr.bf16.mxu0 0
      %2526 = vmatpush1.bf16.msra.mxu0 0
      %2527 = vmatprep.subr.bf16.mxu0 0
      %2528 = vmatpush1.bf16.msra.mxu0 0
      %2529 = vmatprep.subr.bf16.mxu0 0
      %2530 = vmatpush1.bf16.msra.mxu0 0
      %2531 = vmatprep.subr.bf16.mxu0 0
      %2532 = vmatpush1.bf16.msra.mxu0 0
      %2533 = vmatprep.subr.bf16.mxu0 0
      %2534 = vmatpush1.bf16.msra.mxu0 %v2517
      %2535 = vmatprep.subr.bf16.mxu0 0
      %2536 = vmatpush2.bf16.msra.mxu0 0
      %2537 = vmatprep.subr.bf16.mxu0 0
      %2538 = vmatpush2.bf16.msra.mxu0 0
      %2539 = vmatprep.subr.bf16.mxu0 0
      %2540 = vmatpush2.bf16.msra.mxu0 0
      %2541 = vmatprep.subr.bf16.mxu0 0
      %2542 = vmatpush2.bf16.msra.mxu0 0
      %2543 = vmatprep.subr.bf16.mxu0 0
      %2544 = vmatpush2.bf16.msra.mxu0 0
      %2545 = vmatprep.subr.bf16.mxu0 0
      %2546 = vmatpush2.bf16.msra.mxu0 0
      %2547 = vmatprep.subr.bf16.mxu0 0
      %2548 = vmatpush2.bf16.msra.mxu0 0
      %2549 = vmatprep.subr.bf16.mxu0 0
      %2550 = vmatpush2.bf16.msra.mxu0 0
      %2551 = vmatprep.mubr.bf16.mxu0 0
      %2552 = vmatmul.mubr.bf16.gmra.mxu0 %v2420
      %v2553 = vpop.f32.mrf.mxu0
      %v2554 = vpop.f32.mrf.mxu0
      %v2555 = vpop.f32.mrf.mxu0
      %v2556 = vadd.f32 0.0, %v2555
      %v2557 = vpop.f32.mrf.mxu0
      %2558 = vmatprep.mubr.bf16.mxu0 0
      %2559 = vmatmul.mubr.bf16.gmra.mxu0 %v2423
      %v2560 = vpop.f32.mrf.mxu0
      %v2561 = vadd.f32 0.0, %v2560
      %v2562 = vpop.f32.mrf.mxu0
      %v2563 = vpop.f32.mrf.mxu0
      %v2564 = vpop.f32.mrf.mxu0
      %2565 = vmatprep.mubr.bf16.mxu0 0
      %2566 = vmatmul.mubr.bf16.gmra.mxu0 %v2426
      %v2567 = vpop.f32.mrf.mxu0
      %v2568 = vpop.f32.mrf.mxu0
      %v2569 = vpop.f32.mrf.mxu0
      %v2570 = vadd.f32 0.0, %v2569
      %v2571 = vpop.f32.mrf.mxu0
      %2572 = vmatprep.mubr.bf16.mxu0 0
      %2573 = vmatmul.mubr.bf16.gmra.mxu0 %v2429
      %v2574 = vpop.f32.mrf.mxu0
      %v2575 = vadd.f32 0.0, %v2574
      %v2576 = vpop.f32.mrf.mxu0
      %v2577 = vpop.f32.mrf.mxu0
      %v2578 = vpop.f32.mrf.mxu0
      %2579 = vmatprep.mubr.bf16.mxu0 0
      %2580 = vmatmul.mubr.bf16.gmra.mxu0 %v2432
      %v2581 = vpop.f32.mrf.mxu0
      %v2582 = vpop.f32.mrf.mxu0
      %v2583 = vpop.f32.mrf.mxu0
      %v2584 = vadd.f32 0.0, %v2583
      %v2585 = vpop.f32.mrf.mxu0
      %2586 = vmatprep.mubr.bf16.mxu0 0
      %2587 = vmatmul.mubr.bf16.gmra.mxu0 %v2435
      %v2588 = vpop.f32.mrf.mxu0
      %v2589 = vadd.f32 0.0, %v2588
      %v2590 = vpop.f32.mrf.mxu0
      %v2591 = vpop.f32.mrf.mxu0
      %v2592 = vpop.f32.mrf.mxu0
      %2593 = vmatprep.mubr.bf16.mxu0 0
      %2594 = vmatmul.mubr.bf16.gmra.mxu0 %v2438
      %v2595 = vpop.f32.mrf.mxu0
      %v2596 = vpop.f32.mrf.mxu0
      %v2597 = vpop.f32.mrf.mxu0
      %v2598 = vadd.f32 0.0, %v2597
      %v2599 = vpop.f32.mrf.mxu0
      %2600 = vmatprep.mubr.bf16.mxu0 0
      %2601 = vmatmul.mubr.bf16.gmra.mxu0 %v2441
      %v2602 = vpop.f32.mrf.mxu0
      %v2603 = vadd.f32 0.0, %v2602
      %v2604 = vpop.f32.mrf.mxu0
      %v2605 = vpop.f32.mrf.mxu0
      %v2606 = vpop.f32.mrf.mxu0
      %2607 = vmatprep.mubr.bf16.mxu0 0
      %2608 = vmatmul.mubr.bf16.gmra.mxu0 %v2444
      %v2609 = vpop.f32.mrf.mxu0
      %v2610 = vpop.f32.mrf.mxu0
      %v2611 = vpop.f32.mrf.mxu0
      %v2612 = vadd.f32 0.0, %v2611
      %v2613 = vpop.f32.mrf.mxu0
      %2614 = vmatprep.mubr.bf16.mxu0 0
      %2615 = vmatmul.mubr.bf16.gmra.mxu0 %v2447
      %v2616 = vpop.f32.mrf.mxu0
      %v2617 = vadd.f32 0.0, %v2616
      %v2618 = vpop.f32.mrf.mxu0
      %v2619 = vpop.f32.mrf.mxu0
      %v2620 = vpop.f32.mrf.mxu0
      %2621 = vmatprep.mubr.bf16.mxu0 0
      %2622 = vmatmul.mubr.bf16.gmra.mxu0 %v2450
      %v2623 = vpop.f32.mrf.mxu0
      %v2624 = vpop.f32.mrf.mxu0
      %v2625 = vpop.f32.mrf.mxu0
      %v2626 = vadd.f32 0.0, %v2625
      %v2627 = vpop.f32.mrf.mxu0
      %2628 = vmatprep.mubr.bf16.mxu0 0
      %2629 = vmatmul.mubr.bf16.gmra.mxu0 %v2453
      %v2630 = vpop.f32.mrf.mxu0
      %v2631 = vadd.f32 0.0, %v2630
      %v2632 = vpop.f32.mrf.mxu0
      %v2633 = vpop.f32.mrf.mxu0
      %v2634 = vpop.f32.mrf.mxu0
      %2635 = vmatprep.mubr.bf16.mxu0 0
      %2636 = vmatmul.mubr.bf16.gmra.mxu0 %v2456
      %v2637 = vpop.f32.mrf.mxu0
      %v2638 = vpop.f32.mrf.mxu0
      %v2639 = vpop.f32.mrf.mxu0
      %v2640 = vadd.f32 0.0, %v2639
      %v2641 = vpop.f32.mrf.mxu0
      %2642 = vmatprep.mubr.bf16.mxu0 0
      %2643 = vmatmul.mubr.bf16.gmra.mxu0 %v2459
      %v2644 = vpop.f32.mrf.mxu0
      %v2645 = vadd.f32 0.0, %v2644
      %v2646 = vpop.f32.mrf.mxu0
      %v2647 = vpop.f32.mrf.mxu0
      %v2648 = vpop.f32.mrf.mxu0
      %2649 = vmatprep.mubr.bf16.mxu0 0
      %2650 = vmatmul.mubr.bf16.gmra.mxu0 %v2462
      %v2651 = vpop.f32.mrf.mxu0
      %v2652 = vpop.f32.mrf.mxu0
      %v2653 = vpop.f32.mrf.mxu0
      %v2654 = vadd.f32 0.0, %v2653
      %v2655 = vpop.f32.mrf.mxu0
      %2656 = vmatprep.mubr.bf16.mxu0 0
      %2657 = vmatmul.mubr.bf16.gmra.mxu0 %v2465
      %v2658 = vpop.f32.mrf.mxu0
      %v2659 = vadd.f32 0.0, %v2658
      %v2660 = vpop.f32.mrf.mxu0
      %v2661 = vpop.f32.mrf.mxu0
      %v2662 = vpop.f32.mrf.mxu0
      %2663 = vmatprep.mubr.bf16.mxu0 0
      %2664 = vmatmul.mubr.bf16.gmra.mxu0 %v2468
      %v2665 = vpop.f32.mrf.mxu0
      %v2666 = vpop.f32.mrf.mxu0
      %v2667 = vpop.f32.mrf.mxu0
      %v2668 = vadd.f32 0.0, %v2667
      %v2669 = vpop.f32.mrf.mxu0
      %2670 = vmatprep.mubr.bf16.mxu0 0
      %2671 = vmatmul.mubr.bf16.gmra.mxu0 %v2471
      %v2672 = vpop.f32.mrf.mxu0
      %v2673 = vadd.f32 0.0, %v2672
      %v2674 = vpop.f32.mrf.mxu0
      %v2675 = vpop.f32.mrf.mxu0
      %v2676 = vpop.f32.mrf.mxu0
      %2677 = vmatprep.mubr.bf16.mxu0 0
      %2678 = vmatmul.mubr.bf16.gmra.mxu0 %v2474
      %v2679 = vpop.f32.mrf.mxu0
      %v2680 = vpop.f32.mrf.mxu0
      %v2681 = vpop.f32.mrf.mxu0
      %v2682 = vadd.f32 0.0, %v2681
      %v2683 = vpop.f32.mrf.mxu0
      %2684 = vmatprep.mubr.bf16.mxu0 0
      %2685 = vmatmul.mubr.bf16.gmra.mxu0 %v2477
      %v2686 = vpop.f32.mrf.mxu0
      %v2687 = vadd.f32 0.0, %v2686
      %v2688 = vpop.f32.mrf.mxu0
      %v2689 = vpop.f32.mrf.mxu0
      %v2690 = vpop.f32.mrf.mxu0
      %2691 = vmatprep.mubr.bf16.mxu0 0
      %2692 = vmatmul.mubr.bf16.gmra.mxu0 %v2480
      %v2693 = vpop.f32.mrf.mxu0
      %v2694 = vpop.f32.mrf.mxu0
      %v2695 = vpop.f32.mrf.mxu0
      %v2696 = vadd.f32 0.0, %v2695
      %v2697 = vpop.f32.mrf.mxu0
      %2698 = vmatprep.mubr.bf16.mxu0 0
      %2699 = vmatmul.mubr.bf16.gmra.mxu0 %v2483
      %v2700 = vpop.f32.mrf.mxu0
      %v2701 = vadd.f32 0.0, %v2700
      %v2702 = vpop.f32.mrf.mxu0
      %v2703 = vpop.f32.mrf.mxu0
      %v2704 = vpop.f32.mrf.mxu0
      %2705 = vmatprep.mubr.bf16.mxu0 0
      %2706 = vmatmul.mubr.bf16.gmra.mxu0 %v2486
      %v2707 = vpop.f32.mrf.mxu0
      %v2708 = vpop.f32.mrf.mxu0
      %v2709 = vpop.f32.mrf.mxu0
      %v2710 = vadd.f32 0.0, %v2709
      %v2711 = vpop.f32.mrf.mxu0
      %2712 = vmatprep.mubr.bf16.mxu0 0
      %2713 = vmatmul.mubr.bf16.gmra.mxu0 %v2489
      %v2714 = vpop.f32.mrf.mxu0
      %v2715 = vadd.f32 0.0, %v2714
      %v2716 = vpop.f32.mrf.mxu0
      %v2717 = vpop.f32.mrf.mxu0
      %v2718 = vpop.f32.mrf.mxu0
      %2719 = vmatprep.mubr.bf16.mxu0 0
      %2720 = vmatmul.mubr.bf16.gmra.mxu0 %v2492
      %v2721 = vpop.f32.mrf.mxu0
      %v2722 = vpop.f32.mrf.mxu0
      %v2723 = vpop.f32.mrf.mxu0
      %v2724 = vadd.f32 0.0, %v2723
      %v2725 = vpop.f32.mrf.mxu0
      %2726 = vmatprep.mubr.bf16.mxu0 0
      %2727 = vmatmul.mubr.bf16.gmra.mxu0 %v2495
      %v2728 = vpop.f32.mrf.mxu0
      %v2729 = vadd.f32 0.0, %v2728
      %v2730 = vpop.f32.mrf.mxu0
      %v2731 = vpop.f32.mrf.mxu0
      %v2732 = vpop.f32.mrf.mxu0
      %2733 = vmatprep.mubr.bf16.mxu0 0
      %2734 = vmatmul.mubr.bf16.gmra.mxu0 %v2498
      %v2735 = vpop.f32.mrf.mxu0
      %v2736 = vpop.f32.mrf.mxu0
      %v2737 = vpop.f32.mrf.mxu0
      %v2738 = vadd.f32 0.0, %v2737
      %v2739 = vpop.f32.mrf.mxu0
      %2740 = vmatprep.mubr.bf16.mxu0 0
      %2741 = vmatmul.mubr.bf16.gmra.mxu0 %v2501
      %v2742 = vpop.f32.mrf.mxu0
      %v2743 = vadd.f32 0.0, %v2742
      %v2744 = vpop.f32.mrf.mxu0
      %v2745 = vpop.f32.mrf.mxu0
      %v2746 = vpop.f32.mrf.mxu0
      %2747 = vmatprep.mubr.bf16.mxu0 0
      %2748 = vmatmul.mubr.bf16.gmra.mxu0 %v2504
      %v2749 = vpop.f32.mrf.mxu0
      %v2750 = vpop.f32.mrf.mxu0
      %v2751 = vpop.f32.mrf.mxu0
      %v2752 = vadd.f32 0.0, %v2751
      %v2753 = vpop.f32.mrf.mxu0
      %2754 = vmatprep.mubr.bf16.mxu0 0
      %2755 = vmatmul.mubr.bf16.gmra.mxu0 %v2507
      %v2756 = vpop.f32.mrf.mxu0
      %v2757 = vadd.f32 0.0, %v2756
      %v2758 = vpop.f32.mrf.mxu0
      %v2759 = vpop.f32.mrf.mxu0
      %v2760 = vpop.f32.mrf.mxu0
      %2761 = vmatprep.mubr.bf16.mxu0 0
      %2762 = vmatmul.mubr.bf16.gmra.mxu0 %v2510
      %v2763 = vpop.f32.mrf.mxu0
      %v2764 = vpop.f32.mrf.mxu0
      %v2765 = vpop.f32.mrf.mxu0
      %v2766 = vadd.f32 0.0, %v2765
      %v2767 = vpop.f32.mrf.mxu0
      %2768 = vmatprep.mubr.bf16.mxu0 0
      %2769 = vmatmul.mubr.bf16.gmra.mxu0 %v2513
      %v2770 = vpop.f32.mrf.mxu0
      %v2771 = vadd.f32 0.0, %v2770
      %v2772 = vpop.f32.mrf.mxu0
      %v2773 = vpop.f32.mrf.mxu0
      %v2774 = vpop.f32.mrf.mxu0
      %2775 = vdwg.mxu0
      %v2778 = vunpack.c.l.b16 %v1414
      %v2779 = vunpack.c.l.b16 %v1415
      %v2780 = vpack.c.b16 %v2779, %v2778
      %v2782 = vsel %vm2418, %v1379, 0
      %v2785 = vsel %vm2418, %v1380, 0
      %v2788 = vsel %vm2418, %v1381, 0
      %v2791 = vsel %vm2418, %v1382, 0
      %v2794 = vsel %vm2418, %v1383, 0
      %v2797 = vsel %vm2418, %v1384, 0
      %v2800 = vsel %vm2418, %v1385, 0
      %v2803 = vsel %vm2418, %v1386, 0
      %v2806 = vsel %vm2418, %v1387, 0
      %v2809 = vsel %vm2418, %v1388, 0
      %v2812 = vsel %vm2418, %v1389, 0
      %v2815 = vsel %vm2418, %v1390, 0
      %v2818 = vsel %vm2418, %v1391, 0
      %v2821 = vsel %vm2418, %v1392, 0
      %v2824 = vsel %vm2418, %v1393, 0
      %v2827 = vsel %vm2418, %v1394, 0
      %v2830 = vsel %vm2418, %v1395, 0
      %v2833 = vsel %vm2418, %v1396, 0
      %v2836 = vsel %vm2418, %v1397, 0
      %v2839 = vsel %vm2418, %v1398, 0
      %v2842 = vsel %vm2418, %v1399, 0
      %v2845 = vsel %vm2418, %v1400, 0
      %v2848 = vsel %vm2418, %v1401, 0
      %v2851 = vsel %vm2418, %v1402, 0
      %v2854 = vsel %vm2418, %v1403, 0
      %v2857 = vsel %vm2418, %v1404, 0
      %v2860 = vsel %vm2418, %v1405, 0
      %v2863 = vsel %vm2418, %v1406, 0
      %v2866 = vsel %vm2418, %v1407, 0
      %v2869 = vsel %vm2418, %v1408, 0
      %v2872 = vsel %vm2418, %v1409, 0
      %v2875 = vsel %vm2418, %v1410, 0
      %v2878 = vsel %vm2515, %v2780, 0
      %2880 = vmatprep.subr.bf16.mxu0 0
      %2881 = vmatpush1.bf16.msra.mxu0 0
      %2882 = vmatprep.subr.bf16.mxu0 0
      %2883 = vmatpush1.bf16.msra.mxu0 0
      %2884 = vmatprep.subr.bf16.mxu0 0
      %2885 = vmatpush1.bf16.msra.mxu0 0
      %2886 = vmatprep.subr.bf16.mxu0 0
      %2887 = vmatpush1.bf16.msra.mxu0 0
      %2888 = vmatprep.subr.bf16.mxu0 0
      %2889 = vmatpush1.bf16.msra.mxu0 0
      %2890 = vmatprep.subr.bf16.mxu0 0
      %2891 = vmatpush1.bf16.msra.mxu0 0
      %2892 = vmatprep.subr.bf16.mxu0 0
      %2893 = vmatpush1.bf16.msra.mxu0 0
      %2894 = vmatprep.subr.bf16.mxu0 0
      %2895 = vmatpush1.bf16.msra.mxu0 %v2878
      %2896 = vmatprep.subr.bf16.mxu0 0
      %2897 = vmatpush2.bf16.msra.mxu0 0
      %2898 = vmatprep.subr.bf16.mxu0 0
      %2899 = vmatpush2.bf16.msra.mxu0 0
      %2900 = vmatprep.subr.bf16.mxu0 0
      %2901 = vmatpush2.bf16.msra.mxu0 0
      %2902 = vmatprep.subr.bf16.mxu0 0
      %2903 = vmatpush2.bf16.msra.mxu0 0
      %2904 = vmatprep.subr.bf16.mxu0 0
      %2905 = vmatpush2.bf16.msra.mxu0 0
      %2906 = vmatprep.subr.bf16.mxu0 0
      %2907 = vmatpush2.bf16.msra.mxu0 0
      %2908 = vmatprep.subr.bf16.mxu0 0
      %2909 = vmatpush2.bf16.msra.mxu0 0
      %2910 = vmatprep.subr.bf16.mxu0 0
      %2911 = vmatpush2.bf16.msra.mxu0 0
      %2912 = vmatprep.mubr.bf16.mxu0 0
      %2913 = vmatmul.mubr.bf16.gmra.mxu0 %v2782
      %v2914 = vpop.f32.mrf.mxu0
      %v2915 = vpop.f32.mrf.mxu0
      %v2916 = vpop.f32.mrf.mxu0
      %v2917 = vadd.f32 %v2556, %v2916
      %v2918 = vpop.f32.mrf.mxu0
      %2919 = vmatprep.mubr.bf16.mxu0 0
      %2920 = vmatmul.mubr.bf16.gmra.mxu0 %v2785
      %v2921 = vpop.f32.mrf.mxu0
      %v2922 = vadd.f32 %v2561, %v2921
      %v2923 = vpop.f32.mrf.mxu0
      %v2924 = vpop.f32.mrf.mxu0
      %v2925 = vpop.f32.mrf.mxu0
      %2926 = vmatprep.mubr.bf16.mxu0 0
      %2927 = vmatmul.mubr.bf16.gmra.mxu0 %v2788
      %v2928 = vpop.f32.mrf.mxu0
      %v2929 = vpop.f32.mrf.mxu0
      %v2930 = vpop.f32.mrf.mxu0
      %v2931 = vadd.f32 %v2570, %v2930
      %v2932 = vpop.f32.mrf.mxu0
      %2933 = vmatprep.mubr.bf16.mxu0 0
      %2934 = vmatmul.mubr.bf16.gmra.mxu0 %v2791
      %v2935 = vpop.f32.mrf.mxu0
      %v2936 = vadd.f32 %v2575, %v2935
      %v2937 = vpop.f32.mrf.mxu0
      %v2938 = vpop.f32.mrf.mxu0
      %v2939 = vpop.f32.mrf.mxu0
      %2940 = vmatprep.mubr.bf16.mxu0 0
      %2941 = vmatmul.mubr.bf16.gmra.mxu0 %v2794
      %v2942 = vpop.f32.mrf.mxu0
      %v2943 = vpop.f32.mrf.mxu0
      %v2944 = vpop.f32.mrf.mxu0
      %v2945 = vadd.f32 %v2584, %v2944
      %v2946 = vpop.f32.mrf.mxu0
      %2947 = vmatprep.mubr.bf16.mxu0 0
      %2948 = vmatmul.mubr.bf16.gmra.mxu0 %v2797
      %v2949 = vpop.f32.mrf.mxu0
      %v2950 = vadd.f32 %v2589, %v2949
      %v2951 = vpop.f32.mrf.mxu0
      %v2952 = vpop.f32.mrf.mxu0
      %v2953 = vpop.f32.mrf.mxu0
      %2954 = vmatprep.mubr.bf16.mxu0 0
      %2955 = vmatmul.mubr.bf16.gmra.mxu0 %v2800
      %v2956 = vpop.f32.mrf.mxu0
      %v2957 = vpop.f32.mrf.mxu0
      %v2958 = vpop.f32.mrf.mxu0
      %v2959 = vadd.f32 %v2598, %v2958
      %v2960 = vpop.f32.mrf.mxu0
      %2961 = vmatprep.mubr.bf16.mxu0 0
      %2962 = vmatmul.mubr.bf16.gmra.mxu0 %v2803
      %v2963 = vpop.f32.mrf.mxu0
      %v2964 = vadd.f32 %v2603, %v2963
      %v2965 = vpop.f32.mrf.mxu0
      %v2966 = vpop.f32.mrf.mxu0
      %v2967 = vpop.f32.mrf.mxu0
      %2968 = vmatprep.mubr.bf16.mxu0 0
      %2969 = vmatmul.mubr.bf16.gmra.mxu0 %v2806
      %v2970 = vpop.f32.mrf.mxu0
      %v2971 = vpop.f32.mrf.mxu0
      %v2972 = vpop.f32.mrf.mxu0
      %v2973 = vadd.f32 %v2612, %v2972
      %v2974 = vpop.f32.mrf.mxu0
      %2975 = vmatprep.mubr.bf16.mxu0 0
      %2976 = vmatmul.mubr.bf16.gmra.mxu0 %v2809
      %v2977 = vpop.f32.mrf.mxu0
      %v2978 = vadd.f32 %v2617, %v2977
      %v2979 = vpop.f32.mrf.mxu0
      %v2980 = vpop.f32.mrf.mxu0
      %v2981 = vpop.f32.mrf.mxu0
      %2982 = vmatprep.mubr.bf16.mxu0 0
      %2983 = vmatmul.mubr.bf16.gmra.mxu0 %v2812
      %v2984 = vpop.f32.mrf.mxu0
      %v2985 = vpop.f32.mrf.mxu0
      %v2986 = vpop.f32.mrf.mxu0
      %v2987 = vadd.f32 %v2626, %v2986
      %v2988 = vpop.f32.mrf.mxu0
      %2989 = vmatprep.mubr.bf16.mxu0 0
      %2990 = vmatmul.mubr.bf16.gmra.mxu0 %v2815
      %v2991 = vpop.f32.mrf.mxu0
      %v2992 = vadd.f32 %v2631, %v2991
      %v2993 = vpop.f32.mrf.mxu0
      %v2994 = vpop.f32.mrf.mxu0
      %v2995 = vpop.f32.mrf.mxu0
      %2996 = vmatprep.mubr.bf16.mxu0 0
      %2997 = vmatmul.mubr.bf16.gmra.mxu0 %v2818
      %v2998 = vpop.f32.mrf.mxu0
      %v2999 = vpop.f32.mrf.mxu0
      %v3000 = vpop.f32.mrf.mxu0
      %v3001 = vadd.f32 %v2640, %v3000
      %v3002 = vpop.f32.mrf.mxu0
      %3003 = vmatprep.mubr.bf16.mxu0 0
      %3004 = vmatmul.mubr.bf16.gmra.mxu0 %v2821
      %v3005 = vpop.f32.mrf.mxu0
      %v3006 = vadd.f32 %v2645, %v3005
      %v3007 = vpop.f32.mrf.mxu0
      %v3008 = vpop.f32.mrf.mxu0
      %v3009 = vpop.f32.mrf.mxu0
      %3010 = vmatprep.mubr.bf16.mxu0 0
      %3011 = vmatmul.mubr.bf16.gmra.mxu0 %v2824
      %v3012 = vpop.f32.mrf.mxu0
      %v3013 = vpop.f32.mrf.mxu0
      %v3014 = vpop.f32.mrf.mxu0
      %v3015 = vadd.f32 %v2654, %v3014
      %v3016 = vpop.f32.mrf.mxu0
      %3017 = vmatprep.mubr.bf16.mxu0 0
      %3018 = vmatmul.mubr.bf16.gmra.mxu0 %v2827
      %v3019 = vpop.f32.mrf.mxu0
      %v3020 = vadd.f32 %v2659, %v3019
      %v3021 = vpop.f32.mrf.mxu0
      %v3022 = vpop.f32.mrf.mxu0
      %v3023 = vpop.f32.mrf.mxu0
      %3024 = vmatprep.mubr.bf16.mxu0 0
      %3025 = vmatmul.mubr.bf16.gmra.mxu0 %v2830
      %v3026 = vpop.f32.mrf.mxu0
      %v3027 = vpop.f32.mrf.mxu0
      %v3028 = vpop.f32.mrf.mxu0
      %v3029 = vadd.f32 %v2668, %v3028
      %v3030 = vpop.f32.mrf.mxu0
      %3031 = vmatprep.mubr.bf16.mxu0 0
      %3032 = vmatmul.mubr.bf16.gmra.mxu0 %v2833
      %v3033 = vpop.f32.mrf.mxu0
      %v3034 = vadd.f32 %v2673, %v3033
      %v3035 = vpop.f32.mrf.mxu0
      %v3036 = vpop.f32.mrf.mxu0
      %v3037 = vpop.f32.mrf.mxu0
      %3038 = vmatprep.mubr.bf16.mxu0 0
      %3039 = vmatmul.mubr.bf16.gmra.mxu0 %v2836
      %v3040 = vpop.f32.mrf.mxu0
      %v3041 = vpop.f32.mrf.mxu0
      %v3042 = vpop.f32.mrf.mxu0
      %v3043 = vadd.f32 %v2682, %v3042
      %v3044 = vpop.f32.mrf.mxu0
      %3045 = vmatprep.mubr.bf16.mxu0 0
      %3046 = vmatmul.mubr.bf16.gmra.mxu0 %v2839
      %v3047 = vpop.f32.mrf.mxu0
      %v3048 = vadd.f32 %v2687, %v3047
      %v3049 = vpop.f32.mrf.mxu0
      %v3050 = vpop.f32.mrf.mxu0
      %v3051 = vpop.f32.mrf.mxu0
      %3052 = vmatprep.mubr.bf16.mxu0 0
      %3053 = vmatmul.mubr.bf16.gmra.mxu0 %v2842
      %v3054 = vpop.f32.mrf.mxu0
      %v3055 = vpop.f32.mrf.mxu0
      %v3056 = vpop.f32.mrf.mxu0
      %v3057 = vadd.f32 %v2696, %v3056
      %v3058 = vpop.f32.mrf.mxu0
      %3059 = vmatprep.mubr.bf16.mxu0 0
      %3060 = vmatmul.mubr.bf16.gmra.mxu0 %v2845
      %v3061 = vpop.f32.mrf.mxu0
      %v3062 = vadd.f32 %v2701, %v3061
      %v3063 = vpop.f32.mrf.mxu0
      %v3064 = vpop.f32.mrf.mxu0
      %v3065 = vpop.f32.mrf.mxu0
      %3066 = vmatprep.mubr.bf16.mxu0 0
      %3067 = vmatmul.mubr.bf16.gmra.mxu0 %v2848
      %v3068 = vpop.f32.mrf.mxu0
      %v3069 = vpop.f32.mrf.mxu0
      %v3070 = vpop.f32.mrf.mxu0
      %v3071 = vadd.f32 %v2710, %v3070
      %v3072 = vpop.f32.mrf.mxu0
      %3073 = vmatprep.mubr.bf16.mxu0 0
      %3074 = vmatmul.mubr.bf16.gmra.mxu0 %v2851
      %v3075 = vpop.f32.mrf.mxu0
      %v3076 = vadd.f32 %v2715, %v3075
      %v3077 = vpop.f32.mrf.mxu0
      %v3078 = vpop.f32.mrf.mxu0
      %v3079 = vpop.f32.mrf.mxu0
      %3080 = vmatprep.mubr.bf16.mxu0 0
      %3081 = vmatmul.mubr.bf16.gmra.mxu0 %v2854
      %v3082 = vpop.f32.mrf.mxu0
      %v3083 = vpop.f32.mrf.mxu0
      %v3084 = vpop.f32.mrf.mxu0
      %v3085 = vadd.f32 %v2724, %v3084
      %v3086 = vpop.f32.mrf.mxu0
      %3087 = vmatprep.mubr.bf16.mxu0 0
      %3088 = vmatmul.mubr.bf16.gmra.mxu0 %v2857
      %v3089 = vpop.f32.mrf.mxu0
      %v3090 = vadd.f32 %v2729, %v3089
      %v3091 = vpop.f32.mrf.mxu0
      %v3092 = vpop.f32.mrf.mxu0
      %v3093 = vpop.f32.mrf.mxu0
      %3094 = vmatprep.mubr.bf16.mxu0 0
      %3095 = vmatmul.mubr.bf16.gmra.mxu0 %v2860
      %v3096 = vpop.f32.mrf.mxu0
      %v3097 = vpop.f32.mrf.mxu0
      %v3098 = vpop.f32.mrf.mxu0
      %v3099 = vadd.f32 %v2738, %v3098
      %v3100 = vpop.f32.mrf.mxu0
      %3101 = vmatprep.mubr.bf16.mxu0 0
      %3102 = vmatmul.mubr.bf16.gmra.mxu0 %v2863
      %v3103 = vpop.f32.mrf.mxu0
      %v3104 = vadd.f32 %v2743, %v3103
      %v3105 = vpop.f32.mrf.mxu0
      %v3106 = vpop.f32.mrf.mxu0
      %v3107 = vpop.f32.mrf.mxu0
      %3108 = vmatprep.mubr.bf16.mxu0 0
      %3109 = vmatmul.mubr.bf16.gmra.mxu0 %v2866
      %v3110 = vpop.f32.mrf.mxu0
      %v3111 = vpop.f32.mrf.mxu0
      %v3112 = vpop.f32.mrf.mxu0
      %v3113 = vadd.f32 %v2752, %v3112
      %v3114 = vpop.f32.mrf.mxu0
      %3115 = vmatprep.mubr.bf16.mxu0 0
      %3116 = vmatmul.mubr.bf16.gmra.mxu0 %v2869
      %v3117 = vpop.f32.mrf.mxu0
      %v3118 = vadd.f32 %v2757, %v3117
      %v3119 = vpop.f32.mrf.mxu0
      %v3120 = vpop.f32.mrf.mxu0
      %v3121 = vpop.f32.mrf.mxu0
      %3122 = vmatprep.mubr.bf16.mxu0 0
      %3123 = vmatmul.mubr.bf16.gmra.mxu0 %v2872
      %v3124 = vpop.f32.mrf.mxu0
      %v3125 = vpop.f32.mrf.mxu0
      %v3126 = vpop.f32.mrf.mxu0
      %v3127 = vadd.f32 %v2766, %v3126
      %v3128 = vpop.f32.mrf.mxu0
      %3129 = vmatprep.mubr.bf16.mxu0 0
      %3130 = vmatmul.mubr.bf16.gmra.mxu0 %v2875
      %v3131 = vpop.f32.mrf.mxu0
      %v3132 = vadd.f32 %v2771, %v3131
      %v3133 = vpop.f32.mrf.mxu0
      %v3134 = vpop.f32.mrf.mxu0
      %v3135 = vpop.f32.mrf.mxu0
      %3136 = vdwg.mxu0
      %s3137 = scalar_lea.vmem [#allocation2], 64
      %v3138 = vld [vmem:[%s3137] sm:$0xff]
      %v3139 = vld [vmem:[%s3137 + $0x8] sm:$0xff]
      %v3140 = vld [vmem:[%s3137 + $0x10] sm:$0xff]
      %v3141 = vld [vmem:[%s3137 + $0x18] sm:$0xff]
      %v3142 = vld [vmem:[%s3137 + $0x20] sm:$0xff]
      %v3143 = vld [vmem:[%s3137 + $0x28] sm:$0xff]
      %v3144 = vld [vmem:[%s3137 + $0x30] sm:$0xff]
      %v3145 = vld [vmem:[%s3137 + $0x38] sm:$0xff]
      %v3146 = vld [vmem:[%s3137 + $0x40] sm:$0xff]
      %v3147 = vld [vmem:[%s3137 + $0x48] sm:$0xff]
      %v3148 = vld [vmem:[%s3137 + $0x50] sm:$0xff]
      %v3149 = vld [vmem:[%s3137 + $0x58] sm:$0xff]
      %v3150 = vld [vmem:[%s3137 + $0x60] sm:$0xff]
      %v3151 = vld [vmem:[%s3137 + $0x68] sm:$0xff]
      %v3152 = vld [vmem:[%s3137 + $0x70] sm:$0xff]
      %v3153 = vld [vmem:[%s3137 + $0x78] sm:$0xff]
      %v3154 = vld [vmem:[%s3137 + $0x80] sm:$0xff]
      %v3155 = vld [vmem:[%s3137 + $0x88] sm:$0xff]
      %v3156 = vld [vmem:[%s3137 + $0x90] sm:$0xff]
      %v3157 = vld [vmem:[%s3137 + $0x98] sm:$0xff]
      %v3158 = vld [vmem:[%s3137 + $0xa0] sm:$0xff]
      %v3159 = vld [vmem:[%s3137 + $0xa8] sm:$0xff]
      %v3160 = vld [vmem:[%s3137 + $0xb0] sm:$0xff]
      %v3161 = vld [vmem:[%s3137 + $0xb8] sm:$0xff]
      %v3162 = vld [vmem:[%s3137 + $0xc0] sm:$0xff]
      %v3163 = vld [vmem:[%s3137 + $0xc8] sm:$0xff]
      %v3164 = vld [vmem:[%s3137 + $0xd0] sm:$0xff]
      %v3165 = vld [vmem:[%s3137 + $0xd8] sm:$0xff]
      %v3166 = vld [vmem:[%s3137 + $0xe0] sm:$0xff]
      %v3167 = vld [vmem:[%s3137 + $0xe8] sm:$0xff]
      %v3168 = vld [vmem:[%s3137 + $0xf0] sm:$0xff]
      %v3169 = vld [vmem:[%s3137 + $0xf8] sm:$0xff]
      %v3170 = vld [vmem:[%s3137 + $0x100] sm:$0xff]
      %v3171 = vld [vmem:[%s3137 + $0x108] sm:$0xff]
      %v3172 = vld [vmem:[%s3137 + $0x110] sm:$0xff]
      %v3173 = vld [vmem:[%s3137 + $0x118] sm:$0xff]
      %v3174 = vld [vmem:[%s3137 + $0x120] sm:$0xff]
      %v3175 = vld [vmem:[%s3137 + $0x128] sm:$0xff]
      %v3176 = vld [vmem:[%s3137 + $0x130] sm:$0xff]
      %v3177 = vld [vmem:[%s3137 + $0x138] sm:$0xff]
      %v3178 = vld [vmem:[%s3137 + $0x140] sm:$0xff]
      %v3179 = vld [vmem:[%s3137 + $0x148] sm:$0xff]
      %v3180 = vld [vmem:[%s3137 + $0x150] sm:$0xff]
      %v3181 = vld [vmem:[%s3137 + $0x158] sm:$0xff]
      %v3182 = vld [vmem:[%s3137 + $0x160] sm:$0xff]
      %v3183 = vld [vmem:[%s3137 + $0x168] sm:$0xff]
      %v3184 = vld [vmem:[%s3137 + $0x170] sm:$0xff]
      %v3185 = vld [vmem:[%s3137 + $0x178] sm:$0xff]
      %v3186 = vld [vmem:[%s3137 + $0x180] sm:$0xff]
      %v3187 = vld [vmem:[%s3137 + $0x188] sm:$0xff]
      %v3188 = vld [vmem:[%s3137 + $0x190] sm:$0xff]
      %v3189 = vld [vmem:[%s3137 + $0x198] sm:$0xff]
      %v3190 = vld [vmem:[%s3137 + $0x1a0] sm:$0xff]
      %v3191 = vld [vmem:[%s3137 + $0x1a8] sm:$0xff]
      %v3192 = vld [vmem:[%s3137 + $0x1b0] sm:$0xff]
      %v3193 = vld [vmem:[%s3137 + $0x1b8] sm:$0xff]
      %v3194 = vld [vmem:[%s3137 + $0x1c0] sm:$0xff]
      %v3195 = vld [vmem:[%s3137 + $0x1c8] sm:$0xff]
      %v3196 = vld [vmem:[%s3137 + $0x1d0] sm:$0xff]
      %v3197 = vld [vmem:[%s3137 + $0x1d8] sm:$0xff]
      %v3198 = vld [vmem:[%s3137 + $0x1e0] sm:$0xff]
      %v3199 = vld [vmem:[%s3137 + $0x1e8] sm:$0xff]
      %v3200 = vld [vmem:[%s3137 + $0x1f0] sm:$0xff]
      %v3201 = vld [vmem:[%s3137 + $0x1f8] sm:$0xff]
      %v3202 = vrot.slane %v3138, 7
      %v3203 = vrot.slane %v3139, 7
      %v3204 = vrot.slane %v3140, 7
      %v3205 = vrot.slane %v3141, 7
      %v3206 = vrot.slane %v3142, 7
      %v3207 = vrot.slane %v3143, 7
      %v3208 = vrot.slane %v3144, 7
      %v3209 = vrot.slane %v3145, 7
      %v3210 = vrot.slane %v3146, 7
      %v3211 = vrot.slane %v3147, 7
      %v3212 = vrot.slane %v3148, 7
      %v3213 = vrot.slane %v3149, 7
      %v3214 = vrot.slane %v3150, 7
      %v3215 = vrot.slane %v3151, 7
      %v3216 = vrot.slane %v3152, 7
      %v3217 = vrot.slane %v3153, 7
      %v3218 = vrot.slane %v3154, 7
      %v3219 = vrot.slane %v3155, 7
      %v3220 = vrot.slane %v3156, 7
      %v3221 = vrot.slane %v3157, 7
      %v3222 = vrot.slane %v3158, 7
      %v3223 = vrot.slane %v3159, 7
      %v3224 = vrot.slane %v3160, 7
      %v3225 = vrot.slane %v3161, 7
      %v3226 = vrot.slane %v3162, 7
      %v3227 = vrot.slane %v3163, 7
      %v3228 = vrot.slane %v3164, 7
      %v3229 = vrot.slane %v3165, 7
      %v3230 = vrot.slane %v3166, 7
      %v3231 = vrot.slane %v3167, 7
      %v3232 = vrot.slane %v3168, 7
      %v3233 = vrot.slane %v3169, 7
      %v3234 = vrot.slane %v3170, 7
      %v3235 = vrot.slane %v3171, 7
      %v3236 = vrot.slane %v3172, 7
      %v3237 = vrot.slane %v3173, 7
      %v3238 = vrot.slane %v3174, 7
      %v3239 = vrot.slane %v3175, 7
      %v3240 = vrot.slane %v3176, 7
      %v3241 = vrot.slane %v3177, 7
      %v3242 = vrot.slane %v3178, 7
      %v3243 = vrot.slane %v3179, 7
      %v3244 = vrot.slane %v3180, 7
      %v3245 = vrot.slane %v3181, 7
      %v3246 = vrot.slane %v3182, 7
      %v3247 = vrot.slane %v3183, 7
      %v3248 = vrot.slane %v3184, 7
      %v3249 = vrot.slane %v3185, 7
      %v3250 = vrot.slane %v3186, 7
      %v3251 = vrot.slane %v3187, 7
      %v3252 = vrot.slane %v3188, 7
      %v3253 = vrot.slane %v3189, 7
      %v3254 = vrot.slane %v3190, 7
      %v3255 = vrot.slane %v3191, 7
      %v3256 = vrot.slane %v3192, 7
      %v3257 = vrot.slane %v3193, 7
      %v3258 = vrot.slane %v3194, 7
      %v3259 = vrot.slane %v3195, 7
      %v3260 = vrot.slane %v3196, 7
      %v3261 = vrot.slane %v3197, 7
      %v3262 = vrot.slane %v3198, 7
      %v3263 = vrot.slane %v3199, 7
      %v3264 = vrot.slane %v3200, 7
      %v3265 = vrot.slane %v3201, 7
      %v3266 = vsel %vm543, %v3264, %v3265
      %v3267 = vsel %vm543, %v3263, %v3264
      %v3268 = vsel %vm543, %v3262, %v3263
      %v3269 = vsel %vm543, %v3261, %v3262
      %v3270 = vsel %vm543, %v3260, %v3261
      %v3271 = vsel %vm543, %v3259, %v3260
      %v3272 = vsel %vm543, %v3258, %v3259
      %v3273 = vsel %vm543, %v3257, %v3258
      %v3274 = vsel %vm543, %v3256, %v3257
      %v3275 = vsel %vm543, %v3255, %v3256
      %v3276 = vsel %vm543, %v3254, %v3255
      %v3277 = vsel %vm543, %v3253, %v3254
      %v3278 = vsel %vm543, %v3252, %v3253
      %v3279 = vsel %vm543, %v3251, %v3252
      %v3280 = vsel %vm543, %v3250, %v3251
      %v3281 = vsel %vm543, %v3249, %v3250
      %v3282 = vsel %vm543, %v3248, %v3249
      %v3283 = vsel %vm543, %v3247, %v3248
      %v3284 = vsel %vm543, %v3246, %v3247
      %v3285 = vsel %vm543, %v3245, %v3246
      %v3286 = vsel %vm543, %v3244, %v3245
      %v3287 = vsel %vm543, %v3243, %v3244
      %v3288 = vsel %vm543, %v3242, %v3243
      %v3289 = vsel %vm543, %v3241, %v3242
      %v3290 = vsel %vm543, %v3240, %v3241
      %v3291 = vsel %vm543, %v3239, %v3240
      %v3292 = vsel %vm543, %v3238, %v3239
      %v3293 = vsel %vm543, %v3237, %v3238
      %v3294 = vsel %vm543, %v3236, %v3237
      %v3295 = vsel %vm543, %v3235, %v3236
      %v3296 = vsel %vm543, %v3234, %v3235
      %v3297 = vsel %vm543, %v3233, %v3234
      %v3298 = vsel %vm543, %v3232, %v3233
      %v3299 = vsel %vm543, %v3231, %v3232
      %v3300 = vsel %vm543, %v3230, %v3231
      %v3301 = vsel %vm543, %v3229, %v3230
      %v3302 = vsel %vm543, %v3228, %v3229
      %v3303 = vsel %vm543, %v3227, %v3228
      %v3304 = vsel %vm543, %v3226, %v3227
      %v3305 = vsel %vm543, %v3225, %v3226
      %v3306 = vsel %vm543, %v3224, %v3225
      %v3307 = vsel %vm543, %v3223, %v3224
      %v3308 = vsel %vm543, %v3222, %v3223
      %v3309 = vsel %vm543, %v3221, %v3222
      %v3310 = vsel %vm543, %v3220, %v3221
      %v3311 = vsel %vm543, %v3219, %v3220
      %v3312 = vsel %vm543, %v3218, %v3219
      %v3313 = vsel %vm543, %v3217, %v3218
      %v3314 = vsel %vm543, %v3216, %v3217
      %v3315 = vsel %vm543, %v3215, %v3216
      %v3316 = vsel %vm543, %v3214, %v3215
      %v3317 = vsel %vm543, %v3213, %v3214
      %v3318 = vsel %vm543, %v3212, %v3213
      %v3319 = vsel %vm543, %v3211, %v3212
      %v3320 = vsel %vm543, %v3210, %v3211
      %v3321 = vsel %vm543, %v3209, %v3210
      %v3322 = vsel %vm543, %v3208, %v3209
      %v3323 = vsel %vm543, %v3207, %v3208
      %v3324 = vsel %vm543, %v3206, %v3207
      %v3325 = vsel %vm543, %v3205, %v3206
      %v3326 = vsel %vm543, %v3204, %v3205
      %v3327 = vsel %vm543, %v3203, %v3204
      %v3328 = vsel %vm543, %v3202, %v3203
      %v3329 = vsel %vm543, %v3265, %v3202
      %v3330 = vrot.slane %v3138, 1
      %v3331 = vrot.slane %v3139, 1
      %v3332 = vrot.slane %v3140, 1
      %v3333 = vrot.slane %v3141, 1
      %v3334 = vrot.slane %v3142, 1
      %v3335 = vrot.slane %v3143, 1
      %v3336 = vrot.slane %v3144, 1
      %v3337 = vrot.slane %v3145, 1
      %v3338 = vrot.slane %v3146, 1
      %v3339 = vrot.slane %v3147, 1
      %v3340 = vrot.slane %v3148, 1
      %v3341 = vrot.slane %v3149, 1
      %v3342 = vrot.slane %v3150, 1
      %v3343 = vrot.slane %v3151, 1
      %v3344 = vrot.slane %v3152, 1
      %v3345 = vrot.slane %v3153, 1
      %v3346 = vrot.slane %v3154, 1
      %v3347 = vrot.slane %v3155, 1
      %v3348 = vrot.slane %v3156, 1
      %v3349 = vrot.slane %v3157, 1
      %v3350 = vrot.slane %v3158, 1
      %v3351 = vrot.slane %v3159, 1
      %v3352 = vrot.slane %v3160, 1
      %v3353 = vrot.slane %v3161, 1
      %v3354 = vrot.slane %v3162, 1
      %v3355 = vrot.slane %v3163, 1
      %v3356 = vrot.slane %v3164, 1
      %v3357 = vrot.slane %v3165, 1
      %v3358 = vrot.slane %v3166, 1
      %v3359 = vrot.slane %v3167, 1
      %v3360 = vrot.slane %v3168, 1
      %v3361 = vrot.slane %v3169, 1
      %v3362 = vrot.slane %v3170, 1
      %v3363 = vrot.slane %v3171, 1
      %v3364 = vrot.slane %v3172, 1
      %v3365 = vrot.slane %v3173, 1
      %v3366 = vrot.slane %v3174, 1
      %v3367 = vrot.slane %v3175, 1
      %v3368 = vrot.slane %v3176, 1
      %v3369 = vrot.slane %v3177, 1
      %v3370 = vrot.slane %v3178, 1
      %v3371 = vrot.slane %v3179, 1
      %v3372 = vrot.slane %v3180, 1
      %v3373 = vrot.slane %v3181, 1
      %v3374 = vrot.slane %v3182, 1
      %v3375 = vrot.slane %v3183, 1
      %v3376 = vrot.slane %v3184, 1
      %v3377 = vrot.slane %v3185, 1
      %v3378 = vrot.slane %v3186, 1
      %v3379 = vrot.slane %v3187, 1
      %v3380 = vrot.slane %v3188, 1
      %v3381 = vrot.slane %v3189, 1
      %v3382 = vrot.slane %v3190, 1
      %v3383 = vrot.slane %v3191, 1
      %v3384 = vrot.slane %v3192, 1
      %v3385 = vrot.slane %v3193, 1
      %v3386 = vrot.slane %v3194, 1
      %v3387 = vrot.slane %v3195, 1
      %v3388 = vrot.slane %v3196, 1
      %v3389 = vrot.slane %v3197, 1
      %v3390 = vrot.slane %v3198, 1
      %v3391 = vrot.slane %v3199, 1
      %v3392 = vrot.slane %v3200, 1
      %v3393 = vrot.slane %v3201, 1
      %v3394 = vsel %vm672, %v3392, %v3393
      %v3395 = vsel %vm672, %v3391, %v3392
      %v3396 = vsel %vm672, %v3390, %v3391
      %v3397 = vsel %vm672, %v3389, %v3390
      %v3398 = vsel %vm672, %v3388, %v3389
      %v3399 = vsel %vm672, %v3387, %v3388
      %v3400 = vsel %vm672, %v3386, %v3387
      %v3401 = vsel %vm672, %v3385, %v3386
      %v3402 = vsel %vm672, %v3384, %v3385
      %v3403 = vsel %vm672, %v3383, %v3384
      %v3404 = vsel %vm672, %v3382, %v3383
      %v3405 = vsel %vm672, %v3381, %v3382
      %v3406 = vsel %vm672, %v3380, %v3381
      %v3407 = vsel %vm672, %v3379, %v3380
      %v3408 = vsel %vm672, %v3378, %v3379
      %v3409 = vsel %vm672, %v3377, %v3378
      %v3410 = vsel %vm672, %v3376, %v3377
      %v3411 = vsel %vm672, %v3375, %v3376
      %v3412 = vsel %vm672, %v3374, %v3375
      %v3413 = vsel %vm672, %v3373, %v3374
      %v3414 = vsel %vm672, %v3372, %v3373
      %v3415 = vsel %vm672, %v3371, %v3372
      %v3416 = vsel %vm672, %v3370, %v3371
      %v3417 = vsel %vm672, %v3369, %v3370
      %v3418 = vsel %vm672, %v3368, %v3369
      %v3419 = vsel %vm672, %v3367, %v3368
      %v3420 = vsel %vm672, %v3366, %v3367
      %v3421 = vsel %vm672, %v3365, %v3366
      %v3422 = vsel %vm672, %v3364, %v3365
      %v3423 = vsel %vm672, %v3363, %v3364
      %v3424 = vsel %vm672, %v3362, %v3363
      %v3425 = vsel %vm672, %v3361, %v3362
      %v3426 = vsel %vm672, %v3360, %v3361
      %v3427 = vsel %vm672, %v3359, %v3360
      %v3428 = vsel %vm672, %v3358, %v3359
      %v3429 = vsel %vm672, %v3357, %v3358
      %v3430 = vsel %vm672, %v3356, %v3357
      %v3431 = vsel %vm672, %v3355, %v3356
      %v3432 = vsel %vm672, %v3354, %v3355
      %v3433 = vsel %vm672, %v3353, %v3354
      %v3434 = vsel %vm672, %v3352, %v3353
      %v3435 = vsel %vm672, %v3351, %v3352
      %v3436 = vsel %vm672, %v3350, %v3351
      %v3437 = vsel %vm672, %v3349, %v3350
      %v3438 = vsel %vm672, %v3348, %v3349
      %v3439 = vsel %vm672, %v3347, %v3348
      %v3440 = vsel %vm672, %v3346, %v3347
      %v3441 = vsel %vm672, %v3345, %v3346
      %v3442 = vsel %vm672, %v3344, %v3345
      %v3443 = vsel %vm672, %v3343, %v3344
      %v3444 = vsel %vm672, %v3342, %v3343
      %v3445 = vsel %vm672, %v3341, %v3342
      %v3446 = vsel %vm672, %v3340, %v3341
      %v3447 = vsel %vm672, %v3339, %v3340
      %v3448 = vsel %vm672, %v3338, %v3339
      %v3449 = vsel %vm672, %v3337, %v3338
      %v3450 = vsel %vm672, %v3336, %v3337
      %v3451 = vsel %vm672, %v3335, %v3336
      %v3452 = vsel %vm672, %v3334, %v3335
      %v3453 = vsel %vm672, %v3333, %v3334
      %v3454 = vsel %vm672, %v3332, %v3333
      %v3455 = vsel %vm672, %v3331, %v3332
      %v3456 = vsel %vm672, %v3330, %v3331
      %v3457 = vsel %vm672, %v3393, %v3330
      %3522 = vrot.lane.b32.xlu0 %v3138, 4
      %v3523 = vpop.permute.xlu0 %3522
      %3524 = vrot.lane.b32.xlu0 %v3139, 4
      %v3525 = vpop.permute.xlu0 %3524
      %3526 = vrot.lane.b32.xlu0 %v3140, 4
      %v3527 = vpop.permute.xlu0 %3526
      %3528 = vrot.lane.b32.xlu0 %v3141, 4
      %v3529 = vpop.permute.xlu0 %3528
      %3530 = vrot.lane.b32.xlu0 %v3142, 4
      %v3531 = vpop.permute.xlu0 %3530
      %3532 = vrot.lane.b32.xlu0 %v3143, 4
      %v3533 = vpop.permute.xlu0 %3532
      %3534 = vrot.lane.b32.xlu0 %v3144, 4
      %v3535 = vpop.permute.xlu0 %3534
      %3536 = vrot.lane.b32.xlu0 %v3145, 4
      %v3537 = vpop.permute.xlu0 %3536
      %3538 = vrot.lane.b32.xlu0 %v3146, 4
      %v3539 = vpop.permute.xlu0 %3538
      %3540 = vrot.lane.b32.xlu0 %v3147, 4
      %v3541 = vpop.permute.xlu0 %3540
      %3542 = vrot.lane.b32.xlu0 %v3148, 4
      %v3543 = vpop.permute.xlu0 %3542
      %3544 = vrot.lane.b32.xlu0 %v3149, 4
      %v3545 = vpop.permute.xlu0 %3544
      %3546 = vrot.lane.b32.xlu0 %v3150, 4
      %v3547 = vpop.permute.xlu0 %3546
      %3548 = vrot.lane.b32.xlu0 %v3151, 4
      %v3549 = vpop.permute.xlu0 %3548
      %3550 = vrot.lane.b32.xlu0 %v3152, 4
      %v3551 = vpop.permute.xlu0 %3550
      %3552 = vrot.lane.b32.xlu0 %v3153, 4
      %v3553 = vpop.permute.xlu0 %3552
      %3554 = vrot.lane.b32.xlu0 %v3154, 4
      %v3555 = vpop.permute.xlu0 %3554
      %3556 = vrot.lane.b32.xlu0 %v3155, 4
      %v3557 = vpop.permute.xlu0 %3556
      %3558 = vrot.lane.b32.xlu0 %v3156, 4
      %v3559 = vpop.permute.xlu0 %3558
      %3560 = vrot.lane.b32.xlu0 %v3157, 4
      %v3561 = vpop.permute.xlu0 %3560
      %3562 = vrot.lane.b32.xlu0 %v3158, 4
      %v3563 = vpop.permute.xlu0 %3562
      %3564 = vrot.lane.b32.xlu0 %v3159, 4
      %v3565 = vpop.permute.xlu0 %3564
      %3566 = vrot.lane.b32.xlu0 %v3160, 4
      %v3567 = vpop.permute.xlu0 %3566
      %3568 = vrot.lane.b32.xlu0 %v3161, 4
      %v3569 = vpop.permute.xlu0 %3568
      %3570 = vrot.lane.b32.xlu0 %v3162, 4
      %v3571 = vpop.permute.xlu0 %3570
      %3572 = vrot.lane.b32.xlu0 %v3163, 4
      %v3573 = vpop.permute.xlu0 %3572
      %3574 = vrot.lane.b32.xlu0 %v3164, 4
      %v3575 = vpop.permute.xlu0 %3574
      %3576 = vrot.lane.b32.xlu0 %v3165, 4
      %v3577 = vpop.permute.xlu0 %3576
      %3578 = vrot.lane.b32.xlu0 %v3166, 4
      %v3579 = vpop.permute.xlu0 %3578
      %3580 = vrot.lane.b32.xlu0 %v3167, 4
      %v3581 = vpop.permute.xlu0 %3580
      %3582 = vrot.lane.b32.xlu0 %v3168, 4
      %v3583 = vpop.permute.xlu0 %3582
      %3584 = vrot.lane.b32.xlu0 %v3169, 4
      %v3585 = vpop.permute.xlu0 %3584
      %3586 = vrot.lane.b32.xlu0 %v3170, 4
      %v3587 = vpop.permute.xlu0 %3586
      %3588 = vrot.lane.b32.xlu0 %v3171, 4
      %v3589 = vpop.permute.xlu0 %3588
      %3590 = vrot.lane.b32.xlu0 %v3172, 4
      %v3591 = vpop.permute.xlu0 %3590
      %3592 = vrot.lane.b32.xlu0 %v3173, 4
      %v3593 = vpop.permute.xlu0 %3592
      %3594 = vrot.lane.b32.xlu0 %v3174, 4
      %v3595 = vpop.permute.xlu0 %3594
      %3596 = vrot.lane.b32.xlu0 %v3175, 4
      %v3597 = vpop.permute.xlu0 %3596
      %3598 = vrot.lane.b32.xlu0 %v3176, 4
      %v3599 = vpop.permute.xlu0 %3598
      %3600 = vrot.lane.b32.xlu0 %v3177, 4
      %v3601 = vpop.permute.xlu0 %3600
      %3602 = vrot.lane.b32.xlu0 %v3178, 4
      %v3603 = vpop.permute.xlu0 %3602
      %3604 = vrot.lane.b32.xlu0 %v3179, 4
      %v3605 = vpop.permute.xlu0 %3604
      %3606 = vrot.lane.b32.xlu0 %v3180, 4
      %v3607 = vpop.permute.xlu0 %3606
      %3608 = vrot.lane.b32.xlu0 %v3181, 4
      %v3609 = vpop.permute.xlu0 %3608
      %3610 = vrot.lane.b32.xlu0 %v3182, 4
      %v3611 = vpop.permute.xlu0 %3610
      %3612 = vrot.lane.b32.xlu0 %v3183, 4
      %v3613 = vpop.permute.xlu0 %3612
      %3614 = vrot.lane.b32.xlu0 %v3184, 4
      %v3615 = vpop.permute.xlu0 %3614
      %3616 = vrot.lane.b32.xlu0 %v3185, 4
      %v3617 = vpop.permute.xlu0 %3616
      %3618 = vrot.lane.b32.xlu0 %v3186, 4
      %v3619 = vpop.permute.xlu0 %3618
      %3620 = vrot.lane.b32.xlu0 %v3187, 4
      %v3621 = vpop.permute.xlu0 %3620
      %3622 = vrot.lane.b32.xlu0 %v3188, 4
      %v3623 = vpop.permute.xlu0 %3622
      %3624 = vrot.lane.b32.xlu0 %v3189, 4
      %v3625 = vpop.permute.xlu0 %3624
      %3626 = vrot.lane.b32.xlu0 %v3190, 4
      %v3627 = vpop.permute.xlu0 %3626
      %3628 = vrot.lane.b32.xlu0 %v3191, 4
      %v3629 = vpop.permute.xlu0 %3628
      %3630 = vrot.lane.b32.xlu0 %v3192, 4
      %v3631 = vpop.permute.xlu0 %3630
      %3632 = vrot.lane.b32.xlu0 %v3193, 4
      %v3633 = vpop.permute.xlu0 %3632
      %3634 = vrot.lane.b32.xlu0 %v3194, 4
      %v3635 = vpop.permute.xlu0 %3634
      %3636 = vrot.lane.b32.xlu0 %v3195, 4
      %v3637 = vpop.permute.xlu0 %3636
      %3638 = vrot.lane.b32.xlu0 %v3196, 4
      %v3639 = vpop.permute.xlu0 %3638
      %3640 = vrot.lane.b32.xlu0 %v3197, 4
      %v3641 = vpop.permute.xlu0 %3640
      %3642 = vrot.lane.b32.xlu0 %v3198, 4
      %v3643 = vpop.permute.xlu0 %3642
      %3644 = vrot.lane.b32.xlu0 %v3199, 4
      %v3645 = vpop.permute.xlu0 %3644
      %3646 = vrot.lane.b32.xlu0 %v3200, 4
      %v3647 = vpop.permute.xlu0 %3646
      %3648 = vrot.lane.b32.xlu0 %v3201, 4
      %v3649 = vpop.permute.xlu0 %3648
      %3778 = vrot.lane.b32.xlu0 %v3456, 8
      %v3779 = vpop.permute.xlu0 %3778
      %3780 = vrot.lane.b32.xlu0 %v3455, 8
      %v3781 = vpop.permute.xlu0 %3780
      %3782 = vrot.lane.b32.xlu0 %v3454, 8
      %v3783 = vpop.permute.xlu0 %3782
      %3784 = vrot.lane.b32.xlu0 %v3453, 8
      %v3785 = vpop.permute.xlu0 %3784
      %3786 = vrot.lane.b32.xlu0 %v3452, 8
      %v3787 = vpop.permute.xlu0 %3786
      %3788 = vrot.lane.b32.xlu0 %v3451, 8
      %v3789 = vpop.permute.xlu0 %3788
      %3790 = vrot.lane.b32.xlu0 %v3450, 8
      %v3791 = vpop.permute.xlu0 %3790
      %3792 = vrot.lane.b32.xlu0 %v3449, 8
      %v3793 = vpop.permute.xlu0 %3792
      %3794 = vrot.lane.b32.xlu0 %v3448, 8
      %v3795 = vpop.permute.xlu0 %3794
      %3796 = vrot.lane.b32.xlu0 %v3447, 8
      %v3797 = vpop.permute.xlu0 %3796
      %3798 = vrot.lane.b32.xlu0 %v3446, 8
      %v3799 = vpop.permute.xlu0 %3798
      %3800 = vrot.lane.b32.xlu0 %v3445, 8
      %v3801 = vpop.permute.xlu0 %3800
      %3802 = vrot.lane.b32.xlu0 %v3444, 8
      %v3803 = vpop.permute.xlu0 %3802
      %3804 = vrot.lane.b32.xlu0 %v3443, 8
      %v3805 = vpop.permute.xlu0 %3804
      %3806 = vrot.lane.b32.xlu0 %v3442, 8
      %v3807 = vpop.permute.xlu0 %3806
      %3808 = vrot.lane.b32.xlu0 %v3441, 8
      %v3809 = vpop.permute.xlu0 %3808
      %3810 = vrot.lane.b32.xlu0 %v3440, 8
      %v3811 = vpop.permute.xlu0 %3810
      %3812 = vrot.lane.b32.xlu0 %v3439, 8
      %v3813 = vpop.permute.xlu0 %3812
      %3814 = vrot.lane.b32.xlu0 %v3438, 8
      %v3815 = vpop.permute.xlu0 %3814
      %3816 = vrot.lane.b32.xlu0 %v3437, 8
      %v3817 = vpop.permute.xlu0 %3816
      %3818 = vrot.lane.b32.xlu0 %v3436, 8
      %v3819 = vpop.permute.xlu0 %3818
      %3820 = vrot.lane.b32.xlu0 %v3435, 8
      %v3821 = vpop.permute.xlu0 %3820
      %3822 = vrot.lane.b32.xlu0 %v3434, 8
      %v3823 = vpop.permute.xlu0 %3822
      %3824 = vrot.lane.b32.xlu0 %v3433, 8
      %v3825 = vpop.permute.xlu0 %3824
      %3826 = vrot.lane.b32.xlu0 %v3432, 8
      %v3827 = vpop.permute.xlu0 %3826
      %3828 = vrot.lane.b32.xlu0 %v3431, 8
      %v3829 = vpop.permute.xlu0 %3828
      %3830 = vrot.lane.b32.xlu0 %v3430, 8
      %v3831 = vpop.permute.xlu0 %3830
      %3832 = vrot.lane.b32.xlu0 %v3429, 8
      %v3833 = vpop.permute.xlu0 %3832
      %3834 = vrot.lane.b32.xlu0 %v3428, 8
      %v3835 = vpop.permute.xlu0 %3834
      %3836 = vrot.lane.b32.xlu0 %v3427, 8
      %v3837 = vpop.permute.xlu0 %3836
      %3838 = vrot.lane.b32.xlu0 %v3426, 8
      %v3839 = vpop.permute.xlu0 %3838
      %3840 = vrot.lane.b32.xlu0 %v3425, 8
      %v3841 = vpop.permute.xlu0 %3840
      %3842 = vrot.lane.b32.xlu0 %v3424, 8
      %v3843 = vpop.permute.xlu0 %3842
      %3844 = vrot.lane.b32.xlu0 %v3423, 8
      %v3845 = vpop.permute.xlu0 %3844
      %3846 = vrot.lane.b32.xlu0 %v3422, 8
      %v3847 = vpop.permute.xlu0 %3846
      %3848 = vrot.lane.b32.xlu0 %v3421, 8
      %v3849 = vpop.permute.xlu0 %3848
      %3850 = vrot.lane.b32.xlu0 %v3420, 8
      %v3851 = vpop.permute.xlu0 %3850
      %3852 = vrot.lane.b32.xlu0 %v3419, 8
      %v3853 = vpop.permute.xlu0 %3852
      %3854 = vrot.lane.b32.xlu0 %v3418, 8
      %v3855 = vpop.permute.xlu0 %3854
      %3856 = vrot.lane.b32.xlu0 %v3417, 8
      %v3857 = vpop.permute.xlu0 %3856
      %3858 = vrot.lane.b32.xlu0 %v3416, 8
      %v3859 = vpop.permute.xlu0 %3858
      %3860 = vrot.lane.b32.xlu0 %v3415, 8
      %v3861 = vpop.permute.xlu0 %3860
      %3862 = vrot.lane.b32.xlu0 %v3414, 8
      %v3863 = vpop.permute.xlu0 %3862
      %3864 = vrot.lane.b32.xlu0 %v3413, 8
      %v3865 = vpop.permute.xlu0 %3864
      %3866 = vrot.lane.b32.xlu0 %v3412, 8
      %v3867 = vpop.permute.xlu0 %3866
      %3868 = vrot.lane.b32.xlu0 %v3411, 8
      %v3869 = vpop.permute.xlu0 %3868
      %3870 = vrot.lane.b32.xlu0 %v3410, 8
      %v3871 = vpop.permute.xlu0 %3870
      %3872 = vrot.lane.b32.xlu0 %v3409, 8
      %v3873 = vpop.permute.xlu0 %3872
      %3874 = vrot.lane.b32.xlu0 %v3408, 8
      %v3875 = vpop.permute.xlu0 %3874
      %3876 = vrot.lane.b32.xlu0 %v3407, 8
      %v3877 = vpop.permute.xlu0 %3876
      %3878 = vrot.lane.b32.xlu0 %v3406, 8
      %v3879 = vpop.permute.xlu0 %3878
      %3880 = vrot.lane.b32.xlu0 %v3405, 8
      %v3881 = vpop.permute.xlu0 %3880
      %3882 = vrot.lane.b32.xlu0 %v3404, 8
      %v3883 = vpop.permute.xlu0 %3882
      %3884 = vrot.lane.b32.xlu0 %v3403, 8
      %v3885 = vpop.permute.xlu0 %3884
      %3886 = vrot.lane.b32.xlu0 %v3402, 8
      %v3887 = vpop.permute.xlu0 %3886
      %3888 = vrot.lane.b32.xlu0 %v3401, 8
      %v3889 = vpop.permute.xlu0 %3888
      %3890 = vrot.lane.b32.xlu0 %v3400, 8
      %v3891 = vpop.permute.xlu0 %3890
      %3892 = vrot.lane.b32.xlu0 %v3399, 8
      %v3893 = vpop.permute.xlu0 %3892
      %3894 = vrot.lane.b32.xlu0 %v3398, 8
      %v3895 = vpop.permute.xlu0 %3894
      %3896 = vrot.lane.b32.xlu0 %v3397, 8
      %v3897 = vpop.permute.xlu0 %3896
      %3898 = vrot.lane.b32.xlu0 %v3396, 8
      %v3899 = vpop.permute.xlu0 %3898
      %3900 = vrot.lane.b32.xlu0 %v3395, 8
      %v3901 = vpop.permute.xlu0 %3900
      %3902 = vrot.lane.b32.xlu0 %v3394, 8
      %v3903 = vpop.permute.xlu0 %3902
      %3904 = vrot.lane.b32.xlu0 %v3457, 8
      %v3905 = vpop.permute.xlu0 %3904
      %v3970 = vsel %vm1249, %v3329, %v3523
      %v3971 = vsel %vm1249, %v3328, %v3525
      %v3972 = vsel %vm1249, %v3327, %v3527
      %v3973 = vsel %vm1249, %v3326, %v3529
      %v3974 = vsel %vm1249, %v3325, %v3531
      %v3975 = vsel %vm1249, %v3324, %v3533
      %v3976 = vsel %vm1249, %v3323, %v3535
      %v3977 = vsel %vm1249, %v3322, %v3537
      %v3978 = vsel %vm1249, %v3321, %v3539
      %v3979 = vsel %vm1249, %v3320, %v3541
      %v3980 = vsel %vm1249, %v3319, %v3543
      %v3981 = vsel %vm1249, %v3318, %v3545
      %v3982 = vsel %vm1249, %v3317, %v3547
      %v3983 = vsel %vm1249, %v3316, %v3549
      %v3984 = vsel %vm1249, %v3315, %v3551
      %v3985 = vsel %vm1249, %v3314, %v3553
      %v3986 = vsel %vm1249, %v3313, %v3555
      %v3987 = vsel %vm1249, %v3312, %v3557
      %v3988 = vsel %vm1249, %v3311, %v3559
      %v3989 = vsel %vm1249, %v3310, %v3561
      %v3990 = vsel %vm1249, %v3309, %v3563
      %v3991 = vsel %vm1249, %v3308, %v3565
      %v3992 = vsel %vm1249, %v3307, %v3567
      %v3993 = vsel %vm1249, %v3306, %v3569
      %v3994 = vsel %vm1249, %v3305, %v3571
      %v3995 = vsel %vm1249, %v3304, %v3573
      %v3996 = vsel %vm1249, %v3303, %v3575
      %v3997 = vsel %vm1249, %v3302, %v3577
      %v3998 = vsel %vm1249, %v3301, %v3579
      %v3999 = vsel %vm1249, %v3300, %v3581
      %v4000 = vsel %vm1249, %v3299, %v3583
      %v4001 = vsel %vm1249, %v3298, %v3585
      %v4002 = vsel %vm1249, %v3297, %v3587
      %v4003 = vsel %vm1249, %v3296, %v3589
      %v4004 = vsel %vm1249, %v3295, %v3591
      %v4005 = vsel %vm1249, %v3294, %v3593
      %v4006 = vsel %vm1249, %v3293, %v3595
      %v4007 = vsel %vm1249, %v3292, %v3597
      %v4008 = vsel %vm1249, %v3291, %v3599
      %v4009 = vsel %vm1249, %v3290, %v3601
      %v4010 = vsel %vm1249, %v3289, %v3603
      %v4011 = vsel %vm1249, %v3288, %v3605
      %v4012 = vsel %vm1249, %v3287, %v3607
      %v4013 = vsel %vm1249, %v3286, %v3609
      %v4014 = vsel %vm1249, %v3285, %v3611
      %v4015 = vsel %vm1249, %v3284, %v3613
      %v4016 = vsel %vm1249, %v3283, %v3615
      %v4017 = vsel %vm1249, %v3282, %v3617
      %v4018 = vsel %vm1249, %v3281, %v3619
      %v4019 = vsel %vm1249, %v3280, %v3621
      %v4020 = vsel %vm1249, %v3279, %v3623
      %v4021 = vsel %vm1249, %v3278, %v3625
      %v4022 = vsel %vm1249, %v3277, %v3627
      %v4023 = vsel %vm1249, %v3276, %v3629
      %v4024 = vsel %vm1249, %v3275, %v3631
      %v4025 = vsel %vm1249, %v3274, %v3633
      %v4026 = vsel %vm1249, %v3273, %v3635
      %v4027 = vsel %vm1249, %v3272, %v3637
      %v4028 = vsel %vm1249, %v3271, %v3639
      %v4029 = vsel %vm1249, %v3270, %v3641
      %v4030 = vsel %vm1249, %v3269, %v3643
      %v4031 = vsel %vm1249, %v3268, %v3645
      %v4032 = vsel %vm1249, %v3267, %v3647
      %v4033 = vsel %vm1249, %v3266, %v3649
      %v4034 = vsel %vm1314, %v3970, %v3779
      %v4035 = vsel %vm1314, %v3971, %v3781
      %v4036 = vsel %vm1314, %v3972, %v3783
      %v4037 = vsel %vm1314, %v3973, %v3785
      %v4038 = vsel %vm1314, %v3974, %v3787
      %v4039 = vsel %vm1314, %v3975, %v3789
      %v4040 = vsel %vm1314, %v3976, %v3791
      %v4041 = vsel %vm1314, %v3977, %v3793
      %v4042 = vsel %vm1314, %v3978, %v3795
      %v4043 = vsel %vm1314, %v3979, %v3797
      %v4044 = vsel %vm1314, %v3980, %v3799
      %v4045 = vsel %vm1314, %v3981, %v3801
      %v4046 = vsel %vm1314, %v3982, %v3803
      %v4047 = vsel %vm1314, %v3983, %v3805
      %v4048 = vsel %vm1314, %v3984, %v3807
      %v4049 = vsel %vm1314, %v3985, %v3809
      %v4050 = vsel %vm1314, %v3986, %v3811
      %v4051 = vsel %vm1314, %v3987, %v3813
      %v4052 = vsel %vm1314, %v3988, %v3815
      %v4053 = vsel %vm1314, %v3989, %v3817
      %v4054 = vsel %vm1314, %v3990, %v3819
      %v4055 = vsel %vm1314, %v3991, %v3821
      %v4056 = vsel %vm1314, %v3992, %v3823
      %v4057 = vsel %vm1314, %v3993, %v3825
      %v4058 = vsel %vm1314, %v3994, %v3827
      %v4059 = vsel %vm1314, %v3995, %v3829
      %v4060 = vsel %vm1314, %v3996, %v3831
      %v4061 = vsel %vm1314, %v3997, %v3833
      %v4062 = vsel %vm1314, %v3998, %v3835
      %v4063 = vsel %vm1314, %v3999, %v3837
      %v4064 = vsel %vm1314, %v4000, %v3839
      %v4065 = vsel %vm1314, %v4001, %v3841
      %v4066 = vsel %vm1314, %v4002, %v3843
      %v4067 = vsel %vm1314, %v4003, %v3845
      %v4068 = vsel %vm1314, %v4004, %v3847
      %v4069 = vsel %vm1314, %v4005, %v3849
      %v4070 = vsel %vm1314, %v4006, %v3851
      %v4071 = vsel %vm1314, %v4007, %v3853
      %v4072 = vsel %vm1314, %v4008, %v3855
      %v4073 = vsel %vm1314, %v4009, %v3857
      %v4074 = vsel %vm1314, %v4010, %v3859
      %v4075 = vsel %vm1314, %v4011, %v3861
      %v4076 = vsel %vm1314, %v4012, %v3863
      %v4077 = vsel %vm1314, %v4013, %v3865
      %v4078 = vsel %vm1314, %v4014, %v3867
      %v4079 = vsel %vm1314, %v4015, %v3869
      %v4080 = vsel %vm1314, %v4016, %v3871
      %v4081 = vsel %vm1314, %v4017, %v3873
      %v4082 = vsel %vm1314, %v4018, %v3875
      %v4083 = vsel %vm1314, %v4019, %v3877
      %v4084 = vsel %vm1314, %v4020, %v3879
      %v4085 = vsel %vm1314, %v4021, %v3881
      %v4086 = vsel %vm1314, %v4022, %v3883
      %v4087 = vsel %vm1314, %v4023, %v3885
      %v4088 = vsel %vm1314, %v4024, %v3887
      %v4089 = vsel %vm1314, %v4025, %v3889
      %v4090 = vsel %vm1314, %v4026, %v3891
      %v4091 = vsel %vm1314, %v4027, %v3893
      %v4092 = vsel %vm1314, %v4028, %v3895
      %v4093 = vsel %vm1314, %v4029, %v3897
      %v4094 = vsel %vm1314, %v4030, %v3899
      %v4095 = vsel %vm1314, %v4031, %v3901
      %v4096 = vsel %vm1314, %v4032, %v3903
      %v4097 = vsel %vm1314, %v4033, %v3905
      %v4098 = vpack.c.bf16 %v4035, %v4034
      %v4099 = vpack.c.bf16 %v4037, %v4036
      %v4100 = vpack.c.bf16 %v4039, %v4038
      %v4101 = vpack.c.bf16 %v4041, %v4040
      %v4102 = vpack.c.bf16 %v4043, %v4042
      %v4103 = vpack.c.bf16 %v4045, %v4044
      %v4104 = vpack.c.bf16 %v4047, %v4046
      %v4105 = vpack.c.bf16 %v4049, %v4048
      %v4106 = vpack.c.bf16 %v4051, %v4050
      %v4107 = vpack.c.bf16 %v4053, %v4052
      %v4108 = vpack.c.bf16 %v4055, %v4054
      %v4109 = vpack.c.bf16 %v4057, %v4056
      %v4110 = vpack.c.bf16 %v4059, %v4058
      %v4111 = vpack.c.bf16 %v4061, %v4060
      %v4112 = vpack.c.bf16 %v4063, %v4062
      %v4113 = vpack.c.bf16 %v4065, %v4064
      %v4114 = vpack.c.bf16 %v4067, %v4066
      %v4115 = vpack.c.bf16 %v4069, %v4068
      %v4116 = vpack.c.bf16 %v4071, %v4070
      %v4117 = vpack.c.bf16 %v4073, %v4072
      %v4118 = vpack.c.bf16 %v4075, %v4074
      %v4119 = vpack.c.bf16 %v4077, %v4076
      %v4120 = vpack.c.bf16 %v4079, %v4078
      %v4121 = vpack.c.bf16 %v4081, %v4080
      %v4122 = vpack.c.bf16 %v4083, %v4082
      %v4123 = vpack.c.bf16 %v4085, %v4084
      %v4124 = vpack.c.bf16 %v4087, %v4086
      %v4125 = vpack.c.bf16 %v4089, %v4088
      %v4126 = vpack.c.bf16 %v4091, %v4090
      %v4127 = vpack.c.bf16 %v4093, %v4092
      %v4128 = vpack.c.bf16 %v4095, %v4094
      %v4129 = vpack.c.bf16 %v4097, %v4096
      %s4130 = sadd.s32 4, %s1411
      %s4131 = smul.addr %s4130, 4
      %s4132 = scalar_lea.vmem %s1, %s4131
      %v4133 = vld [vmem:[%s4132] sm:$0xf]
      %v4134 = vld [vmem:[%s4132 + $0x4] sm:$0x3]
      %v4137 = vunpack.c.l.b16 %v4133
      %v4138 = vunpack.c.l.b16 %v4134
      %v4139 = vpack.c.b16 %v4138, %v4137
      %v4141 = vsel %vm2418, %v4098, 0
      %v4144 = vsel %vm2418, %v4099, 0
      %v4147 = vsel %vm2418, %v4100, 0
      %v4150 = vsel %vm2418, %v4101, 0
      %v4153 = vsel %vm2418, %v4102, 0
      %v4156 = vsel %vm2418, %v4103, 0
      %v4159 = vsel %vm2418, %v4104, 0
      %v4162 = vsel %vm2418, %v4105, 0
      %v4165 = vsel %vm2418, %v4106, 0
      %v4168 = vsel %vm2418, %v4107, 0
      %v4171 = vsel %vm2418, %v4108, 0
      %v4174 = vsel %vm2418, %v4109, 0
      %v4177 = vsel %vm2418, %v4110, 0
      %v4180 = vsel %vm2418, %v4111, 0
      %v4183 = vsel %vm2418, %v4112, 0
      %v4186 = vsel %vm2418, %v4113, 0
      %v4189 = vsel %vm2418, %v4114, 0
      %v4192 = vsel %vm2418, %v4115, 0
      %v4195 = vsel %vm2418, %v4116, 0
      %v4198 = vsel %vm2418, %v4117, 0
      %v4201 = vsel %vm2418, %v4118, 0
      %v4204 = vsel %vm2418, %v4119, 0
      %v4207 = vsel %vm2418, %v4120, 0
      %v4210 = vsel %vm2418, %v4121, 0
      %v4213 = vsel %vm2418, %v4122, 0
      %v4216 = vsel %vm2418, %v4123, 0
      %v4219 = vsel %vm2418, %v4124, 0
      %v4222 = vsel %vm2418, %v4125, 0
      %v4225 = vsel %vm2418, %v4126, 0
      %v4228 = vsel %vm2418, %v4127, 0
      %v4231 = vsel %vm2418, %v4128, 0
      %v4234 = vsel %vm2418, %v4129, 0
      %v4237 = vsel %vm2515, %v4139, 0
      %4239 = vmatprep.subr.bf16.mxu0 0
      %4240 = vmatpush1.bf16.msra.mxu0 0
      %4241 = vmatprep.subr.bf16.mxu0 0
      %4242 = vmatpush1.bf16.msra.mxu0 0
      %4243 = vmatprep.subr.bf16.mxu0 0
      %4244 = vmatpush1.bf16.msra.mxu0 0
      %4245 = vmatprep.subr.bf16.mxu0 0
      %4246 = vmatpush1.bf16.msra.mxu0 0
      %4247 = vmatprep.subr.bf16.mxu0 0
      %4248 = vmatpush1.bf16.msra.mxu0 0
      %4249 = vmatprep.subr.bf16.mxu0 0
      %4250 = vmatpush1.bf16.msra.mxu0 0
      %4251 = vmatprep.subr.bf16.mxu0 0
      %4252 = vmatpush1.bf16.msra.mxu0 0
      %4253 = vmatprep.subr.bf16.mxu0 0
      %4254 = vmatpush1.bf16.msra.mxu0 %v4237
      %4255 = vmatprep.subr.bf16.mxu0 0
      %4256 = vmatpush2.bf16.msra.mxu0 0
      %4257 = vmatprep.subr.bf16.mxu0 0
      %4258 = vmatpush2.bf16.msra.mxu0 0
      %4259 = vmatprep.subr.bf16.mxu0 0
      %4260 = vmatpush2.bf16.msra.mxu0 0
      %4261 = vmatprep.subr.bf16.mxu0 0
      %4262 = vmatpush2.bf16.msra.mxu0 0
      %4263 = vmatprep.subr.bf16.mxu0 0
      %4264 = vmatpush2.bf16.msra.mxu0 0
      %4265 = vmatprep.subr.bf16.mxu0 0
      %4266 = vmatpush2.bf16.msra.mxu0 0
      %4267 = vmatprep.subr.bf16.mxu0 0
      %4268 = vmatpush2.bf16.msra.mxu0 0
      %4269 = vmatprep.subr.bf16.mxu0 0
      %4270 = vmatpush2.bf16.msra.mxu0 0
      %4271 = vmatprep.mubr.bf16.mxu0 0
      %4272 = vmatmul.mubr.bf16.gmra.mxu0 %v4141
      %v4273 = vpop.f32.mrf.mxu0
      %v4274 = vpop.f32.mrf.mxu0
      %v4275 = vpop.f32.mrf.mxu0
      %v4276 = vadd.f32 0.0, %v4275
      %v4277 = vpop.f32.mrf.mxu0
      %4278 = vmatprep.mubr.bf16.mxu0 0
      %4279 = vmatmul.mubr.bf16.gmra.mxu0 %v4144
      %v4280 = vpop.f32.mrf.mxu0
      %v4281 = vadd.f32 0.0, %v4280
      %v4282 = vpop.f32.mrf.mxu0
      %v4283 = vpop.f32.mrf.mxu0
      %v4284 = vpop.f32.mrf.mxu0
      %4285 = vmatprep.mubr.bf16.mxu0 0
      %4286 = vmatmul.mubr.bf16.gmra.mxu0 %v4147
      %v4287 = vpop.f32.mrf.mxu0
      %v4288 = vpop.f32.mrf.mxu0
      %v4289 = vpop.f32.mrf.mxu0
      %v4290 = vadd.f32 0.0, %v4289
      %v4291 = vpop.f32.mrf.mxu0
      %4292 = vmatprep.mubr.bf16.mxu0 0
      %4293 = vmatmul.mubr.bf16.gmra.mxu0 %v4150
      %v4294 = vpop.f32.mrf.mxu0
      %v4295 = vadd.f32 0.0, %v4294
      %v4296 = vpop.f32.mrf.mxu0
      %v4297 = vpop.f32.mrf.mxu0
      %v4298 = vpop.f32.mrf.mxu0
      %4299 = vmatprep.mubr.bf16.mxu0 0
      %4300 = vmatmul.mubr.bf16.gmra.mxu0 %v4153
      %v4301 = vpop.f32.mrf.mxu0
      %v4302 = vpop.f32.mrf.mxu0
      %v4303 = vpop.f32.mrf.mxu0
      %v4304 = vadd.f32 0.0, %v4303
      %v4305 = vpop.f32.mrf.mxu0
      %4306 = vmatprep.mubr.bf16.mxu0 0
      %4307 = vmatmul.mubr.bf16.gmra.mxu0 %v4156
      %v4308 = vpop.f32.mrf.mxu0
      %v4309 = vadd.f32 0.0, %v4308
      %v4310 = vpop.f32.mrf.mxu0
      %v4311 = vpop.f32.mrf.mxu0
      %v4312 = vpop.f32.mrf.mxu0
      %4313 = vmatprep.mubr.bf16.mxu0 0
      %4314 = vmatmul.mubr.bf16.gmra.mxu0 %v4159
      %v4315 = vpop.f32.mrf.mxu0
      %v4316 = vpop.f32.mrf.mxu0
      %v4317 = vpop.f32.mrf.mxu0
      %v4318 = vadd.f32 0.0, %v4317
      %v4319 = vpop.f32.mrf.mxu0
      %4320 = vmatprep.mubr.bf16.mxu0 0
      %4321 = vmatmul.mubr.bf16.gmra.mxu0 %v4162
      %v4322 = vpop.f32.mrf.mxu0
      %v4323 = vadd.f32 0.0, %v4322
      %v4324 = vpop.f32.mrf.mxu0
      %v4325 = vpop.f32.mrf.mxu0
      %v4326 = vpop.f32.mrf.mxu0
      %4327 = vmatprep.mubr.bf16.mxu0 0
      %4328 = vmatmul.mubr.bf16.gmra.mxu0 %v4165
      %v4329 = vpop.f32.mrf.mxu0
      %v4330 = vpop.f32.mrf.mxu0
      %v4331 = vpop.f32.mrf.mxu0
      %v4332 = vadd.f32 0.0, %v4331
      %v4333 = vpop.f32.mrf.mxu0
      %4334 = vmatprep.mubr.bf16.mxu0 0
      %4335 = vmatmul.mubr.bf16.gmra.mxu0 %v4168
      %v4336 = vpop.f32.mrf.mxu0
      %v4337 = vadd.f32 0.0, %v4336
      %v4338 = vpop.f32.mrf.mxu0
      %v4339 = vpop.f32.mrf.mxu0
      %v4340 = vpop.f32.mrf.mxu0
      %4341 = vmatprep.mubr.bf16.mxu0 0
      %4342 = vmatmul.mubr.bf16.gmra.mxu0 %v4171
      %v4343 = vpop.f32.mrf.mxu0
      %v4344 = vpop.f32.mrf.mxu0
      %v4345 = vpop.f32.mrf.mxu0
      %v4346 = vadd.f32 0.0, %v4345
      %v4347 = vpop.f32.mrf.mxu0
      %4348 = vmatprep.mubr.bf16.mxu0 0
      %4349 = vmatmul.mubr.bf16.gmra.mxu0 %v4174
      %v4350 = vpop.f32.mrf.mxu0
      %v4351 = vadd.f32 0.0, %v4350
      %v4352 = vpop.f32.mrf.mxu0
      %v4353 = vpop.f32.mrf.mxu0
      %v4354 = vpop.f32.mrf.mxu0
      %4355 = vmatprep.mubr.bf16.mxu0 0
      %4356 = vmatmul.mubr.bf16.gmra.mxu0 %v4177
      %v4357 = vpop.f32.mrf.mxu0
      %v4358 = vpop.f32.mrf.mxu0
      %v4359 = vpop.f32.mrf.mxu0
      %v4360 = vadd.f32 0.0, %v4359
      %v4361 = vpop.f32.mrf.mxu0
      %4362 = vmatprep.mubr.bf16.mxu0 0
      %4363 = vmatmul.mubr.bf16.gmra.mxu0 %v4180
      %v4364 = vpop.f32.mrf.mxu0
      %v4365 = vadd.f32 0.0, %v4364
      %v4366 = vpop.f32.mrf.mxu0
      %v4367 = vpop.f32.mrf.mxu0
      %v4368 = vpop.f32.mrf.mxu0
      %4369 = vmatprep.mubr.bf16.mxu0 0
      %4370 = vmatmul.mubr.bf16.gmra.mxu0 %v4183
      %v4371 = vpop.f32.mrf.mxu0
      %v4372 = vpop.f32.mrf.mxu0
      %v4373 = vpop.f32.mrf.mxu0
      %v4374 = vadd.f32 0.0, %v4373
      %v4375 = vpop.f32.mrf.mxu0
      %4376 = vmatprep.mubr.bf16.mxu0 0
      %4377 = vmatmul.mubr.bf16.gmra.mxu0 %v4186
      %v4378 = vpop.f32.mrf.mxu0
      %v4379 = vadd.f32 0.0, %v4378
      %v4380 = vpop.f32.mrf.mxu0
      %v4381 = vpop.f32.mrf.mxu0
      %v4382 = vpop.f32.mrf.mxu0
      %4383 = vmatprep.mubr.bf16.mxu0 0
      %4384 = vmatmul.mubr.bf16.gmra.mxu0 %v4189
      %v4385 = vpop.f32.mrf.mxu0
      %v4386 = vpop.f32.mrf.mxu0
      %v4387 = vpop.f32.mrf.mxu0
      %v4388 = vadd.f32 0.0, %v4387
      %v4389 = vpop.f32.mrf.mxu0
      %4390 = vmatprep.mubr.bf16.mxu0 0
      %4391 = vmatmul.mubr.bf16.gmra.mxu0 %v4192
      %v4392 = vpop.f32.mrf.mxu0
      %v4393 = vadd.f32 0.0, %v4392
      %v4394 = vpop.f32.mrf.mxu0
      %v4395 = vpop.f32.mrf.mxu0
      %v4396 = vpop.f32.mrf.mxu0
      %4397 = vmatprep.mubr.bf16.mxu0 0
      %4398 = vmatmul.mubr.bf16.gmra.mxu0 %v4195
      %v4399 = vpop.f32.mrf.mxu0
      %v4400 = vpop.f32.mrf.mxu0
      %v4401 = vpop.f32.mrf.mxu0
      %v4402 = vadd.f32 0.0, %v4401
      %v4403 = vpop.f32.mrf.mxu0
      %4404 = vmatprep.mubr.bf16.mxu0 0
      %4405 = vmatmul.mubr.bf16.gmra.mxu0 %v4198
      %v4406 = vpop.f32.mrf.mxu0
      %v4407 = vadd.f32 0.0, %v4406
      %v4408 = vpop.f32.mrf.mxu0
      %v4409 = vpop.f32.mrf.mxu0
      %v4410 = vpop.f32.mrf.mxu0
      %4411 = vmatprep.mubr.bf16.mxu0 0
      %4412 = vmatmul.mubr.bf16.gmra.mxu0 %v4201
      %v4413 = vpop.f32.mrf.mxu0
      %v4414 = vpop.f32.mrf.mxu0
      %v4415 = vpop.f32.mrf.mxu0
      %v4416 = vadd.f32 0.0, %v4415
      %v4417 = vpop.f32.mrf.mxu0
      %4418 = vmatprep.mubr.bf16.mxu0 0
      %4419 = vmatmul.mubr.bf16.gmra.mxu0 %v4204
      %v4420 = vpop.f32.mrf.mxu0
      %v4421 = vadd.f32 0.0, %v4420
      %v4422 = vpop.f32.mrf.mxu0
      %v4423 = vpop.f32.mrf.mxu0
      %v4424 = vpop.f32.mrf.mxu0
      %4425 = vmatprep.mubr.bf16.mxu0 0
      %4426 = vmatmul.mubr.bf16.gmra.mxu0 %v4207
      %v4427 = vpop.f32.mrf.mxu0
      %v4428 = vpop.f32.mrf.mxu0
      %v4429 = vpop.f32.mrf.mxu0
      %v4430 = vadd.f32 0.0, %v4429
      %v4431 = vpop.f32.mrf.mxu0
      %4432 = vmatprep.mubr.bf16.mxu0 0
      %4433 = vmatmul.mubr.bf16.gmra.mxu0 %v4210
      %v4434 = vpop.f32.mrf.mxu0
      %v4435 = vadd.f32 0.0, %v4434
      %v4436 = vpop.f32.mrf.mxu0
      %v4437 = vpop.f32.mrf.mxu0
      %v4438 = vpop.f32.mrf.mxu0
      %4439 = vmatprep.mubr.bf16.mxu0 0
      %4440 = vmatmul.mubr.bf16.gmra.mxu0 %v4213
      %v4441 = vpop.f32.mrf.mxu0
      %v4442 = vpop.f32.mrf.mxu0
      %v4443 = vpop.f32.mrf.mxu0
      %v4444 = vadd.f32 0.0, %v4443
      %v4445 = vpop.f32.mrf.mxu0
      %4446 = vmatprep.mubr.bf16.mxu0 0
      %4447 = vmatmul.mubr.bf16.gmra.mxu0 %v4216
      %v4448 = vpop.f32.mrf.mxu0
      %v4449 = vadd.f32 0.0, %v4448
      %v4450 = vpop.f32.mrf.mxu0
      %v4451 = vpop.f32.mrf.mxu0
      %v4452 = vpop.f32.mrf.mxu0
      %4453 = vmatprep.mubr.bf16.mxu0 0
      %4454 = vmatmul.mubr.bf16.gmra.mxu0 %v4219
      %v4455 = vpop.f32.mrf.mxu0
      %v4456 = vpop.f32.mrf.mxu0
      %v4457 = vpop.f32.mrf.mxu0
      %v4458 = vadd.f32 0.0, %v4457
      %v4459 = vpop.f32.mrf.mxu0
      %4460 = vmatprep.mubr.bf16.mxu0 0
      %4461 = vmatmul.mubr.bf16.gmra.mxu0 %v4222
      %v4462 = vpop.f32.mrf.mxu0
      %v4463 = vadd.f32 0.0, %v4462
      %v4464 = vpop.f32.mrf.mxu0
      %v4465 = vpop.f32.mrf.mxu0
      %v4466 = vpop.f32.mrf.mxu0
      %4467 = vmatprep.mubr.bf16.mxu0 0
      %4468 = vmatmul.mubr.bf16.gmra.mxu0 %v4225
      %v4469 = vpop.f32.mrf.mxu0
      %v4470 = vpop.f32.mrf.mxu0
      %v4471 = vpop.f32.mrf.mxu0
      %v4472 = vadd.f32 0.0, %v4471
      %v4473 = vpop.f32.mrf.mxu0
      %4474 = vmatprep.mubr.bf16.mxu0 0
      %4475 = vmatmul.mubr.bf16.gmra.mxu0 %v4228
      %v4476 = vpop.f32.mrf.mxu0
      %v4477 = vadd.f32 0.0, %v4476
      %v4478 = vpop.f32.mrf.mxu0
      %v4479 = vpop.f32.mrf.mxu0
      %v4480 = vpop.f32.mrf.mxu0
      %4481 = vmatprep.mubr.bf16.mxu0 0
      %4482 = vmatmul.mubr.bf16.gmra.mxu0 %v4231
      %v4483 = vpop.f32.mrf.mxu0
      %v4484 = vpop.f32.mrf.mxu0
      %v4485 = vpop.f32.mrf.mxu0
      %v4486 = vadd.f32 0.0, %v4485
      %v4487 = vpop.f32.mrf.mxu0
      %4488 = vmatprep.mubr.bf16.mxu0 0
      %4489 = vmatmul.mubr.bf16.gmra.mxu0 %v4234
      %v4490 = vpop.f32.mrf.mxu0
      %v4491 = vadd.f32 0.0, %v4490
      %v4492 = vpop.f32.mrf.mxu0
      %v4493 = vpop.f32.mrf.mxu0
      %v4494 = vpop.f32.mrf.mxu0
      %4495 = vdwg.mxu0
      %v4496 = vadd.f32 %v2917, %v4276
      %v4497 = vadd.f32 %v2922, %v4281
      %v4498 = vadd.f32 %v2931, %v4290
      %v4499 = vadd.f32 %v2936, %v4295
      %v4500 = vadd.f32 %v2945, %v4304
      %v4501 = vadd.f32 %v2950, %v4309
      %v4502 = vadd.f32 %v2959, %v4318
      %v4503 = vadd.f32 %v2964, %v4323
      %v4504 = vadd.f32 %v2973, %v4332
      %v4505 = vadd.f32 %v2978, %v4337
      %v4506 = vadd.f32 %v2987, %v4346
      %v4507 = vadd.f32 %v2992, %v4351
      %v4508 = vadd.f32 %v3001, %v4360
      %v4509 = vadd.f32 %v3006, %v4365
      %v4510 = vadd.f32 %v3015, %v4374
      %v4511 = vadd.f32 %v3020, %v4379
      %v4512 = vadd.f32 %v3029, %v4388
      %v4513 = vadd.f32 %v3034, %v4393
      %v4514 = vadd.f32 %v3043, %v4402
      %v4515 = vadd.f32 %v3048, %v4407
      %v4516 = vadd.f32 %v3057, %v4416
      %v4517 = vadd.f32 %v3062, %v4421
      %v4518 = vadd.f32 %v3071, %v4430
      %v4519 = vadd.f32 %v3076, %v4435
      %v4520 = vadd.f32 %v3085, %v4444
      %v4521 = vadd.f32 %v3090, %v4449
      %v4522 = vadd.f32 %v3099, %v4458
      %v4523 = vadd.f32 %v3104, %v4463
      %v4524 = vadd.f32 %v3113, %v4472
      %v4525 = vadd.f32 %v3118, %v4477
      %v4526 = vadd.f32 %v3127, %v4486
      %v4527 = vadd.f32 %v3132, %v4491
      %s4528 = scalar_lea.vmem %s2, %s21
      %v4529 = vld [vmem:[%s4528] sm:$0x1]
      %v4531 = vlaneseq
      %v4532 = vshrl.u32 %v4531, 7
      %v4533 = vsub.s32 0, %v4532
      %v4534 = vrot.slane %v4529, %v4533
      %v4536 = vadd.f32 %v4496, %v4534
      %v4537 = vadd.f32 %v4497, %v4534
      %v4538 = vadd.f32 %v4498, %v4534
      %v4539 = vadd.f32 %v4499, %v4534
      %v4540 = vadd.f32 %v4500, %v4534
      %v4541 = vadd.f32 %v4501, %v4534
      %v4542 = vadd.f32 %v4502, %v4534
      %v4543 = vadd.f32 %v4503, %v4534
      %v4544 = vadd.f32 %v4504, %v4534
      %v4545 = vadd.f32 %v4505, %v4534
      %v4546 = vadd.f32 %v4506, %v4534
      %v4547 = vadd.f32 %v4507, %v4534
      %v4548 = vadd.f32 %v4508, %v4534
      %v4549 = vadd.f32 %v4509, %v4534
      %v4550 = vadd.f32 %v4510, %v4534
      %v4551 = vadd.f32 %v4511, %v4534
      %v4552 = vadd.f32 %v4512, %v4534
      %v4553 = vadd.f32 %v4513, %v4534
      %v4554 = vadd.f32 %v4514, %v4534
      %v4555 = vadd.f32 %v4515, %v4534
      %v4556 = vadd.f32 %v4516, %v4534
      %v4557 = vadd.f32 %v4517, %v4534
      %v4558 = vadd.f32 %v4518, %v4534
      %v4559 = vadd.f32 %v4519, %v4534
      %v4560 = vadd.f32 %v4520, %v4534
      %v4561 = vadd.f32 %v4521, %v4534
      %v4562 = vadd.f32 %v4522, %v4534
      %v4563 = vadd.f32 %v4523, %v4534
      %v4564 = vadd.f32 %v4524, %v4534
      %v4565 = vadd.f32 %v4525, %v4534
      %v4566 = vadd.f32 %v4526, %v4534
      %v4567 = vadd.f32 %v4527, %v4534
      %v4568 = vsel %vm1249, %v4536, 0.0
      %v4569 = vsel %vm1249, %v4537, 0.0
      %v4570 = vadd.f32 %v4568, %v4569
      %v4571 = vsel %vm1249, %v4538, 0.0
      %v4572 = vadd.f32 %v4570, %v4571
      %v4573 = vsel %vm1249, %v4539, 0.0
      %v4574 = vadd.f32 %v4572, %v4573
      %v4575 = vsel %vm1249, %v4540, 0.0
      %v4576 = vadd.f32 %v4574, %v4575
      %v4577 = vsel %vm1249, %v4541, 0.0
      %v4578 = vadd.f32 %v4576, %v4577
      %v4579 = vsel %vm1249, %v4542, 0.0
      %v4580 = vadd.f32 %v4578, %v4579
      %v4581 = vsel %vm1249, %v4543, 0.0
      %v4582 = vadd.f32 %v4580, %v4581
      %v4583 = vsel %vm1249, %v4544, 0.0
      %v4584 = vadd.f32 %v4582, %v4583
      %v4585 = vsel %vm1249, %v4545, 0.0
      %v4586 = vadd.f32 %v4584, %v4585
      %v4587 = vsel %vm1249, %v4546, 0.0
      %v4588 = vadd.f32 %v4586, %v4587
      %v4589 = vsel %vm1249, %v4547, 0.0
      %v4590 = vadd.f32 %v4588, %v4589
      %v4591 = vsel %vm1249, %v4548, 0.0
      %v4592 = vadd.f32 %v4590, %v4591
      %v4593 = vsel %vm1249, %v4549, 0.0
      %v4594 = vadd.f32 %v4592, %v4593
      %v4595 = vsel %vm1249, %v4550, 0.0
      %v4596 = vadd.f32 %v4594, %v4595
      %v4597 = vsel %vm1249, %v4551, 0.0
      %v4598 = vadd.f32 %v4596, %v4597
      %v4599 = vsel %vm1249, %v4552, 0.0
      %v4600 = vadd.f32 %v4598, %v4599
      %v4601 = vsel %vm1249, %v4553, 0.0
      %v4602 = vadd.f32 %v4600, %v4601
      %v4603 = vsel %vm1249, %v4554, 0.0
      %v4604 = vadd.f32 %v4602, %v4603
      %v4605 = vsel %vm1249, %v4555, 0.0
      %v4606 = vadd.f32 %v4604, %v4605
      %v4607 = vsel %vm1249, %v4556, 0.0
      %v4608 = vadd.f32 %v4606, %v4607
      %v4609 = vsel %vm1249, %v4557, 0.0
      %v4610 = vadd.f32 %v4608, %v4609
      %v4611 = vsel %vm1249, %v4558, 0.0
      %v4612 = vadd.f32 %v4610, %v4611
      %v4613 = vsel %vm1249, %v4559, 0.0
      %v4614 = vadd.f32 %v4612, %v4613
      %v4615 = vsel %vm1249, %v4560, 0.0
      %v4616 = vadd.f32 %v4614, %v4615
      %v4617 = vsel %vm1249, %v4561, 0.0
      %v4618 = vadd.f32 %v4616, %v4617
      %v4619 = vsel %vm1249, %v4562, 0.0
      %v4620 = vadd.f32 %v4618, %v4619
      %v4621 = vsel %vm1249, %v4563, 0.0
      %v4622 = vadd.f32 %v4620, %v4621
      %v4623 = vsel %vm1249, %v4564, 0.0
      %v4624 = vadd.f32 %v4622, %v4623
      %v4625 = vsel %vm1249, %v4565, 0.0
      %v4626 = vadd.f32 %v4624, %v4625
      %v4627 = vsel %vm1249, %v4566, 0.0
      %v4628 = vadd.f32 %v4626, %v4627
      %v4629 = vsel %vm1249, %v4567, 0.0
      %v4630 = vadd.f32 %v4628, %v4629
      %v4631 = vrot.slane %v4630, 4
      %v4632 = vadd.f32 %v4630, %v4631
      %v4633 = vrot.slane %v4632, 2
      %v4634 = vadd.f32 %v4632, %v4633
      %v4635 = vrot.slane %v4634, 1
      %v4636 = vadd.f32 %v4634, %v4635
      %v4637 = vmul.f32 %v4536, %v4536
      %v4638 = vmul.f32 %v4537, %v4537
      %v4639 = vmul.f32 %v4538, %v4538
      %v4640 = vmul.f32 %v4539, %v4539
      %v4641 = vmul.f32 %v4540, %v4540
      %v4642 = vmul.f32 %v4541, %v4541
      %v4643 = vmul.f32 %v4542, %v4542
      %v4644 = vmul.f32 %v4543, %v4543
      %v4645 = vmul.f32 %v4544, %v4544
      %v4646 = vmul.f32 %v4545, %v4545
      %v4647 = vmul.f32 %v4546, %v4546
      %v4648 = vmul.f32 %v4547, %v4547
      %v4649 = vmul.f32 %v4548, %v4548
      %v4650 = vmul.f32 %v4549, %v4549
      %v4651 = vmul.f32 %v4550, %v4550
      %v4652 = vmul.f32 %v4551, %v4551
      %v4653 = vmul.f32 %v4552, %v4552
      %v4654 = vmul.f32 %v4553, %v4553
      %v4655 = vmul.f32 %v4554, %v4554
      %v4656 = vmul.f32 %v4555, %v4555
      %v4657 = vmul.f32 %v4556, %v4556
      %v4658 = vmul.f32 %v4557, %v4557
      %v4659 = vmul.f32 %v4558, %v4558
      %v4660 = vmul.f32 %v4559, %v4559
      %v4661 = vmul.f32 %v4560, %v4560
      %v4662 = vmul.f32 %v4561, %v4561
      %v4663 = vmul.f32 %v4562, %v4562
      %v4664 = vmul.f32 %v4563, %v4563
      %v4665 = vmul.f32 %v4564, %v4564
      %v4666 = vmul.f32 %v4565, %v4565
      %v4667 = vmul.f32 %v4566, %v4566
      %v4668 = vmul.f32 %v4567, %v4567
      %v4669 = vsel %vm1249, %v4637, 0.0
      %v4670 = vsel %vm1249, %v4638, 0.0
      %v4671 = vadd.f32 %v4669, %v4670
      %v4672 = vsel %vm1249, %v4639, 0.0
      %v4673 = vadd.f32 %v4671, %v4672
      %v4674 = vsel %vm1249, %v4640, 0.0
      %v4675 = vadd.f32 %v4673, %v4674
      %v4676 = vsel %vm1249, %v4641, 0.0
      %v4677 = vadd.f32 %v4675, %v4676
      %v4678 = vsel %vm1249, %v4642, 0.0
      %v4679 = vadd.f32 %v4677, %v4678
      %v4680 = vsel %vm1249, %v4643, 0.0
      %v4681 = vadd.f32 %v4679, %v4680
      %v4682 = vsel %vm1249, %v4644, 0.0
      %v4683 = vadd.f32 %v4681, %v4682
      %v4684 = vsel %vm1249, %v4645, 0.0
      %v4685 = vadd.f32 %v4683, %v4684
      %v4686 = vsel %vm1249, %v4646, 0.0
      %v4687 = vadd.f32 %v4685, %v4686
      %v4688 = vsel %vm1249, %v4647, 0.0
      %v4689 = vadd.f32 %v4687, %v4688
      %v4690 = vsel %vm1249, %v4648, 0.0
      %v4691 = vadd.f32 %v4689, %v4690
      %v4692 = vsel %vm1249, %v4649, 0.0
      %v4693 = vadd.f32 %v4691, %v4692
      %v4694 = vsel %vm1249, %v4650, 0.0
      %v4695 = vadd.f32 %v4693, %v4694
      %v4696 = vsel %vm1249, %v4651, 0.0
      %v4697 = vadd.f32 %v4695, %v4696
      %v4698 = vsel %vm1249, %v4652, 0.0
      %v4699 = vadd.f32 %v4697, %v4698
      %v4700 = vsel %vm1249, %v4653, 0.0
      %v4701 = vadd.f32 %v4699, %v4700
      %v4702 = vsel %vm1249, %v4654, 0.0
      %v4703 = vadd.f32 %v4701, %v4702
      %v4704 = vsel %vm1249, %v4655, 0.0
      %v4705 = vadd.f32 %v4703, %v4704
      %v4706 = vsel %vm1249, %v4656, 0.0
      %v4707 = vadd.f32 %v4705, %v4706
      %v4708 = vsel %vm1249, %v4657, 0.0
      %v4709 = vadd.f32 %v4707, %v4708
      %v4710 = vsel %vm1249, %v4658, 0.0
      %v4711 = vadd.f32 %v4709, %v4710
      %v4712 = vsel %vm1249, %v4659, 0.0
      %v4713 = vadd.f32 %v4711, %v4712
      %v4714 = vsel %vm1249, %v4660, 0.0
      %v4715 = vadd.f32 %v4713, %v4714
      %v4716 = vsel %vm1249, %v4661, 0.0
      %v4717 = vadd.f32 %v4715, %v4716
      %v4718 = vsel %vm1249, %v4662, 0.0
      %v4719 = vadd.f32 %v4717, %v4718
      %v4720 = vsel %vm1249, %v4663, 0.0
      %v4721 = vadd.f32 %v4719, %v4720
      %v4722 = vsel %vm1249, %v4664, 0.0
      %v4723 = vadd.f32 %v4721, %v4722
      %v4724 = vsel %vm1249, %v4665, 0.0
      %v4725 = vadd.f32 %v4723, %v4724
      %v4726 = vsel %vm1249, %v4666, 0.0
      %v4727 = vadd.f32 %v4725, %v4726
      %v4728 = vsel %vm1249, %v4667, 0.0
      %v4729 = vadd.f32 %v4727, %v4728
      %v4730 = vsel %vm1249, %v4668, 0.0
      %v4731 = vadd.f32 %v4729, %v4730
      %v4732 = vrot.slane %v4731, 4
      %v4733 = vadd.f32 %v4731, %v4732
      %v4734 = vrot.slane %v4733, 2
      %v4735 = vadd.f32 %v4733, %v4734
      %v4736 = vrot.slane %v4735, 1
      %v4737 = vadd.f32 %v4735, %v4736
      %v4738 = vmul.f32 %v4636, 0.00390625
      %v4739 = vmul.f32 %v4737, 0.00390625
      %v4740 = vmul.f32 %v4738, %v4738
      %v4741 = vsub.f32 %v4739, %v4740
      %v4742 = vmax.f32 %v4741, 0.0
      %v4743 = vsub.f32 %v4536, %v4738
      %v4744 = vsub.f32 %v4537, %v4738
      %v4745 = vsub.f32 %v4538, %v4738
      %v4746 = vsub.f32 %v4539, %v4738
      %v4747 = vsub.f32 %v4540, %v4738
      %v4748 = vsub.f32 %v4541, %v4738
      %v4749 = vsub.f32 %v4542, %v4738
      %v4750 = vsub.f32 %v4543, %v4738
      %v4751 = vsub.f32 %v4544, %v4738
      %v4752 = vsub.f32 %v4545, %v4738
      %v4753 = vsub.f32 %v4546, %v4738
      %v4754 = vsub.f32 %v4547, %v4738
      %v4755 = vsub.f32 %v4548, %v4738
      %v4756 = vsub.f32 %v4549, %v4738
      %v4757 = vsub.f32 %v4550, %v4738
      %v4758 = vsub.f32 %v4551, %v4738
      %v4759 = vsub.f32 %v4552, %v4738
      %v4760 = vsub.f32 %v4553, %v4738
      %v4761 = vsub.f32 %v4554, %v4738
      %v4762 = vsub.f32 %v4555, %v4738
      %v4763 = vsub.f32 %v4556, %v4738
      %v4764 = vsub.f32 %v4557, %v4738
      %v4765 = vsub.f32 %v4558, %v4738
      %v4766 = vsub.f32 %v4559, %v4738
      %v4767 = vsub.f32 %v4560, %v4738
      %v4768 = vsub.f32 %v4561, %v4738
      %v4769 = vsub.f32 %v4562, %v4738
      %v4770 = vsub.f32 %v4563, %v4738
      %v4771 = vsub.f32 %v4564, %v4738
      %v4772 = vsub.f32 %v4565, %v4738
      %v4773 = vsub.f32 %v4566, %v4738
      %v4774 = vsub.f32 %v4567, %v4738
      %v4775 = vadd.f32 %v4742, 1e-05
      %v4776 = vrsqrt.pop %v4775
      %v4777 = vmul.f32 %v4743, %v4776
      %v4778 = vmul.f32 %v4744, %v4776
      %v4779 = vmul.f32 %v4745, %v4776
      %v4780 = vmul.f32 %v4746, %v4776
      %v4781 = vmul.f32 %v4747, %v4776
      %v4782 = vmul.f32 %v4748, %v4776
      %v4783 = vmul.f32 %v4749, %v4776
      %v4784 = vmul.f32 %v4750, %v4776
      %v4785 = vmul.f32 %v4751, %v4776
      %v4786 = vmul.f32 %v4752, %v4776
      %v4787 = vmul.f32 %v4753, %v4776
      %v4788 = vmul.f32 %v4754, %v4776
      %v4789 = vmul.f32 %v4755, %v4776
      %v4790 = vmul.f32 %v4756, %v4776
      %v4791 = vmul.f32 %v4757, %v4776
      %v4792 = vmul.f32 %v4758, %v4776
      %v4793 = vmul.f32 %v4759, %v4776
      %v4794 = vmul.f32 %v4760, %v4776
      %v4795 = vmul.f32 %v4761, %v4776
      %v4796 = vmul.f32 %v4762, %v4776
      %v4797 = vmul.f32 %v4763, %v4776
      %v4798 = vmul.f32 %v4764, %v4776
      %v4799 = vmul.f32 %v4765, %v4776
      %v4800 = vmul.f32 %v4766, %v4776
      %v4801 = vmul.f32 %v4767, %v4776
      %v4802 = vmul.f32 %v4768, %v4776
      %v4803 = vmul.f32 %v4769, %v4776
      %v4804 = vmul.f32 %v4770, %v4776
      %v4805 = vmul.f32 %v4771, %v4776
      %v4806 = vmul.f32 %v4772, %v4776
      %v4807 = vmul.f32 %v4773, %v4776
      %v4808 = vmul.f32 %v4774, %v4776
      %v4809 = vmax.f32 %v4777, 0.0
      %v4810 = vmax.f32 %v4778, 0.0
      %v4811 = vmax.f32 %v4779, 0.0
      %v4812 = vmax.f32 %v4780, 0.0
      %v4813 = vmax.f32 %v4781, 0.0
      %v4814 = vmax.f32 %v4782, 0.0
      %v4815 = vmax.f32 %v4783, 0.0
      %v4816 = vmax.f32 %v4784, 0.0
      %v4817 = vmax.f32 %v4785, 0.0
      %v4818 = vmax.f32 %v4786, 0.0
      %v4819 = vmax.f32 %v4787, 0.0
      %v4820 = vmax.f32 %v4788, 0.0
      %v4821 = vmax.f32 %v4789, 0.0
      %v4822 = vmax.f32 %v4790, 0.0
      %v4823 = vmax.f32 %v4791, 0.0
      %v4824 = vmax.f32 %v4792, 0.0
      %v4825 = vmax.f32 %v4793, 0.0
      %v4826 = vmax.f32 %v4794, 0.0
      %v4827 = vmax.f32 %v4795, 0.0
      %v4828 = vmax.f32 %v4796, 0.0
      %v4829 = vmax.f32 %v4797, 0.0
      %v4830 = vmax.f32 %v4798, 0.0
      %v4831 = vmax.f32 %v4799, 0.0
      %v4832 = vmax.f32 %v4800, 0.0
      %v4833 = vmax.f32 %v4801, 0.0
      %v4834 = vmax.f32 %v4802, 0.0
      %v4835 = vmax.f32 %v4803, 0.0
      %v4836 = vmax.f32 %v4804, 0.0
      %v4837 = vmax.f32 %v4805, 0.0
      %v4838 = vmax.f32 %v4806, 0.0
      %v4839 = vmax.f32 %v4807, 0.0
      %v4840 = vmax.f32 %v4808, 0.0
      %4841 = vst.msk [vmem:[%s380 + $0x8] sm:$0xff] %vm1249, %v4809
      %4842 = vst.msk [vmem:[%s380 + $0x10] sm:$0xff] %vm1249, %v4810
      %4843 = vst.msk [vmem:[%s380 + $0x28] sm:$0xff] %vm1249, %v4811
      %4844 = vst.msk [vmem:[%s380 + $0x30] sm:$0xff] %vm1249, %v4812
      %4845 = vst.msk [vmem:[%s380 + $0x48] sm:$0xff] %vm1249, %v4813
      %4846 = vst.msk [vmem:[%s380 + $0x50] sm:$0xff] %vm1249, %v4814
      %4847 = vst.msk [vmem:[%s380 + $0x68] sm:$0xff] %vm1249, %v4815
      %4848 = vst.msk [vmem:[%s380 + $0x70] sm:$0xff] %vm1249, %v4816
      %4849 = vst.msk [vmem:[%s380 + $0x88] sm:$0xff] %vm1249, %v4817
      %4850 = vst.msk [vmem:[%s380 + $0x90] sm:$0xff] %vm1249, %v4818
      %4851 = vst.msk [vmem:[%s380 + $0xa8] sm:$0xff] %vm1249, %v4819
      %4852 = vst.msk [vmem:[%s380 + $0xb0] sm:$0xff] %vm1249, %v4820
      %4853 = vst.msk [vmem:[%s380 + $0xc8] sm:$0xff] %vm1249, %v4821
      %4854 = vst.msk [vmem:[%s380 + $0xd0] sm:$0xff] %vm1249, %v4822
      %4855 = vst.msk [vmem:[%s380 + $0xe8] sm:$0xff] %vm1249, %v4823
      %4856 = vst.msk [vmem:[%s380 + $0xf0] sm:$0xff] %vm1249, %v4824
      %4857 = vst.msk [vmem:[%s380 + $0x108] sm:$0xff] %vm1249, %v4825
      %4858 = vst.msk [vmem:[%s380 + $0x110] sm:$0xff] %vm1249, %v4826
      %4859 = vst.msk [vmem:[%s380 + $0x128] sm:$0xff] %vm1249, %v4827
      %4860 = vst.msk [vmem:[%s380 + $0x130] sm:$0xff] %vm1249, %v4828
      %4861 = vst.msk [vmem:[%s380 + $0x148] sm:$0xff] %vm1249, %v4829
      %4862 = vst.msk [vmem:[%s380 + $0x150] sm:$0xff] %vm1249, %v4830
      %4863 = vst.msk [vmem:[%s380 + $0x168] sm:$0xff] %vm1249, %v4831
      %4864 = vst.msk [vmem:[%s380 + $0x170] sm:$0xff] %vm1249, %v4832
      %4865 = vst.msk [vmem:[%s380 + $0x188] sm:$0xff] %vm1249, %v4833
      %4866 = vst.msk [vmem:[%s380 + $0x190] sm:$0xff] %vm1249, %v4834
      %4867 = vst.msk [vmem:[%s380 + $0x1a8] sm:$0xff] %vm1249, %v4835
      %4868 = vst.msk [vmem:[%s380 + $0x1b0] sm:$0xff] %vm1249, %v4836
      %4869 = vst.msk [vmem:[%s380 + $0x1c8] sm:$0xff] %vm1249, %v4837
      %4870 = vst.msk [vmem:[%s380 + $0x1d0] sm:$0xff] %vm1249, %v4838
      %4871 = vst.msk [vmem:[%s380 + $0x1e8] sm:$0xff] %vm1249, %v4839
      %4872 = vst.msk [vmem:[%s380 + $0x1f0] sm:$0xff] %vm1249, %v4840
      %v4873 = vld [vmem:[#allocation2] sm:$0xff]
      %v4874 = vld [vmem:[#allocation2 + $0x8] sm:$0xff]
      %v4875 = vld [vmem:[#allocation2 + $0x10] sm:$0xff]
      %v4876 = vld [vmem:[#allocation2 + $0x18] sm:$0xff]
      %v4877 = vld [vmem:[#allocation2 + $0x20] sm:$0xff]
      %v4878 = vld [vmem:[#allocation2 + $0x28] sm:$0xff]
      %v4879 = vld [vmem:[#allocation2 + $0x30] sm:$0xff]
      %v4880 = vld [vmem:[#allocation2 + $0x38] sm:$0xff]
      %v4881 = vld [vmem:[#allocation2 + $0x40] sm:$0xff]
      %v4882 = vld [vmem:[#allocation2 + $0x48] sm:$0xff]
      %v4883 = vld [vmem:[#allocation2 + $0x50] sm:$0xff]
      %v4884 = vld [vmem:[#allocation2 + $0x58] sm:$0xff]
      %v4885 = vld [vmem:[#allocation2 + $0x60] sm:$0xff]
      %v4886 = vld [vmem:[#allocation2 + $0x68] sm:$0xff]
      %v4887 = vld [vmem:[#allocation2 + $0x70] sm:$0xff]
      %v4888 = vld [vmem:[#allocation2 + $0x78] sm:$0xff]
      %v4889 = vld [vmem:[#allocation2 + $0x80] sm:$0xff]
      %v4890 = vld [vmem:[#allocation2 + $0x88] sm:$0xff]
      %v4891 = vld [vmem:[#allocation2 + $0x90] sm:$0xff]
      %v4892 = vld [vmem:[#allocation2 + $0x98] sm:$0xff]
      %v4893 = vld [vmem:[#allocation2 + $0xa0] sm:$0xff]
      %v4894 = vld [vmem:[#allocation2 + $0xa8] sm:$0xff]
      %v4895 = vld [vmem:[#allocation2 + $0xb0] sm:$0xff]
      %v4896 = vld [vmem:[#allocation2 + $0xb8] sm:$0xff]
      %v4897 = vld [vmem:[#allocation2 + $0xc0] sm:$0xff]
      %v4898 = vld [vmem:[#allocation2 + $0xc8] sm:$0xff]
      %v4899 = vld [vmem:[#allocation2 + $0xd0] sm:$0xff]
      %v4900 = vld [vmem:[#allocation2 + $0xd8] sm:$0xff]
      %v4901 = vld [vmem:[#allocation2 + $0xe0] sm:$0xff]
      %v4902 = vld [vmem:[#allocation2 + $0xe8] sm:$0xff]
      %v4903 = vld [vmem:[#allocation2 + $0xf0] sm:$0xff]
      %v4904 = vld [vmem:[#allocation2 + $0xf8] sm:$0xff]
      %v4905 = vld [vmem:[#allocation2 + $0x100] sm:$0xff]
      %v4906 = vld [vmem:[#allocation2 + $0x108] sm:$0xff]
      %v4907 = vld [vmem:[#allocation2 + $0x110] sm:$0xff]
      %v4908 = vld [vmem:[#allocation2 + $0x118] sm:$0xff]
      %v4909 = vld [vmem:[#allocation2 + $0x120] sm:$0xff]
      %v4910 = vld [vmem:[#allocation2 + $0x128] sm:$0xff]
      %v4911 = vld [vmem:[#allocation2 + $0x130] sm:$0xff]
      %v4912 = vld [vmem:[#allocation2 + $0x138] sm:$0xff]
      %v4913 = vld [vmem:[#allocation2 + $0x140] sm:$0xff]
      %v4914 = vld [vmem:[#allocation2 + $0x148] sm:$0xff]
      %v4915 = vld [vmem:[#allocation2 + $0x150] sm:$0xff]
      %v4916 = vld [vmem:[#allocation2 + $0x158] sm:$0xff]
      %v4917 = vld [vmem:[#allocation2 + $0x160] sm:$0xff]
      %v4918 = vld [vmem:[#allocation2 + $0x168] sm:$0xff]
      %v4919 = vld [vmem:[#allocation2 + $0x170] sm:$0xff]
      %v4920 = vld [vmem:[#allocation2 + $0x178] sm:$0xff]
      %v4921 = vld [vmem:[#allocation2 + $0x180] sm:$0xff]
      %v4922 = vld [vmem:[#allocation2 + $0x188] sm:$0xff]
      %v4923 = vld [vmem:[#allocation2 + $0x190] sm:$0xff]
      %v4924 = vld [vmem:[#allocation2 + $0x198] sm:$0xff]
      %v4925 = vld [vmem:[#allocation2 + $0x1a0] sm:$0xff]
      %v4926 = vld [vmem:[#allocation2 + $0x1a8] sm:$0xff]
      %v4927 = vld [vmem:[#allocation2 + $0x1b0] sm:$0xff]
      %v4928 = vld [vmem:[#allocation2 + $0x1b8] sm:$0xff]
      %v4929 = vld [vmem:[#allocation2 + $0x1c0] sm:$0xff]
      %v4930 = vld [vmem:[#allocation2 + $0x1c8] sm:$0xff]
      %v4931 = vld [vmem:[#allocation2 + $0x1d0] sm:$0xff]
      %v4932 = vld [vmem:[#allocation2 + $0x1d8] sm:$0xff]
      %v4933 = vld [vmem:[#allocation2 + $0x1e0] sm:$0xff]
      %v4934 = vld [vmem:[#allocation2 + $0x1e8] sm:$0xff]
      %v4935 = vld [vmem:[#allocation2 + $0x1f0] sm:$0xff]
      %v4936 = vld [vmem:[#allocation2 + $0x1f8] sm:$0xff]
      %v4937 = vrot.slane %v4873, 7
      %v4938 = vrot.slane %v4874, 7
      %v4939 = vrot.slane %v4875, 7
      %v4940 = vrot.slane %v4876, 7
      %v4941 = vrot.slane %v4877, 7
      %v4942 = vrot.slane %v4878, 7
      %v4943 = vrot.slane %v4879, 7
      %v4944 = vrot.slane %v4880, 7
      %v4945 = vrot.slane %v4881, 7
      %v4946 = vrot.slane %v4882, 7
      %v4947 = vrot.slane %v4883, 7
      %v4948 = vrot.slane %v4884, 7
      %v4949 = vrot.slane %v4885, 7
      %v4950 = vrot.slane %v4886, 7
      %v4951 = vrot.slane %v4887, 7
      %v4952 = vrot.slane %v4888, 7
      %v4953 = vrot.slane %v4889, 7
      %v4954 = vrot.slane %v4890, 7
      %v4955 = vrot.slane %v4891, 7
      %v4956 = vrot.slane %v4892, 7
      %v4957 = vrot.slane %v4893, 7
      %v4958 = vrot.slane %v4894, 7
      %v4959 = vrot.slane %v4895, 7
      %v4960 = vrot.slane %v4896, 7
      %v4961 = vrot.slane %v4897, 7
      %v4962 = vrot.slane %v4898, 7
      %v4963 = vrot.slane %v4899, 7
      %v4964 = vrot.slane %v4900, 7
      %v4965 = vrot.slane %v4901, 7
      %v4966 = vrot.slane %v4902, 7
      %v4967 = vrot.slane %v4903, 7
      %v4968 = vrot.slane %v4904, 7
      %v4969 = vrot.slane %v4905, 7
      %v4970 = vrot.slane %v4906, 7
      %v4971 = vrot.slane %v4907, 7
      %v4972 = vrot.slane %v4908, 7
      %v4973 = vrot.slane %v4909, 7
      %v4974 = vrot.slane %v4910, 7
      %v4975 = vrot.slane %v4911, 7
      %v4976 = vrot.slane %v4912, 7
      %v4977 = vrot.slane %v4913, 7
      %v4978 = vrot.slane %v4914, 7
      %v4979 = vrot.slane %v4915, 7
      %v4980 = vrot.slane %v4916, 7
      %v4981 = vrot.slane %v4917, 7
      %v4982 = vrot.slane %v4918, 7
      %v4983 = vrot.slane %v4919, 7
      %v4984 = vrot.slane %v4920, 7
      %v4985 = vrot.slane %v4921, 7
      %v4986 = vrot.slane %v4922, 7
      %v4987 = vrot.slane %v4923, 7
      %v4988 = vrot.slane %v4924, 7
      %v4989 = vrot.slane %v4925, 7
      %v4990 = vrot.slane %v4926, 7
      %v4991 = vrot.slane %v4927, 7
      %v4992 = vrot.slane %v4928, 7
      %v4993 = vrot.slane %v4929, 7
      %v4994 = vrot.slane %v4930, 7
      %v4995 = vrot.slane %v4931, 7
      %v4996 = vrot.slane %v4932, 7
      %v4997 = vrot.slane %v4933, 7
      %v4998 = vrot.slane %v4934, 7
      %v4999 = vrot.slane %v4935, 7
      %v5000 = vrot.slane %v4936, 7
      %v5001 = vsel %vm543, %v4999, %v5000
      %v5002 = vsel %vm543, %v4998, %v4999
      %v5003 = vsel %vm543, %v4997, %v4998
      %v5004 = vsel %vm543, %v4996, %v4997
      %v5005 = vsel %vm543, %v4995, %v4996
      %v5006 = vsel %vm543, %v4994, %v4995
      %v5007 = vsel %vm543, %v4993, %v4994
      %v5008 = vsel %vm543, %v4992, %v4993
      %v5009 = vsel %vm543, %v4991, %v4992
      %v5010 = vsel %vm543, %v4990, %v4991
      %v5011 = vsel %vm543, %v4989, %v4990
      %v5012 = vsel %vm543, %v4988, %v4989
      %v5013 = vsel %vm543, %v4987, %v4988
      %v5014 = vsel %vm543, %v4986, %v4987
      %v5015 = vsel %vm543, %v4985, %v4986
      %v5016 = vsel %vm543, %v4984, %v4985
      %v5017 = vsel %vm543, %v4983, %v4984
      %v5018 = vsel %vm543, %v4982, %v4983
      %v5019 = vsel %vm543, %v4981, %v4982
      %v5020 = vsel %vm543, %v4980, %v4981
      %v5021 = vsel %vm543, %v4979, %v4980
      %v5022 = vsel %vm543, %v4978, %v4979
      %v5023 = vsel %vm543, %v4977, %v4978
      %v5024 = vsel %vm543, %v4976, %v4977
      %v5025 = vsel %vm543, %v4975, %v4976
      %v5026 = vsel %vm543, %v4974, %v4975
      %v5027 = vsel %vm543, %v4973, %v4974
      %v5028 = vsel %vm543, %v4972, %v4973
      %v5029 = vsel %vm543, %v4971, %v4972
      %v5030 = vsel %vm543, %v4970, %v4971
      %v5031 = vsel %vm543, %v4969, %v4970
      %v5032 = vsel %vm543, %v4968, %v4969
      %v5033 = vsel %vm543, %v4967, %v4968
      %v5034 = vsel %vm543, %v4966, %v4967
      %v5035 = vsel %vm543, %v4965, %v4966
      %v5036 = vsel %vm543, %v4964, %v4965
      %v5037 = vsel %vm543, %v4963, %v4964
      %v5038 = vsel %vm543, %v4962, %v4963
      %v5039 = vsel %vm543, %v4961, %v4962
      %v5040 = vsel %vm543, %v4960, %v4961
      %v5041 = vsel %vm543, %v4959, %v4960
      %v5042 = vsel %vm543, %v4958, %v4959
      %v5043 = vsel %vm543, %v4957, %v4958
      %v5044 = vsel %vm543, %v4956, %v4957
      %v5045 = vsel %vm543, %v4955, %v4956
      %v5046 = vsel %vm543, %v4954, %v4955
      %v5047 = vsel %vm543, %v4953, %v4954
      %v5048 = vsel %vm543, %v4952, %v4953
      %v5049 = vsel %vm543, %v4951, %v4952
      %v5050 = vsel %vm543, %v4950, %v4951
      %v5051 = vsel %vm543, %v4949, %v4950
      %v5052 = vsel %vm543, %v4948, %v4949
      %v5053 = vsel %vm543, %v4947, %v4948
      %v5054 = vsel %vm543, %v4946, %v4947
      %v5055 = vsel %vm543, %v4945, %v4946
      %v5056 = vsel %vm543, %v4944, %v4945
      %v5057 = vsel %vm543, %v4943, %v4944
      %v5058 = vsel %vm543, %v4942, %v4943
      %v5059 = vsel %vm543, %v4941, %v4942
      %v5060 = vsel %vm543, %v4940, %v4941
      %v5061 = vsel %vm543, %v4939, %v4940
      %v5062 = vsel %vm543, %v4938, %v4939
      %v5063 = vsel %vm543, %v4937, %v4938
      %v5064 = vsel %vm543, %v5000, %v4937
      %v5065 = vrot.slane %v4873, 1
      %v5066 = vrot.slane %v4874, 1
      %v5067 = vrot.slane %v4875, 1
      %v5068 = vrot.slane %v4876, 1
      %v5069 = vrot.slane %v4877, 1
      %v5070 = vrot.slane %v4878, 1
      %v5071 = vrot.slane %v4879, 1
      %v5072 = vrot.slane %v4880, 1
      %v5073 = vrot.slane %v4881, 1
      %v5074 = vrot.slane %v4882, 1
      %v5075 = vrot.slane %v4883, 1
      %v5076 = vrot.slane %v4884, 1
      %v5077 = vrot.slane %v4885, 1
      %v5078 = vrot.slane %v4886, 1
      %v5079 = vrot.slane %v4887, 1
      %v5080 = vrot.slane %v4888, 1
      %v5081 = vrot.slane %v4889, 1
      %v5082 = vrot.slane %v4890, 1
      %v5083 = vrot.slane %v4891, 1
      %v5084 = vrot.slane %v4892, 1
      %v5085 = vrot.slane %v4893, 1
      %v5086 = vrot.slane %v4894, 1
      %v5087 = vrot.slane %v4895, 1
      %v5088 = vrot.slane %v4896, 1
      %v5089 = vrot.slane %v4897, 1
      %v5090 = vrot.slane %v4898, 1
      %v5091 = vrot.slane %v4899, 1
      %v5092 = vrot.slane %v4900, 1
      %v5093 = vrot.slane %v4901, 1
      %v5094 = vrot.slane %v4902, 1
      %v5095 = vrot.slane %v4903, 1
      %v5096 = vrot.slane %v4904, 1
      %v5097 = vrot.slane %v4905, 1
      %v5098 = vrot.slane %v4906, 1
      %v5099 = vrot.slane %v4907, 1
      %v5100 = vrot.slane %v4908, 1
      %v5101 = vrot.slane %v4909, 1
      %v5102 = vrot.slane %v4910, 1
      %v5103 = vrot.slane %v4911, 1
      %v5104 = vrot.slane %v4912, 1
      %v5105 = vrot.slane %v4913, 1
      %v5106 = vrot.slane %v4914, 1
      %v5107 = vrot.slane %v4915, 1
      %v5108 = vrot.slane %v4916, 1
      %v5109 = vrot.slane %v4917, 1
      %v5110 = vrot.slane %v4918, 1
      %v5111 = vrot.slane %v4919, 1
      %v5112 = vrot.slane %v4920, 1
      %v5113 = vrot.slane %v4921, 1
      %v5114 = vrot.slane %v4922, 1
      %v5115 = vrot.slane %v4923, 1
      %v5116 = vrot.slane %v4924, 1
      %v5117 = vrot.slane %v4925, 1
      %v5118 = vrot.slane %v4926, 1
      %v5119 = vrot.slane %v4927, 1
      %v5120 = vrot.slane %v4928, 1
      %v5121 = vrot.slane %v4929, 1
      %v5122 = vrot.slane %v4930, 1
      %v5123 = vrot.slane %v4931, 1
      %v5124 = vrot.slane %v4932, 1
      %v5125 = vrot.slane %v4933, 1
      %v5126 = vrot.slane %v4934, 1
      %v5127 = vrot.slane %v4935, 1
      %v5128 = vrot.slane %v4936, 1
      %v5129 = vsel %vm672, %v5127, %v5128
      %v5130 = vsel %vm672, %v5126, %v5127
      %v5131 = vsel %vm672, %v5125, %v5126
      %v5132 = vsel %vm672, %v5124, %v5125
      %v5133 = vsel %vm672, %v5123, %v5124
      %v5134 = vsel %vm672, %v5122, %v5123
      %v5135 = vsel %vm672, %v5121, %v5122
      %v5136 = vsel %vm672, %v5120, %v5121
      %v5137 = vsel %vm672, %v5119, %v5120
      %v5138 = vsel %vm672, %v5118, %v5119
      %v5139 = vsel %vm672, %v5117, %v5118
      %v5140 = vsel %vm672, %v5116, %v5117
      %v5141 = vsel %vm672, %v5115, %v5116
      %v5142 = vsel %vm672, %v5114, %v5115
      %v5143 = vsel %vm672, %v5113, %v5114
      %v5144 = vsel %vm672, %v5112, %v5113
      %v5145 = vsel %vm672, %v5111, %v5112
      %v5146 = vsel %vm672, %v5110, %v5111
      %v5147 = vsel %vm672, %v5109, %v5110
      %v5148 = vsel %vm672, %v5108, %v5109
      %v5149 = vsel %vm672, %v5107, %v5108
      %v5150 = vsel %vm672, %v5106, %v5107
      %v5151 = vsel %vm672, %v5105, %v5106
      %v5152 = vsel %vm672, %v5104, %v5105
      %v5153 = vsel %vm672, %v5103, %v5104
      %v5154 = vsel %vm672, %v5102, %v5103
      %v5155 = vsel %vm672, %v5101, %v5102
      %v5156 = vsel %vm672, %v5100, %v5101
      %v5157 = vsel %vm672, %v5099, %v5100
      %v5158 = vsel %vm672, %v5098, %v5099
      %v5159 = vsel %vm672, %v5097, %v5098
      %v5160 = vsel %vm672, %v5096, %v5097
      %v5161 = vsel %vm672, %v5095, %v5096
      %v5162 = vsel %vm672, %v5094, %v5095
      %v5163 = vsel %vm672, %v5093, %v5094
      %v5164 = vsel %vm672, %v5092, %v5093
      %v5165 = vsel %vm672, %v5091, %v5092
      %v5166 = vsel %vm672, %v5090, %v5091
      %v5167 = vsel %vm672, %v5089, %v5090
      %v5168 = vsel %vm672, %v5088, %v5089
      %v5169 = vsel %vm672, %v5087, %v5088
      %v5170 = vsel %vm672, %v5086, %v5087
      %v5171 = vsel %vm672, %v5085, %v5086
      %v5172 = vsel %vm672, %v5084, %v5085
      %v5173 = vsel %vm672, %v5083, %v5084
      %v5174 = vsel %vm672, %v5082, %v5083
      %v5175 = vsel %vm672, %v5081, %v5082
      %v5176 = vsel %vm672, %v5080, %v5081
      %v5177 = vsel %vm672, %v5079, %v5080
      %v5178 = vsel %vm672, %v5078, %v5079
      %v5179 = vsel %vm672, %v5077, %v5078
      %v5180 = vsel %vm672, %v5076, %v5077
      %v5181 = vsel %vm672, %v5075, %v5076
      %v5182 = vsel %vm672, %v5074, %v5075
      %v5183 = vsel %vm672, %v5073, %v5074
      %v5184 = vsel %vm672, %v5072, %v5073
      %v5185 = vsel %vm672, %v5071, %v5072
      %v5186 = vsel %vm672, %v5070, %v5071
      %v5187 = vsel %vm672, %v5069, %v5070
      %v5188 = vsel %vm672, %v5068, %v5069
      %v5189 = vsel %vm672, %v5067, %v5068
      %v5190 = vsel %vm672, %v5066, %v5067
      %v5191 = vsel %vm672, %v5065, %v5066
      %v5192 = vsel %vm672, %v5128, %v5065
      %5257 = vrot.lane.b32.xlu0 %v4873, 4
      %v5258 = vpop.permute.xlu0 %5257
      %5259 = vrot.lane.b32.xlu0 %v4874, 4
      %v5260 = vpop.permute.xlu0 %5259
      %5261 = vrot.lane.b32.xlu0 %v4875, 4
      %v5262 = vpop.permute.xlu0 %5261
      %5263 = vrot.lane.b32.xlu0 %v4876, 4
      %v5264 = vpop.permute.xlu0 %5263
      %5265 = vrot.lane.b32.xlu0 %v4877, 4
      %v5266 = vpop.permute.xlu0 %5265
      %5267 = vrot.lane.b32.xlu0 %v4878, 4
      %v5268 = vpop.permute.xlu0 %5267
      %5269 = vrot.lane.b32.xlu0 %v4879, 4
      %v5270 = vpop.permute.xlu0 %5269
      %5271 = vrot.lane.b32.xlu0 %v4880, 4
      %v5272 = vpop.permute.xlu0 %5271
      %5273 = vrot.lane.b32.xlu0 %v4881, 4
      %v5274 = vpop.permute.xlu0 %5273
      %5275 = vrot.lane.b32.xlu0 %v4882, 4
      %v5276 = vpop.permute.xlu0 %5275
      %5277 = vrot.lane.b32.xlu0 %v4883, 4
      %v5278 = vpop.permute.xlu0 %5277
      %5279 = vrot.lane.b32.xlu0 %v4884, 4
      %v5280 = vpop.permute.xlu0 %5279
      %5281 = vrot.lane.b32.xlu0 %v4885, 4
      %v5282 = vpop.permute.xlu0 %5281
      %5283 = vrot.lane.b32.xlu0 %v4886, 4
      %v5284 = vpop.permute.xlu0 %5283
      %5285 = vrot.lane.b32.xlu0 %v4887, 4
      %v5286 = vpop.permute.xlu0 %5285
      %5287 = vrot.lane.b32.xlu0 %v4888, 4
      %v5288 = vpop.permute.xlu0 %5287
      %5289 = vrot.lane.b32.xlu0 %v4889, 4
      %v5290 = vpop.permute.xlu0 %5289
      %5291 = vrot.lane.b32.xlu0 %v4890, 4
      %v5292 = vpop.permute.xlu0 %5291
      %5293 = vrot.lane.b32.xlu0 %v4891, 4
      %v5294 = vpop.permute.xlu0 %5293
      %5295 = vrot.lane.b32.xlu0 %v4892, 4
      %v5296 = vpop.permute.xlu0 %5295
      %5297 = vrot.lane.b32.xlu0 %v4893, 4
      %v5298 = vpop.permute.xlu0 %5297
      %5299 = vrot.lane.b32.xlu0 %v4894, 4
      %v5300 = vpop.permute.xlu0 %5299
      %5301 = vrot.lane.b32.xlu0 %v4895, 4
      %v5302 = vpop.permute.xlu0 %5301
      %5303 = vrot.lane.b32.xlu0 %v4896, 4
      %v5304 = vpop.permute.xlu0 %5303
      %5305 = vrot.lane.b32.xlu0 %v4897, 4
      %v5306 = vpop.permute.xlu0 %5305
      %5307 = vrot.lane.b32.xlu0 %v4898, 4
      %v5308 = vpop.permute.xlu0 %5307
      %5309 = vrot.lane.b32.xlu0 %v4899, 4
      %v5310 = vpop.permute.xlu0 %5309
      %5311 = vrot.lane.b32.xlu0 %v4900, 4
      %v5312 = vpop.permute.xlu0 %5311
      %5313 = vrot.lane.b32.xlu0 %v4901, 4
      %v5314 = vpop.permute.xlu0 %5313
      %5315 = vrot.lane.b32.xlu0 %v4902, 4
      %v5316 = vpop.permute.xlu0 %5315
      %5317 = vrot.lane.b32.xlu0 %v4903, 4
      %v5318 = vpop.permute.xlu0 %5317
      %5319 = vrot.lane.b32.xlu0 %v4904, 4
      %v5320 = vpop.permute.xlu0 %5319
      %5321 = vrot.lane.b32.xlu0 %v4905, 4
      %v5322 = vpop.permute.xlu0 %5321
      %5323 = vrot.lane.b32.xlu0 %v4906, 4
      %v5324 = vpop.permute.xlu0 %5323
      %5325 = vrot.lane.b32.xlu0 %v4907, 4
      %v5326 = vpop.permute.xlu0 %5325
      %5327 = vrot.lane.b32.xlu0 %v4908, 4
      %v5328 = vpop.permute.xlu0 %5327
      %5329 = vrot.lane.b32.xlu0 %v4909, 4
      %v5330 = vpop.permute.xlu0 %5329
      %5331 = vrot.lane.b32.xlu0 %v4910, 4
      %v5332 = vpop.permute.xlu0 %5331
      %5333 = vrot.lane.b32.xlu0 %v4911, 4
      %v5334 = vpop.permute.xlu0 %5333
      %5335 = vrot.lane.b32.xlu0 %v4912, 4
      %v5336 = vpop.permute.xlu0 %5335
      %5337 = vrot.lane.b32.xlu0 %v4913, 4
      %v5338 = vpop.permute.xlu0 %5337
      %5339 = vrot.lane.b32.xlu0 %v4914, 4
      %v5340 = vpop.permute.xlu0 %5339
      %5341 = vrot.lane.b32.xlu0 %v4915, 4
      %v5342 = vpop.permute.xlu0 %5341
      %5343 = vrot.lane.b32.xlu0 %v4916, 4
      %v5344 = vpop.permute.xlu0 %5343
      %5345 = vrot.lane.b32.xlu0 %v4917, 4
      %v5346 = vpop.permute.xlu0 %5345
      %5347 = vrot.lane.b32.xlu0 %v4918, 4
      %v5348 = vpop.permute.xlu0 %5347
      %5349 = vrot.lane.b32.xlu0 %v4919, 4
      %v5350 = vpop.permute.xlu0 %5349
      %5351 = vrot.lane.b32.xlu0 %v4920, 4
      %v5352 = vpop.permute.xlu0 %5351
      %5353 = vrot.lane.b32.xlu0 %v4921, 4
      %v5354 = vpop.permute.xlu0 %5353
      %5355 = vrot.lane.b32.xlu0 %v4922, 4
      %v5356 = vpop.permute.xlu0 %5355
      %5357 = vrot.lane.b32.xlu0 %v4923, 4
      %v5358 = vpop.permute.xlu0 %5357
      %5359 = vrot.lane.b32.xlu0 %v4924, 4
      %v5360 = vpop.permute.xlu0 %5359
      %5361 = vrot.lane.b32.xlu0 %v4925, 4
      %v5362 = vpop.permute.xlu0 %5361
      %5363 = vrot.lane.b32.xlu0 %v4926, 4
      %v5364 = vpop.permute.xlu0 %5363
      %5365 = vrot.lane.b32.xlu0 %v4927, 4
      %v5366 = vpop.permute.xlu0 %5365
      %5367 = vrot.lane.b32.xlu0 %v4928, 4
      %v5368 = vpop.permute.xlu0 %5367
      %5369 = vrot.lane.b32.xlu0 %v4929, 4
      %v5370 = vpop.permute.xlu0 %5369
      %5371 = vrot.lane.b32.xlu0 %v4930, 4
      %v5372 = vpop.permute.xlu0 %5371
      %5373 = vrot.lane.b32.xlu0 %v4931, 4
      %v5374 = vpop.permute.xlu0 %5373
      %5375 = vrot.lane.b32.xlu0 %v4932, 4
      %v5376 = vpop.permute.xlu0 %5375
      %5377 = vrot.lane.b32.xlu0 %v4933, 4
      %v5378 = vpop.permute.xlu0 %5377
      %5379 = vrot.lane.b32.xlu0 %v4934, 4
      %v5380 = vpop.permute.xlu0 %5379
      %5381 = vrot.lane.b32.xlu0 %v4935, 4
      %v5382 = vpop.permute.xlu0 %5381
      %5383 = vrot.lane.b32.xlu0 %v4936, 4
      %v5384 = vpop.permute.xlu0 %5383
      %5513 = vrot.lane.b32.xlu0 %v5191, 8
      %v5514 = vpop.permute.xlu0 %5513
      %5515 = vrot.lane.b32.xlu0 %v5190, 8
      %v5516 = vpop.permute.xlu0 %5515
      %5517 = vrot.lane.b32.xlu0 %v5189, 8
      %v5518 = vpop.permute.xlu0 %5517
      %5519 = vrot.lane.b32.xlu0 %v5188, 8
      %v5520 = vpop.permute.xlu0 %5519
      %5521 = vrot.lane.b32.xlu0 %v5187, 8
      %v5522 = vpop.permute.xlu0 %5521
      %5523 = vrot.lane.b32.xlu0 %v5186, 8
      %v5524 = vpop.permute.xlu0 %5523
      %5525 = vrot.lane.b32.xlu0 %v5185, 8
      %v5526 = vpop.permute.xlu0 %5525
      %5527 = vrot.lane.b32.xlu0 %v5184, 8
      %v5528 = vpop.permute.xlu0 %5527
      %5529 = vrot.lane.b32.xlu0 %v5183, 8
      %v5530 = vpop.permute.xlu0 %5529
      %5531 = vrot.lane.b32.xlu0 %v5182, 8
      %v5532 = vpop.permute.xlu0 %5531
      %5533 = vrot.lane.b32.xlu0 %v5181, 8
      %v5534 = vpop.permute.xlu0 %5533
      %5535 = vrot.lane.b32.xlu0 %v5180, 8
      %v5536 = vpop.permute.xlu0 %5535
      %5537 = vrot.lane.b32.xlu0 %v5179, 8
      %v5538 = vpop.permute.xlu0 %5537
      %5539 = vrot.lane.b32.xlu0 %v5178, 8
      %v5540 = vpop.permute.xlu0 %5539
      %5541 = vrot.lane.b32.xlu0 %v5177, 8
      %v5542 = vpop.permute.xlu0 %5541
      %5543 = vrot.lane.b32.xlu0 %v5176, 8
      %v5544 = vpop.permute.xlu0 %5543
      %5545 = vrot.lane.b32.xlu0 %v5175, 8
      %v5546 = vpop.permute.xlu0 %5545
      %5547 = vrot.lane.b32.xlu0 %v5174, 8
      %v5548 = vpop.permute.xlu0 %5547
      %5549 = vrot.lane.b32.xlu0 %v5173, 8
      %v5550 = vpop.permute.xlu0 %5549
      %5551 = vrot.lane.b32.xlu0 %v5172, 8
      %v5552 = vpop.permute.xlu0 %5551
      %5553 = vrot.lane.b32.xlu0 %v5171, 8
      %v5554 = vpop.permute.xlu0 %5553
      %5555 = vrot.lane.b32.xlu0 %v5170, 8
      %v5556 = vpop.permute.xlu0 %5555
      %5557 = vrot.lane.b32.xlu0 %v5169, 8
      %v5558 = vpop.permute.xlu0 %5557
      %5559 = vrot.lane.b32.xlu0 %v5168, 8
      %v5560 = vpop.permute.xlu0 %5559
      %5561 = vrot.lane.b32.xlu0 %v5167, 8
      %v5562 = vpop.permute.xlu0 %5561
      %5563 = vrot.lane.b32.xlu0 %v5166, 8
      %v5564 = vpop.permute.xlu0 %5563
      %5565 = vrot.lane.b32.xlu0 %v5165, 8
      %v5566 = vpop.permute.xlu0 %5565
      %5567 = vrot.lane.b32.xlu0 %v5164, 8
      %v5568 = vpop.permute.xlu0 %5567
      %5569 = vrot.lane.b32.xlu0 %v5163, 8
      %v5570 = vpop.permute.xlu0 %5569
      %5571 = vrot.lane.b32.xlu0 %v5162, 8
      %v5572 = vpop.permute.xlu0 %5571
      %5573 = vrot.lane.b32.xlu0 %v5161, 8
      %v5574 = vpop.permute.xlu0 %5573
      %5575 = vrot.lane.b32.xlu0 %v5160, 8
      %v5576 = vpop.permute.xlu0 %5575
      %5577 = vrot.lane.b32.xlu0 %v5159, 8
      %v5578 = vpop.permute.xlu0 %5577
      %5579 = vrot.lane.b32.xlu0 %v5158, 8
      %v5580 = vpop.permute.xlu0 %5579
      %5581 = vrot.lane.b32.xlu0 %v5157, 8
      %v5582 = vpop.permute.xlu0 %5581
      %5583 = vrot.lane.b32.xlu0 %v5156, 8
      %v5584 = vpop.permute.xlu0 %5583
      %5585 = vrot.lane.b32.xlu0 %v5155, 8
      %v5586 = vpop.permute.xlu0 %5585
      %5587 = vrot.lane.b32.xlu0 %v5154, 8
      %v5588 = vpop.permute.xlu0 %5587
      %5589 = vrot.lane.b32.xlu0 %v5153, 8
      %v5590 = vpop.permute.xlu0 %5589
      %5591 = vrot.lane.b32.xlu0 %v5152, 8
      %v5592 = vpop.permute.xlu0 %5591
      %5593 = vrot.lane.b32.xlu0 %v5151, 8
      %v5594 = vpop.permute.xlu0 %5593
      %5595 = vrot.lane.b32.xlu0 %v5150, 8
      %v5596 = vpop.permute.xlu0 %5595
      %5597 = vrot.lane.b32.xlu0 %v5149, 8
      %v5598 = vpop.permute.xlu0 %5597
      %5599 = vrot.lane.b32.xlu0 %v5148, 8
      %v5600 = vpop.permute.xlu0 %5599
      %5601 = vrot.lane.b32.xlu0 %v5147, 8
      %v5602 = vpop.permute.xlu0 %5601
      %5603 = vrot.lane.b32.xlu0 %v5146, 8
      %v5604 = vpop.permute.xlu0 %5603
      %5605 = vrot.lane.b32.xlu0 %v5145, 8
      %v5606 = vpop.permute.xlu0 %5605
      %5607 = vrot.lane.b32.xlu0 %v5144, 8
      %v5608 = vpop.permute.xlu0 %5607
      %5609 = vrot.lane.b32.xlu0 %v5143, 8
      %v5610 = vpop.permute.xlu0 %5609
      %5611 = vrot.lane.b32.xlu0 %v5142, 8
      %v5612 = vpop.permute.xlu0 %5611
      %5613 = vrot.lane.b32.xlu0 %v5141, 8
      %v5614 = vpop.permute.xlu0 %5613
      %5615 = vrot.lane.b32.xlu0 %v5140, 8
      %v5616 = vpop.permute.xlu0 %5615
      %5617 = vrot.lane.b32.xlu0 %v5139, 8
      %v5618 = vpop.permute.xlu0 %5617
      %5619 = vrot.lane.b32.xlu0 %v5138, 8
      %v5620 = vpop.permute.xlu0 %5619
      %5621 = vrot.lane.b32.xlu0 %v5137, 8
      %v5622 = vpop.permute.xlu0 %5621
      %5623 = vrot.lane.b32.xlu0 %v5136, 8
      %v5624 = vpop.permute.xlu0 %5623
      %5625 = vrot.lane.b32.xlu0 %v5135, 8
      %v5626 = vpop.permute.xlu0 %5625
      %5627 = vrot.lane.b32.xlu0 %v5134, 8
      %v5628 = vpop.permute.xlu0 %5627
      %5629 = vrot.lane.b32.xlu0 %v5133, 8
      %v5630 = vpop.permute.xlu0 %5629
      %5631 = vrot.lane.b32.xlu0 %v5132, 8
      %v5632 = vpop.permute.xlu0 %5631
      %5633 = vrot.lane.b32.xlu0 %v5131, 8
      %v5634 = vpop.permute.xlu0 %5633
      %5635 = vrot.lane.b32.xlu0 %v5130, 8
      %v5636 = vpop.permute.xlu0 %5635
      %5637 = vrot.lane.b32.xlu0 %v5129, 8
      %v5638 = vpop.permute.xlu0 %5637
      %5639 = vrot.lane.b32.xlu0 %v5192, 8
      %v5640 = vpop.permute.xlu0 %5639
      %v5705 = vsel %vm1249, %v5064, %v5258
      %v5706 = vsel %vm1249, %v5063, %v5260
      %v5707 = vsel %vm1249, %v5062, %v5262
      %v5708 = vsel %vm1249, %v5061, %v5264
      %v5709 = vsel %vm1249, %v5060, %v5266
      %v5710 = vsel %vm1249, %v5059, %v5268
      %v5711 = vsel %vm1249, %v5058, %v5270
      %v5712 = vsel %vm1249, %v5057, %v5272
      %v5713 = vsel %vm1249, %v5056, %v5274
      %v5714 = vsel %vm1249, %v5055, %v5276
      %v5715 = vsel %vm1249, %v5054, %v5278
      %v5716 = vsel %vm1249, %v5053, %v5280
      %v5717 = vsel %vm1249, %v5052, %v5282
      %v5718 = vsel %vm1249, %v5051, %v5284
      %v5719 = vsel %vm1249, %v5050, %v5286
      %v5720 = vsel %vm1249, %v5049, %v5288
      %v5721 = vsel %vm1249, %v5048, %v5290
      %v5722 = vsel %vm1249, %v5047, %v5292
      %v5723 = vsel %vm1249, %v5046, %v5294
      %v5724 = vsel %vm1249, %v5045, %v5296
      %v5725 = vsel %vm1249, %v5044, %v5298
      %v5726 = vsel %vm1249, %v5043, %v5300
      %v5727 = vsel %vm1249, %v5042, %v5302
      %v5728 = vsel %vm1249, %v5041, %v5304
      %v5729 = vsel %vm1249, %v5040, %v5306
      %v5730 = vsel %vm1249, %v5039, %v5308
      %v5731 = vsel %vm1249, %v5038, %v5310
      %v5732 = vsel %vm1249, %v5037, %v5312
      %v5733 = vsel %vm1249, %v5036, %v5314
      %v5734 = vsel %vm1249, %v5035, %v5316
      %v5735 = vsel %vm1249, %v5034, %v5318
      %v5736 = vsel %vm1249, %v5033, %v5320
      %v5737 = vsel %vm1249, %v5032, %v5322
      %v5738 = vsel %vm1249, %v5031, %v5324
      %v5739 = vsel %vm1249, %v5030, %v5326
      %v5740 = vsel %vm1249, %v5029, %v5328
      %v5741 = vsel %vm1249, %v5028, %v5330
      %v5742 = vsel %vm1249, %v5027, %v5332
      %v5743 = vsel %vm1249, %v5026, %v5334
      %v5744 = vsel %vm1249, %v5025, %v5336
      %v5745 = vsel %vm1249, %v5024, %v5338
      %v5746 = vsel %vm1249, %v5023, %v5340
      %v5747 = vsel %vm1249, %v5022, %v5342
      %v5748 = vsel %vm1249, %v5021, %v5344
      %v5749 = vsel %vm1249, %v5020, %v5346
      %v5750 = vsel %vm1249, %v5019, %v5348
      %v5751 = vsel %vm1249, %v5018, %v5350
      %v5752 = vsel %vm1249, %v5017, %v5352
      %v5753 = vsel %vm1249, %v5016, %v5354
      %v5754 = vsel %vm1249, %v5015, %v5356
      %v5755 = vsel %vm1249, %v5014, %v5358
      %v5756 = vsel %vm1249, %v5013, %v5360
      %v5757 = vsel %vm1249, %v5012, %v5362
      %v5758 = vsel %vm1249, %v5011, %v5364
      %v5759 = vsel %vm1249, %v5010, %v5366
      %v5760 = vsel %vm1249, %v5009, %v5368
      %v5761 = vsel %vm1249, %v5008, %v5370
      %v5762 = vsel %vm1249, %v5007, %v5372
      %v5763 = vsel %vm1249, %v5006, %v5374
      %v5764 = vsel %vm1249, %v5005, %v5376
      %v5765 = vsel %vm1249, %v5004, %v5378
      %v5766 = vsel %vm1249, %v5003, %v5380
      %v5767 = vsel %vm1249, %v5002, %v5382
      %v5768 = vsel %vm1249, %v5001, %v5384
      %v5769 = vsel %vm1314, %v5705, %v5514
      %v5770 = vsel %vm1314, %v5706, %v5516
      %v5771 = vsel %vm1314, %v5707, %v5518
      %v5772 = vsel %vm1314, %v5708, %v5520
      %v5773 = vsel %vm1314, %v5709, %v5522
      %v5774 = vsel %vm1314, %v5710, %v5524
      %v5775 = vsel %vm1314, %v5711, %v5526
      %v5776 = vsel %vm1314, %v5712, %v5528
      %v5777 = vsel %vm1314, %v5713, %v5530
      %v5778 = vsel %vm1314, %v5714, %v5532
      %v5779 = vsel %vm1314, %v5715, %v5534
      %v5780 = vsel %vm1314, %v5716, %v5536
      %v5781 = vsel %vm1314, %v5717, %v5538
      %v5782 = vsel %vm1314, %v5718, %v5540
      %v5783 = vsel %vm1314, %v5719, %v5542
      %v5784 = vsel %vm1314, %v5720, %v5544
      %v5785 = vsel %vm1314, %v5721, %v5546
      %v5786 = vsel %vm1314, %v5722, %v5548
      %v5787 = vsel %vm1314, %v5723, %v5550
      %v5788 = vsel %vm1314, %v5724, %v5552
      %v5789 = vsel %vm1314, %v5725, %v5554
      %v5790 = vsel %vm1314, %v5726, %v5556
      %v5791 = vsel %vm1314, %v5727, %v5558
      %v5792 = vsel %vm1314, %v5728, %v5560
      %v5793 = vsel %vm1314, %v5729, %v5562
      %v5794 = vsel %vm1314, %v5730, %v5564
      %v5795 = vsel %vm1314, %v5731, %v5566
      %v5796 = vsel %vm1314, %v5732, %v5568
      %v5797 = vsel %vm1314, %v5733, %v5570
      %v5798 = vsel %vm1314, %v5734, %v5572
      %v5799 = vsel %vm1314, %v5735, %v5574
      %v5800 = vsel %vm1314, %v5736, %v5576
      %v5801 = vsel %vm1314, %v5737, %v5578
      %v5802 = vsel %vm1314, %v5738, %v5580
      %v5803 = vsel %vm1314, %v5739, %v5582
      %v5804 = vsel %vm1314, %v5740, %v5584
      %v5805 = vsel %vm1314, %v5741, %v5586
      %v5806 = vsel %vm1314, %v5742, %v5588
      %v5807 = vsel %vm1314, %v5743, %v5590
      %v5808 = vsel %vm1314, %v5744, %v5592
      %v5809 = vsel %vm1314, %v5745, %v5594
      %v5810 = vsel %vm1314, %v5746, %v5596
      %v5811 = vsel %vm1314, %v5747, %v5598
      %v5812 = vsel %vm1314, %v5748, %v5600
      %v5813 = vsel %vm1314, %v5749, %v5602
      %v5814 = vsel %vm1314, %v5750, %v5604
      %v5815 = vsel %vm1314, %v5751, %v5606
      %v5816 = vsel %vm1314, %v5752, %v5608
      %v5817 = vsel %vm1314, %v5753, %v5610
      %v5818 = vsel %vm1314, %v5754, %v5612
      %v5819 = vsel %vm1314, %v5755, %v5614
      %v5820 = vsel %vm1314, %v5756, %v5616
      %v5821 = vsel %vm1314, %v5757, %v5618
      %v5822 = vsel %vm1314, %v5758, %v5620
      %v5823 = vsel %vm1314, %v5759, %v5622
      %v5824 = vsel %vm1314, %v5760, %v5624
      %v5825 = vsel %vm1314, %v5761, %v5626
      %v5826 = vsel %vm1314, %v5762, %v5628
      %v5827 = vsel %vm1314, %v5763, %v5630
      %v5828 = vsel %vm1314, %v5764, %v5632
      %v5829 = vsel %vm1314, %v5765, %v5634
      %v5830 = vsel %vm1314, %v5766, %v5636
      %v5831 = vsel %vm1314, %v5767, %v5638
      %v5832 = vsel %vm1314, %v5768, %v5640
      %v5833 = vpack.c.bf16 %v5770, %v5769
      %v5834 = vpack.c.bf16 %v5772, %v5771
      %v5835 = vpack.c.bf16 %v5774, %v5773
      %v5836 = vpack.c.bf16 %v5776, %v5775
      %v5837 = vpack.c.bf16 %v5778, %v5777
      %v5838 = vpack.c.bf16 %v5780, %v5779
      %v5839 = vpack.c.bf16 %v5782, %v5781
      %v5840 = vpack.c.bf16 %v5784, %v5783
      %v5841 = vpack.c.bf16 %v5786, %v5785
      %v5842 = vpack.c.bf16 %v5788, %v5787
      %v5843 = vpack.c.bf16 %v5790, %v5789
      %v5844 = vpack.c.bf16 %v5792, %v5791
      %v5845 = vpack.c.bf16 %v5794, %v5793
      %v5846 = vpack.c.bf16 %v5796, %v5795
      %v5847 = vpack.c.bf16 %v5798, %v5797
      %v5848 = vpack.c.bf16 %v5800, %v5799
      %v5849 = vpack.c.bf16 %v5802, %v5801
      %v5850 = vpack.c.bf16 %v5804, %v5803
      %v5851 = vpack.c.bf16 %v5806, %v5805
      %v5852 = vpack.c.bf16 %v5808, %v5807
      %v5853 = vpack.c.bf16 %v5810, %v5809
      %v5854 = vpack.c.bf16 %v5812, %v5811
      %v5855 = vpack.c.bf16 %v5814, %v5813
      %v5856 = vpack.c.bf16 %v5816, %v5815
      %v5857 = vpack.c.bf16 %v5818, %v5817
      %v5858 = vpack.c.bf16 %v5820, %v5819
      %v5859 = vpack.c.bf16 %v5822, %v5821
      %v5860 = vpack.c.bf16 %v5824, %v5823
      %v5861 = vpack.c.bf16 %v5826, %v5825
      %v5862 = vpack.c.bf16 %v5828, %v5827
      %v5863 = vpack.c.bf16 %v5830, %v5829
      %v5864 = vpack.c.bf16 %v5832, %v5831
      %s5865 = smul.addr %s1411, 4
      %s5866 = scalar_lea.vmem %s3, %s5865
      %v5867 = vld [vmem:[%s5866] sm:$0xf]
      %v5868 = vld [vmem:[%s5866 + $0x4] sm:$0x3]
      %v5869 = vld [vmem:[%s380] sm:$0xff]
      %v5870 = vld [vmem:[%s380 + $0x8] sm:$0xff]
      %v5871 = vld [vmem:[%s380 + $0x10] sm:$0xff]
      %v5872 = vld [vmem:[%s380 + $0x18] sm:$0xff]
      %v5873 = vld [vmem:[%s380 + $0x20] sm:$0xff]
      %v5874 = vld [vmem:[%s380 + $0x28] sm:$0xff]
      %v5875 = vld [vmem:[%s380 + $0x30] sm:$0xff]
      %v5876 = vld [vmem:[%s380 + $0x38] sm:$0xff]
      %v5877 = vld [vmem:[%s380 + $0x40] sm:$0xff]
      %v5878 = vld [vmem:[%s380 + $0x48] sm:$0xff]
      %v5879 = vld [vmem:[%s380 + $0x50] sm:$0xff]
      %v5880 = vld [vmem:[%s380 + $0x58] sm:$0xff]
      %v5881 = vld [vmem:[%s380 + $0x60] sm:$0xff]
      %v5882 = vld [vmem:[%s380 + $0x68] sm:$0xff]
      %v5883 = vld [vmem:[%s380 + $0x70] sm:$0xff]
      %v5884 = vld [vmem:[%s380 + $0x78] sm:$0xff]
      %v5885 = vld [vmem:[%s380 + $0x80] sm:$0xff]
      %v5886 = vld [vmem:[%s380 + $0x88] sm:$0xff]
      %v5887 = vld [vmem:[%s380 + $0x90] sm:$0xff]
      %v5888 = vld [vmem:[%s380 + $0x98] sm:$0xff]
      %v5889 = vld [vmem:[%s380 + $0xa0] sm:$0xff]
      %v5890 = vld [vmem:[%s380 + $0xa8] sm:$0xff]
      %v5891 = vld [vmem:[%s380 + $0xb0] sm:$0xff]
      %v5892 = vld [vmem:[%s380 + $0xb8] sm:$0xff]
      %v5893 = vld [vmem:[%s380 + $0xc0] sm:$0xff]
      %v5894 = vld [vmem:[%s380 + $0xc8] sm:$0xff]
      %v5895 = vld [vmem:[%s380 + $0xd0] sm:$0xff]
      %v5896 = vld [vmem:[%s380 + $0xd8] sm:$0xff]
      %v5897 = vld [vmem:[%s380 + $0xe0] sm:$0xff]
      %v5898 = vld [vmem:[%s380 + $0xe8] sm:$0xff]
      %v5899 = vld [vmem:[%s380 + $0xf0] sm:$0xff]
      %v5900 = vld [vmem:[%s380 + $0xf8] sm:$0xff]
      %v5901 = vld [vmem:[%s380 + $0x100] sm:$0xff]
      %v5902 = vld [vmem:[%s380 + $0x108] sm:$0xff]
      %v5903 = vld [vmem:[%s380 + $0x110] sm:$0xff]
      %v5904 = vld [vmem:[%s380 + $0x118] sm:$0xff]
      %v5905 = vld [vmem:[%s380 + $0x120] sm:$0xff]
      %v5906 = vld [vmem:[%s380 + $0x128] sm:$0xff]
      %v5907 = vld [vmem:[%s380 + $0x130] sm:$0xff]
      %v5908 = vld [vmem:[%s380 + $0x138] sm:$0xff]
      %v5909 = vld [vmem:[%s380 + $0x140] sm:$0xff]
      %v5910 = vld [vmem:[%s380 + $0x148] sm:$0xff]
      %v5911 = vld [vmem:[%s380 + $0x150] sm:$0xff]
      %v5912 = vld [vmem:[%s380 + $0x158] sm:$0xff]
      %v5913 = vld [vmem:[%s380 + $0x160] sm:$0xff]
      %v5914 = vld [vmem:[%s380 + $0x168] sm:$0xff]
      %v5915 = vld [vmem:[%s380 + $0x170] sm:$0xff]
      %v5916 = vld [vmem:[%s380 + $0x178] sm:$0xff]
      %v5917 = vld [vmem:[%s380 + $0x180] sm:$0xff]
      %v5918 = vld [vmem:[%s380 + $0x188] sm:$0xff]
      %v5919 = vld [vmem:[%s380 + $0x190] sm:$0xff]
      %v5920 = vld [vmem:[%s380 + $0x198] sm:$0xff]
      %v5921 = vld [vmem:[%s380 + $0x1a0] sm:$0xff]
      %v5922 = vld [vmem:[%s380 + $0x1a8] sm:$0xff]
      %v5923 = vld [vmem:[%s380 + $0x1b0] sm:$0xff]
      %v5924 = vld [vmem:[%s380 + $0x1b8] sm:$0xff]
      %v5925 = vld [vmem:[%s380 + $0x1c0] sm:$0xff]
      %v5926 = vld [vmem:[%s380 + $0x1c8] sm:$0xff]
      %v5927 = vld [vmem:[%s380 + $0x1d0] sm:$0xff]
      %v5928 = vld [vmem:[%s380 + $0x1d8] sm:$0xff]
      %v5929 = vld [vmem:[%s380 + $0x1e0] sm:$0xff]
      %v5930 = vld [vmem:[%s380 + $0x1e8] sm:$0xff]
      %v5931 = vld [vmem:[%s380 + $0x1f0] sm:$0xff]
      %v5932 = vld [vmem:[%s380 + $0x1f8] sm:$0xff]
      %v5933 = vrot.slane %v5869, 7
      %v5934 = vrot.slane %v5870, 7
      %v5935 = vrot.slane %v5871, 7
      %v5936 = vrot.slane %v5872, 7
      %v5937 = vrot.slane %v5873, 7
      %v5938 = vrot.slane %v5874, 7
      %v5939 = vrot.slane %v5875, 7
      %v5940 = vrot.slane %v5876, 7
      %v5941 = vrot.slane %v5877, 7
      %v5942 = vrot.slane %v5878, 7
      %v5943 = vrot.slane %v5879, 7
      %v5944 = vrot.slane %v5880, 7
      %v5945 = vrot.slane %v5881, 7
      %v5946 = vrot.slane %v5882, 7
      %v5947 = vrot.slane %v5883, 7
      %v5948 = vrot.slane %v5884, 7
      %v5949 = vrot.slane %v5885, 7
      %v5950 = vrot.slane %v5886, 7
      %v5951 = vrot.slane %v5887, 7
      %v5952 = vrot.slane %v5888, 7
      %v5953 = vrot.slane %v5889, 7
      %v5954 = vrot.slane %v5890, 7
      %v5955 = vrot.slane %v5891, 7
      %v5956 = vrot.slane %v5892, 7
      %v5957 = vrot.slane %v5893, 7
      %v5958 = vrot.slane %v5894, 7
      %v5959 = vrot.slane %v5895, 7
      %v5960 = vrot.slane %v5896, 7
      %v5961 = vrot.slane %v5897, 7
      %v5962 = vrot.slane %v5898, 7
      %v5963 = vrot.slane %v5899, 7
      %v5964 = vrot.slane %v5900, 7
      %v5965 = vrot.slane %v5901, 7
      %v5966 = vrot.slane %v5902, 7
      %v5967 = vrot.slane %v5903, 7
      %v5968 = vrot.slane %v5904, 7
      %v5969 = vrot.slane %v5905, 7
      %v5970 = vrot.slane %v5906, 7
      %v5971 = vrot.slane %v5907, 7
      %v5972 = vrot.slane %v5908, 7
      %v5973 = vrot.slane %v5909, 7
      %v5974 = vrot.slane %v5910, 7
      %v5975 = vrot.slane %v5911, 7
      %v5976 = vrot.slane %v5912, 7
      %v5977 = vrot.slane %v5913, 7
      %v5978 = vrot.slane %v5914, 7
      %v5979 = vrot.slane %v5915, 7
      %v5980 = vrot.slane %v5916, 7
      %v5981 = vrot.slane %v5917, 7
      %v5982 = vrot.slane %v5918, 7
      %v5983 = vrot.slane %v5919, 7
      %v5984 = vrot.slane %v5920, 7
      %v5985 = vrot.slane %v5921, 7
      %v5986 = vrot.slane %v5922, 7
      %v5987 = vrot.slane %v5923, 7
      %v5988 = vrot.slane %v5924, 7
      %v5989 = vrot.slane %v5925, 7
      %v5990 = vrot.slane %v5926, 7
      %v5991 = vrot.slane %v5927, 7
      %v5992 = vrot.slane %v5928, 7
      %v5993 = vrot.slane %v5929, 7
      %v5994 = vrot.slane %v5930, 7
      %v5995 = vrot.slane %v5931, 7
      %v5996 = vrot.slane %v5932, 7
      %v5997 = vsel %vm543, %v5995, %v5996
      %v5998 = vsel %vm543, %v5994, %v5995
      %v5999 = vsel %vm543, %v5993, %v5994
      %v6000 = vsel %vm543, %v5992, %v5993
      %v6001 = vsel %vm543, %v5991, %v5992
      %v6002 = vsel %vm543, %v5990, %v5991
      %v6003 = vsel %vm543, %v5989, %v5990
      %v6004 = vsel %vm543, %v5988, %v5989
      %v6005 = vsel %vm543, %v5987, %v5988
      %v6006 = vsel %vm543, %v5986, %v5987
      %v6007 = vsel %vm543, %v5985, %v5986
      %v6008 = vsel %vm543, %v5984, %v5985
      %v6009 = vsel %vm543, %v5983, %v5984
      %v6010 = vsel %vm543, %v5982, %v5983
      %v6011 = vsel %vm543, %v5981, %v5982
      %v6012 = vsel %vm543, %v5980, %v5981
      %v6013 = vsel %vm543, %v5979, %v5980
      %v6014 = vsel %vm543, %v5978, %v5979
      %v6015 = vsel %vm543, %v5977, %v5978
      %v6016 = vsel %vm543, %v5976, %v5977
      %v6017 = vsel %vm543, %v5975, %v5976
      %v6018 = vsel %vm543, %v5974, %v5975
      %v6019 = vsel %vm543, %v5973, %v5974
      %v6020 = vsel %vm543, %v5972, %v5973
      %v6021 = vsel %vm543, %v5971, %v5972
      %v6022 = vsel %vm543, %v5970, %v5971
      %v6023 = vsel %vm543, %v5969, %v5970
      %v6024 = vsel %vm543, %v5968, %v5969
      %v6025 = vsel %vm543, %v5967, %v5968
      %v6026 = vsel %vm543, %v5966, %v5967
      %v6027 = vsel %vm543, %v5965, %v5966
      %v6028 = vsel %vm543, %v5964, %v5965
      %v6029 = vsel %vm543, %v5963, %v5964
      %v6030 = vsel %vm543, %v5962, %v5963
      %v6031 = vsel %vm543, %v5961, %v5962
      %v6032 = vsel %vm543, %v5960, %v5961
      %v6033 = vsel %vm543, %v5959, %v5960
      %v6034 = vsel %vm543, %v5958, %v5959
      %v6035 = vsel %vm543, %v5957, %v5958
      %v6036 = vsel %vm543, %v5956, %v5957
      %v6037 = vsel %vm543, %v5955, %v5956
      %v6038 = vsel %vm543, %v5954, %v5955
      %v6039 = vsel %vm543, %v5953, %v5954
      %v6040 = vsel %vm543, %v5952, %v5953
      %v6041 = vsel %vm543, %v5951, %v5952
      %v6042 = vsel %vm543, %v5950, %v5951
      %v6043 = vsel %vm543, %v5949, %v5950
      %v6044 = vsel %vm543, %v5948, %v5949
      %v6045 = vsel %vm543, %v5947, %v5948
      %v6046 = vsel %vm543, %v5946, %v5947
      %v6047 = vsel %vm543, %v5945, %v5946
      %v6048 = vsel %vm543, %v5944, %v5945
      %v6049 = vsel %vm543, %v5943, %v5944
      %v6050 = vsel %vm543, %v5942, %v5943
      %v6051 = vsel %vm543, %v5941, %v5942
      %v6052 = vsel %vm543, %v5940, %v5941
      %v6053 = vsel %vm543, %v5939, %v5940
      %v6054 = vsel %vm543, %v5938, %v5939
      %v6055 = vsel %vm543, %v5937, %v5938
      %v6056 = vsel %vm543, %v5936, %v5937
      %v6057 = vsel %vm543, %v5935, %v5936
      %v6058 = vsel %vm543, %v5934, %v5935
      %v6059 = vsel %vm543, %v5933, %v5934
      %v6060 = vsel %vm543, %v5996, %v5933
      %v6061 = vrot.slane %v5869, 1
      %v6062 = vrot.slane %v5870, 1
      %v6063 = vrot.slane %v5871, 1
      %v6064 = vrot.slane %v5872, 1
      %v6065 = vrot.slane %v5873, 1
      %v6066 = vrot.slane %v5874, 1
      %v6067 = vrot.slane %v5875, 1
      %v6068 = vrot.slane %v5876, 1
      %v6069 = vrot.slane %v5877, 1
      %v6070 = vrot.slane %v5878, 1
      %v6071 = vrot.slane %v5879, 1
      %v6072 = vrot.slane %v5880, 1
      %v6073 = vrot.slane %v5881, 1
      %v6074 = vrot.slane %v5882, 1
      %v6075 = vrot.slane %v5883, 1
      %v6076 = vrot.slane %v5884, 1
      %v6077 = vrot.slane %v5885, 1
      %v6078 = vrot.slane %v5886, 1
      %v6079 = vrot.slane %v5887, 1
      %v6080 = vrot.slane %v5888, 1
      %v6081 = vrot.slane %v5889, 1
      %v6082 = vrot.slane %v5890, 1
      %v6083 = vrot.slane %v5891, 1
      %v6084 = vrot.slane %v5892, 1
      %v6085 = vrot.slane %v5893, 1
      %v6086 = vrot.slane %v5894, 1
      %v6087 = vrot.slane %v5895, 1
      %v6088 = vrot.slane %v5896, 1
      %v6089 = vrot.slane %v5897, 1
      %v6090 = vrot.slane %v5898, 1
      %v6091 = vrot.slane %v5899, 1
      %v6092 = vrot.slane %v5900, 1
      %v6093 = vrot.slane %v5901, 1
      %v6094 = vrot.slane %v5902, 1
      %v6095 = vrot.slane %v5903, 1
      %v6096 = vrot.slane %v5904, 1
      %v6097 = vrot.slane %v5905, 1
      %v6098 = vrot.slane %v5906, 1
      %v6099 = vrot.slane %v5907, 1
      %v6100 = vrot.slane %v5908, 1
      %v6101 = vrot.slane %v5909, 1
      %v6102 = vrot.slane %v5910, 1
      %v6103 = vrot.slane %v5911, 1
      %v6104 = vrot.slane %v5912, 1
      %v6105 = vrot.slane %v5913, 1
      %v6106 = vrot.slane %v5914, 1
      %v6107 = vrot.slane %v5915, 1
      %v6108 = vrot.slane %v5916, 1
      %v6109 = vrot.slane %v5917, 1
      %v6110 = vrot.slane %v5918, 1
      %v6111 = vrot.slane %v5919, 1
      %v6112 = vrot.slane %v5920, 1
      %v6113 = vrot.slane %v5921, 1
      %v6114 = vrot.slane %v5922, 1
      %v6115 = vrot.slane %v5923, 1
      %v6116 = vrot.slane %v5924, 1
      %v6117 = vrot.slane %v5925, 1
      %v6118 = vrot.slane %v5926, 1
      %v6119 = vrot.slane %v5927, 1
      %v6120 = vrot.slane %v5928, 1
      %v6121 = vrot.slane %v5929, 1
      %v6122 = vrot.slane %v5930, 1
      %v6123 = vrot.slane %v5931, 1
      %v6124 = vrot.slane %v5932, 1
      %v6125 = vsel %vm672, %v6123, %v6124
      %v6126 = vsel %vm672, %v6122, %v6123
      %v6127 = vsel %vm672, %v6121, %v6122
      %v6128 = vsel %vm672, %v6120, %v6121
      %v6129 = vsel %vm672, %v6119, %v6120
      %v6130 = vsel %vm672, %v6118, %v6119
      %v6131 = vsel %vm672, %v6117, %v6118
      %v6132 = vsel %vm672, %v6116, %v6117
      %v6133 = vsel %vm672, %v6115, %v6116
      %v6134 = vsel %vm672, %v6114, %v6115
      %v6135 = vsel %vm672, %v6113, %v6114
      %v6136 = vsel %vm672, %v6112, %v6113
      %v6137 = vsel %vm672, %v6111, %v6112
      %v6138 = vsel %vm672, %v6110, %v6111
      %v6139 = vsel %vm672, %v6109, %v6110
      %v6140 = vsel %vm672, %v6108, %v6109
      %v6141 = vsel %vm672, %v6107, %v6108
      %v6142 = vsel %vm672, %v6106, %v6107
      %v6143 = vsel %vm672, %v6105, %v6106
      %v6144 = vsel %vm672, %v6104, %v6105
      %v6145 = vsel %vm672, %v6103, %v6104
      %v6146 = vsel %vm672, %v6102, %v6103
      %v6147 = vsel %vm672, %v6101, %v6102
      %v6148 = vsel %vm672, %v6100, %v6101
      %v6149 = vsel %vm672, %v6099, %v6100
      %v6150 = vsel %vm672, %v6098, %v6099
      %v6151 = vsel %vm672, %v6097, %v6098
      %v6152 = vsel %vm672, %v6096, %v6097
      %v6153 = vsel %vm672, %v6095, %v6096
      %v6154 = vsel %vm672, %v6094, %v6095
      %v6155 = vsel %vm672, %v6093, %v6094
      %v6156 = vsel %vm672, %v6092, %v6093
      %v6157 = vsel %vm672, %v6091, %v6092
      %v6158 = vsel %vm672, %v6090, %v6091
      %v6159 = vsel %vm672, %v6089, %v6090
      %v6160 = vsel %vm672, %v6088, %v6089
      %v6161 = vsel %vm672, %v6087, %v6088
      %v6162 = vsel %vm672, %v6086, %v6087
      %v6163 = vsel %vm672, %v6085, %v6086
      %v6164 = vsel %vm672, %v6084, %v6085
      %v6165 = vsel %vm672, %v6083, %v6084
      %v6166 = vsel %vm672, %v6082, %v6083
      %v6167 = vsel %vm672, %v6081, %v6082
      %v6168 = vsel %vm672, %v6080, %v6081
      %v6169 = vsel %vm672, %v6079, %v6080
      %v6170 = vsel %vm672, %v6078, %v6079
      %v6171 = vsel %vm672, %v6077, %v6078
      %v6172 = vsel %vm672, %v6076, %v6077
      %v6173 = vsel %vm672, %v6075, %v6076
      %v6174 = vsel %vm672, %v6074, %v6075
      %v6175 = vsel %vm672, %v6073, %v6074
      %v6176 = vsel %vm672, %v6072, %v6073
      %v6177 = vsel %vm672, %v6071, %v6072
      %v6178 = vsel %vm672, %v6070, %v6071
      %v6179 = vsel %vm672, %v6069, %v6070
      %v6180 = vsel %vm672, %v6068, %v6069
      %v6181 = vsel %vm672, %v6067, %v6068
      %v6182 = vsel %vm672, %v6066, %v6067
      %v6183 = vsel %vm672, %v6065, %v6066
      %v6184 = vsel %vm672, %v6064, %v6065
      %v6185 = vsel %vm672, %v6063, %v6064
      %v6186 = vsel %vm672, %v6062, %v6063
      %v6187 = vsel %vm672, %v6061, %v6062
      %v6188 = vsel %vm672, %v6124, %v6061
      %6253 = vrot.lane.b32.xlu0 %v5869, 4
      %v6254 = vpop.permute.xlu0 %6253
      %6255 = vrot.lane.b32.xlu0 %v5870, 4
      %v6256 = vpop.permute.xlu0 %6255
      %6257 = vrot.lane.b32.xlu0 %v5871, 4
      %v6258 = vpop.permute.xlu0 %6257
      %6259 = vrot.lane.b32.xlu0 %v5872, 4
      %v6260 = vpop.permute.xlu0 %6259
      %6261 = vrot.lane.b32.xlu0 %v5873, 4
      %v6262 = vpop.permute.xlu0 %6261
      %6263 = vrot.lane.b32.xlu0 %v5874, 4
      %v6264 = vpop.permute.xlu0 %6263
      %6265 = vrot.lane.b32.xlu0 %v5875, 4
      %v6266 = vpop.permute.xlu0 %6265
      %6267 = vrot.lane.b32.xlu0 %v5876, 4
      %v6268 = vpop.permute.xlu0 %6267
      %6269 = vrot.lane.b32.xlu0 %v5877, 4
      %v6270 = vpop.permute.xlu0 %6269
      %6271 = vrot.lane.b32.xlu0 %v5878, 4
      %v6272 = vpop.permute.xlu0 %6271
      %6273 = vrot.lane.b32.xlu0 %v5879, 4
      %v6274 = vpop.permute.xlu0 %6273
      %6275 = vrot.lane.b32.xlu0 %v5880, 4
      %v6276 = vpop.permute.xlu0 %6275
      %6277 = vrot.lane.b32.xlu0 %v5881, 4
      %v6278 = vpop.permute.xlu0 %6277
      %6279 = vrot.lane.b32.xlu0 %v5882, 4
      %v6280 = vpop.permute.xlu0 %6279
      %6281 = vrot.lane.b32.xlu0 %v5883, 4
      %v6282 = vpop.permute.xlu0 %6281
      %6283 = vrot.lane.b32.xlu0 %v5884, 4
      %v6284 = vpop.permute.xlu0 %6283
      %6285 = vrot.lane.b32.xlu0 %v5885, 4
      %v6286 = vpop.permute.xlu0 %6285
      %6287 = vrot.lane.b32.xlu0 %v5886, 4
      %v6288 = vpop.permute.xlu0 %6287
      %6289 = vrot.lane.b32.xlu0 %v5887, 4
      %v6290 = vpop.permute.xlu0 %6289
      %6291 = vrot.lane.b32.xlu0 %v5888, 4
      %v6292 = vpop.permute.xlu0 %6291
      %6293 = vrot.lane.b32.xlu0 %v5889, 4
      %v6294 = vpop.permute.xlu0 %6293
      %6295 = vrot.lane.b32.xlu0 %v5890, 4
      %v6296 = vpop.permute.xlu0 %6295
      %6297 = vrot.lane.b32.xlu0 %v5891, 4
      %v6298 = vpop.permute.xlu0 %6297
      %6299 = vrot.lane.b32.xlu0 %v5892, 4
      %v6300 = vpop.permute.xlu0 %6299
      %6301 = vrot.lane.b32.xlu0 %v5893, 4
      %v6302 = vpop.permute.xlu0 %6301
      %6303 = vrot.lane.b32.xlu0 %v5894, 4
      %v6304 = vpop.permute.xlu0 %6303
      %6305 = vrot.lane.b32.xlu0 %v5895, 4
      %v6306 = vpop.permute.xlu0 %6305
      %6307 = vrot.lane.b32.xlu0 %v5896, 4
      %v6308 = vpop.permute.xlu0 %6307
      %6309 = vrot.lane.b32.xlu0 %v5897, 4
      %v6310 = vpop.permute.xlu0 %6309
      %6311 = vrot.lane.b32.xlu0 %v5898, 4
      %v6312 = vpop.permute.xlu0 %6311
      %6313 = vrot.lane.b32.xlu0 %v5899, 4
      %v6314 = vpop.permute.xlu0 %6313
      %6315 = vrot.lane.b32.xlu0 %v5900, 4
      %v6316 = vpop.permute.xlu0 %6315
      %6317 = vrot.lane.b32.xlu0 %v5901, 4
      %v6318 = vpop.permute.xlu0 %6317
      %6319 = vrot.lane.b32.xlu0 %v5902, 4
      %v6320 = vpop.permute.xlu0 %6319
      %6321 = vrot.lane.b32.xlu0 %v5903, 4
      %v6322 = vpop.permute.xlu0 %6321
      %6323 = vrot.lane.b32.xlu0 %v5904, 4
      %v6324 = vpop.permute.xlu0 %6323
      %6325 = vrot.lane.b32.xlu0 %v5905, 4
      %v6326 = vpop.permute.xlu0 %6325
      %6327 = vrot.lane.b32.xlu0 %v5906, 4
      %v6328 = vpop.permute.xlu0 %6327
      %6329 = vrot.lane.b32.xlu0 %v5907, 4
      %v6330 = vpop.permute.xlu0 %6329
      %6331 = vrot.lane.b32.xlu0 %v5908, 4
      %v6332 = vpop.permute.xlu0 %6331
      %6333 = vrot.lane.b32.xlu0 %v5909, 4
      %v6334 = vpop.permute.xlu0 %6333
      %6335 = vrot.lane.b32.xlu0 %v5910, 4
      %v6336 = vpop.permute.xlu0 %6335
      %6337 = vrot.lane.b32.xlu0 %v5911, 4
      %v6338 = vpop.permute.xlu0 %6337
      %6339 = vrot.lane.b32.xlu0 %v5912, 4
      %v6340 = vpop.permute.xlu0 %6339
      %6341 = vrot.lane.b32.xlu0 %v5913, 4
      %v6342 = vpop.permute.xlu0 %6341
      %6343 = vrot.lane.b32.xlu0 %v5914, 4
      %v6344 = vpop.permute.xlu0 %6343
      %6345 = vrot.lane.b32.xlu0 %v5915, 4
      %v6346 = vpop.permute.xlu0 %6345
      %6347 = vrot.lane.b32.xlu0 %v5916, 4
      %v6348 = vpop.permute.xlu0 %6347
      %6349 = vrot.lane.b32.xlu0 %v5917, 4
      %v6350 = vpop.permute.xlu0 %6349
      %6351 = vrot.lane.b32.xlu0 %v5918, 4
      %v6352 = vpop.permute.xlu0 %6351
      %6353 = vrot.lane.b32.xlu0 %v5919, 4
      %v6354 = vpop.permute.xlu0 %6353
      %6355 = vrot.lane.b32.xlu0 %v5920, 4
      %v6356 = vpop.permute.xlu0 %6355
      %6357 = vrot.lane.b32.xlu0 %v5921, 4
      %v6358 = vpop.permute.xlu0 %6357
      %6359 = vrot.lane.b32.xlu0 %v5922, 4
      %v6360 = vpop.permute.xlu0 %6359
      %6361 = vrot.lane.b32.xlu0 %v5923, 4
      %v6362 = vpop.permute.xlu0 %6361
      %6363 = vrot.lane.b32.xlu0 %v5924, 4
      %v6364 = vpop.permute.xlu0 %6363
      %6365 = vrot.lane.b32.xlu0 %v5925, 4
      %v6366 = vpop.permute.xlu0 %6365
      %6367 = vrot.lane.b32.xlu0 %v5926, 4
      %v6368 = vpop.permute.xlu0 %6367
      %6369 = vrot.lane.b32.xlu0 %v5927, 4
      %v6370 = vpop.permute.xlu0 %6369
      %6371 = vrot.lane.b32.xlu0 %v5928, 4
      %v6372 = vpop.permute.xlu0 %6371
      %6373 = vrot.lane.b32.xlu0 %v5929, 4
      %v6374 = vpop.permute.xlu0 %6373
      %6375 = vrot.lane.b32.xlu0 %v5930, 4
      %v6376 = vpop.permute.xlu0 %6375
      %6377 = vrot.lane.b32.xlu0 %v5931, 4
      %v6378 = vpop.permute.xlu0 %6377
      %6379 = vrot.lane.b32.xlu0 %v5932, 4
      %v6380 = vpop.permute.xlu0 %6379
      %6509 = vrot.lane.b32.xlu0 %v6187, 8
      %v6510 = vpop.permute.xlu0 %6509
      %6511 = vrot.lane.b32.xlu0 %v6186, 8
      %v6512 = vpop.permute.xlu0 %6511
      %6513 = vrot.lane.b32.xlu0 %v6185, 8
      %v6514 = vpop.permute.xlu0 %6513
      %6515 = vrot.lane.b32.xlu0 %v6184, 8
      %v6516 = vpop.permute.xlu0 %6515
      %6517 = vrot.lane.b32.xlu0 %v6183, 8
      %v6518 = vpop.permute.xlu0 %6517
      %6519 = vrot.lane.b32.xlu0 %v6182, 8
      %v6520 = vpop.permute.xlu0 %6519
      %6521 = vrot.lane.b32.xlu0 %v6181, 8
      %v6522 = vpop.permute.xlu0 %6521
      %6523 = vrot.lane.b32.xlu0 %v6180, 8
      %v6524 = vpop.permute.xlu0 %6523
      %6525 = vrot.lane.b32.xlu0 %v6179, 8
      %v6526 = vpop.permute.xlu0 %6525
      %6527 = vrot.lane.b32.xlu0 %v6178, 8
      %v6528 = vpop.permute.xlu0 %6527
      %6529 = vrot.lane.b32.xlu0 %v6177, 8
      %v6530 = vpop.permute.xlu0 %6529
      %6531 = vrot.lane.b32.xlu0 %v6176, 8
      %v6532 = vpop.permute.xlu0 %6531
      %6533 = vrot.lane.b32.xlu0 %v6175, 8
      %v6534 = vpop.permute.xlu0 %6533
      %6535 = vrot.lane.b32.xlu0 %v6174, 8
      %v6536 = vpop.permute.xlu0 %6535
      %6537 = vrot.lane.b32.xlu0 %v6173, 8
      %v6538 = vpop.permute.xlu0 %6537
      %6539 = vrot.lane.b32.xlu0 %v6172, 8
      %v6540 = vpop.permute.xlu0 %6539
      %6541 = vrot.lane.b32.xlu0 %v6171, 8
      %v6542 = vpop.permute.xlu0 %6541
      %6543 = vrot.lane.b32.xlu0 %v6170, 8
      %v6544 = vpop.permute.xlu0 %6543
      %6545 = vrot.lane.b32.xlu0 %v6169, 8
      %v6546 = vpop.permute.xlu0 %6545
      %6547 = vrot.lane.b32.xlu0 %v6168, 8
      %v6548 = vpop.permute.xlu0 %6547
      %6549 = vrot.lane.b32.xlu0 %v6167, 8
      %v6550 = vpop.permute.xlu0 %6549
      %6551 = vrot.lane.b32.xlu0 %v6166, 8
      %v6552 = vpop.permute.xlu0 %6551
      %6553 = vrot.lane.b32.xlu0 %v6165, 8
      %v6554 = vpop.permute.xlu0 %6553
      %6555 = vrot.lane.b32.xlu0 %v6164, 8
      %v6556 = vpop.permute.xlu0 %6555
      %6557 = vrot.lane.b32.xlu0 %v6163, 8
      %v6558 = vpop.permute.xlu0 %6557
      %6559 = vrot.lane.b32.xlu0 %v6162, 8
      %v6560 = vpop.permute.xlu0 %6559
      %6561 = vrot.lane.b32.xlu0 %v6161, 8
      %v6562 = vpop.permute.xlu0 %6561
      %6563 = vrot.lane.b32.xlu0 %v6160, 8
      %v6564 = vpop.permute.xlu0 %6563
      %6565 = vrot.lane.b32.xlu0 %v6159, 8
      %v6566 = vpop.permute.xlu0 %6565
      %6567 = vrot.lane.b32.xlu0 %v6158, 8
      %v6568 = vpop.permute.xlu0 %6567
      %6569 = vrot.lane.b32.xlu0 %v6157, 8
      %v6570 = vpop.permute.xlu0 %6569
      %6571 = vrot.lane.b32.xlu0 %v6156, 8
      %v6572 = vpop.permute.xlu0 %6571
      %6573 = vrot.lane.b32.xlu0 %v6155, 8
      %v6574 = vpop.permute.xlu0 %6573
      %6575 = vrot.lane.b32.xlu0 %v6154, 8
      %v6576 = vpop.permute.xlu0 %6575
      %6577 = vrot.lane.b32.xlu0 %v6153, 8
      %v6578 = vpop.permute.xlu0 %6577
      %6579 = vrot.lane.b32.xlu0 %v6152, 8
      %v6580 = vpop.permute.xlu0 %6579
      %6581 = vrot.lane.b32.xlu0 %v6151, 8
      %v6582 = vpop.permute.xlu0 %6581
      %6583 = vrot.lane.b32.xlu0 %v6150, 8
      %v6584 = vpop.permute.xlu0 %6583
      %6585 = vrot.lane.b32.xlu0 %v6149, 8
      %v6586 = vpop.permute.xlu0 %6585
      %6587 = vrot.lane.b32.xlu0 %v6148, 8
      %v6588 = vpop.permute.xlu0 %6587
      %6589 = vrot.lane.b32.xlu0 %v6147, 8
      %v6590 = vpop.permute.xlu0 %6589
      %6591 = vrot.lane.b32.xlu0 %v6146, 8
      %v6592 = vpop.permute.xlu0 %6591
      %6593 = vrot.lane.b32.xlu0 %v6145, 8
      %v6594 = vpop.permute.xlu0 %6593
      %6595 = vrot.lane.b32.xlu0 %v6144, 8
      %v6596 = vpop.permute.xlu0 %6595
      %6597 = vrot.lane.b32.xlu0 %v6143, 8
      %v6598 = vpop.permute.xlu0 %6597
      %6599 = vrot.lane.b32.xlu0 %v6142, 8
      %v6600 = vpop.permute.xlu0 %6599
      %6601 = vrot.lane.b32.xlu0 %v6141, 8
      %v6602 = vpop.permute.xlu0 %6601
      %6603 = vrot.lane.b32.xlu0 %v6140, 8
      %v6604 = vpop.permute.xlu0 %6603
      %6605 = vrot.lane.b32.xlu0 %v6139, 8
      %v6606 = vpop.permute.xlu0 %6605
      %6607 = vrot.lane.b32.xlu0 %v6138, 8
      %v6608 = vpop.permute.xlu0 %6607
      %6609 = vrot.lane.b32.xlu0 %v6137, 8
      %v6610 = vpop.permute.xlu0 %6609
      %6611 = vrot.lane.b32.xlu0 %v6136, 8
      %v6612 = vpop.permute.xlu0 %6611
      %6613 = vrot.lane.b32.xlu0 %v6135, 8
      %v6614 = vpop.permute.xlu0 %6613
      %6615 = vrot.lane.b32.xlu0 %v6134, 8
      %v6616 = vpop.permute.xlu0 %6615
      %6617 = vrot.lane.b32.xlu0 %v6133, 8
      %v6618 = vpop.permute.xlu0 %6617
      %6619 = vrot.lane.b32.xlu0 %v6132, 8
      %v6620 = vpop.permute.xlu0 %6619
      %6621 = vrot.lane.b32.xlu0 %v6131, 8
      %v6622 = vpop.permute.xlu0 %6621
      %6623 = vrot.lane.b32.xlu0 %v6130, 8
      %v6624 = vpop.permute.xlu0 %6623
      %6625 = vrot.lane.b32.xlu0 %v6129, 8
      %v6626 = vpop.permute.xlu0 %6625
      %6627 = vrot.lane.b32.xlu0 %v6128, 8
      %v6628 = vpop.permute.xlu0 %6627
      %6629 = vrot.lane.b32.xlu0 %v6127, 8
      %v6630 = vpop.permute.xlu0 %6629
      %6631 = vrot.lane.b32.xlu0 %v6126, 8
      %v6632 = vpop.permute.xlu0 %6631
      %6633 = vrot.lane.b32.xlu0 %v6125, 8
      %v6634 = vpop.permute.xlu0 %6633
      %6635 = vrot.lane.b32.xlu0 %v6188, 8
      %v6636 = vpop.permute.xlu0 %6635
      %v6701 = vsel %vm1249, %v6060, %v6254
      %v6702 = vsel %vm1249, %v6059, %v6256
      %v6703 = vsel %vm1249, %v6058, %v6258
      %v6704 = vsel %vm1249, %v6057, %v6260
      %v6705 = vsel %vm1249, %v6056, %v6262
      %v6706 = vsel %vm1249, %v6055, %v6264
      %v6707 = vsel %vm1249, %v6054, %v6266
      %v6708 = vsel %vm1249, %v6053, %v6268
      %v6709 = vsel %vm1249, %v6052, %v6270
      %v6710 = vsel %vm1249, %v6051, %v6272
      %v6711 = vsel %vm1249, %v6050, %v6274
      %v6712 = vsel %vm1249, %v6049, %v6276
      %v6713 = vsel %vm1249, %v6048, %v6278
      %v6714 = vsel %vm1249, %v6047, %v6280
      %v6715 = vsel %vm1249, %v6046, %v6282
      %v6716 = vsel %vm1249, %v6045, %v6284
      %v6717 = vsel %vm1249, %v6044, %v6286
      %v6718 = vsel %vm1249, %v6043, %v6288
      %v6719 = vsel %vm1249, %v6042, %v6290
      %v6720 = vsel %vm1249, %v6041, %v6292
      %v6721 = vsel %vm1249, %v6040, %v6294
      %v6722 = vsel %vm1249, %v6039, %v6296
      %v6723 = vsel %vm1249, %v6038, %v6298
      %v6724 = vsel %vm1249, %v6037, %v6300
      %v6725 = vsel %vm1249, %v6036, %v6302
      %v6726 = vsel %vm1249, %v6035, %v6304
      %v6727 = vsel %vm1249, %v6034, %v6306
      %v6728 = vsel %vm1249, %v6033, %v6308
      %v6729 = vsel %vm1249, %v6032, %v6310
      %v6730 = vsel %vm1249, %v6031, %v6312
      %v6731 = vsel %vm1249, %v6030, %v6314
      %v6732 = vsel %vm1249, %v6029, %v6316
      %v6733 = vsel %vm1249, %v6028, %v6318
      %v6734 = vsel %vm1249, %v6027, %v6320
      %v6735 = vsel %vm1249, %v6026, %v6322
      %v6736 = vsel %vm1249, %v6025, %v6324
      %v6737 = vsel %vm1249, %v6024, %v6326
      %v6738 = vsel %vm1249, %v6023, %v6328
      %v6739 = vsel %vm1249, %v6022, %v6330
      %v6740 = vsel %vm1249, %v6021, %v6332
      %v6741 = vsel %vm1249, %v6020, %v6334
      %v6742 = vsel %vm1249, %v6019, %v6336
      %v6743 = vsel %vm1249, %v6018, %v6338
      %v6744 = vsel %vm1249, %v6017, %v6340
      %v6745 = vsel %vm1249, %v6016, %v6342
      %v6746 = vsel %vm1249, %v6015, %v6344
      %v6747 = vsel %vm1249, %v6014, %v6346
      %v6748 = vsel %vm1249, %v6013, %v6348
      %v6749 = vsel %vm1249, %v6012, %v6350
      %v6750 = vsel %vm1249, %v6011, %v6352
      %v6751 = vsel %vm1249, %v6010, %v6354
      %v6752 = vsel %vm1249, %v6009, %v6356
      %v6753 = vsel %vm1249, %v6008, %v6358
      %v6754 = vsel %vm1249, %v6007, %v6360
      %v6755 = vsel %vm1249, %v6006, %v6362
      %v6756 = vsel %vm1249, %v6005, %v6364
      %v6757 = vsel %vm1249, %v6004, %v6366
      %v6758 = vsel %vm1249, %v6003, %v6368
      %v6759 = vsel %vm1249, %v6002, %v6370
      %v6760 = vsel %vm1249, %v6001, %v6372
      %v6761 = vsel %vm1249, %v6000, %v6374
      %v6762 = vsel %vm1249, %v5999, %v6376
      %v6763 = vsel %vm1249, %v5998, %v6378
      %v6764 = vsel %vm1249, %v5997, %v6380
      %v6765 = vsel %vm1314, %v6701, %v6510
      %v6766 = vsel %vm1314, %v6702, %v6512
      %v6767 = vsel %vm1314, %v6703, %v6514
      %v6768 = vsel %vm1314, %v6704, %v6516
      %v6769 = vsel %vm1314, %v6705, %v6518
      %v6770 = vsel %vm1314, %v6706, %v6520
      %v6771 = vsel %vm1314, %v6707, %v6522
      %v6772 = vsel %vm1314, %v6708, %v6524
      %v6773 = vsel %vm1314, %v6709, %v6526
      %v6774 = vsel %vm1314, %v6710, %v6528
      %v6775 = vsel %vm1314, %v6711, %v6530
      %v6776 = vsel %vm1314, %v6712, %v6532
      %v6777 = vsel %vm1314, %v6713, %v6534
      %v6778 = vsel %vm1314, %v6714, %v6536
      %v6779 = vsel %vm1314, %v6715, %v6538
      %v6780 = vsel %vm1314, %v6716, %v6540
      %v6781 = vsel %vm1314, %v6717, %v6542
      %v6782 = vsel %vm1314, %v6718, %v6544
      %v6783 = vsel %vm1314, %v6719, %v6546
      %v6784 = vsel %vm1314, %v6720, %v6548
      %v6785 = vsel %vm1314, %v6721, %v6550
      %v6786 = vsel %vm1314, %v6722, %v6552
      %v6787 = vsel %vm1314, %v6723, %v6554
      %v6788 = vsel %vm1314, %v6724, %v6556
      %v6789 = vsel %vm1314, %v6725, %v6558
      %v6790 = vsel %vm1314, %v6726, %v6560
      %v6791 = vsel %vm1314, %v6727, %v6562
      %v6792 = vsel %vm1314, %v6728, %v6564
      %v6793 = vsel %vm1314, %v6729, %v6566
      %v6794 = vsel %vm1314, %v6730, %v6568
      %v6795 = vsel %vm1314, %v6731, %v6570
      %v6796 = vsel %vm1314, %v6732, %v6572
      %v6797 = vsel %vm1314, %v6733, %v6574
      %v6798 = vsel %vm1314, %v6734, %v6576
      %v6799 = vsel %vm1314, %v6735, %v6578
      %v6800 = vsel %vm1314, %v6736, %v6580
      %v6801 = vsel %vm1314, %v6737, %v6582
      %v6802 = vsel %vm1314, %v6738, %v6584
      %v6803 = vsel %vm1314, %v6739, %v6586
      %v6804 = vsel %vm1314, %v6740, %v6588
      %v6805 = vsel %vm1314, %v6741, %v6590
      %v6806 = vsel %vm1314, %v6742, %v6592
      %v6807 = vsel %vm1314, %v6743, %v6594
      %v6808 = vsel %vm1314, %v6744, %v6596
      %v6809 = vsel %vm1314, %v6745, %v6598
      %v6810 = vsel %vm1314, %v6746, %v6600
      %v6811 = vsel %vm1314, %v6747, %v6602
      %v6812 = vsel %vm1314, %v6748, %v6604
      %v6813 = vsel %vm1314, %v6749, %v6606
      %v6814 = vsel %vm1314, %v6750, %v6608
      %v6815 = vsel %vm1314, %v6751, %v6610
      %v6816 = vsel %vm1314, %v6752, %v6612
      %v6817 = vsel %vm1314, %v6753, %v6614
      %v6818 = vsel %vm1314, %v6754, %v6616
      %v6819 = vsel %vm1314, %v6755, %v6618
      %v6820 = vsel %vm1314, %v6756, %v6620
      %v6821 = vsel %vm1314, %v6757, %v6622
      %v6822 = vsel %vm1314, %v6758, %v6624
      %v6823 = vsel %vm1314, %v6759, %v6626
      %v6824 = vsel %vm1314, %v6760, %v6628
      %v6825 = vsel %vm1314, %v6761, %v6630
      %v6826 = vsel %vm1314, %v6762, %v6632
      %v6827 = vsel %vm1314, %v6763, %v6634
      %v6828 = vsel %vm1314, %v6764, %v6636
      %v6829 = vpack.c.bf16 %v6766, %v6765
      %v6830 = vpack.c.bf16 %v6768, %v6767
      %v6831 = vpack.c.bf16 %v6770, %v6769
      %v6832 = vpack.c.bf16 %v6772, %v6771
      %v6833 = vpack.c.bf16 %v6774, %v6773
      %v6834 = vpack.c.bf16 %v6776, %v6775
      %v6835 = vpack.c.bf16 %v6778, %v6777
      %v6836 = vpack.c.bf16 %v6780, %v6779
      %v6837 = vpack.c.bf16 %v6782, %v6781
      %v6838 = vpack.c.bf16 %v6784, %v6783
      %v6839 = vpack.c.bf16 %v6786, %v6785
      %v6840 = vpack.c.bf16 %v6788, %v6787
      %v6841 = vpack.c.bf16 %v6790, %v6789
      %v6842 = vpack.c.bf16 %v6792, %v6791
      %v6843 = vpack.c.bf16 %v6794, %v6793
      %v6844 = vpack.c.bf16 %v6796, %v6795
      %v6845 = vpack.c.bf16 %v6798, %v6797
      %v6846 = vpack.c.bf16 %v6800, %v6799
      %v6847 = vpack.c.bf16 %v6802, %v6801
      %v6848 = vpack.c.bf16 %v6804, %v6803
      %v6849 = vpack.c.bf16 %v6806, %v6805
      %v6850 = vpack.c.bf16 %v6808, %v6807
      %v6851 = vpack.c.bf16 %v6810, %v6809
      %v6852 = vpack.c.bf16 %v6812, %v6811
      %v6853 = vpack.c.bf16 %v6814, %v6813
      %v6854 = vpack.c.bf16 %v6816, %v6815
      %v6855 = vpack.c.bf16 %v6818, %v6817
      %v6856 = vpack.c.bf16 %v6820, %v6819
      %v6857 = vpack.c.bf16 %v6822, %v6821
      %v6858 = vpack.c.bf16 %v6824, %v6823
      %v6859 = vpack.c.bf16 %v6826, %v6825
      %v6860 = vpack.c.bf16 %v6828, %v6827
      %s6861 = smul.addr %s2408, 4
      %s6862 = scalar_lea.vmem %s3, %s6861
      %v6863 = vld [vmem:[%s6862] sm:$0xf]
      %v6864 = vld [vmem:[%s6862 + $0x4] sm:$0x3]
      %v6867 = vunpack.c.l.b16 %v6863
      %v6868 = vunpack.c.l.b16 %v6864
      %v6869 = vpack.c.b16 %v6868, %v6867
      %v6871 = vsel %vm2418, %v6829, 0
      %v6874 = vsel %vm2418, %v6830, 0
      %v6877 = vsel %vm2418, %v6831, 0
      %v6880 = vsel %vm2418, %v6832, 0
      %v6883 = vsel %vm2418, %v6833, 0
      %v6886 = vsel %vm2418, %v6834, 0
      %v6889 = vsel %vm2418, %v6835, 0
      %v6892 = vsel %vm2418, %v6836, 0
      %v6895 = vsel %vm2418, %v6837, 0
      %v6898 = vsel %vm2418, %v6838, 0
      %v6901 = vsel %vm2418, %v6839, 0
      %v6904 = vsel %vm2418, %v6840, 0
      %v6907 = vsel %vm2418, %v6841, 0
      %v6910 = vsel %vm2418, %v6842, 0
      %v6913 = vsel %vm2418, %v6843, 0
      %v6916 = vsel %vm2418, %v6844, 0
      %v6919 = vsel %vm2418, %v6845, 0
      %v6922 = vsel %vm2418, %v6846, 0
      %v6925 = vsel %vm2418, %v6847, 0
      %v6928 = vsel %vm2418, %v6848, 0
      %v6931 = vsel %vm2418, %v6849, 0
      %v6934 = vsel %vm2418, %v6850, 0
      %v6937 = vsel %vm2418, %v6851, 0
      %v6940 = vsel %vm2418, %v6852, 0
      %v6943 = vsel %vm2418, %v6853, 0
      %v6946 = vsel %vm2418, %v6854, 0
      %v6949 = vsel %vm2418, %v6855, 0
      %v6952 = vsel %vm2418, %v6856, 0
      %v6955 = vsel %vm2418, %v6857, 0
      %v6958 = vsel %vm2418, %v6858, 0
      %v6961 = vsel %vm2418, %v6859, 0
      %v6964 = vsel %vm2418, %v6860, 0
      %v6967 = vsel %vm2515, %v6869, 0
      %6969 = vmatprep.subr.bf16.mxu0 0
      %6970 = vmatpush1.bf16.msra.mxu0 0
      %6971 = vmatprep.subr.bf16.mxu0 0
      %6972 = vmatpush1.bf16.msra.mxu0 0
      %6973 = vmatprep.subr.bf16.mxu0 0
      %6974 = vmatpush1.bf16.msra.mxu0 0
      %6975 = vmatprep.subr.bf16.mxu0 0
      %6976 = vmatpush1.bf16.msra.mxu0 0
      %6977 = vmatprep.subr.bf16.mxu0 0
      %6978 = vmatpush1.bf16.msra.mxu0 0
      %6979 = vmatprep.subr.bf16.mxu0 0
      %6980 = vmatpush1.bf16.msra.mxu0 0
      %6981 = vmatprep.subr.bf16.mxu0 0
      %6982 = vmatpush1.bf16.msra.mxu0 0
      %6983 = vmatprep.subr.bf16.mxu0 0
      %6984 = vmatpush1.bf16.msra.mxu0 %v6967
      %6985 = vmatprep.subr.bf16.mxu0 0
      %6986 = vmatpush2.bf16.msra.mxu0 0
      %6987 = vmatprep.subr.bf16.mxu0 0
      %6988 = vmatpush2.bf16.msra.mxu0 0
      %6989 = vmatprep.subr.bf16.mxu0 0
      %6990 = vmatpush2.bf16.msra.mxu0 0
      %6991 = vmatprep.subr.bf16.mxu0 0
      %6992 = vmatpush2.bf16.msra.mxu0 0
      %6993 = vmatprep.subr.bf16.mxu0 0
      %6994 = vmatpush2.bf16.msra.mxu0 0
      %6995 = vmatprep.subr.bf16.mxu0 0
      %6996 = vmatpush2.bf16.msra.mxu0 0
      %6997 = vmatprep.subr.bf16.mxu0 0
      %6998 = vmatpush2.bf16.msra.mxu0 0
      %6999 = vmatprep.subr.bf16.mxu0 0
      %7000 = vmatpush2.bf16.msra.mxu0 0
      %7001 = vmatprep.mubr.bf16.mxu0 0
      %7002 = vmatmul.mubr.bf16.gmra.mxu0 %v6871
      %v7003 = vpop.f32.mrf.mxu0
      %v7004 = vpop.f32.mrf.mxu0
      %v7005 = vpop.f32.mrf.mxu0
      %v7006 = vadd.f32 0.0, %v7005
      %v7007 = vpop.f32.mrf.mxu0
      %7008 = vmatprep.mubr.bf16.mxu0 0
      %7009 = vmatmul.mubr.bf16.gmra.mxu0 %v6874
      %v7010 = vpop.f32.mrf.mxu0
      %v7011 = vadd.f32 0.0, %v7010
      %v7012 = vpop.f32.mrf.mxu0
      %v7013 = vpop.f32.mrf.mxu0
      %v7014 = vpop.f32.mrf.mxu0
      %7015 = vmatprep.mubr.bf16.mxu0 0
      %7016 = vmatmul.mubr.bf16.gmra.mxu0 %v6877
      %v7017 = vpop.f32.mrf.mxu0
      %v7018 = vpop.f32.mrf.mxu0
      %v7019 = vpop.f32.mrf.mxu0
      %v7020 = vadd.f32 0.0, %v7019
      %v7021 = vpop.f32.mrf.mxu0
      %7022 = vmatprep.mubr.bf16.mxu0 0
      %7023 = vmatmul.mubr.bf16.gmra.mxu0 %v6880
      %v7024 = vpop.f32.mrf.mxu0
      %v7025 = vadd.f32 0.0, %v7024
      %v7026 = vpop.f32.mrf.mxu0
      %v7027 = vpop.f32.mrf.mxu0
      %v7028 = vpop.f32.mrf.mxu0
      %7029 = vmatprep.mubr.bf16.mxu0 0
      %7030 = vmatmul.mubr.bf16.gmra.mxu0 %v6883
      %v7031 = vpop.f32.mrf.mxu0
      %v7032 = vpop.f32.mrf.mxu0
      %v7033 = vpop.f32.mrf.mxu0
      %v7034 = vadd.f32 0.0, %v7033
      %v7035 = vpop.f32.mrf.mxu0
      %7036 = vmatprep.mubr.bf16.mxu0 0
      %7037 = vmatmul.mubr.bf16.gmra.mxu0 %v6886
      %v7038 = vpop.f32.mrf.mxu0
      %v7039 = vadd.f32 0.0, %v7038
      %v7040 = vpop.f32.mrf.mxu0
      %v7041 = vpop.f32.mrf.mxu0
      %v7042 = vpop.f32.mrf.mxu0
      %7043 = vmatprep.mubr.bf16.mxu0 0
      %7044 = vmatmul.mubr.bf16.gmra.mxu0 %v6889
      %v7045 = vpop.f32.mrf.mxu0
      %v7046 = vpop.f32.mrf.mxu0
      %v7047 = vpop.f32.mrf.mxu0
      %v7048 = vadd.f32 0.0, %v7047
      %v7049 = vpop.f32.mrf.mxu0
      %7050 = vmatprep.mubr.bf16.mxu0 0
      %7051 = vmatmul.mubr.bf16.gmra.mxu0 %v6892
      %v7052 = vpop.f32.mrf.mxu0
      %v7053 = vadd.f32 0.0, %v7052
      %v7054 = vpop.f32.mrf.mxu0
      %v7055 = vpop.f32.mrf.mxu0
      %v7056 = vpop.f32.mrf.mxu0
      %7057 = vmatprep.mubr.bf16.mxu0 0
      %7058 = vmatmul.mubr.bf16.gmra.mxu0 %v6895
      %v7059 = vpop.f32.mrf.mxu0
      %v7060 = vpop.f32.mrf.mxu0
      %v7061 = vpop.f32.mrf.mxu0
      %v7062 = vadd.f32 0.0, %v7061
      %v7063 = vpop.f32.mrf.mxu0
      %7064 = vmatprep.mubr.bf16.mxu0 0
      %7065 = vmatmul.mubr.bf16.gmra.mxu0 %v6898
      %v7066 = vpop.f32.mrf.mxu0
      %v7067 = vadd.f32 0.0, %v7066
      %v7068 = vpop.f32.mrf.mxu0
      %v7069 = vpop.f32.mrf.mxu0
      %v7070 = vpop.f32.mrf.mxu0
      %7071 = vmatprep.mubr.bf16.mxu0 0
      %7072 = vmatmul.mubr.bf16.gmra.mxu0 %v6901
      %v7073 = vpop.f32.mrf.mxu0
      %v7074 = vpop.f32.mrf.mxu0
      %v7075 = vpop.f32.mrf.mxu0
      %v7076 = vadd.f32 0.0, %v7075
      %v7077 = vpop.f32.mrf.mxu0
      %7078 = vmatprep.mubr.bf16.mxu0 0
      %7079 = vmatmul.mubr.bf16.gmra.mxu0 %v6904
      %v7080 = vpop.f32.mrf.mxu0
      %v7081 = vadd.f32 0.0, %v7080
      %v7082 = vpop.f32.mrf.mxu0
      %v7083 = vpop.f32.mrf.mxu0
      %v7084 = vpop.f32.mrf.mxu0
      %7085 = vmatprep.mubr.bf16.mxu0 0
      %7086 = vmatmul.mubr.bf16.gmra.mxu0 %v6907
      %v7087 = vpop.f32.mrf.mxu0
      %v7088 = vpop.f32.mrf.mxu0
      %v7089 = vpop.f32.mrf.mxu0
      %v7090 = vadd.f32 0.0, %v7089
      %v7091 = vpop.f32.mrf.mxu0
      %7092 = vmatprep.mubr.bf16.mxu0 0
      %7093 = vmatmul.mubr.bf16.gmra.mxu0 %v6910
      %v7094 = vpop.f32.mrf.mxu0
      %v7095 = vadd.f32 0.0, %v7094
      %v7096 = vpop.f32.mrf.mxu0
      %v7097 = vpop.f32.mrf.mxu0
      %v7098 = vpop.f32.mrf.mxu0
      %7099 = vmatprep.mubr.bf16.mxu0 0
      %7100 = vmatmul.mubr.bf16.gmra.mxu0 %v6913
      %v7101 = vpop.f32.mrf.mxu0
      %v7102 = vpop.f32.mrf.mxu0
      %v7103 = vpop.f32.mrf.mxu0
      %v7104 = vadd.f32 0.0, %v7103
      %v7105 = vpop.f32.mrf.mxu0
      %7106 = vmatprep.mubr.bf16.mxu0 0
      %7107 = vmatmul.mubr.bf16.gmra.mxu0 %v6916
      %v7108 = vpop.f32.mrf.mxu0
      %v7109 = vadd.f32 0.0, %v7108
      %v7110 = vpop.f32.mrf.mxu0
      %v7111 = vpop.f32.mrf.mxu0
      %v7112 = vpop.f32.mrf.mxu0
      %7113 = vmatprep.mubr.bf16.mxu0 0
      %7114 = vmatmul.mubr.bf16.gmra.mxu0 %v6919
      %v7115 = vpop.f32.mrf.mxu0
      %v7116 = vpop.f32.mrf.mxu0
      %v7117 = vpop.f32.mrf.mxu0
      %v7118 = vadd.f32 0.0, %v7117
      %v7119 = vpop.f32.mrf.mxu0
      %7120 = vmatprep.mubr.bf16.mxu0 0
      %7121 = vmatmul.mubr.bf16.gmra.mxu0 %v6922
      %v7122 = vpop.f32.mrf.mxu0
      %v7123 = vadd.f32 0.0, %v7122
      %v7124 = vpop.f32.mrf.mxu0
      %v7125 = vpop.f32.mrf.mxu0
      %v7126 = vpop.f32.mrf.mxu0
      %7127 = vmatprep.mubr.bf16.mxu0 0
      %7128 = vmatmul.mubr.bf16.gmra.mxu0 %v6925
      %v7129 = vpop.f32.mrf.mxu0
      %v7130 = vpop.f32.mrf.mxu0
      %v7131 = vpop.f32.mrf.mxu0
      %v7132 = vadd.f32 0.0, %v7131
      %v7133 = vpop.f32.mrf.mxu0
      %7134 = vmatprep.mubr.bf16.mxu0 0
      %7135 = vmatmul.mubr.bf16.gmra.mxu0 %v6928
      %v7136 = vpop.f32.mrf.mxu0
      %v7137 = vadd.f32 0.0, %v7136
      %v7138 = vpop.f32.mrf.mxu0
      %v7139 = vpop.f32.mrf.mxu0
      %v7140 = vpop.f32.mrf.mxu0
      %7141 = vmatprep.mubr.bf16.mxu0 0
      %7142 = vmatmul.mubr.bf16.gmra.mxu0 %v6931
      %v7143 = vpop.f32.mrf.mxu0
      %v7144 = vpop.f32.mrf.mxu0
      %v7145 = vpop.f32.mrf.mxu0
      %v7146 = vadd.f32 0.0, %v7145
      %v7147 = vpop.f32.mrf.mxu0
      %7148 = vmatprep.mubr.bf16.mxu0 0
      %7149 = vmatmul.mubr.bf16.gmra.mxu0 %v6934
      %v7150 = vpop.f32.mrf.mxu0
      %v7151 = vadd.f32 0.0, %v7150
      %v7152 = vpop.f32.mrf.mxu0
      %v7153 = vpop.f32.mrf.mxu0
      %v7154 = vpop.f32.mrf.mxu0
      %7155 = vmatprep.mubr.bf16.mxu0 0
      %7156 = vmatmul.mubr.bf16.gmra.mxu0 %v6937
      %v7157 = vpop.f32.mrf.mxu0
      %v7158 = vpop.f32.mrf.mxu0
      %v7159 = vpop.f32.mrf.mxu0
      %v7160 = vadd.f32 0.0, %v7159
      %v7161 = vpop.f32.mrf.mxu0
      %7162 = vmatprep.mubr.bf16.mxu0 0
      %7163 = vmatmul.mubr.bf16.gmra.mxu0 %v6940
      %v7164 = vpop.f32.mrf.mxu0
      %v7165 = vadd.f32 0.0, %v7164
      %v7166 = vpop.f32.mrf.mxu0
      %v7167 = vpop.f32.mrf.mxu0
      %v7168 = vpop.f32.mrf.mxu0
      %7169 = vmatprep.mubr.bf16.mxu0 0
      %7170 = vmatmul.mubr.bf16.gmra.mxu0 %v6943
      %v7171 = vpop.f32.mrf.mxu0
      %v7172 = vpop.f32.mrf.mxu0
      %v7173 = vpop.f32.mrf.mxu0
      %v7174 = vadd.f32 0.0, %v7173
      %v7175 = vpop.f32.mrf.mxu0
      %7176 = vmatprep.mubr.bf16.mxu0 0
      %7177 = vmatmul.mubr.bf16.gmra.mxu0 %v6946
      %v7178 = vpop.f32.mrf.mxu0
      %v7179 = vadd.f32 0.0, %v7178
      %v7180 = vpop.f32.mrf.mxu0
      %v7181 = vpop.f32.mrf.mxu0
      %v7182 = vpop.f32.mrf.mxu0
      %7183 = vmatprep.mubr.bf16.mxu0 0
      %7184 = vmatmul.mubr.bf16.gmra.mxu0 %v6949
      %v7185 = vpop.f32.mrf.mxu0
      %v7186 = vpop.f32.mrf.mxu0
      %v7187 = vpop.f32.mrf.mxu0
      %v7188 = vadd.f32 0.0, %v7187
      %v7189 = vpop.f32.mrf.mxu0
      %7190 = vmatprep.mubr.bf16.mxu0 0
      %7191 = vmatmul.mubr.bf16.gmra.mxu0 %v6952
      %v7192 = vpop.f32.mrf.mxu0
      %v7193 = vadd.f32 0.0, %v7192
      %v7194 = vpop.f32.mrf.mxu0
      %v7195 = vpop.f32.mrf.mxu0
      %v7196 = vpop.f32.mrf.mxu0
      %7197 = vmatprep.mubr.bf16.mxu0 0
      %7198 = vmatmul.mubr.bf16.gmra.mxu0 %v6955
      %v7199 = vpop.f32.mrf.mxu0
      %v7200 = vpop.f32.mrf.mxu0
      %v7201 = vpop.f32.mrf.mxu0
      %v7202 = vadd.f32 0.0, %v7201
      %v7203 = vpop.f32.mrf.mxu0
      %7204 = vmatprep.mubr.bf16.mxu0 0
      %7205 = vmatmul.mubr.bf16.gmra.mxu0 %v6958
      %v7206 = vpop.f32.mrf.mxu0
      %v7207 = vadd.f32 0.0, %v7206
      %v7208 = vpop.f32.mrf.mxu0
      %v7209 = vpop.f32.mrf.mxu0
      %v7210 = vpop.f32.mrf.mxu0
      %7211 = vmatprep.mubr.bf16.mxu0 0
      %7212 = vmatmul.mubr.bf16.gmra.mxu0 %v6961
      %v7213 = vpop.f32.mrf.mxu0
      %v7214 = vpop.f32.mrf.mxu0
      %v7215 = vpop.f32.mrf.mxu0
      %v7216 = vadd.f32 0.0, %v7215
      %v7217 = vpop.f32.mrf.mxu0
      %7218 = vmatprep.mubr.bf16.mxu0 0
      %7219 = vmatmul.mubr.bf16.gmra.mxu0 %v6964
      %v7220 = vpop.f32.mrf.mxu0
      %v7221 = vadd.f32 0.0, %v7220
      %v7222 = vpop.f32.mrf.mxu0
      %v7223 = vpop.f32.mrf.mxu0
      %v7224 = vpop.f32.mrf.mxu0
      %7225 = vdwg.mxu0
      %v7228 = vunpack.c.l.b16 %v5867
      %v7229 = vunpack.c.l.b16 %v5868
      %v7230 = vpack.c.b16 %v7229, %v7228
      %v7232 = vsel %vm2418, %v5833, 0
      %v7235 = vsel %vm2418, %v5834, 0
      %v7238 = vsel %vm2418, %v5835, 0
      %v7241 = vsel %vm2418, %v5836, 0
      %v7244 = vsel %vm2418, %v5837, 0
      %v7247 = vsel %vm2418, %v5838, 0
      %v7250 = vsel %vm2418, %v5839, 0
      %v7253 = vsel %vm2418, %v5840, 0
      %v7256 = vsel %vm2418, %v5841, 0
      %v7259 = vsel %vm2418, %v5842, 0
      %v7262 = vsel %vm2418, %v5843, 0
      %v7265 = vsel %vm2418, %v5844, 0
      %v7268 = vsel %vm2418, %v5845, 0
      %v7271 = vsel %vm2418, %v5846, 0
      %v7274 = vsel %vm2418, %v5847, 0
      %v7277 = vsel %vm2418, %v5848, 0
      %v7280 = vsel %vm2418, %v5849, 0
      %v7283 = vsel %vm2418, %v5850, 0
      %v7286 = vsel %vm2418, %v5851, 0
      %v7289 = vsel %vm2418, %v5852, 0
      %v7292 = vsel %vm2418, %v5853, 0
      %v7295 = vsel %vm2418, %v5854, 0
      %v7298 = vsel %vm2418, %v5855, 0
      %v7301 = vsel %vm2418, %v5856, 0
      %v7304 = vsel %vm2418, %v5857, 0
      %v7307 = vsel %vm2418, %v5858, 0
      %v7310 = vsel %vm2418, %v5859, 0
      %v7313 = vsel %vm2418, %v5860, 0
      %v7316 = vsel %vm2418, %v5861, 0
      %v7319 = vsel %vm2418, %v5862, 0
      %v7322 = vsel %vm2418, %v5863, 0
      %v7325 = vsel %vm2418, %v5864, 0
      %v7328 = vsel %vm2515, %v7230, 0
      %7330 = vmatprep.subr.bf16.mxu0 0
      %7331 = vmatpush1.bf16.msra.mxu0 0
      %7332 = vmatprep.subr.bf16.mxu0 0
      %7333 = vmatpush1.bf16.msra.mxu0 0
      %7334 = vmatprep.subr.bf16.mxu0 0
      %7335 = vmatpush1.bf16.msra.mxu0 0
      %7336 = vmatprep.subr.bf16.mxu0 0
      %7337 = vmatpush1.bf16.msra.mxu0 0
      %7338 = vmatprep.subr.bf16.mxu0 0
      %7339 = vmatpush1.bf16.msra.mxu0 0
      %7340 = vmatprep.subr.bf16.mxu0 0
      %7341 = vmatpush1.bf16.msra.mxu0 0
      %7342 = vmatprep.subr.bf16.mxu0 0
      %7343 = vmatpush1.bf16.msra.mxu0 0
      %7344 = vmatprep.subr.bf16.mxu0 0
      %7345 = vmatpush1.bf16.msra.mxu0 %v7328
      %7346 = vmatprep.subr.bf16.mxu0 0
      %7347 = vmatpush2.bf16.msra.mxu0 0
      %7348 = vmatprep.subr.bf16.mxu0 0
      %7349 = vmatpush2.bf16.msra.mxu0 0
      %7350 = vmatprep.subr.bf16.mxu0 0
      %7351 = vmatpush2.bf16.msra.mxu0 0
      %7352 = vmatprep.subr.bf16.mxu0 0
      %7353 = vmatpush2.bf16.msra.mxu0 0
      %7354 = vmatprep.subr.bf16.mxu0 0
      %7355 = vmatpush2.bf16.msra.mxu0 0
      %7356 = vmatprep.subr.bf16.mxu0 0
      %7357 = vmatpush2.bf16.msra.mxu0 0
      %7358 = vmatprep.subr.bf16.mxu0 0
      %7359 = vmatpush2.bf16.msra.mxu0 0
      %7360 = vmatprep.subr.bf16.mxu0 0
      %7361 = vmatpush2.bf16.msra.mxu0 0
      %7362 = vmatprep.mubr.bf16.mxu0 0
      %7363 = vmatmul.mubr.bf16.gmra.mxu0 %v7232
      %v7364 = vpop.f32.mrf.mxu0
      %v7365 = vpop.f32.mrf.mxu0
      %v7366 = vpop.f32.mrf.mxu0
      %v7367 = vadd.f32 %v7006, %v7366
      %v7368 = vpop.f32.mrf.mxu0
      %7369 = vmatprep.mubr.bf16.mxu0 0
      %7370 = vmatmul.mubr.bf16.gmra.mxu0 %v7235
      %v7371 = vpop.f32.mrf.mxu0
      %v7372 = vadd.f32 %v7011, %v7371
      %v7373 = vpop.f32.mrf.mxu0
      %v7374 = vpop.f32.mrf.mxu0
      %v7375 = vpop.f32.mrf.mxu0
      %7376 = vmatprep.mubr.bf16.mxu0 0
      %7377 = vmatmul.mubr.bf16.gmra.mxu0 %v7238
      %v7378 = vpop.f32.mrf.mxu0
      %v7379 = vpop.f32.mrf.mxu0
      %v7380 = vpop.f32.mrf.mxu0
      %v7381 = vadd.f32 %v7020, %v7380
      %v7382 = vpop.f32.mrf.mxu0
      %7383 = vmatprep.mubr.bf16.mxu0 0
      %7384 = vmatmul.mubr.bf16.gmra.mxu0 %v7241
      %v7385 = vpop.f32.mrf.mxu0
      %v7386 = vadd.f32 %v7025, %v7385
      %v7387 = vpop.f32.mrf.mxu0
      %v7388 = vpop.f32.mrf.mxu0
      %v7389 = vpop.f32.mrf.mxu0
      %7390 = vmatprep.mubr.bf16.mxu0 0
      %7391 = vmatmul.mubr.bf16.gmra.mxu0 %v7244
      %v7392 = vpop.f32.mrf.mxu0
      %v7393 = vpop.f32.mrf.mxu0
      %v7394 = vpop.f32.mrf.mxu0
      %v7395 = vadd.f32 %v7034, %v7394
      %v7396 = vpop.f32.mrf.mxu0
      %7397 = vmatprep.mubr.bf16.mxu0 0
      %7398 = vmatmul.mubr.bf16.gmra.mxu0 %v7247
      %v7399 = vpop.f32.mrf.mxu0
      %v7400 = vadd.f32 %v7039, %v7399
      %v7401 = vpop.f32.mrf.mxu0
      %v7402 = vpop.f32.mrf.mxu0
      %v7403 = vpop.f32.mrf.mxu0
      %7404 = vmatprep.mubr.bf16.mxu0 0
      %7405 = vmatmul.mubr.bf16.gmra.mxu0 %v7250
      %v7406 = vpop.f32.mrf.mxu0
      %v7407 = vpop.f32.mrf.mxu0
      %v7408 = vpop.f32.mrf.mxu0
      %v7409 = vadd.f32 %v7048, %v7408
      %v7410 = vpop.f32.mrf.mxu0
      %7411 = vmatprep.mubr.bf16.mxu0 0
      %7412 = vmatmul.mubr.bf16.gmra.mxu0 %v7253
      %v7413 = vpop.f32.mrf.mxu0
      %v7414 = vadd.f32 %v7053, %v7413
      %v7415 = vpop.f32.mrf.mxu0
      %v7416 = vpop.f32.mrf.mxu0
      %v7417 = vpop.f32.mrf.mxu0
      %7418 = vmatprep.mubr.bf16.mxu0 0
      %7419 = vmatmul.mubr.bf16.gmra.mxu0 %v7256
      %v7420 = vpop.f32.mrf.mxu0
      %v7421 = vpop.f32.mrf.mxu0
      %v7422 = vpop.f32.mrf.mxu0
      %v7423 = vadd.f32 %v7062, %v7422
      %v7424 = vpop.f32.mrf.mxu0
      %7425 = vmatprep.mubr.bf16.mxu0 0
      %7426 = vmatmul.mubr.bf16.gmra.mxu0 %v7259
      %v7427 = vpop.f32.mrf.mxu0
      %v7428 = vadd.f32 %v7067, %v7427
      %v7429 = vpop.f32.mrf.mxu0
      %v7430 = vpop.f32.mrf.mxu0
      %v7431 = vpop.f32.mrf.mxu0
      %7432 = vmatprep.mubr.bf16.mxu0 0
      %7433 = vmatmul.mubr.bf16.gmra.mxu0 %v7262
      %v7434 = vpop.f32.mrf.mxu0
      %v7435 = vpop.f32.mrf.mxu0
      %v7436 = vpop.f32.mrf.mxu0
      %v7437 = vadd.f32 %v7076, %v7436
      %v7438 = vpop.f32.mrf.mxu0
      %7439 = vmatprep.mubr.bf16.mxu0 0
      %7440 = vmatmul.mubr.bf16.gmra.mxu0 %v7265
      %v7441 = vpop.f32.mrf.mxu0
      %v7442 = vadd.f32 %v7081, %v7441
      %v7443 = vpop.f32.mrf.mxu0
      %v7444 = vpop.f32.mrf.mxu0
      %v7445 = vpop.f32.mrf.mxu0
      %7446 = vmatprep.mubr.bf16.mxu0 0
      %7447 = vmatmul.mubr.bf16.gmra.mxu0 %v7268
      %v7448 = vpop.f32.mrf.mxu0
      %v7449 = vpop.f32.mrf.mxu0
      %v7450 = vpop.f32.mrf.mxu0
      %v7451 = vadd.f32 %v7090, %v7450
      %v7452 = vpop.f32.mrf.mxu0
      %7453 = vmatprep.mubr.bf16.mxu0 0
      %7454 = vmatmul.mubr.bf16.gmra.mxu0 %v7271
      %v7455 = vpop.f32.mrf.mxu0
      %v7456 = vadd.f32 %v7095, %v7455
      %v7457 = vpop.f32.mrf.mxu0
      %v7458 = vpop.f32.mrf.mxu0
      %v7459 = vpop.f32.mrf.mxu0
      %7460 = vmatprep.mubr.bf16.mxu0 0
      %7461 = vmatmul.mubr.bf16.gmra.mxu0 %v7274
      %v7462 = vpop.f32.mrf.mxu0
      %v7463 = vpop.f32.mrf.mxu0
      %v7464 = vpop.f32.mrf.mxu0
      %v7465 = vadd.f32 %v7104, %v7464
      %v7466 = vpop.f32.mrf.mxu0
      %7467 = vmatprep.mubr.bf16.mxu0 0
      %7468 = vmatmul.mubr.bf16.gmra.mxu0 %v7277
      %v7469 = vpop.f32.mrf.mxu0
      %v7470 = vadd.f32 %v7109, %v7469
      %v7471 = vpop.f32.mrf.mxu0
      %v7472 = vpop.f32.mrf.mxu0
      %v7473 = vpop.f32.mrf.mxu0
      %7474 = vmatprep.mubr.bf16.mxu0 0
      %7475 = vmatmul.mubr.bf16.gmra.mxu0 %v7280
      %v7476 = vpop.f32.mrf.mxu0
      %v7477 = vpop.f32.mrf.mxu0
      %v7478 = vpop.f32.mrf.mxu0
      %v7479 = vadd.f32 %v7118, %v7478
      %v7480 = vpop.f32.mrf.mxu0
      %7481 = vmatprep.mubr.bf16.mxu0 0
      %7482 = vmatmul.mubr.bf16.gmra.mxu0 %v7283
      %v7483 = vpop.f32.mrf.mxu0
      %v7484 = vadd.f32 %v7123, %v7483
      %v7485 = vpop.f32.mrf.mxu0
      %v7486 = vpop.f32.mrf.mxu0
      %v7487 = vpop.f32.mrf.mxu0
      %7488 = vmatprep.mubr.bf16.mxu0 0
      %7489 = vmatmul.mubr.bf16.gmra.mxu0 %v7286
      %v7490 = vpop.f32.mrf.mxu0
      %v7491 = vpop.f32.mrf.mxu0
      %v7492 = vpop.f32.mrf.mxu0
      %v7493 = vadd.f32 %v7132, %v7492
      %v7494 = vpop.f32.mrf.mxu0
      %7495 = vmatprep.mubr.bf16.mxu0 0
      %7496 = vmatmul.mubr.bf16.gmra.mxu0 %v7289
      %v7497 = vpop.f32.mrf.mxu0
      %v7498 = vadd.f32 %v7137, %v7497
      %v7499 = vpop.f32.mrf.mxu0
      %v7500 = vpop.f32.mrf.mxu0
      %v7501 = vpop.f32.mrf.mxu0
      %7502 = vmatprep.mubr.bf16.mxu0 0
      %7503 = vmatmul.mubr.bf16.gmra.mxu0 %v7292
      %v7504 = vpop.f32.mrf.mxu0
      %v7505 = vpop.f32.mrf.mxu0
      %v7506 = vpop.f32.mrf.mxu0
      %v7507 = vadd.f32 %v7146, %v7506
      %v7508 = vpop.f32.mrf.mxu0
      %7509 = vmatprep.mubr.bf16.mxu0 0
      %7510 = vmatmul.mubr.bf16.gmra.mxu0 %v7295
      %v7511 = vpop.f32.mrf.mxu0
      %v7512 = vadd.f32 %v7151, %v7511
      %v7513 = vpop.f32.mrf.mxu0
      %v7514 = vpop.f32.mrf.mxu0
      %v7515 = vpop.f32.mrf.mxu0
      %7516 = vmatprep.mubr.bf16.mxu0 0
      %7517 = vmatmul.mubr.bf16.gmra.mxu0 %v7298
      %v7518 = vpop.f32.mrf.mxu0
      %v7519 = vpop.f32.mrf.mxu0
      %v7520 = vpop.f32.mrf.mxu0
      %v7521 = vadd.f32 %v7160, %v7520
      %v7522 = vpop.f32.mrf.mxu0
      %7523 = vmatprep.mubr.bf16.mxu0 0
      %7524 = vmatmul.mubr.bf16.gmra.mxu0 %v7301
      %v7525 = vpop.f32.mrf.mxu0
      %v7526 = vadd.f32 %v7165, %v7525
      %v7527 = vpop.f32.mrf.mxu0
      %v7528 = vpop.f32.mrf.mxu0
      %v7529 = vpop.f32.mrf.mxu0
      %7530 = vmatprep.mubr.bf16.mxu0 0
      %7531 = vmatmul.mubr.bf16.gmra.mxu0 %v7304
      %v7532 = vpop.f32.mrf.mxu0
      %v7533 = vpop.f32.mrf.mxu0
      %v7534 = vpop.f32.mrf.mxu0
      %v7535 = vadd.f32 %v7174, %v7534
      %v7536 = vpop.f32.mrf.mxu0
      %7537 = vmatprep.mubr.bf16.mxu0 0
      %7538 = vmatmul.mubr.bf16.gmra.mxu0 %v7307
      %v7539 = vpop.f32.mrf.mxu0
      %v7540 = vadd.f32 %v7179, %v7539
      %v7541 = vpop.f32.mrf.mxu0
      %v7542 = vpop.f32.mrf.mxu0
      %v7543 = vpop.f32.mrf.mxu0
      %7544 = vmatprep.mubr.bf16.mxu0 0
      %7545 = vmatmul.mubr.bf16.gmra.mxu0 %v7310
      %v7546 = vpop.f32.mrf.mxu0
      %v7547 = vpop.f32.mrf.mxu0
      %v7548 = vpop.f32.mrf.mxu0
      %v7549 = vadd.f32 %v7188, %v7548
      %v7550 = vpop.f32.mrf.mxu0
      %7551 = vmatprep.mubr.bf16.mxu0 0
      %7552 = vmatmul.mubr.bf16.gmra.mxu0 %v7313
      %v7553 = vpop.f32.mrf.mxu0
      %v7554 = vadd.f32 %v7193, %v7553
      %v7555 = vpop.f32.mrf.mxu0
      %v7556 = vpop.f32.mrf.mxu0
      %v7557 = vpop.f32.mrf.mxu0
      %7558 = vmatprep.mubr.bf16.mxu0 0
      %7559 = vmatmul.mubr.bf16.gmra.mxu0 %v7316
      %v7560 = vpop.f32.mrf.mxu0
      %v7561 = vpop.f32.mrf.mxu0
      %v7562 = vpop.f32.mrf.mxu0
      %v7563 = vadd.f32 %v7202, %v7562
      %v7564 = vpop.f32.mrf.mxu0
      %7565 = vmatprep.mubr.bf16.mxu0 0
      %7566 = vmatmul.mubr.bf16.gmra.mxu0 %v7319
      %v7567 = vpop.f32.mrf.mxu0
      %v7568 = vadd.f32 %v7207, %v7567
      %v7569 = vpop.f32.mrf.mxu0
      %v7570 = vpop.f32.mrf.mxu0
      %v7571 = vpop.f32.mrf.mxu0
      %7572 = vmatprep.mubr.bf16.mxu0 0
      %7573 = vmatmul.mubr.bf16.gmra.mxu0 %v7322
      %v7574 = vpop.f32.mrf.mxu0
      %v7575 = vpop.f32.mrf.mxu0
      %v7576 = vpop.f32.mrf.mxu0
      %v7577 = vadd.f32 %v7216, %v7576
      %v7578 = vpop.f32.mrf.mxu0
      %7579 = vmatprep.mubr.bf16.mxu0 0
      %7580 = vmatmul.mubr.bf16.gmra.mxu0 %v7325
      %v7581 = vpop.f32.mrf.mxu0
      %v7582 = vadd.f32 %v7221, %v7581
      %v7583 = vpop.f32.mrf.mxu0
      %v7584 = vpop.f32.mrf.mxu0
      %v7585 = vpop.f32.mrf.mxu0
      %7586 = vdwg.mxu0
      %v7587 = vld [vmem:[%s3137] sm:$0xff]
      %v7588 = vld [vmem:[%s3137 + $0x8] sm:$0xff]
      %v7589 = vld [vmem:[%s3137 + $0x10] sm:$0xff]
      %v7590 = vld [vmem:[%s3137 + $0x18] sm:$0xff]
      %v7591 = vld [vmem:[%s3137 + $0x20] sm:$0xff]
      %v7592 = vld [vmem:[%s3137 + $0x28] sm:$0xff]
      %v7593 = vld [vmem:[%s3137 + $0x30] sm:$0xff]
      %v7594 = vld [vmem:[%s3137 + $0x38] sm:$0xff]
      %v7595 = vld [vmem:[%s3137 + $0x40] sm:$0xff]
      %v7596 = vld [vmem:[%s3137 + $0x48] sm:$0xff]
      %v7597 = vld [vmem:[%s3137 + $0x50] sm:$0xff]
      %v7598 = vld [vmem:[%s3137 + $0x58] sm:$0xff]
      %v7599 = vld [vmem:[%s3137 + $0x60] sm:$0xff]
      %v7600 = vld [vmem:[%s3137 + $0x68] sm:$0xff]
      %v7601 = vld [vmem:[%s3137 + $0x70] sm:$0xff]
      %v7602 = vld [vmem:[%s3137 + $0x78] sm:$0xff]
      %v7603 = vld [vmem:[%s3137 + $0x80] sm:$0xff]
      %v7604 = vld [vmem:[%s3137 + $0x88] sm:$0xff]
      %v7605 = vld [vmem:[%s3137 + $0x90] sm:$0xff]
      %v7606 = vld [vmem:[%s3137 + $0x98] sm:$0xff]
      %v7607 = vld [vmem:[%s3137 + $0xa0] sm:$0xff]
      %v7608 = vld [vmem:[%s3137 + $0xa8] sm:$0xff]
      %v7609 = vld [vmem:[%s3137 + $0xb0] sm:$0xff]
      %v7610 = vld [vmem:[%s3137 + $0xb8] sm:$0xff]
      %v7611 = vld [vmem:[%s3137 + $0xc0] sm:$0xff]
      %v7612 = vld [vmem:[%s3137 + $0xc8] sm:$0xff]
      %v7613 = vld [vmem:[%s3137 + $0xd0] sm:$0xff]
      %v7614 = vld [vmem:[%s3137 + $0xd8] sm:$0xff]
      %v7615 = vld [vmem:[%s3137 + $0xe0] sm:$0xff]
      %v7616 = vld [vmem:[%s3137 + $0xe8] sm:$0xff]
      %v7617 = vld [vmem:[%s3137 + $0xf0] sm:$0xff]
      %v7618 = vld [vmem:[%s3137 + $0xf8] sm:$0xff]
      %v7619 = vld [vmem:[%s3137 + $0x100] sm:$0xff]
      %v7620 = vld [vmem:[%s3137 + $0x108] sm:$0xff]
      %v7621 = vld [vmem:[%s3137 + $0x110] sm:$0xff]
      %v7622 = vld [vmem:[%s3137 + $0x118] sm:$0xff]
      %v7623 = vld [vmem:[%s3137 + $0x120] sm:$0xff]
      %v7624 = vld [vmem:[%s3137 + $0x128] sm:$0xff]
      %v7625 = vld [vmem:[%s3137 + $0x130] sm:$0xff]
      %v7626 = vld [vmem:[%s3137 + $0x138] sm:$0xff]
      %v7627 = vld [vmem:[%s3137 + $0x140] sm:$0xff]
      %v7628 = vld [vmem:[%s3137 + $0x148] sm:$0xff]
      %v7629 = vld [vmem:[%s3137 + $0x150] sm:$0xff]
      %v7630 = vld [vmem:[%s3137 + $0x158] sm:$0xff]
      %v7631 = vld [vmem:[%s3137 + $0x160] sm:$0xff]
      %v7632 = vld [vmem:[%s3137 + $0x168] sm:$0xff]
      %v7633 = vld [vmem:[%s3137 + $0x170] sm:$0xff]
      %v7634 = vld [vmem:[%s3137 + $0x178] sm:$0xff]
      %v7635 = vld [vmem:[%s3137 + $0x180] sm:$0xff]
      %v7636 = vld [vmem:[%s3137 + $0x188] sm:$0xff]
      %v7637 = vld [vmem:[%s3137 + $0x190] sm:$0xff]
      %v7638 = vld [vmem:[%s3137 + $0x198] sm:$0xff]
      %v7639 = vld [vmem:[%s3137 + $0x1a0] sm:$0xff]
      %v7640 = vld [vmem:[%s3137 + $0x1a8] sm:$0xff]
      %v7641 = vld [vmem:[%s3137 + $0x1b0] sm:$0xff]
      %v7642 = vld [vmem:[%s3137 + $0x1b8] sm:$0xff]
      %v7643 = vld [vmem:[%s3137 + $0x1c0] sm:$0xff]
      %v7644 = vld [vmem:[%s3137 + $0x1c8] sm:$0xff]
      %v7645 = vld [vmem:[%s3137 + $0x1d0] sm:$0xff]
      %v7646 = vld [vmem:[%s3137 + $0x1d8] sm:$0xff]
      %v7647 = vld [vmem:[%s3137 + $0x1e0] sm:$0xff]
      %v7648 = vld [vmem:[%s3137 + $0x1e8] sm:$0xff]
      %v7649 = vld [vmem:[%s3137 + $0x1f0] sm:$0xff]
      %v7650 = vld [vmem:[%s3137 + $0x1f8] sm:$0xff]
      %v7651 = vrot.slane %v7587, 7
      %v7652 = vrot.slane %v7588, 7
      %v7653 = vrot.slane %v7589, 7
      %v7654 = vrot.slane %v7590, 7
      %v7655 = vrot.slane %v7591, 7
      %v7656 = vrot.slane %v7592, 7
      %v7657 = vrot.slane %v7593, 7
      %v7658 = vrot.slane %v7594, 7
      %v7659 = vrot.slane %v7595, 7
      %v7660 = vrot.slane %v7596, 7
      %v7661 = vrot.slane %v7597, 7
      %v7662 = vrot.slane %v7598, 7
      %v7663 = vrot.slane %v7599, 7
      %v7664 = vrot.slane %v7600, 7
      %v7665 = vrot.slane %v7601, 7
      %v7666 = vrot.slane %v7602, 7
      %v7667 = vrot.slane %v7603, 7
      %v7668 = vrot.slane %v7604, 7
      %v7669 = vrot.slane %v7605, 7
      %v7670 = vrot.slane %v7606, 7
      %v7671 = vrot.slane %v7607, 7
      %v7672 = vrot.slane %v7608, 7
      %v7673 = vrot.slane %v7609, 7
      %v7674 = vrot.slane %v7610, 7
      %v7675 = vrot.slane %v7611, 7
      %v7676 = vrot.slane %v7612, 7
      %v7677 = vrot.slane %v7613, 7
      %v7678 = vrot.slane %v7614, 7
      %v7679 = vrot.slane %v7615, 7
      %v7680 = vrot.slane %v7616, 7
      %v7681 = vrot.slane %v7617, 7
      %v7682 = vrot.slane %v7618, 7
      %v7683 = vrot.slane %v7619, 7
      %v7684 = vrot.slane %v7620, 7
      %v7685 = vrot.slane %v7621, 7
      %v7686 = vrot.slane %v7622, 7
      %v7687 = vrot.slane %v7623, 7
      %v7688 = vrot.slane %v7624, 7
      %v7689 = vrot.slane %v7625, 7
      %v7690 = vrot.slane %v7626, 7
      %v7691 = vrot.slane %v7627, 7
      %v7692 = vrot.slane %v7628, 7
      %v7693 = vrot.slane %v7629, 7
      %v7694 = vrot.slane %v7630, 7
      %v7695 = vrot.slane %v7631, 7
      %v7696 = vrot.slane %v7632, 7
      %v7697 = vrot.slane %v7633, 7
      %v7698 = vrot.slane %v7634, 7
      %v7699 = vrot.slane %v7635, 7
      %v7700 = vrot.slane %v7636, 7
      %v7701 = vrot.slane %v7637, 7
      %v7702 = vrot.slane %v7638, 7
      %v7703 = vrot.slane %v7639, 7
      %v7704 = vrot.slane %v7640, 7
      %v7705 = vrot.slane %v7641, 7
      %v7706 = vrot.slane %v7642, 7
      %v7707 = vrot.slane %v7643, 7
      %v7708 = vrot.slane %v7644, 7
      %v7709 = vrot.slane %v7645, 7
      %v7710 = vrot.slane %v7646, 7
      %v7711 = vrot.slane %v7647, 7
      %v7712 = vrot.slane %v7648, 7
      %v7713 = vrot.slane %v7649, 7
      %v7714 = vrot.slane %v7650, 7
      %v7715 = vsel %vm543, %v7713, %v7714
      %v7716 = vsel %vm543, %v7712, %v7713
      %v7717 = vsel %vm543, %v7711, %v7712
      %v7718 = vsel %vm543, %v7710, %v7711
      %v7719 = vsel %vm543, %v7709, %v7710
      %v7720 = vsel %vm543, %v7708, %v7709
      %v7721 = vsel %vm543, %v7707, %v7708
      %v7722 = vsel %vm543, %v7706, %v7707
      %v7723 = vsel %vm543, %v7705, %v7706
      %v7724 = vsel %vm543, %v7704, %v7705
      %v7725 = vsel %vm543, %v7703, %v7704
      %v7726 = vsel %vm543, %v7702, %v7703
      %v7727 = vsel %vm543, %v7701, %v7702
      %v7728 = vsel %vm543, %v7700, %v7701
      %v7729 = vsel %vm543, %v7699, %v7700
      %v7730 = vsel %vm543, %v7698, %v7699
      %v7731 = vsel %vm543, %v7697, %v7698
      %v7732 = vsel %vm543, %v7696, %v7697
      %v7733 = vsel %vm543, %v7695, %v7696
      %v7734 = vsel %vm543, %v7694, %v7695
      %v7735 = vsel %vm543, %v7693, %v7694
      %v7736 = vsel %vm543, %v7692, %v7693
      %v7737 = vsel %vm543, %v7691, %v7692
      %v7738 = vsel %vm543, %v7690, %v7691
      %v7739 = vsel %vm543, %v7689, %v7690
      %v7740 = vsel %vm543, %v7688, %v7689
      %v7741 = vsel %vm543, %v7687, %v7688
      %v7742 = vsel %vm543, %v7686, %v7687
      %v7743 = vsel %vm543, %v7685, %v7686
      %v7744 = vsel %vm543, %v7684, %v7685
      %v7745 = vsel %vm543, %v7683, %v7684
      %v7746 = vsel %vm543, %v7682, %v7683
      %v7747 = vsel %vm543, %v7681, %v7682
      %v7748 = vsel %vm543, %v7680, %v7681
      %v7749 = vsel %vm543, %v7679, %v7680
      %v7750 = vsel %vm543, %v7678, %v7679
      %v7751 = vsel %vm543, %v7677, %v7678
      %v7752 = vsel %vm543, %v7676, %v7677
      %v7753 = vsel %vm543, %v7675, %v7676
      %v7754 = vsel %vm543, %v7674, %v7675
      %v7755 = vsel %vm543, %v7673, %v7674
      %v7756 = vsel %vm543, %v7672, %v7673
      %v7757 = vsel %vm543, %v7671, %v7672
      %v7758 = vsel %vm543, %v7670, %v7671
      %v7759 = vsel %vm543, %v7669, %v7670
      %v7760 = vsel %vm543, %v7668, %v7669
      %v7761 = vsel %vm543, %v7667, %v7668
      %v7762 = vsel %vm543, %v7666, %v7667
      %v7763 = vsel %vm543, %v7665, %v7666
      %v7764 = vsel %vm543, %v7664, %v7665
      %v7765 = vsel %vm543, %v7663, %v7664
      %v7766 = vsel %vm543, %v7662, %v7663
      %v7767 = vsel %vm543, %v7661, %v7662
      %v7768 = vsel %vm543, %v7660, %v7661
      %v7769 = vsel %vm543, %v7659, %v7660
      %v7770 = vsel %vm543, %v7658, %v7659
      %v7771 = vsel %vm543, %v7657, %v7658
      %v7772 = vsel %vm543, %v7656, %v7657
      %v7773 = vsel %vm543, %v7655, %v7656
      %v7774 = vsel %vm543, %v7654, %v7655
      %v7775 = vsel %vm543, %v7653, %v7654
      %v7776 = vsel %vm543, %v7652, %v7653
      %v7777 = vsel %vm543, %v7651, %v7652
      %v7778 = vsel %vm543, %v7714, %v7651
      %v7779 = vrot.slane %v7587, 1
      %v7780 = vrot.slane %v7588, 1
      %v7781 = vrot.slane %v7589, 1
      %v7782 = vrot.slane %v7590, 1
      %v7783 = vrot.slane %v7591, 1
      %v7784 = vrot.slane %v7592, 1
      %v7785 = vrot.slane %v7593, 1
      %v7786 = vrot.slane %v7594, 1
      %v7787 = vrot.slane %v7595, 1
      %v7788 = vrot.slane %v7596, 1
      %v7789 = vrot.slane %v7597, 1
      %v7790 = vrot.slane %v7598, 1
      %v7791 = vrot.slane %v7599, 1
      %v7792 = vrot.slane %v7600, 1
      %v7793 = vrot.slane %v7601, 1
      %v7794 = vrot.slane %v7602, 1
      %v7795 = vrot.slane %v7603, 1
      %v7796 = vrot.slane %v7604, 1
      %v7797 = vrot.slane %v7605, 1
      %v7798 = vrot.slane %v7606, 1
      %v7799 = vrot.slane %v7607, 1
      %v7800 = vrot.slane %v7608, 1
      %v7801 = vrot.slane %v7609, 1
      %v7802 = vrot.slane %v7610, 1
      %v7803 = vrot.slane %v7611, 1
      %v7804 = vrot.slane %v7612, 1
      %v7805 = vrot.slane %v7613, 1
      %v7806 = vrot.slane %v7614, 1
      %v7807 = vrot.slane %v7615, 1
      %v7808 = vrot.slane %v7616, 1
      %v7809 = vrot.slane %v7617, 1
      %v7810 = vrot.slane %v7618, 1
      %v7811 = vrot.slane %v7619, 1
      %v7812 = vrot.slane %v7620, 1
      %v7813 = vrot.slane %v7621, 1
      %v7814 = vrot.slane %v7622, 1
      %v7815 = vrot.slane %v7623, 1
      %v7816 = vrot.slane %v7624, 1
      %v7817 = vrot.slane %v7625, 1
      %v7818 = vrot.slane %v7626, 1
      %v7819 = vrot.slane %v7627, 1
      %v7820 = vrot.slane %v7628, 1
      %v7821 = vrot.slane %v7629, 1
      %v7822 = vrot.slane %v7630, 1
      %v7823 = vrot.slane %v7631, 1
      %v7824 = vrot.slane %v7632, 1
      %v7825 = vrot.slane %v7633, 1
      %v7826 = vrot.slane %v7634, 1
      %v7827 = vrot.slane %v7635, 1
      %v7828 = vrot.slane %v7636, 1
      %v7829 = vrot.slane %v7637, 1
      %v7830 = vrot.slane %v7638, 1
      %v7831 = vrot.slane %v7639, 1
      %v7832 = vrot.slane %v7640, 1
      %v7833 = vrot.slane %v7641, 1
      %v7834 = vrot.slane %v7642, 1
      %v7835 = vrot.slane %v7643, 1
      %v7836 = vrot.slane %v7644, 1
      %v7837 = vrot.slane %v7645, 1
      %v7838 = vrot.slane %v7646, 1
      %v7839 = vrot.slane %v7647, 1
      %v7840 = vrot.slane %v7648, 1
      %v7841 = vrot.slane %v7649, 1
      %v7842 = vrot.slane %v7650, 1
      %v7843 = vsel %vm672, %v7841, %v7842
      %v7844 = vsel %vm672, %v7840, %v7841
      %v7845 = vsel %vm672, %v7839, %v7840
      %v7846 = vsel %vm672, %v7838, %v7839
      %v7847 = vsel %vm672, %v7837, %v7838
      %v7848 = vsel %vm672, %v7836, %v7837
      %v7849 = vsel %vm672, %v7835, %v7836
      %v7850 = vsel %vm672, %v7834, %v7835
      %v7851 = vsel %vm672, %v7833, %v7834
      %v7852 = vsel %vm672, %v7832, %v7833
      %v7853 = vsel %vm672, %v7831, %v7832
      %v7854 = vsel %vm672, %v7830, %v7831
      %v7855 = vsel %vm672, %v7829, %v7830
      %v7856 = vsel %vm672, %v7828, %v7829
      %v7857 = vsel %vm672, %v7827, %v7828
      %v7858 = vsel %vm672, %v7826, %v7827
      %v7859 = vsel %vm672, %v7825, %v7826
      %v7860 = vsel %vm672, %v7824, %v7825
      %v7861 = vsel %vm672, %v7823, %v7824
      %v7862 = vsel %vm672, %v7822, %v7823
      %v7863 = vsel %vm672, %v7821, %v7822
      %v7864 = vsel %vm672, %v7820, %v7821
      %v7865 = vsel %vm672, %v7819, %v7820
      %v7866 = vsel %vm672, %v7818, %v7819
      %v7867 = vsel %vm672, %v7817, %v7818
      %v7868 = vsel %vm672, %v7816, %v7817
      %v7869 = vsel %vm672, %v7815, %v7816
      %v7870 = vsel %vm672, %v7814, %v7815
      %v7871 = vsel %vm672, %v7813, %v7814
      %v7872 = vsel %vm672, %v7812, %v7813
      %v7873 = vsel %vm672, %v7811, %v7812
      %v7874 = vsel %vm672, %v7810, %v7811
      %v7875 = vsel %vm672, %v7809, %v7810
      %v7876 = vsel %vm672, %v7808, %v7809
      %v7877 = vsel %vm672, %v7807, %v7808
      %v7878 = vsel %vm672, %v7806, %v7807
      %v7879 = vsel %vm672, %v7805, %v7806
      %v7880 = vsel %vm672, %v7804, %v7805
      %v7881 = vsel %vm672, %v7803, %v7804
      %v7882 = vsel %vm672, %v7802, %v7803
      %v7883 = vsel %vm672, %v7801, %v7802
      %v7884 = vsel %vm672, %v7800, %v7801
      %v7885 = vsel %vm672, %v7799, %v7800
      %v7886 = vsel %vm672, %v7798, %v7799
      %v7887 = vsel %vm672, %v7797, %v7798
      %v7888 = vsel %vm672, %v7796, %v7797
      %v7889 = vsel %vm672, %v7795, %v7796
      %v7890 = vsel %vm672, %v7794, %v7795
      %v7891 = vsel %vm672, %v7793, %v7794
      %v7892 = vsel %vm672, %v7792, %v7793
      %v7893 = vsel %vm672, %v7791, %v7792
      %v7894 = vsel %vm672, %v7790, %v7791
      %v7895 = vsel %vm672, %v7789, %v7790
      %v7896 = vsel %vm672, %v7788, %v7789
      %v7897 = vsel %vm672, %v7787, %v7788
      %v7898 = vsel %vm672, %v7786, %v7787
      %v7899 = vsel %vm672, %v7785, %v7786
      %v7900 = vsel %vm672, %v7784, %v7785
      %v7901 = vsel %vm672, %v7783, %v7784
      %v7902 = vsel %vm672, %v7782, %v7783
      %v7903 = vsel %vm672, %v7781, %v7782
      %v7904 = vsel %vm672, %v7780, %v7781
      %v7905 = vsel %vm672, %v7779, %v7780
      %v7906 = vsel %vm672, %v7842, %v7779
      %7971 = vrot.lane.b32.xlu0 %v7587, 4
      %v7972 = vpop.permute.xlu0 %7971
      %7973 = vrot.lane.b32.xlu0 %v7588, 4
      %v7974 = vpop.permute.xlu0 %7973
      %7975 = vrot.lane.b32.xlu0 %v7589, 4
      %v7976 = vpop.permute.xlu0 %7975
      %7977 = vrot.lane.b32.xlu0 %v7590, 4
      %v7978 = vpop.permute.xlu0 %7977
      %7979 = vrot.lane.b32.xlu0 %v7591, 4
      %v7980 = vpop.permute.xlu0 %7979
      %7981 = vrot.lane.b32.xlu0 %v7592, 4
      %v7982 = vpop.permute.xlu0 %7981
      %7983 = vrot.lane.b32.xlu0 %v7593, 4
      %v7984 = vpop.permute.xlu0 %7983
      %7985 = vrot.lane.b32.xlu0 %v7594, 4
      %v7986 = vpop.permute.xlu0 %7985
      %7987 = vrot.lane.b32.xlu0 %v7595, 4
      %v7988 = vpop.permute.xlu0 %7987
      %7989 = vrot.lane.b32.xlu0 %v7596, 4
      %v7990 = vpop.permute.xlu0 %7989
      %7991 = vrot.lane.b32.xlu0 %v7597, 4
      %v7992 = vpop.permute.xlu0 %7991
      %7993 = vrot.lane.b32.xlu0 %v7598, 4
      %v7994 = vpop.permute.xlu0 %7993
      %7995 = vrot.lane.b32.xlu0 %v7599, 4
      %v7996 = vpop.permute.xlu0 %7995
      %7997 = vrot.lane.b32.xlu0 %v7600, 4
      %v7998 = vpop.permute.xlu0 %7997
      %7999 = vrot.lane.b32.xlu0 %v7601, 4
      %v8000 = vpop.permute.xlu0 %7999
      %8001 = vrot.lane.b32.xlu0 %v7602, 4
      %v8002 = vpop.permute.xlu0 %8001
      %8003 = vrot.lane.b32.xlu0 %v7603, 4
      %v8004 = vpop.permute.xlu0 %8003
      %8005 = vrot.lane.b32.xlu0 %v7604, 4
      %v8006 = vpop.permute.xlu0 %8005
      %8007 = vrot.lane.b32.xlu0 %v7605, 4
      %v8008 = vpop.permute.xlu0 %8007
      %8009 = vrot.lane.b32.xlu0 %v7606, 4
      %v8010 = vpop.permute.xlu0 %8009
      %8011 = vrot.lane.b32.xlu0 %v7607, 4
      %v8012 = vpop.permute.xlu0 %8011
      %8013 = vrot.lane.b32.xlu0 %v7608, 4
      %v8014 = vpop.permute.xlu0 %8013
      %8015 = vrot.lane.b32.xlu0 %v7609, 4
      %v8016 = vpop.permute.xlu0 %8015
      %8017 = vrot.lane.b32.xlu0 %v7610, 4
      %v8018 = vpop.permute.xlu0 %8017
      %8019 = vrot.lane.b32.xlu0 %v7611, 4
      %v8020 = vpop.permute.xlu0 %8019
      %8021 = vrot.lane.b32.xlu0 %v7612, 4
      %v8022 = vpop.permute.xlu0 %8021
      %8023 = vrot.lane.b32.xlu0 %v7613, 4
      %v8024 = vpop.permute.xlu0 %8023
      %8025 = vrot.lane.b32.xlu0 %v7614, 4
      %v8026 = vpop.permute.xlu0 %8025
      %8027 = vrot.lane.b32.xlu0 %v7615, 4
      %v8028 = vpop.permute.xlu0 %8027
      %8029 = vrot.lane.b32.xlu0 %v7616, 4
      %v8030 = vpop.permute.xlu0 %8029
      %8031 = vrot.lane.b32.xlu0 %v7617, 4
      %v8032 = vpop.permute.xlu0 %8031
      %8033 = vrot.lane.b32.xlu0 %v7618, 4
      %v8034 = vpop.permute.xlu0 %8033
      %8035 = vrot.lane.b32.xlu0 %v7619, 4
      %v8036 = vpop.permute.xlu0 %8035
      %8037 = vrot.lane.b32.xlu0 %v7620, 4
      %v8038 = vpop.permute.xlu0 %8037
      %8039 = vrot.lane.b32.xlu0 %v7621, 4
      %v8040 = vpop.permute.xlu0 %8039
      %8041 = vrot.lane.b32.xlu0 %v7622, 4
      %v8042 = vpop.permute.xlu0 %8041
      %8043 = vrot.lane.b32.xlu0 %v7623, 4
      %v8044 = vpop.permute.xlu0 %8043
      %8045 = vrot.lane.b32.xlu0 %v7624, 4
      %v8046 = vpop.permute.xlu0 %8045
      %8047 = vrot.lane.b32.xlu0 %v7625, 4
      %v8048 = vpop.permute.xlu0 %8047
      %8049 = vrot.lane.b32.xlu0 %v7626, 4
      %v8050 = vpop.permute.xlu0 %8049
      %8051 = vrot.lane.b32.xlu0 %v7627, 4
      %v8052 = vpop.permute.xlu0 %8051
      %8053 = vrot.lane.b32.xlu0 %v7628, 4
      %v8054 = vpop.permute.xlu0 %8053
      %8055 = vrot.lane.b32.xlu0 %v7629, 4
      %v8056 = vpop.permute.xlu0 %8055
      %8057 = vrot.lane.b32.xlu0 %v7630, 4
      %v8058 = vpop.permute.xlu0 %8057
      %8059 = vrot.lane.b32.xlu0 %v7631, 4
      %v8060 = vpop.permute.xlu0 %8059
      %8061 = vrot.lane.b32.xlu0 %v7632, 4
      %v8062 = vpop.permute.xlu0 %8061
      %8063 = vrot.lane.b32.xlu0 %v7633, 4
      %v8064 = vpop.permute.xlu0 %8063
      %8065 = vrot.lane.b32.xlu0 %v7634, 4
      %v8066 = vpop.permute.xlu0 %8065
      %8067 = vrot.lane.b32.xlu0 %v7635, 4
      %v8068 = vpop.permute.xlu0 %8067
      %8069 = vrot.lane.b32.xlu0 %v7636, 4
      %v8070 = vpop.permute.xlu0 %8069
      %8071 = vrot.lane.b32.xlu0 %v7637, 4
      %v8072 = vpop.permute.xlu0 %8071
      %8073 = vrot.lane.b32.xlu0 %v7638, 4
      %v8074 = vpop.permute.xlu0 %8073
      %8075 = vrot.lane.b32.xlu0 %v7639, 4
      %v8076 = vpop.permute.xlu0 %8075
      %8077 = vrot.lane.b32.xlu0 %v7640, 4
      %v8078 = vpop.permute.xlu0 %8077
      %8079 = vrot.lane.b32.xlu0 %v7641, 4
      %v8080 = vpop.permute.xlu0 %8079
      %8081 = vrot.lane.b32.xlu0 %v7642, 4
      %v8082 = vpop.permute.xlu0 %8081
      %8083 = vrot.lane.b32.xlu0 %v7643, 4
      %v8084 = vpop.permute.xlu0 %8083
      %8085 = vrot.lane.b32.xlu0 %v7644, 4
      %v8086 = vpop.permute.xlu0 %8085
      %8087 = vrot.lane.b32.xlu0 %v7645, 4
      %v8088 = vpop.permute.xlu0 %8087
      %8089 = vrot.lane.b32.xlu0 %v7646, 4
      %v8090 = vpop.permute.xlu0 %8089
      %8091 = vrot.lane.b32.xlu0 %v7647, 4
      %v8092 = vpop.permute.xlu0 %8091
      %8093 = vrot.lane.b32.xlu0 %v7648, 4
      %v8094 = vpop.permute.xlu0 %8093
      %8095 = vrot.lane.b32.xlu0 %v7649, 4
      %v8096 = vpop.permute.xlu0 %8095
      %8097 = vrot.lane.b32.xlu0 %v7650, 4
      %v8098 = vpop.permute.xlu0 %8097
      %8227 = vrot.lane.b32.xlu0 %v7905, 8
      %v8228 = vpop.permute.xlu0 %8227
      %8229 = vrot.lane.b32.xlu0 %v7904, 8
      %v8230 = vpop.permute.xlu0 %8229
      %8231 = vrot.lane.b32.xlu0 %v7903, 8
      %v8232 = vpop.permute.xlu0 %8231
      %8233 = vrot.lane.b32.xlu0 %v7902, 8
      %v8234 = vpop.permute.xlu0 %8233
      %8235 = vrot.lane.b32.xlu0 %v7901, 8
      %v8236 = vpop.permute.xlu0 %8235
      %8237 = vrot.lane.b32.xlu0 %v7900, 8
      %v8238 = vpop.permute.xlu0 %8237
      %8239 = vrot.lane.b32.xlu0 %v7899, 8
      %v8240 = vpop.permute.xlu0 %8239
      %8241 = vrot.lane.b32.xlu0 %v7898, 8
      %v8242 = vpop.permute.xlu0 %8241
      %8243 = vrot.lane.b32.xlu0 %v7897, 8
      %v8244 = vpop.permute.xlu0 %8243
      %8245 = vrot.lane.b32.xlu0 %v7896, 8
      %v8246 = vpop.permute.xlu0 %8245
      %8247 = vrot.lane.b32.xlu0 %v7895, 8
      %v8248 = vpop.permute.xlu0 %8247
      %8249 = vrot.lane.b32.xlu0 %v7894, 8
      %v8250 = vpop.permute.xlu0 %8249
      %8251 = vrot.lane.b32.xlu0 %v7893, 8
      %v8252 = vpop.permute.xlu0 %8251
      %8253 = vrot.lane.b32.xlu0 %v7892, 8
      %v8254 = vpop.permute.xlu0 %8253
      %8255 = vrot.lane.b32.xlu0 %v7891, 8
      %v8256 = vpop.permute.xlu0 %8255
      %8257 = vrot.lane.b32.xlu0 %v7890, 8
      %v8258 = vpop.permute.xlu0 %8257
      %8259 = vrot.lane.b32.xlu0 %v7889, 8
      %v8260 = vpop.permute.xlu0 %8259
      %8261 = vrot.lane.b32.xlu0 %v7888, 8
      %v8262 = vpop.permute.xlu0 %8261
      %8263 = vrot.lane.b32.xlu0 %v7887, 8
      %v8264 = vpop.permute.xlu0 %8263
      %8265 = vrot.lane.b32.xlu0 %v7886, 8
      %v8266 = vpop.permute.xlu0 %8265
      %8267 = vrot.lane.b32.xlu0 %v7885, 8
      %v8268 = vpop.permute.xlu0 %8267
      %8269 = vrot.lane.b32.xlu0 %v7884, 8
      %v8270 = vpop.permute.xlu0 %8269
      %8271 = vrot.lane.b32.xlu0 %v7883, 8
      %v8272 = vpop.permute.xlu0 %8271
      %8273 = vrot.lane.b32.xlu0 %v7882, 8
      %v8274 = vpop.permute.xlu0 %8273
      %8275 = vrot.lane.b32.xlu0 %v7881, 8
      %v8276 = vpop.permute.xlu0 %8275
      %8277 = vrot.lane.b32.xlu0 %v7880, 8
      %v8278 = vpop.permute.xlu0 %8277
      %8279 = vrot.lane.b32.xlu0 %v7879, 8
      %v8280 = vpop.permute.xlu0 %8279
      %8281 = vrot.lane.b32.xlu0 %v7878, 8
      %v8282 = vpop.permute.xlu0 %8281
      %8283 = vrot.lane.b32.xlu0 %v7877, 8
      %v8284 = vpop.permute.xlu0 %8283
      %8285 = vrot.lane.b32.xlu0 %v7876, 8
      %v8286 = vpop.permute.xlu0 %8285
      %8287 = vrot.lane.b32.xlu0 %v7875, 8
      %v8288 = vpop.permute.xlu0 %8287
      %8289 = vrot.lane.b32.xlu0 %v7874, 8
      %v8290 = vpop.permute.xlu0 %8289
      %8291 = vrot.lane.b32.xlu0 %v7873, 8
      %v8292 = vpop.permute.xlu0 %8291
      %8293 = vrot.lane.b32.xlu0 %v7872, 8
      %v8294 = vpop.permute.xlu0 %8293
      %8295 = vrot.lane.b32.xlu0 %v7871, 8
      %v8296 = vpop.permute.xlu0 %8295
      %8297 = vrot.lane.b32.xlu0 %v7870, 8
      %v8298 = vpop.permute.xlu0 %8297
      %8299 = vrot.lane.b32.xlu0 %v7869, 8
      %v8300 = vpop.permute.xlu0 %8299
      %8301 = vrot.lane.b32.xlu0 %v7868, 8
      %v8302 = vpop.permute.xlu0 %8301
      %8303 = vrot.lane.b32.xlu0 %v7867, 8
      %v8304 = vpop.permute.xlu0 %8303
      %8305 = vrot.lane.b32.xlu0 %v7866, 8
      %v8306 = vpop.permute.xlu0 %8305
      %8307 = vrot.lane.b32.xlu0 %v7865, 8
      %v8308 = vpop.permute.xlu0 %8307
      %8309 = vrot.lane.b32.xlu0 %v7864, 8
      %v8310 = vpop.permute.xlu0 %8309
      %8311 = vrot.lane.b32.xlu0 %v7863, 8
      %v8312 = vpop.permute.xlu0 %8311
      %8313 = vrot.lane.b32.xlu0 %v7862, 8
      %v8314 = vpop.permute.xlu0 %8313
      %8315 = vrot.lane.b32.xlu0 %v7861, 8
      %v8316 = vpop.permute.xlu0 %8315
      %8317 = vrot.lane.b32.xlu0 %v7860, 8
      %v8318 = vpop.permute.xlu0 %8317
      %8319 = vrot.lane.b32.xlu0 %v7859, 8
      %v8320 = vpop.permute.xlu0 %8319
      %8321 = vrot.lane.b32.xlu0 %v7858, 8
      %v8322 = vpop.permute.xlu0 %8321
      %8323 = vrot.lane.b32.xlu0 %v7857, 8
      %v8324 = vpop.permute.xlu0 %8323
      %8325 = vrot.lane.b32.xlu0 %v7856, 8
      %v8326 = vpop.permute.xlu0 %8325
      %8327 = vrot.lane.b32.xlu0 %v7855, 8
      %v8328 = vpop.permute.xlu0 %8327
      %8329 = vrot.lane.b32.xlu0 %v7854, 8
      %v8330 = vpop.permute.xlu0 %8329
      %8331 = vrot.lane.b32.xlu0 %v7853, 8
      %v8332 = vpop.permute.xlu0 %8331
      %8333 = vrot.lane.b32.xlu0 %v7852, 8
      %v8334 = vpop.permute.xlu0 %8333
      %8335 = vrot.lane.b32.xlu0 %v7851, 8
      %v8336 = vpop.permute.xlu0 %8335
      %8337 = vrot.lane.b32.xlu0 %v7850, 8
      %v8338 = vpop.permute.xlu0 %8337
      %8339 = vrot.lane.b32.xlu0 %v7849, 8
      %v8340 = vpop.permute.xlu0 %8339
      %8341 = vrot.lane.b32.xlu0 %v7848, 8
      %v8342 = vpop.permute.xlu0 %8341
      %8343 = vrot.lane.b32.xlu0 %v7847, 8
      %v8344 = vpop.permute.xlu0 %8343
      %8345 = vrot.lane.b32.xlu0 %v7846, 8
      %v8346 = vpop.permute.xlu0 %8345
      %8347 = vrot.lane.b32.xlu0 %v7845, 8
      %v8348 = vpop.permute.xlu0 %8347
      %8349 = vrot.lane.b32.xlu0 %v7844, 8
      %v8350 = vpop.permute.xlu0 %8349
      %8351 = vrot.lane.b32.xlu0 %v7843, 8
      %v8352 = vpop.permute.xlu0 %8351
      %8353 = vrot.lane.b32.xlu0 %v7906, 8
      %v8354 = vpop.permute.xlu0 %8353
      %v8419 = vsel %vm1249, %v7778, %v7972
      %v8420 = vsel %vm1249, %v7777, %v7974
      %v8421 = vsel %vm1249, %v7776, %v7976
      %v8422 = vsel %vm1249, %v7775, %v7978
      %v8423 = vsel %vm1249, %v7774, %v7980
      %v8424 = vsel %vm1249, %v7773, %v7982
      %v8425 = vsel %vm1249, %v7772, %v7984
      %v8426 = vsel %vm1249, %v7771, %v7986
      %v8427 = vsel %vm1249, %v7770, %v7988
      %v8428 = vsel %vm1249, %v7769, %v7990
      %v8429 = vsel %vm1249, %v7768, %v7992
      %v8430 = vsel %vm1249, %v7767, %v7994
      %v8431 = vsel %vm1249, %v7766, %v7996
      %v8432 = vsel %vm1249, %v7765, %v7998
      %v8433 = vsel %vm1249, %v7764, %v8000
      %v8434 = vsel %vm1249, %v7763, %v8002
      %v8435 = vsel %vm1249, %v7762, %v8004
      %v8436 = vsel %vm1249, %v7761, %v8006
      %v8437 = vsel %vm1249, %v7760, %v8008
      %v8438 = vsel %vm1249, %v7759, %v8010
      %v8439 = vsel %vm1249, %v7758, %v8012
      %v8440 = vsel %vm1249, %v7757, %v8014
      %v8441 = vsel %vm1249, %v7756, %v8016
      %v8442 = vsel %vm1249, %v7755, %v8018
      %v8443 = vsel %vm1249, %v7754, %v8020
      %v8444 = vsel %vm1249, %v7753, %v8022
      %v8445 = vsel %vm1249, %v7752, %v8024
      %v8446 = vsel %vm1249, %v7751, %v8026
      %v8447 = vsel %vm1249, %v7750, %v8028
      %v8448 = vsel %vm1249, %v7749, %v8030
      %v8449 = vsel %vm1249, %v7748, %v8032
      %v8450 = vsel %vm1249, %v7747, %v8034
      %v8451 = vsel %vm1249, %v7746, %v8036
      %v8452 = vsel %vm1249, %v7745, %v8038
      %v8453 = vsel %vm1249, %v7744, %v8040
      %v8454 = vsel %vm1249, %v7743, %v8042
      %v8455 = vsel %vm1249, %v7742, %v8044
      %v8456 = vsel %vm1249, %v7741, %v8046
      %v8457 = vsel %vm1249, %v7740, %v8048
      %v8458 = vsel %vm1249, %v7739, %v8050
      %v8459 = vsel %vm1249, %v7738, %v8052
      %v8460 = vsel %vm1249, %v7737, %v8054
      %v8461 = vsel %vm1249, %v7736, %v8056
      %v8462 = vsel %vm1249, %v7735, %v8058
      %v8463 = vsel %vm1249, %v7734, %v8060
      %v8464 = vsel %vm1249, %v7733, %v8062
      %v8465 = vsel %vm1249, %v7732, %v8064
      %v8466 = vsel %vm1249, %v7731, %v8066
      %v8467 = vsel %vm1249, %v7730, %v8068
      %v8468 = vsel %vm1249, %v7729, %v8070
      %v8469 = vsel %vm1249, %v7728, %v8072
      %v8470 = vsel %vm1249, %v7727, %v8074
      %v8471 = vsel %vm1249, %v7726, %v8076
      %v8472 = vsel %vm1249, %v7725, %v8078
      %v8473 = vsel %vm1249, %v7724, %v8080
      %v8474 = vsel %vm1249, %v7723, %v8082
      %v8475 = vsel %vm1249, %v7722, %v8084
      %v8476 = vsel %vm1249, %v7721, %v8086
      %v8477 = vsel %vm1249, %v7720, %v8088
      %v8478 = vsel %vm1249, %v7719, %v8090
      %v8479 = vsel %vm1249, %v7718, %v8092
      %v8480 = vsel %vm1249, %v7717, %v8094
      %v8481 = vsel %vm1249, %v7716, %v8096
      %v8482 = vsel %vm1249, %v7715, %v8098
      %v8483 = vsel %vm1314, %v8419, %v8228
      %v8484 = vsel %vm1314, %v8420, %v8230
      %v8485 = vsel %vm1314, %v8421, %v8232
      %v8486 = vsel %vm1314, %v8422, %v8234
      %v8487 = vsel %vm1314, %v8423, %v8236
      %v8488 = vsel %vm1314, %v8424, %v8238
      %v8489 = vsel %vm1314, %v8425, %v8240
      %v8490 = vsel %vm1314, %v8426, %v8242
      %v8491 = vsel %vm1314, %v8427, %v8244
      %v8492 = vsel %vm1314, %v8428, %v8246
      %v8493 = vsel %vm1314, %v8429, %v8248
      %v8494 = vsel %vm1314, %v8430, %v8250
      %v8495 = vsel %vm1314, %v8431, %v8252
      %v8496 = vsel %vm1314, %v8432, %v8254
      %v8497 = vsel %vm1314, %v8433, %v8256
      %v8498 = vsel %vm1314, %v8434, %v8258
      %v8499 = vsel %vm1314, %v8435, %v8260
      %v8500 = vsel %vm1314, %v8436, %v8262
      %v8501 = vsel %vm1314, %v8437, %v8264
      %v8502 = vsel %vm1314, %v8438, %v8266
      %v8503 = vsel %vm1314, %v8439, %v8268
      %v8504 = vsel %vm1314, %v8440, %v8270
      %v8505 = vsel %vm1314, %v8441, %v8272
      %v8506 = vsel %vm1314, %v8442, %v8274
      %v8507 = vsel %vm1314, %v8443, %v8276
      %v8508 = vsel %vm1314, %v8444, %v8278
      %v8509 = vsel %vm1314, %v8445, %v8280
      %v8510 = vsel %vm1314, %v8446, %v8282
      %v8511 = vsel %vm1314, %v8447, %v8284
      %v8512 = vsel %vm1314, %v8448, %v8286
      %v8513 = vsel %vm1314, %v8449, %v8288
      %v8514 = vsel %vm1314, %v8450, %v8290
      %v8515 = vsel %vm1314, %v8451, %v8292
      %v8516 = vsel %vm1314, %v8452, %v8294
      %v8517 = vsel %vm1314, %v8453, %v8296
      %v8518 = vsel %vm1314, %v8454, %v8298
      %v8519 = vsel %vm1314, %v8455, %v8300
      %v8520 = vsel %vm1314, %v8456, %v8302
      %v8521 = vsel %vm1314, %v8457, %v8304
      %v8522 = vsel %vm1314, %v8458, %v8306
      %v8523 = vsel %vm1314, %v8459, %v8308
      %v8524 = vsel %vm1314, %v8460, %v8310
      %v8525 = vsel %vm1314, %v8461, %v8312
      %v8526 = vsel %vm1314, %v8462, %v8314
      %v8527 = vsel %vm1314, %v8463, %v8316
      %v8528 = vsel %vm1314, %v8464, %v8318
      %v8529 = vsel %vm1314, %v8465, %v8320
      %v8530 = vsel %vm1314, %v8466, %v8322
      %v8531 = vsel %vm1314, %v8467, %v8324
      %v8532 = vsel %vm1314, %v8468, %v8326
      %v8533 = vsel %vm1314, %v8469, %v8328
      %v8534 = vsel %vm1314, %v8470, %v8330
      %v8535 = vsel %vm1314, %v8471, %v8332
      %v8536 = vsel %vm1314, %v8472, %v8334
      %v8537 = vsel %vm1314, %v8473, %v8336
      %v8538 = vsel %vm1314, %v8474, %v8338
      %v8539 = vsel %vm1314, %v8475, %v8340
      %v8540 = vsel %vm1314, %v8476, %v8342
      %v8541 = vsel %vm1314, %v8477, %v8344
      %v8542 = vsel %vm1314, %v8478, %v8346
      %v8543 = vsel %vm1314, %v8479, %v8348
      %v8544 = vsel %vm1314, %v8480, %v8350
      %v8545 = vsel %vm1314, %v8481, %v8352
      %v8546 = vsel %vm1314, %v8482, %v8354
      %v8547 = vpack.c.bf16 %v8484, %v8483
      %v8548 = vpack.c.bf16 %v8486, %v8485
      %v8549 = vpack.c.bf16 %v8488, %v8487
      %v8550 = vpack.c.bf16 %v8490, %v8489
      %v8551 = vpack.c.bf16 %v8492, %v8491
      %v8552 = vpack.c.bf16 %v8494, %v8493
      %v8553 = vpack.c.bf16 %v8496, %v8495
      %v8554 = vpack.c.bf16 %v8498, %v8497
      %v8555 = vpack.c.bf16 %v8500, %v8499
      %v8556 = vpack.c.bf16 %v8502, %v8501
      %v8557 = vpack.c.bf16 %v8504, %v8503
      %v8558 = vpack.c.bf16 %v8506, %v8505
      %v8559 = vpack.c.bf16 %v8508, %v8507
      %v8560 = vpack.c.bf16 %v8510, %v8509
      %v8561 = vpack.c.bf16 %v8512, %v8511
      %v8562 = vpack.c.bf16 %v8514, %v8513
      %v8563 = vpack.c.bf16 %v8516, %v8515
      %v8564 = vpack.c.bf16 %v8518, %v8517
      %v8565 = vpack.c.bf16 %v8520, %v8519
      %v8566 = vpack.c.bf16 %v8522, %v8521
      %v8567 = vpack.c.bf16 %v8524, %v8523
      %v8568 = vpack.c.bf16 %v8526, %v8525
      %v8569 = vpack.c.bf16 %v8528, %v8527
      %v8570 = vpack.c.bf16 %v8530, %v8529
      %v8571 = vpack.c.bf16 %v8532, %v8531
      %v8572 = vpack.c.bf16 %v8534, %v8533
      %v8573 = vpack.c.bf16 %v8536, %v8535
      %v8574 = vpack.c.bf16 %v8538, %v8537
      %v8575 = vpack.c.bf16 %v8540, %v8539
      %v8576 = vpack.c.bf16 %v8542, %v8541
      %v8577 = vpack.c.bf16 %v8544, %v8543
      %v8578 = vpack.c.bf16 %v8546, %v8545
      %s8579 = smul.addr %s4130, 4
      %s8580 = scalar_lea.vmem %s3, %s8579
      %v8581 = vld [vmem:[%s8580] sm:$0xf]
      %v8582 = vld [vmem:[%s8580 + $0x4] sm:$0x3]
      %v8585 = vunpack.c.l.b16 %v8581
      %v8586 = vunpack.c.l.b16 %v8582
      %v8587 = vpack.c.b16 %v8586, %v8585
      %v8589 = vsel %vm2418, %v8547, 0
      %v8592 = vsel %vm2418, %v8548, 0
      %v8595 = vsel %vm2418, %v8549, 0
      %v8598 = vsel %vm2418, %v8550, 0
      %v8601 = vsel %vm2418, %v8551, 0
      %v8604 = vsel %vm2418, %v8552, 0
      %v8607 = vsel %vm2418, %v8553, 0
      %v8610 = vsel %vm2418, %v8554, 0
      %v8613 = vsel %vm2418, %v8555, 0
      %v8616 = vsel %vm2418, %v8556, 0
      %v8619 = vsel %vm2418, %v8557, 0
      %v8622 = vsel %vm2418, %v8558, 0
      %v8625 = vsel %vm2418, %v8559, 0
      %v8628 = vsel %vm2418, %v8560, 0
      %v8631 = vsel %vm2418, %v8561, 0
      %v8634 = vsel %vm2418, %v8562, 0
      %v8637 = vsel %vm2418, %v8563, 0
      %v8640 = vsel %vm2418, %v8564, 0
      %v8643 = vsel %vm2418, %v8565, 0
      %v8646 = vsel %vm2418, %v8566, 0
      %v8649 = vsel %vm2418, %v8567, 0
      %v8652 = vsel %vm2418, %v8568, 0
      %v8655 = vsel %vm2418, %v8569, 0
      %v8658 = vsel %vm2418, %v8570, 0
      %v8661 = vsel %vm2418, %v8571, 0
      %v8664 = vsel %vm2418, %v8572, 0
      %v8667 = vsel %vm2418, %v8573, 0
      %v8670 = vsel %vm2418, %v8574, 0
      %v8673 = vsel %vm2418, %v8575, 0
      %v8676 = vsel %vm2418, %v8576, 0
      %v8679 = vsel %vm2418, %v8577, 0
      %v8682 = vsel %vm2418, %v8578, 0
      %v8685 = vsel %vm2515, %v8587, 0
      %8687 = vmatprep.subr.bf16.mxu0 0
      %8688 = vmatpush1.bf16.msra.mxu0 0
      %8689 = vmatprep.subr.bf16.mxu0 0
      %8690 = vmatpush1.bf16.msra.mxu0 0
      %8691 = vmatprep.subr.bf16.mxu0 0
      %8692 = vmatpush1.bf16.msra.mxu0 0
      %8693 = vmatprep.subr.bf16.mxu0 0
      %8694 = vmatpush1.bf16.msra.mxu0 0
      %8695 = vmatprep.subr.bf16.mxu0 0
      %8696 = vmatpush1.bf16.msra.mxu0 0
      %8697 = vmatprep.subr.bf16.mxu0 0
      %8698 = vmatpush1.bf16.msra.mxu0 0
      %8699 = vmatprep.subr.bf16.mxu0 0
      %8700 = vmatpush1.bf16.msra.mxu0 0
      %8701 = vmatprep.subr.bf16.mxu0 0
      %8702 = vmatpush1.bf16.msra.mxu0 %v8685
      %8703 = vmatprep.subr.bf16.mxu0 0
      %8704 = vmatpush2.bf16.msra.mxu0 0
      %8705 = vmatprep.subr.bf16.mxu0 0
      %8706 = vmatpush2.bf16.msra.mxu0 0
      %8707 = vmatprep.subr.bf16.mxu0 0
      %8708 = vmatpush2.bf16.msra.mxu0 0
      %8709 = vmatprep.subr.bf16.mxu0 0
      %8710 = vmatpush2.bf16.msra.mxu0 0
      %8711 = vmatprep.subr.bf16.mxu0 0
      %8712 = vmatpush2.bf16.msra.mxu0 0
      %8713 = vmatprep.subr.bf16.mxu0 0
      %8714 = vmatpush2.bf16.msra.mxu0 0
      %8715 = vmatprep.subr.bf16.mxu0 0
      %8716 = vmatpush2.bf16.msra.mxu0 0
      %8717 = vmatprep.subr.bf16.mxu0 0
      %8718 = vmatpush2.bf16.msra.mxu0 0
      %8719 = vmatprep.mubr.bf16.mxu0 0
      %8720 = vmatmul.mubr.bf16.gmra.mxu0 %v8589
      %v8721 = vpop.f32.mrf.mxu0
      %v8722 = vpop.f32.mrf.mxu0
      %v8723 = vpop.f32.mrf.mxu0
      %v8724 = vadd.f32 0.0, %v8723
      %v8725 = vpop.f32.mrf.mxu0
      %8726 = vmatprep.mubr.bf16.mxu0 0
      %8727 = vmatmul.mubr.bf16.gmra.mxu0 %v8592
      %v8728 = vpop.f32.mrf.mxu0
      %v8729 = vadd.f32 0.0, %v8728
      %v8730 = vpop.f32.mrf.mxu0
      %v8731 = vpop.f32.mrf.mxu0
      %v8732 = vpop.f32.mrf.mxu0
      %8733 = vmatprep.mubr.bf16.mxu0 0
      %8734 = vmatmul.mubr.bf16.gmra.mxu0 %v8595
      %v8735 = vpop.f32.mrf.mxu0
      %v8736 = vpop.f32.mrf.mxu0
      %v8737 = vpop.f32.mrf.mxu0
      %v8738 = vadd.f32 0.0, %v8737
      %v8739 = vpop.f32.mrf.mxu0
      %8740 = vmatprep.mubr.bf16.mxu0 0
      %8741 = vmatmul.mubr.bf16.gmra.mxu0 %v8598
      %v8742 = vpop.f32.mrf.mxu0
      %v8743 = vadd.f32 0.0, %v8742
      %v8744 = vpop.f32.mrf.mxu0
      %v8745 = vpop.f32.mrf.mxu0
      %v8746 = vpop.f32.mrf.mxu0
      %8747 = vmatprep.mubr.bf16.mxu0 0
      %8748 = vmatmul.mubr.bf16.gmra.mxu0 %v8601
      %v8749 = vpop.f32.mrf.mxu0
      %v8750 = vpop.f32.mrf.mxu0
      %v8751 = vpop.f32.mrf.mxu0
      %v8752 = vadd.f32 0.0, %v8751
      %v8753 = vpop.f32.mrf.mxu0
      %8754 = vmatprep.mubr.bf16.mxu0 0
      %8755 = vmatmul.mubr.bf16.gmra.mxu0 %v8604
      %v8756 = vpop.f32.mrf.mxu0
      %v8757 = vadd.f32 0.0, %v8756
      %v8758 = vpop.f32.mrf.mxu0
      %v8759 = vpop.f32.mrf.mxu0
      %v8760 = vpop.f32.mrf.mxu0
      %8761 = vmatprep.mubr.bf16.mxu0 0
      %8762 = vmatmul.mubr.bf16.gmra.mxu0 %v8607
      %v8763 = vpop.f32.mrf.mxu0
      %v8764 = vpop.f32.mrf.mxu0
      %v8765 = vpop.f32.mrf.mxu0
      %v8766 = vadd.f32 0.0, %v8765
      %v8767 = vpop.f32.mrf.mxu0
      %8768 = vmatprep.mubr.bf16.mxu0 0
      %8769 = vmatmul.mubr.bf16.gmra.mxu0 %v8610
      %v8770 = vpop.f32.mrf.mxu0
      %v8771 = vadd.f32 0.0, %v8770
      %v8772 = vpop.f32.mrf.mxu0
      %v8773 = vpop.f32.mrf.mxu0
      %v8774 = vpop.f32.mrf.mxu0
      %8775 = vmatprep.mubr.bf16.mxu0 0
      %8776 = vmatmul.mubr.bf16.gmra.mxu0 %v8613
      %v8777 = vpop.f32.mrf.mxu0
      %v8778 = vpop.f32.mrf.mxu0
      %v8779 = vpop.f32.mrf.mxu0
      %v8780 = vadd.f32 0.0, %v8779
      %v8781 = vpop.f32.mrf.mxu0
      %8782 = vmatprep.mubr.bf16.mxu0 0
      %8783 = vmatmul.mubr.bf16.gmra.mxu0 %v8616
      %v8784 = vpop.f32.mrf.mxu0
      %v8785 = vadd.f32 0.0, %v8784
      %v8786 = vpop.f32.mrf.mxu0
      %v8787 = vpop.f32.mrf.mxu0
      %v8788 = vpop.f32.mrf.mxu0
      %8789 = vmatprep.mubr.bf16.mxu0 0
      %8790 = vmatmul.mubr.bf16.gmra.mxu0 %v8619
      %v8791 = vpop.f32.mrf.mxu0
      %v8792 = vpop.f32.mrf.mxu0
      %v8793 = vpop.f32.mrf.mxu0
      %v8794 = vadd.f32 0.0, %v8793
      %v8795 = vpop.f32.mrf.mxu0
      %8796 = vmatprep.mubr.bf16.mxu0 0
      %8797 = vmatmul.mubr.bf16.gmra.mxu0 %v8622
      %v8798 = vpop.f32.mrf.mxu0
      %v8799 = vadd.f32 0.0, %v8798
      %v8800 = vpop.f32.mrf.mxu0
      %v8801 = vpop.f32.mrf.mxu0
      %v8802 = vpop.f32.mrf.mxu0
      %8803 = vmatprep.mubr.bf16.mxu0 0
      %8804 = vmatmul.mubr.bf16.gmra.mxu0 %v8625
      %v8805 = vpop.f32.mrf.mxu0
      %v8806 = vpop.f32.mrf.mxu0
      %v8807 = vpop.f32.mrf.mxu0
      %v8808 = vadd.f32 0.0, %v8807
      %v8809 = vpop.f32.mrf.mxu0
      %8810 = vmatprep.mubr.bf16.mxu0 0
      %8811 = vmatmul.mubr.bf16.gmra.mxu0 %v8628
      %v8812 = vpop.f32.mrf.mxu0
      %v8813 = vadd.f32 0.0, %v8812
      %v8814 = vpop.f32.mrf.mxu0
      %v8815 = vpop.f32.mrf.mxu0
      %v8816 = vpop.f32.mrf.mxu0
      %8817 = vmatprep.mubr.bf16.mxu0 0
      %8818 = vmatmul.mubr.bf16.gmra.mxu0 %v8631
      %v8819 = vpop.f32.mrf.mxu0
      %v8820 = vpop.f32.mrf.mxu0
      %v8821 = vpop.f32.mrf.mxu0
      %v8822 = vadd.f32 0.0, %v8821
      %v8823 = vpop.f32.mrf.mxu0
      %8824 = vmatprep.mubr.bf16.mxu0 0
      %8825 = vmatmul.mubr.bf16.gmra.mxu0 %v8634
      %v8826 = vpop.f32.mrf.mxu0
      %v8827 = vadd.f32 0.0, %v8826
      %v8828 = vpop.f32.mrf.mxu0
      %v8829 = vpop.f32.mrf.mxu0
      %v8830 = vpop.f32.mrf.mxu0
      %8831 = vmatprep.mubr.bf16.mxu0 0
      %8832 = vmatmul.mubr.bf16.gmra.mxu0 %v8637
      %v8833 = vpop.f32.mrf.mxu0
      %v8834 = vpop.f32.mrf.mxu0
      %v8835 = vpop.f32.mrf.mxu0
      %v8836 = vadd.f32 0.0, %v8835
      %v8837 = vpop.f32.mrf.mxu0
      %8838 = vmatprep.mubr.bf16.mxu0 0
      %8839 = vmatmul.mubr.bf16.gmra.mxu0 %v8640
      %v8840 = vpop.f32.mrf.mxu0
      %v8841 = vadd.f32 0.0, %v8840
      %v8842 = vpop.f32.mrf.mxu0
      %v8843 = vpop.f32.mrf.mxu0
      %v8844 = vpop.f32.mrf.mxu0
      %8845 = vmatprep.mubr.bf16.mxu0 0
      %8846 = vmatmul.mubr.bf16.gmra.mxu0 %v8643
      %v8847 = vpop.f32.mrf.mxu0
      %v8848 = vpop.f32.mrf.mxu0
      %v8849 = vpop.f32.mrf.mxu0
      %v8850 = vadd.f32 0.0, %v8849
      %v8851 = vpop.f32.mrf.mxu0
      %8852 = vmatprep.mubr.bf16.mxu0 0
      %8853 = vmatmul.mubr.bf16.gmra.mxu0 %v8646
      %v8854 = vpop.f32.mrf.mxu0
      %v8855 = vadd.f32 0.0, %v8854
      %v8856 = vpop.f32.mrf.mxu0
      %v8857 = vpop.f32.mrf.mxu0
      %v8858 = vpop.f32.mrf.mxu0
      %8859 = vmatprep.mubr.bf16.mxu0 0
      %8860 = vmatmul.mubr.bf16.gmra.mxu0 %v8649
      %v8861 = vpop.f32.mrf.mxu0
      %v8862 = vpop.f32.mrf.mxu0
      %v8863 = vpop.f32.mrf.mxu0
      %v8864 = vadd.f32 0.0, %v8863
      %v8865 = vpop.f32.mrf.mxu0
      %8866 = vmatprep.mubr.bf16.mxu0 0
      %8867 = vmatmul.mubr.bf16.gmra.mxu0 %v8652
      %v8868 = vpop.f32.mrf.mxu0
      %v8869 = vadd.f32 0.0, %v8868
      %v8870 = vpop.f32.mrf.mxu0
      %v8871 = vpop.f32.mrf.mxu0
      %v8872 = vpop.f32.mrf.mxu0
      %8873 = vmatprep.mubr.bf16.mxu0 0
      %8874 = vmatmul.mubr.bf16.gmra.mxu0 %v8655
      %v8875 = vpop.f32.mrf.mxu0
      %v8876 = vpop.f32.mrf.mxu0
      %v8877 = vpop.f32.mrf.mxu0
      %v8878 = vadd.f32 0.0, %v8877
      %v8879 = vpop.f32.mrf.mxu0
      %8880 = vmatprep.mubr.bf16.mxu0 0
      %8881 = vmatmul.mubr.bf16.gmra.mxu0 %v8658
      %v8882 = vpop.f32.mrf.mxu0
      %v8883 = vadd.f32 0.0, %v8882
      %v8884 = vpop.f32.mrf.mxu0
      %v8885 = vpop.f32.mrf.mxu0
      %v8886 = vpop.f32.mrf.mxu0
      %8887 = vmatprep.mubr.bf16.mxu0 0
      %8888 = vmatmul.mubr.bf16.gmra.mxu0 %v8661
      %v8889 = vpop.f32.mrf.mxu0
      %v8890 = vpop.f32.mrf.mxu0
      %v8891 = vpop.f32.mrf.mxu0
      %v8892 = vadd.f32 0.0, %v8891
      %v8893 = vpop.f32.mrf.mxu0
      %8894 = vmatprep.mubr.bf16.mxu0 0
      %8895 = vmatmul.mubr.bf16.gmra.mxu0 %v8664
      %v8896 = vpop.f32.mrf.mxu0
      %v8897 = vadd.f32 0.0, %v8896
      %v8898 = vpop.f32.mrf.mxu0
      %v8899 = vpop.f32.mrf.mxu0
      %v8900 = vpop.f32.mrf.mxu0
      %8901 = vmatprep.mubr.bf16.mxu0 0
      %8902 = vmatmul.mubr.bf16.gmra.mxu0 %v8667
      %v8903 = vpop.f32.mrf.mxu0
      %v8904 = vpop.f32.mrf.mxu0
      %v8905 = vpop.f32.mrf.mxu0
      %v8906 = vadd.f32 0.0, %v8905
      %v8907 = vpop.f32.mrf.mxu0
      %8908 = vmatprep.mubr.bf16.mxu0 0
      %8909 = vmatmul.mubr.bf16.gmra.mxu0 %v8670
      %v8910 = vpop.f32.mrf.mxu0
      %v8911 = vadd.f32 0.0, %v8910
      %v8912 = vpop.f32.mrf.mxu0
      %v8913 = vpop.f32.mrf.mxu0
      %v8914 = vpop.f32.mrf.mxu0
      %8915 = vmatprep.mubr.bf16.mxu0 0
      %8916 = vmatmul.mubr.bf16.gmra.mxu0 %v8673
      %v8917 = vpop.f32.mrf.mxu0
      %v8918 = vpop.f32.mrf.mxu0
      %v8919 = vpop.f32.mrf.mxu0
      %v8920 = vadd.f32 0.0, %v8919
      %v8921 = vpop.f32.mrf.mxu0
      %8922 = vmatprep.mubr.bf16.mxu0 0
      %8923 = vmatmul.mubr.bf16.gmra.mxu0 %v8676
      %v8924 = vpop.f32.mrf.mxu0
      %v8925 = vadd.f32 0.0, %v8924
      %v8926 = vpop.f32.mrf.mxu0
      %v8927 = vpop.f32.mrf.mxu0
      %v8928 = vpop.f32.mrf.mxu0
      %8929 = vmatprep.mubr.bf16.mxu0 0
      %8930 = vmatmul.mubr.bf16.gmra.mxu0 %v8679
      %v8931 = vpop.f32.mrf.mxu0
      %v8932 = vpop.f32.mrf.mxu0
      %v8933 = vpop.f32.mrf.mxu0
      %v8934 = vadd.f32 0.0, %v8933
      %v8935 = vpop.f32.mrf.mxu0
      %8936 = vmatprep.mubr.bf16.mxu0 0
      %8937 = vmatmul.mubr.bf16.gmra.mxu0 %v8682
      %v8938 = vpop.f32.mrf.mxu0
      %v8939 = vadd.f32 0.0, %v8938
      %v8940 = vpop.f32.mrf.mxu0
      %v8941 = vpop.f32.mrf.mxu0
      %v8942 = vpop.f32.mrf.mxu0
      %8943 = vdwg.mxu0
      %v8944 = vadd.f32 %v7367, %v8724
      %v8945 = vadd.f32 %v7372, %v8729
      %v8946 = vadd.f32 %v7381, %v8738
      %v8947 = vadd.f32 %v7386, %v8743
      %v8948 = vadd.f32 %v7395, %v8752
      %v8949 = vadd.f32 %v7400, %v8757
      %v8950 = vadd.f32 %v7409, %v8766
      %v8951 = vadd.f32 %v7414, %v8771
      %v8952 = vadd.f32 %v7423, %v8780
      %v8953 = vadd.f32 %v7428, %v8785
      %v8954 = vadd.f32 %v7437, %v8794
      %v8955 = vadd.f32 %v7442, %v8799
      %v8956 = vadd.f32 %v7451, %v8808
      %v8957 = vadd.f32 %v7456, %v8813
      %v8958 = vadd.f32 %v7465, %v8822
      %v8959 = vadd.f32 %v7470, %v8827
      %v8960 = vadd.f32 %v7479, %v8836
      %v8961 = vadd.f32 %v7484, %v8841
      %v8962 = vadd.f32 %v7493, %v8850
      %v8963 = vadd.f32 %v7498, %v8855
      %v8964 = vadd.f32 %v7507, %v8864
      %v8965 = vadd.f32 %v7512, %v8869
      %v8966 = vadd.f32 %v7521, %v8878
      %v8967 = vadd.f32 %v7526, %v8883
      %v8968 = vadd.f32 %v7535, %v8892
      %v8969 = vadd.f32 %v7540, %v8897
      %v8970 = vadd.f32 %v7549, %v8906
      %v8971 = vadd.f32 %v7554, %v8911
      %v8972 = vadd.f32 %v7563, %v8920
      %v8973 = vadd.f32 %v7568, %v8925
      %v8974 = vadd.f32 %v7577, %v8934
      %v8975 = vadd.f32 %v7582, %v8939
      %s8976 = scalar_lea.vmem %s4, %s21
      %v8977 = vld [vmem:[%s8976] sm:$0x1]
      %v8979 = vlaneseq
      %v8980 = vshrl.u32 %v8979, 7
      %v8981 = vsub.s32 0, %v8980
      %v8982 = vrot.slane %v8977, %v8981
      %v8984 = vadd.f32 %v8944, %v8982
      %v8985 = vadd.f32 %v8945, %v8982
      %v8986 = vadd.f32 %v8946, %v8982
      %v8987 = vadd.f32 %v8947, %v8982
      %v8988 = vadd.f32 %v8948, %v8982
      %v8989 = vadd.f32 %v8949, %v8982
      %v8990 = vadd.f32 %v8950, %v8982
      %v8991 = vadd.f32 %v8951, %v8982
      %v8992 = vadd.f32 %v8952, %v8982
      %v8993 = vadd.f32 %v8953, %v8982
      %v8994 = vadd.f32 %v8954, %v8982
      %v8995 = vadd.f32 %v8955, %v8982
      %v8996 = vadd.f32 %v8956, %v8982
      %v8997 = vadd.f32 %v8957, %v8982
      %v8998 = vadd.f32 %v8958, %v8982
      %v8999 = vadd.f32 %v8959, %v8982
      %v9000 = vadd.f32 %v8960, %v8982
      %v9001 = vadd.f32 %v8961, %v8982
      %v9002 = vadd.f32 %v8962, %v8982
      %v9003 = vadd.f32 %v8963, %v8982
      %v9004 = vadd.f32 %v8964, %v8982
      %v9005 = vadd.f32 %v8965, %v8982
      %v9006 = vadd.f32 %v8966, %v8982
      %v9007 = vadd.f32 %v8967, %v8982
      %v9008 = vadd.f32 %v8968, %v8982
      %v9009 = vadd.f32 %v8969, %v8982
      %v9010 = vadd.f32 %v8970, %v8982
      %v9011 = vadd.f32 %v8971, %v8982
      %v9012 = vadd.f32 %v8972, %v8982
      %v9013 = vadd.f32 %v8973, %v8982
      %v9014 = vadd.f32 %v8974, %v8982
      %v9015 = vadd.f32 %v8975, %v8982
      %v9016 = vsel %vm1249, %v8984, 0.0
      %v9017 = vsel %vm1249, %v8985, 0.0
      %v9018 = vadd.f32 %v9016, %v9017
      %v9019 = vsel %vm1249, %v8986, 0.0
      %v9020 = vadd.f32 %v9018, %v9019
      %v9021 = vsel %vm1249, %v8987, 0.0
      %v9022 = vadd.f32 %v9020, %v9021
      %v9023 = vsel %vm1249, %v8988, 0.0
      %v9024 = vadd.f32 %v9022, %v9023
      %v9025 = vsel %vm1249, %v8989, 0.0
      %v9026 = vadd.f32 %v9024, %v9025
      %v9027 = vsel %vm1249, %v8990, 0.0
      %v9028 = vadd.f32 %v9026, %v9027
      %v9029 = vsel %vm1249, %v8991, 0.0
      %v9030 = vadd.f32 %v9028, %v9029
      %v9031 = vsel %vm1249, %v8992, 0.0
      %v9032 = vadd.f32 %v9030, %v9031
      %v9033 = vsel %vm1249, %v8993, 0.0
      %v9034 = vadd.f32 %v9032, %v9033
      %v9035 = vsel %vm1249, %v8994, 0.0
      %v9036 = vadd.f32 %v9034, %v9035
      %v9037 = vsel %vm1249, %v8995, 0.0
      %v9038 = vadd.f32 %v9036, %v9037
      %v9039 = vsel %vm1249, %v8996, 0.0
      %v9040 = vadd.f32 %v9038, %v9039
      %v9041 = vsel %vm1249, %v8997, 0.0
      %v9042 = vadd.f32 %v9040, %v9041
      %v9043 = vsel %vm1249, %v8998, 0.0
      %v9044 = vadd.f32 %v9042, %v9043
      %v9045 = vsel %vm1249, %v8999, 0.0
      %v9046 = vadd.f32 %v9044, %v9045
      %v9047 = vsel %vm1249, %v9000, 0.0
      %v9048 = vadd.f32 %v9046, %v9047
      %v9049 = vsel %vm1249, %v9001, 0.0
      %v9050 = vadd.f32 %v9048, %v9049
      %v9051 = vsel %vm1249, %v9002, 0.0
      %v9052 = vadd.f32 %v9050, %v9051
      %v9053 = vsel %vm1249, %v9003, 0.0
      %v9054 = vadd.f32 %v9052, %v9053
      %v9055 = vsel %vm1249, %v9004, 0.0
      %v9056 = vadd.f32 %v9054, %v9055
      %v9057 = vsel %vm1249, %v9005, 0.0
      %v9058 = vadd.f32 %v9056, %v9057
      %v9059 = vsel %vm1249, %v9006, 0.0
      %v9060 = vadd.f32 %v9058, %v9059
      %v9061 = vsel %vm1249, %v9007, 0.0
      %v9062 = vadd.f32 %v9060, %v9061
      %v9063 = vsel %vm1249, %v9008, 0.0
      %v9064 = vadd.f32 %v9062, %v9063
      %v9065 = vsel %vm1249, %v9009, 0.0
      %v9066 = vadd.f32 %v9064, %v9065
      %v9067 = vsel %vm1249, %v9010, 0.0
      %v9068 = vadd.f32 %v9066, %v9067
      %v9069 = vsel %vm1249, %v9011, 0.0
      %v9070 = vadd.f32 %v9068, %v9069
      %v9071 = vsel %vm1249, %v9012, 0.0
      %v9072 = vadd.f32 %v9070, %v9071
      %v9073 = vsel %vm1249, %v9013, 0.0
      %v9074 = vadd.f32 %v9072, %v9073
      %v9075 = vsel %vm1249, %v9014, 0.0
      %v9076 = vadd.f32 %v9074, %v9075
      %v9077 = vsel %vm1249, %v9015, 0.0
      %v9078 = vadd.f32 %v9076, %v9077
      %v9079 = vrot.slane %v9078, 4
      %v9080 = vadd.f32 %v9078, %v9079
      %v9081 = vrot.slane %v9080, 2
      %v9082 = vadd.f32 %v9080, %v9081
      %v9083 = vrot.slane %v9082, 1
      %v9084 = vadd.f32 %v9082, %v9083
      %v9085 = vmul.f32 %v8984, %v8984
      %v9086 = vmul.f32 %v8985, %v8985
      %v9087 = vmul.f32 %v8986, %v8986
      %v9088 = vmul.f32 %v8987, %v8987
      %v9089 = vmul.f32 %v8988, %v8988
      %v9090 = vmul.f32 %v8989, %v8989
      %v9091 = vmul.f32 %v8990, %v8990
      %v9092 = vmul.f32 %v8991, %v8991
      %v9093 = vmul.f32 %v8992, %v8992
      %v9094 = vmul.f32 %v8993, %v8993
      %v9095 = vmul.f32 %v8994, %v8994
      %v9096 = vmul.f32 %v8995, %v8995
      %v9097 = vmul.f32 %v8996, %v8996
      %v9098 = vmul.f32 %v8997, %v8997
      %v9099 = vmul.f32 %v8998, %v8998
      %v9100 = vmul.f32 %v8999, %v8999
      %v9101 = vmul.f32 %v9000, %v9000
      %v9102 = vmul.f32 %v9001, %v9001
      %v9103 = vmul.f32 %v9002, %v9002
      %v9104 = vmul.f32 %v9003, %v9003
      %v9105 = vmul.f32 %v9004, %v9004
      %v9106 = vmul.f32 %v9005, %v9005
      %v9107 = vmul.f32 %v9006, %v9006
      %v9108 = vmul.f32 %v9007, %v9007
      %v9109 = vmul.f32 %v9008, %v9008
      %v9110 = vmul.f32 %v9009, %v9009
      %v9111 = vmul.f32 %v9010, %v9010
      %v9112 = vmul.f32 %v9011, %v9011
      %v9113 = vmul.f32 %v9012, %v9012
      %v9114 = vmul.f32 %v9013, %v9013
      %v9115 = vmul.f32 %v9014, %v9014
      %v9116 = vmul.f32 %v9015, %v9015
      %v9117 = vsel %vm1249, %v9085, 0.0
      %v9118 = vsel %vm1249, %v9086, 0.0
      %v9119 = vadd.f32 %v9117, %v9118
      %v9120 = vsel %vm1249, %v9087, 0.0
      %v9121 = vadd.f32 %v9119, %v9120
      %v9122 = vsel %vm1249, %v9088, 0.0
      %v9123 = vadd.f32 %v9121, %v9122
      %v9124 = vsel %vm1249, %v9089, 0.0
      %v9125 = vadd.f32 %v9123, %v9124
      %v9126 = vsel %vm1249, %v9090, 0.0
      %v9127 = vadd.f32 %v9125, %v9126
      %v9128 = vsel %vm1249, %v9091, 0.0
      %v9129 = vadd.f32 %v9127, %v9128
      %v9130 = vsel %vm1249, %v9092, 0.0
      %v9131 = vadd.f32 %v9129, %v9130
      %v9132 = vsel %vm1249, %v9093, 0.0
      %v9133 = vadd.f32 %v9131, %v9132
      %v9134 = vsel %vm1249, %v9094, 0.0
      %v9135 = vadd.f32 %v9133, %v9134
      %v9136 = vsel %vm1249, %v9095, 0.0
      %v9137 = vadd.f32 %v9135, %v9136
      %v9138 = vsel %vm1249, %v9096, 0.0
      %v9139 = vadd.f32 %v9137, %v9138
      %v9140 = vsel %vm1249, %v9097, 0.0
      %v9141 = vadd.f32 %v9139, %v9140
      %v9142 = vsel %vm1249, %v9098, 0.0
      %v9143 = vadd.f32 %v9141, %v9142
      %v9144 = vsel %vm1249, %v9099, 0.0
      %v9145 = vadd.f32 %v9143, %v9144
      %v9146 = vsel %vm1249, %v9100, 0.0
      %v9147 = vadd.f32 %v9145, %v9146
      %v9148 = vsel %vm1249, %v9101, 0.0
      %v9149 = vadd.f32 %v9147, %v9148
      %v9150 = vsel %vm1249, %v9102, 0.0
      %v9151 = vadd.f32 %v9149, %v9150
      %v9152 = vsel %vm1249, %v9103, 0.0
      %v9153 = vadd.f32 %v9151, %v9152
      %v9154 = vsel %vm1249, %v9104, 0.0
      %v9155 = vadd.f32 %v9153, %v9154
      %v9156 = vsel %vm1249, %v9105, 0.0
      %v9157 = vadd.f32 %v9155, %v9156
      %v9158 = vsel %vm1249, %v9106, 0.0
      %v9159 = vadd.f32 %v9157, %v9158
      %v9160 = vsel %vm1249, %v9107, 0.0
      %v9161 = vadd.f32 %v9159, %v9160
      %v9162 = vsel %vm1249, %v9108, 0.0
      %v9163 = vadd.f32 %v9161, %v9162
      %v9164 = vsel %vm1249, %v9109, 0.0
      %v9165 = vadd.f32 %v9163, %v9164
      %v9166 = vsel %vm1249, %v9110, 0.0
      %v9167 = vadd.f32 %v9165, %v9166
      %v9168 = vsel %vm1249, %v9111, 0.0
      %v9169 = vadd.f32 %v9167, %v9168
      %v9170 = vsel %vm1249, %v9112, 0.0
      %v9171 = vadd.f32 %v9169, %v9170
      %v9172 = vsel %vm1249, %v9113, 0.0
      %v9173 = vadd.f32 %v9171, %v9172
      %v9174 = vsel %vm1249, %v9114, 0.0
      %v9175 = vadd.f32 %v9173, %v9174
      %v9176 = vsel %vm1249, %v9115, 0.0
      %v9177 = vadd.f32 %v9175, %v9176
      %v9178 = vsel %vm1249, %v9116, 0.0
      %v9179 = vadd.f32 %v9177, %v9178
      %v9180 = vrot.slane %v9179, 4
      %v9181 = vadd.f32 %v9179, %v9180
      %v9182 = vrot.slane %v9181, 2
      %v9183 = vadd.f32 %v9181, %v9182
      %v9184 = vrot.slane %v9183, 1
      %v9185 = vadd.f32 %v9183, %v9184
      %v9186 = vmul.f32 %v9084, 0.00390625
      %v9187 = vmul.f32 %v9185, 0.00390625
      %v9188 = vmul.f32 %v9186, %v9186
      %v9189 = vsub.f32 %v9187, %v9188
      %v9190 = vmax.f32 %v9189, 0.0
      %v9191 = vsub.f32 %v8984, %v9186
      %v9192 = vsub.f32 %v8985, %v9186
      %v9193 = vsub.f32 %v8986, %v9186
      %v9194 = vsub.f32 %v8987, %v9186
      %v9195 = vsub.f32 %v8988, %v9186
      %v9196 = vsub.f32 %v8989, %v9186
      %v9197 = vsub.f32 %v8990, %v9186
      %v9198 = vsub.f32 %v8991, %v9186
      %v9199 = vsub.f32 %v8992, %v9186
      %v9200 = vsub.f32 %v8993, %v9186
      %v9201 = vsub.f32 %v8994, %v9186
      %v9202 = vsub.f32 %v8995, %v9186
      %v9203 = vsub.f32 %v8996, %v9186
      %v9204 = vsub.f32 %v8997, %v9186
      %v9205 = vsub.f32 %v8998, %v9186
      %v9206 = vsub.f32 %v8999, %v9186
      %v9207 = vsub.f32 %v9000, %v9186
      %v9208 = vsub.f32 %v9001, %v9186
      %v9209 = vsub.f32 %v9002, %v9186
      %v9210 = vsub.f32 %v9003, %v9186
      %v9211 = vsub.f32 %v9004, %v9186
      %v9212 = vsub.f32 %v9005, %v9186
      %v9213 = vsub.f32 %v9006, %v9186
      %v9214 = vsub.f32 %v9007, %v9186
      %v9215 = vsub.f32 %v9008, %v9186
      %v9216 = vsub.f32 %v9009, %v9186
      %v9217 = vsub.f32 %v9010, %v9186
      %v9218 = vsub.f32 %v9011, %v9186
      %v9219 = vsub.f32 %v9012, %v9186
      %v9220 = vsub.f32 %v9013, %v9186
      %v9221 = vsub.f32 %v9014, %v9186
      %v9222 = vsub.f32 %v9015, %v9186
      %v9223 = vadd.f32 %v9190, 1e-05
      %v9224 = vrsqrt.pop %v9223
      %v9225 = vmul.f32 %v9191, %v9224
      %v9226 = vmul.f32 %v9192, %v9224
      %v9227 = vmul.f32 %v9193, %v9224
      %v9228 = vmul.f32 %v9194, %v9224
      %v9229 = vmul.f32 %v9195, %v9224
      %v9230 = vmul.f32 %v9196, %v9224
      %v9231 = vmul.f32 %v9197, %v9224
      %v9232 = vmul.f32 %v9198, %v9224
      %v9233 = vmul.f32 %v9199, %v9224
      %v9234 = vmul.f32 %v9200, %v9224
      %v9235 = vmul.f32 %v9201, %v9224
      %v9236 = vmul.f32 %v9202, %v9224
      %v9237 = vmul.f32 %v9203, %v9224
      %v9238 = vmul.f32 %v9204, %v9224
      %v9239 = vmul.f32 %v9205, %v9224
      %v9240 = vmul.f32 %v9206, %v9224
      %v9241 = vmul.f32 %v9207, %v9224
      %v9242 = vmul.f32 %v9208, %v9224
      %v9243 = vmul.f32 %v9209, %v9224
      %v9244 = vmul.f32 %v9210, %v9224
      %v9245 = vmul.f32 %v9211, %v9224
      %v9246 = vmul.f32 %v9212, %v9224
      %v9247 = vmul.f32 %v9213, %v9224
      %v9248 = vmul.f32 %v9214, %v9224
      %v9249 = vmul.f32 %v9215, %v9224
      %v9250 = vmul.f32 %v9216, %v9224
      %v9251 = vmul.f32 %v9217, %v9224
      %v9252 = vmul.f32 %v9218, %v9224
      %v9253 = vmul.f32 %v9219, %v9224
      %v9254 = vmul.f32 %v9220, %v9224
      %v9255 = vmul.f32 %v9221, %v9224
      %v9256 = vmul.f32 %v9222, %v9224
      %v9257 = vadd.f32 %v9225, %v381
      %v9258 = vadd.f32 %v9226, %v382
      %v9259 = vadd.f32 %v9227, %v383
      %v9260 = vadd.f32 %v9228, %v384
      %v9261 = vadd.f32 %v9229, %v385
      %v9262 = vadd.f32 %v9230, %v386
      %v9263 = vadd.f32 %v9231, %v387
      %v9264 = vadd.f32 %v9232, %v388
      %v9265 = vadd.f32 %v9233, %v389
      %v9266 = vadd.f32 %v9234, %v390
      %v9267 = vadd.f32 %v9235, %v391
      %v9268 = vadd.f32 %v9236, %v392
      %v9269 = vadd.f32 %v9237, %v393
      %v9270 = vadd.f32 %v9238, %v394
      %v9271 = vadd.f32 %v9239, %v395
      %v9272 = vadd.f32 %v9240, %v396
      %v9273 = vadd.f32 %v9241, %v397
      %v9274 = vadd.f32 %v9242, %v398
      %v9275 = vadd.f32 %v9243, %v399
      %v9276 = vadd.f32 %v9244, %v400
      %v9277 = vadd.f32 %v9245, %v401
      %v9278 = vadd.f32 %v9246, %v402
      %v9279 = vadd.f32 %v9247, %v403
      %v9280 = vadd.f32 %v9248, %v404
      %v9281 = vadd.f32 %v9249, %v405
      %v9282 = vadd.f32 %v9250, %v406
      %v9283 = vadd.f32 %v9251, %v407
      %v9284 = vadd.f32 %v9252, %v408
      %v9285 = vadd.f32 %v9253, %v409
      %v9286 = vadd.f32 %v9254, %v410
      %v9287 = vadd.f32 %v9255, %v411
      %v9288 = vadd.f32 %v9256, %v412
      %9289 = vst.msk [vmem:[%s380 + $0x8] sm:$0xff] %vm1249, %v9257
      %9290 = vst.msk [vmem:[%s380 + $0x10] sm:$0xff] %vm1249, %v9258
      %9291 = vst.msk [vmem:[%s380 + $0x28] sm:$0xff] %vm1249, %v9259
      %9292 = vst.msk [vmem:[%s380 + $0x30] sm:$0xff] %vm1249, %v9260
      %9293 = vst.msk [vmem:[%s380 + $0x48] sm:$0xff] %vm1249, %v9261
      %9294 = vst.msk [vmem:[%s380 + $0x50] sm:$0xff] %vm1249, %v9262
      %9295 = vst.msk [vmem:[%s380 + $0x68] sm:$0xff] %vm1249, %v9263
      %9296 = vst.msk [vmem:[%s380 + $0x70] sm:$0xff] %vm1249, %v9264
      %9297 = vst.msk [vmem:[%s380 + $0x88] sm:$0xff] %vm1249, %v9265
      %9298 = vst.msk [vmem:[%s380 + $0x90] sm:$0xff] %vm1249, %v9266
      %9299 = vst.msk [vmem:[%s380 + $0xa8] sm:$0xff] %vm1249, %v9267
      %9300 = vst.msk [vmem:[%s380 + $0xb0] sm:$0xff] %vm1249, %v9268
      %9301 = vst.msk [vmem:[%s380 + $0xc8] sm:$0xff] %vm1249, %v9269
      %9302 = vst.msk [vmem:[%s380 + $0xd0] sm:$0xff] %vm1249, %v9270
      %9303 = vst.msk [vmem:[%s380 + $0xe8] sm:$0xff] %vm1249, %v9271
      %9304 = vst.msk [vmem:[%s380 + $0xf0] sm:$0xff] %vm1249, %v9272
      %9305 = vst.msk [vmem:[%s380 + $0x108] sm:$0xff] %vm1249, %v9273
      %9306 = vst.msk [vmem:[%s380 + $0x110] sm:$0xff] %vm1249, %v9274
      %9307 = vst.msk [vmem:[%s380 + $0x128] sm:$0xff] %vm1249, %v9275
      %9308 = vst.msk [vmem:[%s380 + $0x130] sm:$0xff] %vm1249, %v9276
      %9309 = vst.msk [vmem:[%s380 + $0x148] sm:$0xff] %vm1249, %v9277
      %9310 = vst.msk [vmem:[%s380 + $0x150] sm:$0xff] %vm1249, %v9278
      %9311 = vst.msk [vmem:[%s380 + $0x168] sm:$0xff] %vm1249, %v9279
      %9312 = vst.msk [vmem:[%s380 + $0x170] sm:$0xff] %vm1249, %v9280
      %9313 = vst.msk [vmem:[%s380 + $0x188] sm:$0xff] %vm1249, %v9281
      %9314 = vst.msk [vmem:[%s380 + $0x190] sm:$0xff] %vm1249, %v9282
      %9315 = vst.msk [vmem:[%s380 + $0x1a8] sm:$0xff] %vm1249, %v9283
      %9316 = vst.msk [vmem:[%s380 + $0x1b0] sm:$0xff] %vm1249, %v9284
      %9317 = vst.msk [vmem:[%s380 + $0x1c8] sm:$0xff] %vm1249, %v9285
      %9318 = vst.msk [vmem:[%s380 + $0x1d0] sm:$0xff] %vm1249, %v9286
      %9319 = vst.msk [vmem:[%s380 + $0x1e8] sm:$0xff] %vm1249, %v9287
      %9320 = vst.msk [vmem:[%s380 + $0x1f0] sm:$0xff] %vm1249, %v9288
      %p9321 = scmp.eq.s32.totalorder %s21, 1
      // Predicated region
      $region45: #{_lambda_.1} parent=39 // pred_check
        %p9322 = pneg %p9321
      $region46: #{_lambda_.1} parent=39 // pred_check_branch
        %9324 = sbr.rel (%p9322) target = $region48
      $region47: #{_lambda_.1} parent=39 // pred_region
        %9325 = vst.msk [vmem:[%s236] sm:$0xff] %vm1249, %v9257
        %9326 = vst.msk [vmem:[%s236 + $0x8] sm:$0xff] %vm1249, %v9258
        %9327 = vst.msk [vmem:[%s236 + $0x10] sm:$0xff] %vm1249, %v9259
        %9328 = vst.msk [vmem:[%s236 + $0x18] sm:$0xff] %vm1249, %v9260
        %9329 = vst.msk [vmem:[%s236 + $0x20] sm:$0xff] %vm1249, %v9261
        %9330 = vst.msk [vmem:[%s236 + $0x28] sm:$0xff] %vm1249, %v9262
        %9331 = vst.msk [vmem:[%s236 + $0x30] sm:$0xff] %vm1249, %v9263
        %9332 = vst.msk [vmem:[%s236 + $0x38] sm:$0xff] %vm1249, %v9264
        %9333 = vst.msk [vmem:[%s236 + $0x40] sm:$0xff] %vm1249, %v9265
        %9334 = vst.msk [vmem:[%s236 + $0x48] sm:$0xff] %vm1249, %v9266
        %9335 = vst.msk [vmem:[%s236 + $0x50] sm:$0xff] %vm1249, %v9267
        %9336 = vst.msk [vmem:[%s236 + $0x58] sm:$0xff] %vm1249, %v9268
        %9337 = vst.msk [vmem:[%s236 + $0x60] sm:$0xff] %vm1249, %v9269
        %9338 = vst.msk [vmem:[%s236 + $0x68] sm:$0xff] %vm1249, %v9270
        %9339 = vst.msk [vmem:[%s236 + $0x70] sm:$0xff] %vm1249, %v9271
        %9340 = vst.msk [vmem:[%s236 + $0x78] sm:$0xff] %vm1249, %v9272
        %9341 = vst.msk [vmem:[%s236 + $0x80] sm:$0xff] %vm1249, %v9273
        %9342 = vst.msk [vmem:[%s236 + $0x88] sm:$0xff] %vm1249, %v9274
        %9343 = vst.msk [vmem:[%s236 + $0x90] sm:$0xff] %vm1249, %v9275
        %9344 = vst.msk [vmem:[%s236 + $0x98] sm:$0xff] %vm1249, %v9276
        %9345 = vst.msk [vmem:[%s236 + $0xa0] sm:$0xff] %vm1249, %v9277
        %9346 = vst.msk [vmem:[%s236 + $0xa8] sm:$0xff] %vm1249, %v9278
        %9347 = vst.msk [vmem:[%s236 + $0xb0] sm:$0xff] %vm1249, %v9279
        %9348 = vst.msk [vmem:[%s236 + $0xb8] sm:$0xff] %vm1249, %v9280
        %9349 = vst.msk [vmem:[%s236 + $0xc0] sm:$0xff] %vm1249, %v9281
        %9350 = vst.msk [vmem:[%s236 + $0xc8] sm:$0xff] %vm1249, %v9282
        %9351 = vst.msk [vmem:[%s236 + $0xd0] sm:$0xff] %vm1249, %v9283
        %9352 = vst.msk [vmem:[%s236 + $0xd8] sm:$0xff] %vm1249, %v9284
        %9353 = vst.msk [vmem:[%s236 + $0xe0] sm:$0xff] %vm1249, %v9285
        %9354 = vst.msk [vmem:[%s236 + $0xe8] sm:$0xff] %vm1249, %v9286
        %9355 = vst.msk [vmem:[%s236 + $0xf0] sm:$0xff] %vm1249, %v9287
        %9356 = vst.msk [vmem:[%s236 + $0xf8] sm:$0xff] %vm1249, %v9288
      $region48: #{_lambda_.1} parent=39 // pred_fallthru
        _
      %p9357 = scmp.lt.s32.totalorder %s20, 1
      %s9358 = scalar_select %p9357, %s20, 1
      %s9359 = smul.addr %s9358, 32
      %s9360 = smul.addr %s9359, 8
      %s9361 = scalar_lea.vmem %s5, %s9360
      // Predicated region
      $region49: #{_lambda_.1} parent=39 // pred_check
        %p9362 = pneg %p156
      $region50: #{_lambda_.1} parent=39 // pred_check_branch
        %9364 = sbr.rel (%p9362) target = $region52
      $region51: #{_lambda_.1} parent=39 // pred_region
        _
      $region52: #{_lambda_.1} parent=39 // pred_fallthru
        _
    $region40: #{_lambda_.1} parent=5 // pred_fallthru
      _
    %p9365 = scmp.le.s32.totalorder 2, %s11
    // Predicated region
    $region53: #{_lambda_.1} parent=5 // pred_check
      %p9366 = pneg %p9365
    $region54: #{_lambda_.1} parent=5 // pred_check_branch
      %9368 = sbr.rel (%p9366) target = $region56
    $region55: #{_lambda_.1} parent=5 // pred_region
      %s9369 = ssub.s32 %s11, 2
      // Predicated region
      $region57: #{_lambda_.1} parent=55 // pred_check
        %p9370 = pneg %p162
      $region58: #{_lambda_.1} parent=55 // pred_check_branch
        %9372 = sbr.rel (%p9370) target = $region60
      $region59: #{_lambda_.1} parent=55 // pred_region
        %p9373 = scmp.lt.s32.totalorder %s22, 1
        %s9374 = scalar_select %p9373, %s22, 1
        %s9375 = smul.addr %s9374, 32
        %s9376 = smul.addr %s9375, 8
        %s9377 = scalar_lea.vmem %s5, %s9376
      $region60: #{_lambda_.1} parent=55 // pred_fallthru
        _
    $region56: #{_lambda_.1} parent=5 // pred_fallthru
      _
  $region6: #{_lambda_.1} parent=0 // loop_footer
    %s15 = sadd.s32 1, %s11
  $region7: #{_lambda_.1} parent=0 // loop_footer_branch
    %10 = sbr.rel target = $region3
  $region8: #{_lambda_.1} parent=0 // loop_exit
    _

</llo_original>
